<compile_context>
chip_gen: v7x
topology: tpu7x:2x2x1
jax: 0.10.0
libtpu: 0.0.40
codegen_flags: <defaults>
</compile_context>

<pallas_src>
import functools

import numpy as np
import jax
import jax.numpy as jnp
from jax.experimental import pallas as pl
from jax.experimental.pallas import tpu as pltpu


def _round_up(x, m):
    return ((x + m - 1) // m) * m


def _dims(img_hw, batch):
    """Static geometry for the fused kernel (SimpleCNN: 8/4, 4/2, 3/1 convs)."""
    assert img_hw % 4 == 0
    N = batch
    H1 = img_hw // 4                       # space-to-depth(4) grid -> conv1 is 2x2 s1
    c1 = H1 - 1                            # conv1 output hw == (img-8)//4 + 1
    c2 = (c1 - 4) // 2 + 1                 # conv2 output hw
    G2 = c2 + 1                            # space-to-depth(2) grid -> conv2 is 2x2 s1
    c3 = c2 - 2                            # conv3 (3x3 s1) output hw
    assert 2 * G2 <= c1 and G2 >= 3 and c3 >= 1
    M1 = H1 * H1 * N                       # conv1 dense columns, order (h, w, n)
    M1P = _round_up(M1 + (H1 + 1) * N, 128)          # + room for 2x2 flat shifts
    M3 = _round_up(((c3 - 1) * G2 + (c3 - 1)) * N + N, 16)   # conv3 cols the fc needs
    M2d = (2 * G2 + 2) * N + M3                      # conv2 cols conv3 needs
    M2P = _round_up(max((G2 + 1) * N + M2d, G2 * G2 * N), 128)
    return dict(N=N, H1=H1, c1=c1, c2=c2, c3=c3, G2=G2,
                M1=M1, M1P=M1P, M2d=M2d, M2P=M2P, M3=M3)


# ----------------------------------------------------------------------------
# Parameter init (deterministic, synthetic, torch layouts).
# ----------------------------------------------------------------------------
def init_params(key, *, img_hw, n_rgb, hidden, goal_dim, n_actions):
    def cdim(d, k, s):
        return (d - k) // s + 1

    oh = cdim(cdim(cdim(img_hw, 8, 4), 4, 2), 3, 1)
    flat = 32 * oh * oh
    rnn_in = hidden + goal_dim
    ks = jax.random.split(key, 8)
    s = 0.05
    return {
        "conv1_w": jax.random.normal(ks[0], (32, n_rgb, 8, 8), jnp.float32) * s,
        "conv1_b": jnp.zeros((32,), jnp.float32),
        "conv2_w": jax.random.normal(ks[1], (64, 32, 4, 4), jnp.float32) * s,
        "conv2_b": jnp.zeros((64,), jnp.float32),
        "conv3_w": jax.random.normal(ks[2], (32, 64, 3, 3), jnp.float32) * s,
        "conv3_b": jnp.zeros((32,), jnp.float32),
        "cnn_fc_w": jax.random.normal(ks[3], (hidden, flat), jnp.float32) * s,
        "cnn_fc_b": jnp.zeros((hidden,), jnp.float32),
        "gru_w_ih": jax.random.normal(ks[4], (3 * hidden, rnn_in), jnp.float32) * s,
        "gru_w_hh": jax.random.normal(ks[5], (3 * hidden, hidden), jnp.float32) * s,
        "gru_b_ih": jnp.zeros((3 * hidden,), jnp.float32),
        "gru_b_hh": jnp.zeros((3 * hidden,), jnp.float32),
        # final head: hidden -> action_space.n - 1 (orthogonal in torch; normal here)
        "lin_w": jax.random.normal(ks[6], (n_actions - 1, hidden), jnp.float32) * 0.01,
        "lin_b": jnp.zeros((n_actions - 1,), jnp.float32),
    }


def prepare_params(p, *, hidden, img_hw, batch):
    """One-time rearrangement of all weights into kernel-ready, bf16 blocks."""
    d = _dims(img_hw, batch)
    H = hidden
    N, H1, G2, c3 = d["N"], d["H1"], d["G2"], d["c3"]

    # conv1: space-to-depth(4) -> 4 blocks [32, Cin*16] for 2x2 kernel offsets.
    # Channel order of the s2d input is (c, ir, jr); /255 is folded into the weights.
    c_in = p["conv1_w"].shape[1]
    w1 = p["conv1_w"].reshape(32, c_in, 2, 4, 2, 4)       # [co, c, i, ir, j, jr]
    w1 = w1.transpose(2, 4, 0, 1, 3, 5).reshape(4, 32, c_in * 16)
    w1 = (w1 * (1.0 / 255.0)).astype(jnp.bfloat16)

    # conv2: space-to-depth(2) -> 16 blocks [64, 32] indexed by (parity p, offset kk).
    w2 = p["conv2_w"].reshape(64, 32, 2, 2, 2, 2)         # [co, c1, ib, ir, jb, jr]
    w2 = w2.transpose(3, 5, 2, 4, 0, 1).reshape(16, 64, 32).astype(jnp.bfloat16)

    # conv3: 9 blocks [32, 64] for the 3x3 offsets.
    w3 = p["conv3_w"].transpose(2, 3, 0, 1).reshape(9, 32, 64).astype(jnp.bfloat16)

    # cnn_fc: one [H, 32] block per conv3 output pixel (h3, w3).
    fcw = p["cnn_fc_w"].reshape(H, 32, c3, c3)
    fcw = fcw.transpose(2, 3, 0, 1).reshape(c3 * c3, H, 32).astype(jnp.bfloat16)

    # Constant 0/1 space-to-depth(2) selection matrices (conv1 dense grid -> conv2 grid).
    sel = np.zeros((4, d["M1"], d["M2P"]), np.float32)
    for ir in range(2):
        for jr in range(2):
            pp = ir * 2 + jr
            for h2 in range(G2):
                for w2i in range(G2):
                    for n in range(N):
                        src = ((2 * h2 + ir) * H1 + (2 * w2i + jr)) * N + n
                        dst = (h2 * G2 + w2i) * N + n
                        sel[pp, src, dst] = 1.0
    sel = jnp.asarray(sel, jnp.bfloat16)

    return {
        "w1": w1, "b1": p["conv1_b"].reshape(-1, 1).astype(jnp.float32),
        "sel": sel,
        "w2": w2, "b2": p["conv2_b"].reshape(-1, 1).astype(jnp.float32),
        "w3": w3, "b3": p["conv3_b"].reshape(-1, 1).astype(jnp.float32),
        "fcw": fcw, "fcb": p["cnn_fc_b"].reshape(-1, 1).astype(jnp.float32),
        "wihf": p["gru_w_ih"][:, :H].astype(jnp.bfloat16),     # [3H, H]
        "wihg": p["gru_w_ih"][:, H:].astype(jnp.bfloat16),     # [3H, G]
        "bih": p["gru_b_ih"].reshape(-1, 1).astype(jnp.float32),
        "whh": p["gru_w_hh"].astype(jnp.bfloat16),             # [3H, H]
        "bhh": p["gru_b_hh"].reshape(-1, 1).astype(jnp.float32),
        "linw": p["lin_w"].astype(jnp.bfloat16),               # [A-1, H]
        "linb": p["lin_b"].reshape(-1, 1).astype(jnp.float32),
    }


# ----------------------------------------------------------------------------
# The single fused Pallas kernel.
# Activations are channel-major 2-D matrices [C, (h*W + w)*N + n].
# ----------------------------------------------------------------------------
def _fused_forward_kernel(x1_ref, goal_ref, h0_ref,
                          w1_ref, b1_ref, sel_ref, w2_ref, b2_ref,
                          w3_ref, b3_ref, fcw_ref, fcb_ref,
                          wihf_ref, wihg_ref, bih_ref, whh_ref, bhh_ref,
                          linw_ref, linb_ref,
                          probs_ref, act_ref, hT_ref, rnn_s,
                          *, dims, hidden, seq_len):
    N, H1, G2, c3 = dims["N"], dims["H1"], dims["G2"], dims["c3"]
    M1, M2d, M3 = dims["M1"], dims["M2d"], dims["M3"]
    H = hidden
    f32 = jnp.float32

    # ---- conv1: s2d(4) input, 2x2 kernel, stride 1, dense over the H1 x H1 grid ----
    acc = None
    for k in range(4):
        i, j = k // 2, k % 2
        off = (i * H1 + j) * N
        dk = jnp.dot(w1_ref[k], x1_ref[:, off:off + M1], preferred_element_type=f32)
        acc = dk if acc is None else acc + dk
    out1 = jnp.maximum(acc + b1_ref[...], 0.0).astype(jnp.bfloat16)       # [32, M1]

    # ---- space-to-depth(2) between conv1 and conv2 (exact 0/1 selection matmuls) ----
    in2 = [jnp.dot(out1, sel_ref[pp], preferred_element_type=f32).astype(jnp.bfloat16)
           for pp in range(4)]                                            # 4 x [32, M2P]

    # ---- conv2: 2x2 kernel, stride 1 over the G2 x G2 grid ----
    acc = None
    for pp in range(4):
        for kk in range(4):
            ib, jb = kk // 2, kk % 2
            off = (ib * G2 + jb) * N
            dk = jnp.dot(w2_ref[pp * 4 + kk], in2[pp][:, off:off + M2d],
                         preferred_element_type=f32)
            acc = dk if acc is None else acc + dk
    out2 = jnp.maximum(acc + b2_ref[...], 0.0).astype(jnp.bfloat16)       # [64, M2d]

    # ---- conv3: 3x3 kernel, stride 1 (no ReLU, matches SimpleCNN) ----
    acc = None
    for kk in range(9):
        ky, kx = kk // 3, kk % 3
        off = (ky * G2 + kx) * N
        dk = jnp.dot(w3_ref[kk], out2[:, off:off + M3], preferred_element_type=f32)
        acc = dk if acc is None else acc + dk
    out3 = (acc + b3_ref[...]).astype(jnp.bfloat16)                       # [32, M3]

    # ---- flatten + cnn_fc(+ReLU), feature-major: feat [H, N] ----
    acc = None
    for kk in range(c3 * c3):
        hh3, ww3 = kk // c3, kk % c3
        off = (hh3 * G2 + ww3) * N
        dk = jnp.dot(fcw_ref[kk], out3[:, off:off + N], preferred_element_type=f32)
        acc = dk if acc is None else acc + dk
    feat = jnp.maximum(acc + fcb_ref[...], 0.0).astype(jnp.bfloat16)      # [H, N]

    # ---- goal concat + GRU input projection (hoisted out of the recurrence) ----
    gi = (jnp.dot(wihf_ref[...], feat, preferred_element_type=f32)
          + jnp.dot(wihg_ref[...], goal_ref[...], preferred_element_type=f32)
          + bih_ref[...])                                                 # [3H, N]

    # ---- GRU recurrence (torch gate order r,z,n), unrolled over batch x time ----
    T = seq_len
    B = N // T
    bhh = bhh_ref[...]
    for b in range(B):
        h_col = h0_ref[:, b:b + 1]                                        # [H, 1] f32
        for t in range(T):
            nidx = b * T + t                                              # batch-major
            gh = jnp.dot(whh_ref[...], h_col.astype(jnp.bfloat16),
                         preferred_element_type=f32) + bhh                # [3H, 1]
            gic = gi[:, nidx:nidx + 1]
            r = jax.nn.sigmoid(gic[0:H] + gh[0:H])
            z = jax.nn.sigmoid(gic[H:2 * H] + gh[H:2 * H])
            ng = jnp.tanh(gic[2 * H:3 * H] + r * gh[2 * H:3 * H])
            h_col = (1.0 - z) * ng + z * h_col
            rnn_s[:, nidx:nidx + 1] = h_col
        hT_ref[:, b:b + 1] = h_col

    # ---- action head: linear + first-argmax(+1), fused ----
    logits = (jnp.dot(linw_ref[...], rnn_s[...].astype(jnp.bfloat16),
                      preferred_element_type=f32) + linb_ref[...])        # [A-1, N]
    probs_ref[...] = logits
    a1 = logits.shape[0]
    best_val = logits[0:1, :]
    best_idx = jnp.zeros((1, N), jnp.int32)
    for row in range(1, a1):
        v = logits[row:row + 1, :]
        take = v > best_val                   # strict ">" keeps the first max on ties
        best_val = jnp.where(take, v, best_val)
        best_idx = jnp.where(take, row, best_idx)
    act_ref[...] = best_idx + 1


def _full_spec(shape):
    r = len(shape)
    return pl.BlockSpec(shape, lambda i, _r=r: (0,) * _r)


# ----------------------------------------------------------------------------
# Forward pass: one pallas_call + a handful of tiny layout ops in the wrapper.
# ----------------------------------------------------------------------------
def model1_forward(kp, observations, rnn_hidden, seq_len, hidden):
    rgb = observations["rgb"]                               # [N, IMG, IMG, C], raw 0..255
    N, img_hw, _, C = rgb.shape
    assert N % seq_len == 0
    d = _dims(img_hw, N)
    H1, M1, M1P = d["H1"], d["M1"], d["M1P"]
    B = N // seq_len

    # Space-to-depth(4) of the raw image (single cheap XLA transpose on 48 KB),
    # channel order (c, ir, jr), column order (h, w, n); /255 folded into w1.
    x = rgb.astype(jnp.bfloat16).transpose(3, 1, 2, 0)                    # [C, H, W, N]
    x = x.reshape(C, H1, 4, H1, 4, N).transpose(0, 2, 4, 1, 3, 5)
    x = x.reshape(C * 16, M1)
    x1p = jnp.pad(x, ((0, 0), (0, M1P - M1)))

    goal_t = observations["pointgoal"].astype(jnp.bfloat16).T             # [G, N]
    h0 = rnn_hidden if rnn_hidden is not None else jnp.zeros((B, hidden), jnp.float32)
    h0_t = h0.astype(jnp.float32).T                                       # [H, B]

    A1 = kp["linw"].shape[0]
    args = (x1p, goal_t, h0_t,
            kp["w1"], kp["b1"], kp["sel"], kp["w2"], kp["b2"],
            kp["w3"], kp["b3"], kp["fcw"], kp["fcb"],
            kp["wihf"], kp["wihg"], kp["bih"], kp["whh"], kp["bhh"],
            kp["linw"], kp["linb"])

    probs_t, act, hT_t = pl.pallas_call(
        functools.partial(_fused_forward_kernel, dims=d, hidden=hidden, seq_len=seq_len),
        out_shape=(jax.ShapeDtypeStruct((A1, N), jnp.float32),
                   jax.ShapeDtypeStruct((1, N), jnp.int32),
                   jax.ShapeDtypeStruct((hidden, B), jnp.float32)),
        grid=(1,),
        in_specs=[_full_spec(a.shape) for a in args],
        out_specs=(_full_spec((A1, N)), _full_spec((1, N)), _full_spec((hidden, B))),
        scratch_shapes=[pltpu.VMEM((hidden, N), jnp.float32)],
        compiler_params=pltpu.CompilerParams(dimension_semantics=("arbitrary",)),
    )(*args)

    action = act[0]                                  # [N] int32
    # TODO(synk): epsilon-greedy random-action branch (host-side np.random) is
    # non-deterministic host logic and is not implemented in the kernel.
    return action, hT_t.T, probs_t.T


if __name__ == "__main__":
    key = jax.random.PRNGKey(0)
    k_p, k_rgb, k_goal, k_h = jax.random.split(key, 4)

    # small shapes: 4 observations, 64x64 RGB, goal dim 2, hidden 32, 4 actions, seq 2
    N, IMG, HIDDEN, GOAL, N_ACT, SEQ_LEN = 4, 64, 32, 2, 4, 2

    params = init_params(k_p, img_hw=IMG, n_rgb=3, hidden=HIDDEN,
                         goal_dim=GOAL, n_actions=N_ACT)
    kparams = prepare_params(params, hidden=HIDDEN, img_hw=IMG, batch=N)

    observations = {
        "rgb": jax.random.uniform(k_rgb, (N, IMG, IMG, 3),
                                  minval=0.0, maxval=255.0, dtype=jnp.float32),
        "pointgoal": jax.random.normal(k_goal, (N, GOAL), jnp.float32),
    }
    rnn_hidden = jax.random.normal(k_h, (N // SEQ_LEN, HIDDEN), jnp.float32) * 0.1

    fwd = jax.jit(model1_forward, static_argnums=(3, 4))
    action, h_T, action_probs = fwd(kparams, observations, rnn_hidden,
                                    SEQ_LEN, HIDDEN)
    jax.block_until_ready((action, h_T, action_probs))

    assert action.shape == (N,)
    assert h_T.shape == (N // SEQ_LEN, HIDDEN)
    assert action_probs.shape == (N, N_ACT - 1)
    assert bool(jnp.all(jnp.isfinite(action_probs)))
    assert bool(jnp.all((action >= 1) & (action <= N_ACT - 1)))
    print("KERNEL_OK")
</pallas_src>

<mosaic_0001>
module attributes {stable_mosaic.version = 11 : i64} {
  func.func @_fused_forward_kernel(%arg0: i32, %arg1: memref<48x1152xbf16, #tpu.memory_space<vmem>>, %arg2: memref<2x4xbf16, #tpu.memory_space<vmem>>, %arg3: memref<32x2xf32, #tpu.memory_space<vmem>>, %arg4: memref<4x32x48xbf16, #tpu.memory_space<vmem>>, %arg5: memref<32x1xf32, #tpu.memory_space<vmem>>, %arg6: memref<4x1024x256xbf16, #tpu.memory_space<vmem>>, %arg7: memref<16x64x32xbf16, #tpu.memory_space<vmem>>, %arg8: memref<64x1xf32, #tpu.memory_space<vmem>>, %arg9: memref<9x32x64xbf16, #tpu.memory_space<vmem>>, %arg10: memref<32x1xf32, #tpu.memory_space<vmem>>, %arg11: memref<16x32x32xbf16, #tpu.memory_space<vmem>>, %arg12: memref<32x1xf32, #tpu.memory_space<vmem>>, %arg13: memref<96x32xbf16, #tpu.memory_space<vmem>>, %arg14: memref<96x2xbf16, #tpu.memory_space<vmem>>, %arg15: memref<96x1xf32, #tpu.memory_space<vmem>>, %arg16: memref<96x32xbf16, #tpu.memory_space<vmem>>, %arg17: memref<96x1xf32, #tpu.memory_space<vmem>>, %arg18: memref<3x32xbf16, #tpu.memory_space<vmem>>, %arg19: memref<3x1xf32, #tpu.memory_space<vmem>>, %arg20: memref<3x4xf32, #tpu.memory_space<vmem>>, %arg21: memref<1x4xi32, #tpu.memory_space<vmem>>, %arg22: memref<32x2xf32, #tpu.memory_space<vmem>>, %arg23: memref<32x4xf32, #tpu.memory_space<vmem>>) attributes {dimension_semantics = [#tpu.dimension_semantics<arbitrary>], iteration_bounds = array<i64: 1>, scalar_prefetch = 0 : i64, scratch_operands = 1 : i64, tpu.core_type = #tpu.core_type<tc>, window_params = [{pipeline_mode = #tpu.pipeline_mode<synchronous>, transform_indices = @transform_0, window_bounds = array<i64: 48, 1152>}, {pipeline_mode = #tpu.pipeline_mode<synchronous>, transform_indices = @transform_1, window_bounds = array<i64: 2, 4>}, {pipeline_mode = #tpu.pipeline_mode<synchronous>, transform_indices = @transform_2, window_bounds = array<i64: 32, 2>}, {pipeline_mode = #tpu.pipeline_mode<synchronous>, transform_indices = @transform_3, window_bounds = array<i64: 4, 32, 48>}, {pipeline_mode = #tpu.pipeline_mode<synchronous>, transform_indices = @transform_4, window_bounds = array<i64: 32, 1>}, {pipeline_mode = #tpu.pipeline_mode<synchronous>, transform_indices = @transform_5, window_bounds = array<i64: 4, 1024, 256>}, {pipeline_mode = #tpu.pipeline_mode<synchronous>, transform_indices = @transform_6, window_bounds = array<i64: 16, 64, 32>}, {pipeline_mode = #tpu.pipeline_mode<synchronous>, transform_indices = @transform_7, window_bounds = array<i64: 64, 1>}, {pipeline_mode = #tpu.pipeline_mode<synchronous>, transform_indices = @transform_8, window_bounds = array<i64: 9, 32, 64>}, {pipeline_mode = #tpu.pipeline_mode<synchronous>, transform_indices = @transform_9, window_bounds = array<i64: 32, 1>}, {pipeline_mode = #tpu.pipeline_mode<synchronous>, transform_indices = @transform_10, window_bounds = array<i64: 16, 32, 32>}, {pipeline_mode = #tpu.pipeline_mode<synchronous>, transform_indices = @transform_11, window_bounds = array<i64: 32, 1>}, {pipeline_mode = #tpu.pipeline_mode<synchronous>, transform_indices = @transform_12, window_bounds = array<i64: 96, 32>}, {pipeline_mode = #tpu.pipeline_mode<synchronous>, transform_indices = @transform_13, window_bounds = array<i64: 96, 2>}, {pipeline_mode = #tpu.pipeline_mode<synchronous>, transform_indices = @transform_14, window_bounds = array<i64: 96, 1>}, {pipeline_mode = #tpu.pipeline_mode<synchronous>, transform_indices = @transform_15, window_bounds = array<i64: 96, 32>}, {pipeline_mode = #tpu.pipeline_mode<synchronous>, transform_indices = @transform_16, window_bounds = array<i64: 96, 1>}, {pipeline_mode = #tpu.pipeline_mode<synchronous>, transform_indices = @transform_17, window_bounds = array<i64: 3, 32>}, {pipeline_mode = #tpu.pipeline_mode<synchronous>, transform_indices = @transform_18, window_bounds = array<i64: 3, 1>}, {pipeline_mode = #tpu.pipeline_mode<synchronous>, transform_indices = @transform_19, window_bounds = array<i64: 3, 4>}, {pipeline_mode = #tpu.pipeline_mode<synchronous>, transform_indices = @transform_20, window_bounds = array<i64: 1, 4>}, {pipeline_mode = #tpu.pipeline_mode<synchronous>, transform_indices = @transform_21, window_bounds = array<i64: 32, 2>}]} {
    %c0 = arith.constant 0 : index
    %c0_0 = arith.constant 0 : index
    %c0_1 = arith.constant 0 : index
    %0 = vector.load %arg4[%c0, %c0_0, %c0_1] : memref<4x32x48xbf16, #tpu.memory_space<vmem>>, vector<1x32x48xbf16>
    %1 = vector.shape_cast %0 : vector<1x32x48xbf16> to vector<32x48xbf16>
    %c0_2 = arith.constant 0 : index
    %c0_3 = arith.constant 0 : index
    %2 = vector.load %arg1[%c0_2, %c0_3] : memref<48x1152xbf16, #tpu.memory_space<vmem>>, vector<48x1024xbf16>
    %cst = arith.constant dense<0.000000e+00> : vector<32x1024xf32>
    %3 = tpu.matmul %1, %2, %cst {dimension_numbers = #tpu.dot_dimension_numbers<[1], [0], [0], [1], [0, 0, 1, 1], [], []>} : vector<32x48xbf16>, vector<48x1024xbf16>, vector<32x1024xf32> -> vector<32x1024xf32>
    %c1 = arith.constant 1 : index
    %c0_4 = arith.constant 0 : index
    %c0_5 = arith.constant 0 : index
    %4 = vector.load %arg4[%c1, %c0_4, %c0_5] : memref<4x32x48xbf16, #tpu.memory_space<vmem>>, vector<1x32x48xbf16>
    %5 = vector.shape_cast %4 : vector<1x32x48xbf16> to vector<32x48xbf16>
    %c0_6 = arith.constant 0 : index
    %c4 = arith.constant 4 : index
    %6 = vector.load %arg1[%c0_6, %c4] : memref<48x1152xbf16, #tpu.memory_space<vmem>>, vector<48x1024xbf16>
    %cst_7 = arith.constant dense<0.000000e+00> : vector<32x1024xf32>
    %7 = tpu.matmul %5, %6, %cst_7 {dimension_numbers = #tpu.dot_dimension_numbers<[1], [0], [0], [1], [0, 0, 1, 1], [], []>} : vector<32x48xbf16>, vector<48x1024xbf16>, vector<32x1024xf32> -> vector<32x1024xf32>
    %8 = arith.addf %3, %7 : vector<32x1024xf32>
    %c2 = arith.constant 2 : index
    %c0_8 = arith.constant 0 : index
    %c0_9 = arith.constant 0 : index
    %9 = vector.load %arg4[%c2, %c0_8, %c0_9] : memref<4x32x48xbf16, #tpu.memory_space<vmem>>, vector<1x32x48xbf16>
    %10 = vector.shape_cast %9 : vector<1x32x48xbf16> to vector<32x48xbf16>
    %c0_10 = arith.constant 0 : index
    %c64 = arith.constant 64 : index
    %11 = vector.load %arg1[%c0_10, %c64] : memref<48x1152xbf16, #tpu.memory_space<vmem>>, vector<48x1024xbf16>
    %cst_11 = arith.constant dense<0.000000e+00> : vector<32x1024xf32>
    %12 = tpu.matmul %10, %11, %cst_11 {dimension_numbers = #tpu.dot_dimension_numbers<[1], [0], [0], [1], [0, 0, 1, 1], [], []>} : vector<32x48xbf16>, vector<48x1024xbf16>, vector<32x1024xf32> -> vector<32x1024xf32>
    %13 = arith.addf %8, %12 : vector<32x1024xf32>
    %c3 = arith.constant 3 : index
    %c0_12 = arith.constant 0 : index
    %c0_13 = arith.constant 0 : index
    %14 = vector.load %arg4[%c3, %c0_12, %c0_13] : memref<4x32x48xbf16, #tpu.memory_space<vmem>>, vector<1x32x48xbf16>
    %15 = vector.shape_cast %14 : vector<1x32x48xbf16> to vector<32x48xbf16>
    %c0_14 = arith.constant 0 : index
    %c68 = arith.constant 68 : index
    %16 = vector.load %arg1[%c0_14, %c68] : memref<48x1152xbf16, #tpu.memory_space<vmem>>, vector<48x1024xbf16>
    %cst_15 = arith.constant dense<0.000000e+00> : vector<32x1024xf32>
    %17 = tpu.matmul %15, %16, %cst_15 {dimension_numbers = #tpu.dot_dimension_numbers<[1], [0], [0], [1], [0, 0, 1, 1], [], []>} : vector<32x48xbf16>, vector<48x1024xbf16>, vector<32x1024xf32> -> vector<32x1024xf32>
    %18 = arith.addf %13, %17 : vector<32x1024xf32>
    %c0_16 = arith.constant 0 : index
    %c0_17 = arith.constant 0 : index
    %19 = vector.load %arg5[%c0_16, %c0_17] : memref<32x1xf32, #tpu.memory_space<vmem>>, vector<32x1xf32>
    %20 = vector.broadcast %19 : vector<32x1xf32> to vector<32x1024xf32>
    %21 = arith.addf %18, %20 : vector<32x1024xf32>
    %cst_18 = arith.constant 0.000000e+00 : f32
    %22 = vector.broadcast %cst_18 : f32 to vector<32x1024xf32>
    %23 = arith.maximumf %21, %22 : vector<32x1024xf32>
    %24 = arith.truncf %23 : vector<32x1024xf32> to vector<32x1024xbf16>
    %c0_19 = arith.constant 0 : index
    %c0_20 = arith.constant 0 : index
    %c0_21 = arith.constant 0 : index
    %25 = vector.load %arg6[%c0_19, %c0_20, %c0_21] : memref<4x1024x256xbf16, #tpu.memory_space<vmem>>, vector<1x1024x256xbf16>
    %26 = vector.shape_cast %25 : vector<1x1024x256xbf16> to vector<1024x256xbf16>
    %cst_22 = arith.constant dense<0.000000e+00> : vector<32x256xf32>
    %27 = tpu.matmul %24, %26, %cst_22 {dimension_numbers = #tpu.dot_dimension_numbers<[1], [0], [0], [1], [0, 0, 1, 1], [], []>} : vector<32x1024xbf16>, vector<1024x256xbf16>, vector<32x256xf32> -> vector<32x256xf32>
    %28 = arith.truncf %27 : vector<32x256xf32> to vector<32x256xbf16>
    %c1_23 = arith.constant 1 : index
    %c0_24 = arith.constant 0 : index
    %c0_25 = arith.constant 0 : index
    %29 = vector.load %arg6[%c1_23, %c0_24, %c0_25] : memref<4x1024x256xbf16, #tpu.memory_space<vmem>>, vector<1x1024x256xbf16>
    %30 = vector.shape_cast %29 : vector<1x1024x256xbf16> to vector<1024x256xbf16>
    %cst_26 = arith.constant dense<0.000000e+00> : vector<32x256xf32>
    %31 = tpu.matmul %24, %30, %cst_26 {dimension_numbers = #tpu.dot_dimension_numbers<[1], [0], [0], [1], [0, 0, 1, 1], [], []>} : vector<32x1024xbf16>, vector<1024x256xbf16>, vector<32x256xf32> -> vector<32x256xf32>
    %32 = arith.truncf %31 : vector<32x256xf32> to vector<32x256xbf16>
    %c2_27 = arith.constant 2 : index
    %c0_28 = arith.constant 0 : index
    %c0_29 = arith.constant 0 : index
    %33 = vector.load %arg6[%c2_27, %c0_28, %c0_29] : memref<4x1024x256xbf16, #tpu.memory_space<vmem>>, vector<1x1024x256xbf16>
    %34 = vector.shape_cast %33 : vector<1x1024x256xbf16> to vector<1024x256xbf16>
    %cst_30 = arith.constant dense<0.000000e+00> : vector<32x256xf32>
    %35 = tpu.matmul %24, %34, %cst_30 {dimension_numbers = #tpu.dot_dimension_numbers<[1], [0], [0], [1], [0, 0, 1, 1], [], []>} : vector<32x1024xbf16>, vector<1024x256xbf16>, vector<32x256xf32> -> vector<32x256xf32>
    %36 = arith.truncf %35 : vector<32x256xf32> to vector<32x256xbf16>
    %c3_31 = arith.constant 3 : index
    %c0_32 = arith.constant 0 : index
    %c0_33 = arith.constant 0 : index
    %37 = vector.load %arg6[%c3_31, %c0_32, %c0_33] : memref<4x1024x256xbf16, #tpu.memory_space<vmem>>, vector<1x1024x256xbf16>
    %38 = vector.shape_cast %37 : vector<1x1024x256xbf16> to vector<1024x256xbf16>
    %cst_34 = arith.constant dense<0.000000e+00> : vector<32x256xf32>
    %39 = tpu.matmul %24, %38, %cst_34 {dimension_numbers = #tpu.dot_dimension_numbers<[1], [0], [0], [1], [0, 0, 1, 1], [], []>} : vector<32x1024xbf16>, vector<1024x256xbf16>, vector<32x256xf32> -> vector<32x256xf32>
    %40 = arith.truncf %39 : vector<32x256xf32> to vector<32x256xbf16>
    %c0_35 = arith.constant 0 : index
    %c0_36 = arith.constant 0 : index
    %c0_37 = arith.constant 0 : index
    %41 = vector.load %arg7[%c0_35, %c0_36, %c0_37] : memref<16x64x32xbf16, #tpu.memory_space<vmem>>, vector<1x64x32xbf16>
    %42 = vector.shape_cast %41 : vector<1x64x32xbf16> to vector<64x32xbf16>
    %43 = vector.extract_strided_slice %28 {offsets = [0, 0], sizes = [32, 176], strides = [1, 1]} : vector<32x256xbf16> to vector<32x176xbf16>
    %cst_38 = arith.constant dense<0.000000e+00> : vector<64x176xf32>
    %44 = tpu.matmul %42, %43, %cst_38 {dimension_numbers = #tpu.dot_dimension_numbers<[1], [0], [0], [1], [0, 0, 1, 1], [], []>} : vector<64x32xbf16>, vector<32x176xbf16>, vector<64x176xf32> -> vector<64x176xf32>
    %c1_39 = arith.constant 1 : index
    %c0_40 = arith.constant 0 : index
    %c0_41 = arith.constant 0 : index
    %45 = vector.load %arg7[%c1_39, %c0_40, %c0_41] : memref<16x64x32xbf16, #tpu.memory_space<vmem>>, vector<1x64x32xbf16>
    %46 = vector.shape_cast %45 : vector<1x64x32xbf16> to vector<64x32xbf16>
    %47 = vector.extract_strided_slice %28 {offsets = [0, 4], sizes = [32, 176], strides = [1, 1]} : vector<32x256xbf16> to vector<32x176xbf16>
    %cst_42 = arith.constant dense<0.000000e+00> : vector<64x176xf32>
    %48 = tpu.matmul %46, %47, %cst_42 {dimension_numbers = #tpu.dot_dimension_numbers<[1], [0], [0], [1], [0, 0, 1, 1], [], []>} : vector<64x32xbf16>, vector<32x176xbf16>, vector<64x176xf32> -> vector<64x176xf32>
    %49 = arith.addf %44, %48 : vector<64x176xf32>
    %c2_43 = arith.constant 2 : index
    %c0_44 = arith.constant 0 : index
    %c0_45 = arith.constant 0 : index
    %50 = vector.load %arg7[%c2_43, %c0_44, %c0_45] : memref<16x64x32xbf16, #tpu.memory_space<vmem>>, vector<1x64x32xbf16>
    %51 = vector.shape_cast %50 : vector<1x64x32xbf16> to vector<64x32xbf16>
    %52 = vector.extract_strided_slice %28 {offsets = [0, 28], sizes = [32, 176], strides = [1, 1]} : vector<32x256xbf16> to vector<32x176xbf16>
    %cst_46 = arith.constant dense<0.000000e+00> : vector<64x176xf32>
    %53 = tpu.matmul %51, %52, %cst_46 {dimension_numbers = #tpu.dot_dimension_numbers<[1], [0], [0], [1], [0, 0, 1, 1], [], []>} : vector<64x32xbf16>, vector<32x176xbf16>, vector<64x176xf32> -> vector<64x176xf32>
    %54 = arith.addf %49, %53 : vector<64x176xf32>
    %c3_47 = arith.constant 3 : index
    %c0_48 = arith.constant 0 : index
    %c0_49 = arith.constant 0 : index
    %55 = vector.load %arg7[%c3_47, %c0_48, %c0_49] : memref<16x64x32xbf16, #tpu.memory_space<vmem>>, vector<1x64x32xbf16>
    %56 = vector.shape_cast %55 : vector<1x64x32xbf16> to vector<64x32xbf16>
    %57 = vector.extract_strided_slice %28 {offsets = [0, 32], sizes = [32, 176], strides = [1, 1]} : vector<32x256xbf16> to vector<32x176xbf16>
    %cst_50 = arith.constant dense<0.000000e+00> : vector<64x176xf32>
    %58 = tpu.matmul %56, %57, %cst_50 {dimension_numbers = #tpu.dot_dimension_numbers<[1], [0], [0], [1], [0, 0, 1, 1], [], []>} : vector<64x32xbf16>, vector<32x176xbf16>, vector<64x176xf32> -> vector<64x176xf32>
    %59 = arith.addf %54, %58 : vector<64x176xf32>
    %c4_51 = arith.constant 4 : index
    %c0_52 = arith.constant 0 : index
    %c0_53 = arith.constant 0 : index
    %60 = vector.load %arg7[%c4_51, %c0_52, %c0_53] : memref<16x64x32xbf16, #tpu.memory_space<vmem>>, vector<1x64x32xbf16>
    %61 = vector.shape_cast %60 : vector<1x64x32xbf16> to vector<64x32xbf16>
    %62 = vector.extract_strided_slice %32 {offsets = [0, 0], sizes = [32, 176], strides = [1, 1]} : vector<32x256xbf16> to vector<32x176xbf16>
    %cst_54 = arith.constant dense<0.000000e+00> : vector<64x176xf32>
    %63 = tpu.matmul %61, %62, %cst_54 {dimension_numbers = #tpu.dot_dimension_numbers<[1], [0], [0], [1], [0, 0, 1, 1], [], []>} : vector<64x32xbf16>, vector<32x176xbf16>, vector<64x176xf32> -> vector<64x176xf32>
    %64 = arith.addf %59, %63 : vector<64x176xf32>
    %c5 = arith.constant 5 : index
    %c0_55 = arith.constant 0 : index
    %c0_56 = arith.constant 0 : index
    %65 = vector.load %arg7[%c5, %c0_55, %c0_56] : memref<16x64x32xbf16, #tpu.memory_space<vmem>>, vector<1x64x32xbf16>
    %66 = vector.shape_cast %65 : vector<1x64x32xbf16> to vector<64x32xbf16>
    %67 = vector.extract_strided_slice %32 {offsets = [0, 4], sizes = [32, 176], strides = [1, 1]} : vector<32x256xbf16> to vector<32x176xbf16>
    %cst_57 = arith.constant dense<0.000000e+00> : vector<64x176xf32>
    %68 = tpu.matmul %66, %67, %cst_57 {dimension_numbers = #tpu.dot_dimension_numbers<[1], [0], [0], [1], [0, 0, 1, 1], [], []>} : vector<64x32xbf16>, vector<32x176xbf16>, vector<64x176xf32> -> vector<64x176xf32>
    %69 = arith.addf %64, %68 : vector<64x176xf32>
    %c6 = arith.constant 6 : index
    %c0_58 = arith.constant 0 : index
    %c0_59 = arith.constant 0 : index
    %70 = vector.load %arg7[%c6, %c0_58, %c0_59] : memref<16x64x32xbf16, #tpu.memory_space<vmem>>, vector<1x64x32xbf16>
    %71 = vector.shape_cast %70 : vector<1x64x32xbf16> to vector<64x32xbf16>
    %72 = vector.extract_strided_slice %32 {offsets = [0, 28], sizes = [32, 176], strides = [1, 1]} : vector<32x256xbf16> to vector<32x176xbf16>
    %cst_60 = arith.constant dense<0.000000e+00> : vector<64x176xf32>
    %73 = tpu.matmul %71, %72, %cst_60 {dimension_numbers = #tpu.dot_dimension_numbers<[1], [0], [0], [1], [0, 0, 1, 1], [], []>} : vector<64x32xbf16>, vector<32x176xbf16>, vector<64x176xf32> -> vector<64x176xf32>
    %74 = arith.addf %69, %73 : vector<64x176xf32>
    %c7 = arith.constant 7 : index
    %c0_61 = arith.constant 0 : index
    %c0_62 = arith.constant 0 : index
    %75 = vector.load %arg7[%c7, %c0_61, %c0_62] : memref<16x64x32xbf16, #tpu.memory_space<vmem>>, vector<1x64x32xbf16>
    %76 = vector.shape_cast %75 : vector<1x64x32xbf16> to vector<64x32xbf16>
    %77 = vector.extract_strided_slice %32 {offsets = [0, 32], sizes = [32, 176], strides = [1, 1]} : vector<32x256xbf16> to vector<32x176xbf16>
    %cst_63 = arith.constant dense<0.000000e+00> : vector<64x176xf32>
    %78 = tpu.matmul %76, %77, %cst_63 {dimension_numbers = #tpu.dot_dimension_numbers<[1], [0], [0], [1], [0, 0, 1, 1], [], []>} : vector<64x32xbf16>, vector<32x176xbf16>, vector<64x176xf32> -> vector<64x176xf32>
    %79 = arith.addf %74, %78 : vector<64x176xf32>
    %c8 = arith.constant 8 : index
    %c0_64 = arith.constant 0 : index
    %c0_65 = arith.constant 0 : index
    %80 = vector.load %arg7[%c8, %c0_64, %c0_65] : memref<16x64x32xbf16, #tpu.memory_space<vmem>>, vector<1x64x32xbf16>
    %81 = vector.shape_cast %80 : vector<1x64x32xbf16> to vector<64x32xbf16>
    %82 = vector.extract_strided_slice %36 {offsets = [0, 0], sizes = [32, 176], strides = [1, 1]} : vector<32x256xbf16> to vector<32x176xbf16>
    %cst_66 = arith.constant dense<0.000000e+00> : vector<64x176xf32>
    %83 = tpu.matmul %81, %82, %cst_66 {dimension_numbers = #tpu.dot_dimension_numbers<[1], [0], [0], [1], [0, 0, 1, 1], [], []>} : vector<64x32xbf16>, vector<32x176xbf16>, vector<64x176xf32> -> vector<64x176xf32>
    %84 = arith.addf %79, %83 : vector<64x176xf32>
    %c9 = arith.constant 9 : index
    %c0_67 = arith.constant 0 : index
    %c0_68 = arith.constant 0 : index
    %85 = vector.load %arg7[%c9, %c0_67, %c0_68] : memref<16x64x32xbf16, #tpu.memory_space<vmem>>, vector<1x64x32xbf16>
    %86 = vector.shape_cast %85 : vector<1x64x32xbf16> to vector<64x32xbf16>
    %87 = vector.extract_strided_slice %36 {offsets = [0, 4], sizes = [32, 176], strides = [1, 1]} : vector<32x256xbf16> to vector<32x176xbf16>
    %cst_69 = arith.constant dense<0.000000e+00> : vector<64x176xf32>
    %88 = tpu.matmul %86, %87, %cst_69 {dimension_numbers = #tpu.dot_dimension_numbers<[1], [0], [0], [1], [0, 0, 1, 1], [], []>} : vector<64x32xbf16>, vector<32x176xbf16>, vector<64x176xf32> -> vector<64x176xf32>
    %89 = arith.addf %84, %88 : vector<64x176xf32>
    %c10 = arith.constant 10 : index
    %c0_70 = arith.constant 0 : index
    %c0_71 = arith.constant 0 : index
    %90 = vector.load %arg7[%c10, %c0_70, %c0_71] : memref<16x64x32xbf16, #tpu.memory_space<vmem>>, vector<1x64x32xbf16>
    %91 = vector.shape_cast %90 : vector<1x64x32xbf16> to vector<64x32xbf16>
    %92 = vector.extract_strided_slice %36 {offsets = [0, 28], sizes = [32, 176], strides = [1, 1]} : vector<32x256xbf16> to vector<32x176xbf16>
    %cst_72 = arith.constant dense<0.000000e+00> : vector<64x176xf32>
    %93 = tpu.matmul %91, %92, %cst_72 {dimension_numbers = #tpu.dot_dimension_numbers<[1], [0], [0], [1], [0, 0, 1, 1], [], []>} : vector<64x32xbf16>, vector<32x176xbf16>, vector<64x176xf32> -> vector<64x176xf32>
    %94 = arith.addf %89, %93 : vector<64x176xf32>
    %c11 = arith.constant 11 : index
    %c0_73 = arith.constant 0 : index
    %c0_74 = arith.constant 0 : index
    %95 = vector.load %arg7[%c11, %c0_73, %c0_74] : memref<16x64x32xbf16, #tpu.memory_space<vmem>>, vector<1x64x32xbf16>
    %96 = vector.shape_cast %95 : vector<1x64x32xbf16> to vector<64x32xbf16>
    %97 = vector.extract_strided_slice %36 {offsets = [0, 32], sizes = [32, 176], strides = [1, 1]} : vector<32x256xbf16> to vector<32x176xbf16>
    %cst_75 = arith.constant dense<0.000000e+00> : vector<64x176xf32>
    %98 = tpu.matmul %96, %97, %cst_75 {dimension_numbers = #tpu.dot_dimension_numbers<[1], [0], [0], [1], [0, 0, 1, 1], [], []>} : vector<64x32xbf16>, vector<32x176xbf16>, vector<64x176xf32> -> vector<64x176xf32>
    %99 = arith.addf %94, %98 : vector<64x176xf32>
    %c12 = arith.constant 12 : index
    %c0_76 = arith.constant 0 : index
    %c0_77 = arith.constant 0 : index
    %100 = vector.load %arg7[%c12, %c0_76, %c0_77] : memref<16x64x32xbf16, #tpu.memory_space<vmem>>, vector<1x64x32xbf16>
    %101 = vector.shape_cast %100 : vector<1x64x32xbf16> to vector<64x32xbf16>
    %102 = vector.extract_strided_slice %40 {offsets = [0, 0], sizes = [32, 176], strides = [1, 1]} : vector<32x256xbf16> to vector<32x176xbf16>
    %cst_78 = arith.constant dense<0.000000e+00> : vector<64x176xf32>
    %103 = tpu.matmul %101, %102, %cst_78 {dimension_numbers = #tpu.dot_dimension_numbers<[1], [0], [0], [1], [0, 0, 1, 1], [], []>} : vector<64x32xbf16>, vector<32x176xbf16>, vector<64x176xf32> -> vector<64x176xf32>
    %104 = arith.addf %99, %103 : vector<64x176xf32>
    %c13 = arith.constant 13 : index
    %c0_79 = arith.constant 0 : index
    %c0_80 = arith.constant 0 : index
    %105 = vector.load %arg7[%c13, %c0_79, %c0_80] : memref<16x64x32xbf16, #tpu.memory_space<vmem>>, vector<1x64x32xbf16>
    %106 = vector.shape_cast %105 : vector<1x64x32xbf16> to vector<64x32xbf16>
    %107 = vector.extract_strided_slice %40 {offsets = [0, 4], sizes = [32, 176], strides = [1, 1]} : vector<32x256xbf16> to vector<32x176xbf16>
    %cst_81 = arith.constant dense<0.000000e+00> : vector<64x176xf32>
    %108 = tpu.matmul %106, %107, %cst_81 {dimension_numbers = #tpu.dot_dimension_numbers<[1], [0], [0], [1], [0, 0, 1, 1], [], []>} : vector<64x32xbf16>, vector<32x176xbf16>, vector<64x176xf32> -> vector<64x176xf32>
    %109 = arith.addf %104, %108 : vector<64x176xf32>
    %c14 = arith.constant 14 : index
    %c0_82 = arith.constant 0 : index
    %c0_83 = arith.constant 0 : index
    %110 = vector.load %arg7[%c14, %c0_82, %c0_83] : memref<16x64x32xbf16, #tpu.memory_space<vmem>>, vector<1x64x32xbf16>
    %111 = vector.shape_cast %110 : vector<1x64x32xbf16> to vector<64x32xbf16>
    %112 = vector.extract_strided_slice %40 {offsets = [0, 28], sizes = [32, 176], strides = [1, 1]} : vector<32x256xbf16> to vector<32x176xbf16>
    %cst_84 = arith.constant dense<0.000000e+00> : vector<64x176xf32>
    %113 = tpu.matmul %111, %112, %cst_84 {dimension_numbers = #tpu.dot_dimension_numbers<[1], [0], [0], [1], [0, 0, 1, 1], [], []>} : vector<64x32xbf16>, vector<32x176xbf16>, vector<64x176xf32> -> vector<64x176xf32>
    %114 = arith.addf %109, %113 : vector<64x176xf32>
    %c15 = arith.constant 15 : index
    %c0_85 = arith.constant 0 : index
    %c0_86 = arith.constant 0 : index
    %115 = vector.load %arg7[%c15, %c0_85, %c0_86] : memref<16x64x32xbf16, #tpu.memory_space<vmem>>, vector<1x64x32xbf16>
    %116 = vector.shape_cast %115 : vector<1x64x32xbf16> to vector<64x32xbf16>
    %117 = vector.extract_strided_slice %40 {offsets = [0, 32], sizes = [32, 176], strides = [1, 1]} : vector<32x256xbf16> to vector<32x176xbf16>
    %cst_87 = arith.constant dense<0.000000e+00> : vector<64x176xf32>
    %118 = tpu.matmul %116, %117, %cst_87 {dimension_numbers = #tpu.dot_dimension_numbers<[1], [0], [0], [1], [0, 0, 1, 1], [], []>} : vector<64x32xbf16>, vector<32x176xbf16>, vector<64x176xf32> -> vector<64x176xf32>
    %119 = arith.addf %114, %118 : vector<64x176xf32>
    %c0_88 = arith.constant 0 : index
    %c0_89 = arith.constant 0 : index
    %120 = vector.load %arg8[%c0_88, %c0_89] : memref<64x1xf32, #tpu.memory_space<vmem>>, vector<64x1xf32>
    %121 = vector.broadcast %120 : vector<64x1xf32> to vector<64x176xf32>
    %122 = arith.addf %119, %121 : vector<64x176xf32>
    %cst_90 = arith.constant 0.000000e+00 : f32
    %123 = vector.broadcast %cst_90 : f32 to vector<64x176xf32>
    %124 = arith.maximumf %122, %123 : vector<64x176xf32>
    %125 = arith.truncf %124 : vector<64x176xf32> to vector<64x176xbf16>
    %c0_91 = arith.constant 0 : index
    %c0_92 = arith.constant 0 : index
    %c0_93 = arith.constant 0 : index
    %126 = vector.load %arg9[%c0_91, %c0_92, %c0_93] : memref<9x32x64xbf16, #tpu.memory_space<vmem>>, vector<1x32x64xbf16>
    %127 = vector.shape_cast %126 : vector<1x32x64xbf16> to vector<32x64xbf16>
    %128 = vector.extract_strided_slice %125 {offsets = [0, 0], sizes = [64, 112], strides = [1, 1]} : vector<64x176xbf16> to vector<64x112xbf16>
    %cst_94 = arith.constant dense<0.000000e+00> : vector<32x112xf32>
    %129 = tpu.matmul %127, %128, %cst_94 {dimension_numbers = #tpu.dot_dimension_numbers<[1], [0], [0], [1], [0, 0, 1, 1], [], []>} : vector<32x64xbf16>, vector<64x112xbf16>, vector<32x112xf32> -> vector<32x112xf32>
    %c1_95 = arith.constant 1 : index
    %c0_96 = arith.constant 0 : index
    %c0_97 = arith.constant 0 : index
    %130 = vector.load %arg9[%c1_95, %c0_96, %c0_97] : memref<9x32x64xbf16, #tpu.memory_space<vmem>>, vector<1x32x64xbf16>
    %131 = vector.shape_cast %130 : vector<1x32x64xbf16> to vector<32x64xbf16>
    %132 = vector.extract_strided_slice %125 {offsets = [0, 4], sizes = [64, 112], strides = [1, 1]} : vector<64x176xbf16> to vector<64x112xbf16>
    %cst_98 = arith.constant dense<0.000000e+00> : vector<32x112xf32>
    %133 = tpu.matmul %131, %132, %cst_98 {dimension_numbers = #tpu.dot_dimension_numbers<[1], [0], [0], [1], [0, 0, 1, 1], [], []>} : vector<32x64xbf16>, vector<64x112xbf16>, vector<32x112xf32> -> vector<32x112xf32>
    %134 = arith.addf %129, %133 : vector<32x112xf32>
    %c2_99 = arith.constant 2 : index
    %c0_100 = arith.constant 0 : index
    %c0_101 = arith.constant 0 : index
    %135 = vector.load %arg9[%c2_99, %c0_100, %c0_101] : memref<9x32x64xbf16, #tpu.memory_space<vmem>>, vector<1x32x64xbf16>
    %136 = vector.shape_cast %135 : vector<1x32x64xbf16> to vector<32x64xbf16>
    %137 = vector.extract_strided_slice %125 {offsets = [0, 8], sizes = [64, 112], strides = [1, 1]} : vector<64x176xbf16> to vector<64x112xbf16>
    %cst_102 = arith.constant dense<0.000000e+00> : vector<32x112xf32>
    %138 = tpu.matmul %136, %137, %cst_102 {dimension_numbers = #tpu.dot_dimension_numbers<[1], [0], [0], [1], [0, 0, 1, 1], [], []>} : vector<32x64xbf16>, vector<64x112xbf16>, vector<32x112xf32> -> vector<32x112xf32>
    %139 = arith.addf %134, %138 : vector<32x112xf32>
    %c3_103 = arith.constant 3 : index
    %c0_104 = arith.constant 0 : index
    %c0_105 = arith.constant 0 : index
    %140 = vector.load %arg9[%c3_103, %c0_104, %c0_105] : memref<9x32x64xbf16, #tpu.memory_space<vmem>>, vector<1x32x64xbf16>
    %141 = vector.shape_cast %140 : vector<1x32x64xbf16> to vector<32x64xbf16>
    %142 = vector.extract_strided_slice %125 {offsets = [0, 28], sizes = [64, 112], strides = [1, 1]} : vector<64x176xbf16> to vector<64x112xbf16>
    %cst_106 = arith.constant dense<0.000000e+00> : vector<32x112xf32>
    %143 = tpu.matmul %141, %142, %cst_106 {dimension_numbers = #tpu.dot_dimension_numbers<[1], [0], [0], [1], [0, 0, 1, 1], [], []>} : vector<32x64xbf16>, vector<64x112xbf16>, vector<32x112xf32> -> vector<32x112xf32>
    %144 = arith.addf %139, %143 : vector<32x112xf32>
    %c4_107 = arith.constant 4 : index
    %c0_108 = arith.constant 0 : index
    %c0_109 = arith.constant 0 : index
    %145 = vector.load %arg9[%c4_107, %c0_108, %c0_109] : memref<9x32x64xbf16, #tpu.memory_space<vmem>>, vector<1x32x64xbf16>
    %146 = vector.shape_cast %145 : vector<1x32x64xbf16> to vector<32x64xbf16>
    %147 = vector.extract_strided_slice %125 {offsets = [0, 32], sizes = [64, 112], strides = [1, 1]} : vector<64x176xbf16> to vector<64x112xbf16>
    %cst_110 = arith.constant dense<0.000000e+00> : vector<32x112xf32>
    %148 = tpu.matmul %146, %147, %cst_110 {dimension_numbers = #tpu.dot_dimension_numbers<[1], [0], [0], [1], [0, 0, 1, 1], [], []>} : vector<32x64xbf16>, vector<64x112xbf16>, vector<32x112xf32> -> vector<32x112xf32>
    %149 = arith.addf %144, %148 : vector<32x112xf32>
    %c5_111 = arith.constant 5 : index
    %c0_112 = arith.constant 0 : index
    %c0_113 = arith.constant 0 : index
    %150 = vector.load %arg9[%c5_111, %c0_112, %c0_113] : memref<9x32x64xbf16, #tpu.memory_space<vmem>>, vector<1x32x64xbf16>
    %151 = vector.shape_cast %150 : vector<1x32x64xbf16> to vector<32x64xbf16>
    %152 = vector.extract_strided_slice %125 {offsets = [0, 36], sizes = [64, 112], strides = [1, 1]} : vector<64x176xbf16> to vector<64x112xbf16>
    %cst_114 = arith.constant dense<0.000000e+00> : vector<32x112xf32>
    %153 = tpu.matmul %151, %152, %cst_114 {dimension_numbers = #tpu.dot_dimension_numbers<[1], [0], [0], [1], [0, 0, 1, 1], [], []>} : vector<32x64xbf16>, vector<64x112xbf16>, vector<32x112xf32> -> vector<32x112xf32>
    %154 = arith.addf %149, %153 : vector<32x112xf32>
    %c6_115 = arith.constant 6 : index
    %c0_116 = arith.constant 0 : index
    %c0_117 = arith.constant 0 : index
    %155 = vector.load %arg9[%c6_115, %c0_116, %c0_117] : memref<9x32x64xbf16, #tpu.memory_space<vmem>>, vector<1x32x64xbf16>
    %156 = vector.shape_cast %155 : vector<1x32x64xbf16> to vector<32x64xbf16>
    %157 = vector.extract_strided_slice %125 {offsets = [0, 56], sizes = [64, 112], strides = [1, 1]} : vector<64x176xbf16> to vector<64x112xbf16>
    %cst_118 = arith.constant dense<0.000000e+00> : vector<32x112xf32>
    %158 = tpu.matmul %156, %157, %cst_118 {dimension_numbers = #tpu.dot_dimension_numbers<[1], [0], [0], [1], [0, 0, 1, 1], [], []>} : vector<32x64xbf16>, vector<64x112xbf16>, vector<32x112xf32> -> vector<32x112xf32>
    %159 = arith.addf %154, %158 : vector<32x112xf32>
    %c7_119 = arith.constant 7 : index
    %c0_120 = arith.constant 0 : index
    %c0_121 = arith.constant 0 : index
    %160 = vector.load %arg9[%c7_119, %c0_120, %c0_121] : memref<9x32x64xbf16, #tpu.memory_space<vmem>>, vector<1x32x64xbf16>
    %161 = vector.shape_cast %160 : vector<1x32x64xbf16> to vector<32x64xbf16>
    %162 = vector.extract_strided_slice %125 {offsets = [0, 60], sizes = [64, 112], strides = [1, 1]} : vector<64x176xbf16> to vector<64x112xbf16>
    %cst_122 = arith.constant dense<0.000000e+00> : vector<32x112xf32>
    %163 = tpu.matmul %161, %162, %cst_122 {dimension_numbers = #tpu.dot_dimension_numbers<[1], [0], [0], [1], [0, 0, 1, 1], [], []>} : vector<32x64xbf16>, vector<64x112xbf16>, vector<32x112xf32> -> vector<32x112xf32>
    %164 = arith.addf %159, %163 : vector<32x112xf32>
    %c8_123 = arith.constant 8 : index
    %c0_124 = arith.constant 0 : index
    %c0_125 = arith.constant 0 : index
    %165 = vector.load %arg9[%c8_123, %c0_124, %c0_125] : memref<9x32x64xbf16, #tpu.memory_space<vmem>>, vector<1x32x64xbf16>
    %166 = vector.shape_cast %165 : vector<1x32x64xbf16> to vector<32x64xbf16>
    %167 = vector.extract_strided_slice %125 {offsets = [0, 64], sizes = [64, 112], strides = [1, 1]} : vector<64x176xbf16> to vector<64x112xbf16>
    %cst_126 = arith.constant dense<0.000000e+00> : vector<32x112xf32>
    %168 = tpu.matmul %166, %167, %cst_126 {dimension_numbers = #tpu.dot_dimension_numbers<[1], [0], [0], [1], [0, 0, 1, 1], [], []>} : vector<32x64xbf16>, vector<64x112xbf16>, vector<32x112xf32> -> vector<32x112xf32>
    %169 = arith.addf %164, %168 : vector<32x112xf32>
    %c0_127 = arith.constant 0 : index
    %c0_128 = arith.constant 0 : index
    %170 = vector.load %arg10[%c0_127, %c0_128] : memref<32x1xf32, #tpu.memory_space<vmem>>, vector<32x1xf32>
    %171 = vector.broadcast %170 : vector<32x1xf32> to vector<32x112xf32>
    %172 = arith.addf %169, %171 : vector<32x112xf32>
    %173 = arith.truncf %172 : vector<32x112xf32> to vector<32x112xbf16>
    %c0_129 = arith.constant 0 : index
    %c0_130 = arith.constant 0 : index
    %c0_131 = arith.constant 0 : index
    %174 = vector.load %arg11[%c0_129, %c0_130, %c0_131] : memref<16x32x32xbf16, #tpu.memory_space<vmem>>, vector<1x32x32xbf16>
    %175 = vector.shape_cast %174 : vector<1x32x32xbf16> to vector<32x32xbf16>
    %176 = vector.extract_strided_slice %173 {offsets = [0, 0], sizes = [32, 4], strides = [1, 1]} : vector<32x112xbf16> to vector<32x4xbf16>
    %cst_132 = arith.constant dense<0.000000e+00> : vector<32x4xf32>
    %177 = tpu.matmul %175, %176, %cst_132 {dimension_numbers = #tpu.dot_dimension_numbers<[1], [0], [0], [1], [0, 0, 1, 1], [], []>} : vector<32x32xbf16>, vector<32x4xbf16>, vector<32x4xf32> -> vector<32x4xf32>
    %c1_133 = arith.constant 1 : index
    %c0_134 = arith.constant 0 : index
    %c0_135 = arith.constant 0 : index
    %178 = vector.load %arg11[%c1_133, %c0_134, %c0_135] : memref<16x32x32xbf16, #tpu.memory_space<vmem>>, vector<1x32x32xbf16>
    %179 = vector.shape_cast %178 : vector<1x32x32xbf16> to vector<32x32xbf16>
    %180 = vector.extract_strided_slice %173 {offsets = [0, 4], sizes = [32, 4], strides = [1, 1]} : vector<32x112xbf16> to vector<32x4xbf16>
    %cst_136 = arith.constant dense<0.000000e+00> : vector<32x4xf32>
    %181 = tpu.matmul %179, %180, %cst_136 {dimension_numbers = #tpu.dot_dimension_numbers<[1], [0], [0], [1], [0, 0, 1, 1], [], []>} : vector<32x32xbf16>, vector<32x4xbf16>, vector<32x4xf32> -> vector<32x4xf32>
    %182 = arith.addf %177, %181 : vector<32x4xf32>
    %c2_137 = arith.constant 2 : index
    %c0_138 = arith.constant 0 : index
    %c0_139 = arith.constant 0 : index
    %183 = vector.load %arg11[%c2_137, %c0_138, %c0_139] : memref<16x32x32xbf16, #tpu.memory_space<vmem>>, vector<1x32x32xbf16>
    %184 = vector.shape_cast %183 : vector<1x32x32xbf16> to vector<32x32xbf16>
    %185 = vector.extract_strided_slice %173 {offsets = [0, 8], sizes = [32, 4], strides = [1, 1]} : vector<32x112xbf16> to vector<32x4xbf16>
    %cst_140 = arith.constant dense<0.000000e+00> : vector<32x4xf32>
    %186 = tpu.matmul %184, %185, %cst_140 {dimension_numbers = #tpu.dot_dimension_numbers<[1], [0], [0], [1], [0, 0, 1, 1], [], []>} : vector<32x32xbf16>, vector<32x4xbf16>, vector<32x4xf32> -> vector<32x4xf32>
    %187 = arith.addf %182, %186 : vector<32x4xf32>
    %c3_141 = arith.constant 3 : index
    %c0_142 = arith.constant 0 : index
    %c0_143 = arith.constant 0 : index
    %188 = vector.load %arg11[%c3_141, %c0_142, %c0_143] : memref<16x32x32xbf16, #tpu.memory_space<vmem>>, vector<1x32x32xbf16>
    %189 = vector.shape_cast %188 : vector<1x32x32xbf16> to vector<32x32xbf16>
    %190 = vector.extract_strided_slice %173 {offsets = [0, 12], sizes = [32, 4], strides = [1, 1]} : vector<32x112xbf16> to vector<32x4xbf16>
    %cst_144 = arith.constant dense<0.000000e+00> : vector<32x4xf32>
    %191 = tpu.matmul %189, %190, %cst_144 {dimension_numbers = #tpu.dot_dimension_numbers<[1], [0], [0], [1], [0, 0, 1, 1], [], []>} : vector<32x32xbf16>, vector<32x4xbf16>, vector<32x4xf32> -> vector<32x4xf32>
    %192 = arith.addf %187, %191 : vector<32x4xf32>
    %c4_145 = arith.constant 4 : index
    %c0_146 = arith.constant 0 : index
    %c0_147 = arith.constant 0 : index
    %193 = vector.load %arg11[%c4_145, %c0_146, %c0_147] : memref<16x32x32xbf16, #tpu.memory_space<vmem>>, vector<1x32x32xbf16>
    %194 = vector.shape_cast %193 : vector<1x32x32xbf16> to vector<32x32xbf16>
    %195 = vector.extract_strided_slice %173 {offsets = [0, 28], sizes = [32, 4], strides = [1, 1]} : vector<32x112xbf16> to vector<32x4xbf16>
    %cst_148 = arith.constant dense<0.000000e+00> : vector<32x4xf32>
    %196 = tpu.matmul %194, %195, %cst_148 {dimension_numbers = #tpu.dot_dimension_numbers<[1], [0], [0], [1], [0, 0, 1, 1], [], []>} : vector<32x32xbf16>, vector<32x4xbf16>, vector<32x4xf32> -> vector<32x4xf32>
    %197 = arith.addf %192, %196 : vector<32x4xf32>
    %c5_149 = arith.constant 5 : index
    %c0_150 = arith.constant 0 : index
    %c0_151 = arith.constant 0 : index
    %198 = vector.load %arg11[%c5_149, %c0_150, %c0_151] : memref<16x32x32xbf16, #tpu.memory_space<vmem>>, vector<1x32x32xbf16>
    %199 = vector.shape_cast %198 : vector<1x32x32xbf16> to vector<32x32xbf16>
    %200 = vector.extract_strided_slice %173 {offsets = [0, 32], sizes = [32, 4], strides = [1, 1]} : vector<32x112xbf16> to vector<32x4xbf16>
    %cst_152 = arith.constant dense<0.000000e+00> : vector<32x4xf32>
    %201 = tpu.matmul %199, %200, %cst_152 {dimension_numbers = #tpu.dot_dimension_numbers<[1], [0], [0], [1], [0, 0, 1, 1], [], []>} : vector<32x32xbf16>, vector<32x4xbf16>, vector<32x4xf32> -> vector<32x4xf32>
    %202 = arith.addf %197, %201 : vector<32x4xf32>
    %c6_153 = arith.constant 6 : index
    %c0_154 = arith.constant 0 : index
    %c0_155 = arith.constant 0 : index
    %203 = vector.load %arg11[%c6_153, %c0_154, %c0_155] : memref<16x32x32xbf16, #tpu.memory_space<vmem>>, vector<1x32x32xbf16>
    %204 = vector.shape_cast %203 : vector<1x32x32xbf16> to vector<32x32xbf16>
    %205 = vector.extract_strided_slice %173 {offsets = [0, 36], sizes = [32, 4], strides = [1, 1]} : vector<32x112xbf16> to vector<32x4xbf16>
    %cst_156 = arith.constant dense<0.000000e+00> : vector<32x4xf32>
    %206 = tpu.matmul %204, %205, %cst_156 {dimension_numbers = #tpu.dot_dimension_numbers<[1], [0], [0], [1], [0, 0, 1, 1], [], []>} : vector<32x32xbf16>, vector<32x4xbf16>, vector<32x4xf32> -> vector<32x4xf32>
    %207 = arith.addf %202, %206 : vector<32x4xf32>
    %c7_157 = arith.constant 7 : index
    %c0_158 = arith.constant 0 : index
    %c0_159 = arith.constant 0 : index
    %208 = vector.load %arg11[%c7_157, %c0_158, %c0_159] : memref<16x32x32xbf16, #tpu.memory_space<vmem>>, vector<1x32x32xbf16>
    %209 = vector.shape_cast %208 : vector<1x32x32xbf16> to vector<32x32xbf16>
    %210 = vector.extract_strided_slice %173 {offsets = [0, 40], sizes = [32, 4], strides = [1, 1]} : vector<32x112xbf16> to vector<32x4xbf16>
    %cst_160 = arith.constant dense<0.000000e+00> : vector<32x4xf32>
    %211 = tpu.matmul %209, %210, %cst_160 {dimension_numbers = #tpu.dot_dimension_numbers<[1], [0], [0], [1], [0, 0, 1, 1], [], []>} : vector<32x32xbf16>, vector<32x4xbf16>, vector<32x4xf32> -> vector<32x4xf32>
    %212 = arith.addf %207, %211 : vector<32x4xf32>
    %c8_161 = arith.constant 8 : index
    %c0_162 = arith.constant 0 : index
    %c0_163 = arith.constant 0 : index
    %213 = vector.load %arg11[%c8_161, %c0_162, %c0_163] : memref<16x32x32xbf16, #tpu.memory_space<vmem>>, vector<1x32x32xbf16>
    %214 = vector.shape_cast %213 : vector<1x32x32xbf16> to vector<32x32xbf16>
    %215 = vector.extract_strided_slice %173 {offsets = [0, 56], sizes = [32, 4], strides = [1, 1]} : vector<32x112xbf16> to vector<32x4xbf16>
    %cst_164 = arith.constant dense<0.000000e+00> : vector<32x4xf32>
    %216 = tpu.matmul %214, %215, %cst_164 {dimension_numbers = #tpu.dot_dimension_numbers<[1], [0], [0], [1], [0, 0, 1, 1], [], []>} : vector<32x32xbf16>, vector<32x4xbf16>, vector<32x4xf32> -> vector<32x4xf32>
    %217 = arith.addf %212, %216 : vector<32x4xf32>
    %c9_165 = arith.constant 9 : index
    %c0_166 = arith.constant 0 : index
    %c0_167 = arith.constant 0 : index
    %218 = vector.load %arg11[%c9_165, %c0_166, %c0_167] : memref<16x32x32xbf16, #tpu.memory_space<vmem>>, vector<1x32x32xbf16>
    %219 = vector.shape_cast %218 : vector<1x32x32xbf16> to vector<32x32xbf16>
    %220 = vector.extract_strided_slice %173 {offsets = [0, 60], sizes = [32, 4], strides = [1, 1]} : vector<32x112xbf16> to vector<32x4xbf16>
    %cst_168 = arith.constant dense<0.000000e+00> : vector<32x4xf32>
    %221 = tpu.matmul %219, %220, %cst_168 {dimension_numbers = #tpu.dot_dimension_numbers<[1], [0], [0], [1], [0, 0, 1, 1], [], []>} : vector<32x32xbf16>, vector<32x4xbf16>, vector<32x4xf32> -> vector<32x4xf32>
    %222 = arith.addf %217, %221 : vector<32x4xf32>
    %c10_169 = arith.constant 10 : index
    %c0_170 = arith.constant 0 : index
    %c0_171 = arith.constant 0 : index
    %223 = vector.load %arg11[%c10_169, %c0_170, %c0_171] : memref<16x32x32xbf16, #tpu.memory_space<vmem>>, vector<1x32x32xbf16>
    %224 = vector.shape_cast %223 : vector<1x32x32xbf16> to vector<32x32xbf16>
    %225 = vector.extract_strided_slice %173 {offsets = [0, 64], sizes = [32, 4], strides = [1, 1]} : vector<32x112xbf16> to vector<32x4xbf16>
    %cst_172 = arith.constant dense<0.000000e+00> : vector<32x4xf32>
    %226 = tpu.matmul %224, %225, %cst_172 {dimension_numbers = #tpu.dot_dimension_numbers<[1], [0], [0], [1], [0, 0, 1, 1], [], []>} : vector<32x32xbf16>, vector<32x4xbf16>, vector<32x4xf32> -> vector<32x4xf32>
    %227 = arith.addf %222, %226 : vector<32x4xf32>
    %c11_173 = arith.constant 11 : index
    %c0_174 = arith.constant 0 : index
    %c0_175 = arith.constant 0 : index
    %228 = vector.load %arg11[%c11_173, %c0_174, %c0_175] : memref<16x32x32xbf16, #tpu.memory_space<vmem>>, vector<1x32x32xbf16>
    %229 = vector.shape_cast %228 : vector<1x32x32xbf16> to vector<32x32xbf16>
    %230 = vector.extract_strided_slice %173 {offsets = [0, 68], sizes = [32, 4], strides = [1, 1]} : vector<32x112xbf16> to vector<32x4xbf16>
    %cst_176 = arith.constant dense<0.000000e+00> : vector<32x4xf32>
    %231 = tpu.matmul %229, %230, %cst_176 {dimension_numbers = #tpu.dot_dimension_numbers<[1], [0], [0], [1], [0, 0, 1, 1], [], []>} : vector<32x32xbf16>, vector<32x4xbf16>, vector<32x4xf32> -> vector<32x4xf32>
    %232 = arith.addf %227, %231 : vector<32x4xf32>
    %c12_177 = arith.constant 12 : index
    %c0_178 = arith.constant 0 : index
    %c0_179 = arith.constant 0 : index
    %233 = vector.load %arg11[%c12_177, %c0_178, %c0_179] : memref<16x32x32xbf16, #tpu.memory_space<vmem>>, vector<1x32x32xbf16>
    %234 = vector.shape_cast %233 : vector<1x32x32xbf16> to vector<32x32xbf16>
    %235 = vector.extract_strided_slice %173 {offsets = [0, 84], sizes = [32, 4], strides = [1, 1]} : vector<32x112xbf16> to vector<32x4xbf16>
    %cst_180 = arith.constant dense<0.000000e+00> : vector<32x4xf32>
    %236 = tpu.matmul %234, %235, %cst_180 {dimension_numbers = #tpu.dot_dimension_numbers<[1], [0], [0], [1], [0, 0, 1, 1], [], []>} : vector<32x32xbf16>, vector<32x4xbf16>, vector<32x4xf32> -> vector<32x4xf32>
    %237 = arith.addf %232, %236 : vector<32x4xf32>
    %c13_181 = arith.constant 13 : index
    %c0_182 = arith.constant 0 : index
    %c0_183 = arith.constant 0 : index
    %238 = vector.load %arg11[%c13_181, %c0_182, %c0_183] : memref<16x32x32xbf16, #tpu.memory_space<vmem>>, vector<1x32x32xbf16>
    %239 = vector.shape_cast %238 : vector<1x32x32xbf16> to vector<32x32xbf16>
    %240 = vector.extract_strided_slice %173 {offsets = [0, 88], sizes = [32, 4], strides = [1, 1]} : vector<32x112xbf16> to vector<32x4xbf16>
    %cst_184 = arith.constant dense<0.000000e+00> : vector<32x4xf32>
    %241 = tpu.matmul %239, %240, %cst_184 {dimension_numbers = #tpu.dot_dimension_numbers<[1], [0], [0], [1], [0, 0, 1, 1], [], []>} : vector<32x32xbf16>, vector<32x4xbf16>, vector<32x4xf32> -> vector<32x4xf32>
    %242 = arith.addf %237, %241 : vector<32x4xf32>
    %c14_185 = arith.constant 14 : index
    %c0_186 = arith.constant 0 : index
    %c0_187 = arith.constant 0 : index
    %243 = vector.load %arg11[%c14_185, %c0_186, %c0_187] : memref<16x32x32xbf16, #tpu.memory_space<vmem>>, vector<1x32x32xbf16>
    %244 = vector.shape_cast %243 : vector<1x32x32xbf16> to vector<32x32xbf16>
    %245 = vector.extract_strided_slice %173 {offsets = [0, 92], sizes = [32, 4], strides = [1, 1]} : vector<32x112xbf16> to vector<32x4xbf16>
    %cst_188 = arith.constant dense<0.000000e+00> : vector<32x4xf32>
    %246 = tpu.matmul %244, %245, %cst_188 {dimension_numbers = #tpu.dot_dimension_numbers<[1], [0], [0], [1], [0, 0, 1, 1], [], []>} : vector<32x32xbf16>, vector<32x4xbf16>, vector<32x4xf32> -> vector<32x4xf32>
    %247 = arith.addf %242, %246 : vector<32x4xf32>
    %c15_189 = arith.constant 15 : index
    %c0_190 = arith.constant 0 : index
    %c0_191 = arith.constant 0 : index
    %248 = vector.load %arg11[%c15_189, %c0_190, %c0_191] : memref<16x32x32xbf16, #tpu.memory_space<vmem>>, vector<1x32x32xbf16>
    %249 = vector.shape_cast %248 : vector<1x32x32xbf16> to vector<32x32xbf16>
    %250 = vector.extract_strided_slice %173 {offsets = [0, 96], sizes = [32, 4], strides = [1, 1]} : vector<32x112xbf16> to vector<32x4xbf16>
    %cst_192 = arith.constant dense<0.000000e+00> : vector<32x4xf32>
    %251 = tpu.matmul %249, %250, %cst_192 {dimension_numbers = #tpu.dot_dimension_numbers<[1], [0], [0], [1], [0, 0, 1, 1], [], []>} : vector<32x32xbf16>, vector<32x4xbf16>, vector<32x4xf32> -> vector<32x4xf32>
    %252 = arith.addf %247, %251 : vector<32x4xf32>
    %c0_193 = arith.constant 0 : index
    %c0_194 = arith.constant 0 : index
    %253 = vector.load %arg12[%c0_193, %c0_194] : memref<32x1xf32, #tpu.memory_space<vmem>>, vector<32x1xf32>
    %254 = vector.broadcast %253 : vector<32x1xf32> to vector<32x4xf32>
    %255 = arith.addf %252, %254 : vector<32x4xf32>
    %cst_195 = arith.constant 0.000000e+00 : f32
    %256 = vector.broadcast %cst_195 : f32 to vector<32x4xf32>
    %257 = arith.maximumf %255, %256 : vector<32x4xf32>
    %258 = arith.truncf %257 : vector<32x4xf32> to vector<32x4xbf16>
    %c0_196 = arith.constant 0 : index
    %c0_197 = arith.constant 0 : index
    %259 = vector.load %arg13[%c0_196, %c0_197] : memref<96x32xbf16, #tpu.memory_space<vmem>>, vector<96x32xbf16>
    %cst_198 = arith.constant dense<0.000000e+00> : vector<96x4xf32>
    %260 = tpu.matmul %259, %258, %cst_198 {dimension_numbers = #tpu.dot_dimension_numbers<[1], [0], [0], [1], [0, 0, 1, 1], [], []>} : vector<96x32xbf16>, vector<32x4xbf16>, vector<96x4xf32> -> vector<96x4xf32>
    %c0_199 = arith.constant 0 : index
    %c0_200 = arith.constant 0 : index
    %261 = vector.load %arg14[%c0_199, %c0_200] : memref<96x2xbf16, #tpu.memory_space<vmem>>, vector<96x2xbf16>
    %c0_201 = arith.constant 0 : index
    %c0_202 = arith.constant 0 : index
    %262 = vector.load %arg2[%c0_201, %c0_202] : memref<2x4xbf16, #tpu.memory_space<vmem>>, vector<2x4xbf16>
    %cst_203 = arith.constant dense<0.000000e+00> : vector<96x4xf32>
    %263 = tpu.matmul %261, %262, %cst_203 {dimension_numbers = #tpu.dot_dimension_numbers<[1], [0], [0], [1], [0, 0, 1, 1], [], []>} : vector<96x2xbf16>, vector<2x4xbf16>, vector<96x4xf32> -> vector<96x4xf32>
    %264 = arith.addf %260, %263 : vector<96x4xf32>
    %c0_204 = arith.constant 0 : index
    %c0_205 = arith.constant 0 : index
    %265 = vector.load %arg15[%c0_204, %c0_205] : memref<96x1xf32, #tpu.memory_space<vmem>>, vector<96x1xf32>
    %266 = vector.broadcast %265 : vector<96x1xf32> to vector<96x4xf32>
    %267 = arith.addf %264, %266 : vector<96x4xf32>
    %c0_206 = arith.constant 0 : index
    %c0_207 = arith.constant 0 : index
    %268 = vector.load %arg17[%c0_206, %c0_207] : memref<96x1xf32, #tpu.memory_space<vmem>>, vector<96x1xf32>
    %c0_208 = arith.constant 0 : index
    %c0_209 = arith.constant 0 : index
    %269 = vector.load %arg3[%c0_208, %c0_209] : memref<32x2xf32, #tpu.memory_space<vmem>>, vector<32x1xf32>
    %c0_210 = arith.constant 0 : index
    %c0_211 = arith.constant 0 : index
    %270 = vector.load %arg16[%c0_210, %c0_211] : memref<96x32xbf16, #tpu.memory_space<vmem>>, vector<96x32xbf16>
    %271 = arith.truncf %269 : vector<32x1xf32> to vector<32x1xbf16>
    %cst_212 = arith.constant dense<0.000000e+00> : vector<96x1xf32>
    %272 = tpu.matmul %270, %271, %cst_212 {dimension_numbers = #tpu.dot_dimension_numbers<[1], [0], [0], [1], [0, 0, 1, 1], [], []>} : vector<96x32xbf16>, vector<32x1xbf16>, vector<96x1xf32> -> vector<96x1xf32>
    %273 = arith.addf %272, %268 : vector<96x1xf32>
    %274 = vector.extract_strided_slice %267 {offsets = [0, 0], sizes = [96, 1], strides = [1, 1]} : vector<96x4xf32> to vector<96x1xf32>
    %275 = vector.extract_strided_slice %274 {offsets = [0, 0], sizes = [32, 1], strides = [1, 1]} : vector<96x1xf32> to vector<32x1xf32>
    %276 = vector.extract_strided_slice %273 {offsets = [0, 0], sizes = [32, 1], strides = [1, 1]} : vector<96x1xf32> to vector<32x1xf32>
    %277 = arith.addf %275, %276 : vector<32x1xf32>
    %278 = arith.negf %277 : vector<32x1xf32>
    %279 = math.exp %278 : vector<32x1xf32>
    %cst_213 = arith.constant 1.000000e+00 : f32
    %280 = vector.broadcast %cst_213 : f32 to vector<32x1xf32>
    %281 = arith.addf %280, %279 : vector<32x1xf32>
    %282 = arith.divf %280, %281 : vector<32x1xf32>
    %283 = vector.extract_strided_slice %274 {offsets = [32, 0], sizes = [32, 1], strides = [1, 1]} : vector<96x1xf32> to vector<32x1xf32>
    %284 = vector.extract_strided_slice %273 {offsets = [32, 0], sizes = [32, 1], strides = [1, 1]} : vector<96x1xf32> to vector<32x1xf32>
    %285 = arith.addf %283, %284 : vector<32x1xf32>
    %286 = arith.negf %285 : vector<32x1xf32>
    %287 = math.exp %286 : vector<32x1xf32>
    %cst_214 = arith.constant 1.000000e+00 : f32
    %288 = vector.broadcast %cst_214 : f32 to vector<32x1xf32>
    %289 = arith.addf %288, %287 : vector<32x1xf32>
    %290 = arith.divf %288, %289 : vector<32x1xf32>
    %291 = vector.extract_strided_slice %274 {offsets = [64, 0], sizes = [32, 1], strides = [1, 1]} : vector<96x1xf32> to vector<32x1xf32>
    %292 = vector.extract_strided_slice %273 {offsets = [64, 0], sizes = [32, 1], strides = [1, 1]} : vector<96x1xf32> to vector<32x1xf32>
    %293 = arith.mulf %282, %292 : vector<32x1xf32>
    %294 = arith.addf %291, %293 : vector<32x1xf32>
    %295 = math.tanh %294 : vector<32x1xf32>
    %cst_215 = arith.constant 1.000000e+00 : f32
    %296 = vector.broadcast %cst_215 : f32 to vector<32x1xf32>
    %297 = arith.subf %296, %290 : vector<32x1xf32>
    %298 = arith.mulf %297, %295 : vector<32x1xf32>
    %299 = arith.mulf %290, %269 : vector<32x1xf32>
    %300 = arith.addf %298, %299 : vector<32x1xf32>
    %c0_216 = arith.constant 0 : index
    %c0_217 = arith.constant 0 : index
    %301 = vector.load %arg23[%c0_216, %c0_217] : memref<32x4xf32, #tpu.memory_space<vmem>>, vector<32x1xf32>
    tpu.vector_store %arg23[%c0_216, %c0_217], %300 {strides = array<i32>} : memref<32x4xf32, #tpu.memory_space<vmem>>, vector<32x1xf32>,
    %c0_218 = arith.constant 0 : index
    %c0_219 = arith.constant 0 : index
    %302 = vector.load %arg16[%c0_218, %c0_219] : memref<96x32xbf16, #tpu.memory_space<vmem>>, vector<96x32xbf16>
    %303 = arith.truncf %300 : vector<32x1xf32> to vector<32x1xbf16>
    %cst_220 = arith.constant dense<0.000000e+00> : vector<96x1xf32>
    %304 = tpu.matmul %302, %303, %cst_220 {dimension_numbers = #tpu.dot_dimension_numbers<[1], [0], [0], [1], [0, 0, 1, 1], [], []>} : vector<96x32xbf16>, vector<32x1xbf16>, vector<96x1xf32> -> vector<96x1xf32>
    %305 = arith.addf %304, %268 : vector<96x1xf32>
    %306 = vector.extract_strided_slice %267 {offsets = [0, 1], sizes = [96, 1], strides = [1, 1]} : vector<96x4xf32> to vector<96x1xf32>
    %307 = vector.extract_strided_slice %306 {offsets = [0, 0], sizes = [32, 1], strides = [1, 1]} : vector<96x1xf32> to vector<32x1xf32>
    %308 = vector.extract_strided_slice %305 {offsets = [0, 0], sizes = [32, 1], strides = [1, 1]} : vector<96x1xf32> to vector<32x1xf32>
    %309 = arith.addf %307, %308 : vector<32x1xf32>
    %310 = arith.negf %309 : vector<32x1xf32>
    %311 = math.exp %310 : vector<32x1xf32>
    %cst_221 = arith.constant 1.000000e+00 : f32
    %312 = vector.broadcast %cst_221 : f32 to vector<32x1xf32>
    %313 = arith.addf %312, %311 : vector<32x1xf32>
    %314 = arith.divf %312, %313 : vector<32x1xf32>
    %315 = vector.extract_strided_slice %306 {offsets = [32, 0], sizes = [32, 1], strides = [1, 1]} : vector<96x1xf32> to vector<32x1xf32>
    %316 = vector.extract_strided_slice %305 {offsets = [32, 0], sizes = [32, 1], strides = [1, 1]} : vector<96x1xf32> to vector<32x1xf32>
    %317 = arith.addf %315, %316 : vector<32x1xf32>
    %318 = arith.negf %317 : vector<32x1xf32>
    %319 = math.exp %318 : vector<32x1xf32>
    %cst_222 = arith.constant 1.000000e+00 : f32
    %320 = vector.broadcast %cst_222 : f32 to vector<32x1xf32>
    %321 = arith.addf %320, %319 : vector<32x1xf32>
    %322 = arith.divf %320, %321 : vector<32x1xf32>
    %323 = vector.extract_strided_slice %306 {offsets = [64, 0], sizes = [32, 1], strides = [1, 1]} : vector<96x1xf32> to vector<32x1xf32>
    %324 = vector.extract_strided_slice %305 {offsets = [64, 0], sizes = [32, 1], strides = [1, 1]} : vector<96x1xf32> to vector<32x1xf32>
    %325 = arith.mulf %314, %324 : vector<32x1xf32>
    %326 = arith.addf %323, %325 : vector<32x1xf32>
    %327 = math.tanh %326 : vector<32x1xf32>
    %cst_223 = arith.constant 1.000000e+00 : f32
    %328 = vector.broadcast %cst_223 : f32 to vector<32x1xf32>
    %329 = arith.subf %328, %322 : vector<32x1xf32>
    %330 = arith.mulf %329, %327 : vector<32x1xf32>
    %331 = arith.mulf %322, %300 : vector<32x1xf32>
    %332 = arith.addf %330, %331 : vector<32x1xf32>
    %c0_224 = arith.constant 0 : index
    %c1_225 = arith.constant 1 : index
    %333 = vector.load %arg23[%c0_224, %c1_225] : memref<32x4xf32, #tpu.memory_space<vmem>>, vector<32x1xf32>
    tpu.vector_store %arg23[%c0_224, %c1_225], %332 {strides = array<i32>} : memref<32x4xf32, #tpu.memory_space<vmem>>, vector<32x1xf32>,
    %c0_226 = arith.constant 0 : index
    %c0_227 = arith.constant 0 : index
    %334 = vector.load %arg22[%c0_226, %c0_227] : memref<32x2xf32, #tpu.memory_space<vmem>>, vector<32x1xf32>
    tpu.vector_store %arg22[%c0_226, %c0_227], %332 {strides = array<i32>} : memref<32x2xf32, #tpu.memory_space<vmem>>, vector<32x1xf32>,
    %c0_228 = arith.constant 0 : index
    %c1_229 = arith.constant 1 : index
    %335 = vector.load %arg3[%c0_228, %c1_229] : memref<32x2xf32, #tpu.memory_space<vmem>>, vector<32x1xf32>
    %c0_230 = arith.constant 0 : index
    %c0_231 = arith.constant 0 : index
    %336 = vector.load %arg16[%c0_230, %c0_231] : memref<96x32xbf16, #tpu.memory_space<vmem>>, vector<96x32xbf16>
    %337 = arith.truncf %335 : vector<32x1xf32> to vector<32x1xbf16>
    %cst_232 = arith.constant dense<0.000000e+00> : vector<96x1xf32>
    %338 = tpu.matmul %336, %337, %cst_232 {dimension_numbers = #tpu.dot_dimension_numbers<[1], [0], [0], [1], [0, 0, 1, 1], [], []>} : vector<96x32xbf16>, vector<32x1xbf16>, vector<96x1xf32> -> vector<96x1xf32>
    %339 = arith.addf %338, %268 : vector<96x1xf32>
    %340 = vector.extract_strided_slice %267 {offsets = [0, 2], sizes = [96, 1], strides = [1, 1]} : vector<96x4xf32> to vector<96x1xf32>
    %341 = vector.extract_strided_slice %340 {offsets = [0, 0], sizes = [32, 1], strides = [1, 1]} : vector<96x1xf32> to vector<32x1xf32>
    %342 = vector.extract_strided_slice %339 {offsets = [0, 0], sizes = [32, 1], strides = [1, 1]} : vector<96x1xf32> to vector<32x1xf32>
    %343 = arith.addf %341, %342 : vector<32x1xf32>
    %344 = arith.negf %343 : vector<32x1xf32>
    %345 = math.exp %344 : vector<32x1xf32>
    %cst_233 = arith.constant 1.000000e+00 : f32
    %346 = vector.broadcast %cst_233 : f32 to vector<32x1xf32>
    %347 = arith.addf %346, %345 : vector<32x1xf32>
    %348 = arith.divf %346, %347 : vector<32x1xf32>
    %349 = vector.extract_strided_slice %340 {offsets = [32, 0], sizes = [32, 1], strides = [1, 1]} : vector<96x1xf32> to vector<32x1xf32>
    %350 = vector.extract_strided_slice %339 {offsets = [32, 0], sizes = [32, 1], strides = [1, 1]} : vector<96x1xf32> to vector<32x1xf32>
    %351 = arith.addf %349, %350 : vector<32x1xf32>
    %352 = arith.negf %351 : vector<32x1xf32>
    %353 = math.exp %352 : vector<32x1xf32>
    %cst_234 = arith.constant 1.000000e+00 : f32
    %354 = vector.broadcast %cst_234 : f32 to vector<32x1xf32>
    %355 = arith.addf %354, %353 : vector<32x1xf32>
    %356 = arith.divf %354, %355 : vector<32x1xf32>
    %357 = vector.extract_strided_slice %340 {offsets = [64, 0], sizes = [32, 1], strides = [1, 1]} : vector<96x1xf32> to vector<32x1xf32>
    %358 = vector.extract_strided_slice %339 {offsets = [64, 0], sizes = [32, 1], strides = [1, 1]} : vector<96x1xf32> to vector<32x1xf32>
    %359 = arith.mulf %348, %358 : vector<32x1xf32>
    %360 = arith.addf %357, %359 : vector<32x1xf32>
    %361 = math.tanh %360 : vector<32x1xf32>
    %cst_235 = arith.constant 1.000000e+00 : f32
    %362 = vector.broadcast %cst_235 : f32 to vector<32x1xf32>
    %363 = arith.subf %362, %356 : vector<32x1xf32>
    %364 = arith.mulf %363, %361 : vector<32x1xf32>
    %365 = arith.mulf %356, %335 : vector<32x1xf32>
    %366 = arith.addf %364, %365 : vector<32x1xf32>
    %c0_236 = arith.constant 0 : index
    %c2_237 = arith.constant 2 : index
    %367 = vector.load %arg23[%c0_236, %c2_237] : memref<32x4xf32, #tpu.memory_space<vmem>>, vector<32x1xf32>
    tpu.vector_store %arg23[%c0_236, %c2_237], %366 {strides = array<i32>} : memref<32x4xf32, #tpu.memory_space<vmem>>, vector<32x1xf32>,
    %c0_238 = arith.constant 0 : index
    %c0_239 = arith.constant 0 : index
    %368 = vector.load %arg16[%c0_238, %c0_239] : memref<96x32xbf16, #tpu.memory_space<vmem>>, vector<96x32xbf16>
    %369 = arith.truncf %366 : vector<32x1xf32> to vector<32x1xbf16>
    %cst_240 = arith.constant dense<0.000000e+00> : vector<96x1xf32>
    %370 = tpu.matmul %368, %369, %cst_240 {dimension_numbers = #tpu.dot_dimension_numbers<[1], [0], [0], [1], [0, 0, 1, 1], [], []>} : vector<96x32xbf16>, vector<32x1xbf16>, vector<96x1xf32> -> vector<96x1xf32>
    %371 = arith.addf %370, %268 : vector<96x1xf32>
    %372 = vector.extract_strided_slice %267 {offsets = [0, 3], sizes = [96, 1], strides = [1, 1]} : vector<96x4xf32> to vector<96x1xf32>
    %373 = vector.extract_strided_slice %372 {offsets = [0, 0], sizes = [32, 1], strides = [1, 1]} : vector<96x1xf32> to vector<32x1xf32>
    %374 = vector.extract_strided_slice %371 {offsets = [0, 0], sizes = [32, 1], strides = [1, 1]} : vector<96x1xf32> to vector<32x1xf32>
    %375 = arith.addf %373, %374 : vector<32x1xf32>
    %376 = arith.negf %375 : vector<32x1xf32>
    %377 = math.exp %376 : vector<32x1xf32>
    %cst_241 = arith.constant 1.000000e+00 : f32
    %378 = vector.broadcast %cst_241 : f32 to vector<32x1xf32>
    %379 = arith.addf %378, %377 : vector<32x1xf32>
    %380 = arith.divf %378, %379 : vector<32x1xf32>
    %381 = vector.extract_strided_slice %372 {offsets = [32, 0], sizes = [32, 1], strides = [1, 1]} : vector<96x1xf32> to vector<32x1xf32>
    %382 = vector.extract_strided_slice %371 {offsets = [32, 0], sizes = [32, 1], strides = [1, 1]} : vector<96x1xf32> to vector<32x1xf32>
    %383 = arith.addf %381, %382 : vector<32x1xf32>
    %384 = arith.negf %383 : vector<32x1xf32>
    %385 = math.exp %384 : vector<32x1xf32>
    %cst_242 = arith.constant 1.000000e+00 : f32
    %386 = vector.broadcast %cst_242 : f32 to vector<32x1xf32>
    %387 = arith.addf %386, %385 : vector<32x1xf32>
    %388 = arith.divf %386, %387 : vector<32x1xf32>
    %389 = vector.extract_strided_slice %372 {offsets = [64, 0], sizes = [32, 1], strides = [1, 1]} : vector<96x1xf32> to vector<32x1xf32>
    %390 = vector.extract_strided_slice %371 {offsets = [64, 0], sizes = [32, 1], strides = [1, 1]} : vector<96x1xf32> to vector<32x1xf32>
    %391 = arith.mulf %380, %390 : vector<32x1xf32>
    %392 = arith.addf %389, %391 : vector<32x1xf32>
    %393 = math.tanh %392 : vector<32x1xf32>
    %cst_243 = arith.constant 1.000000e+00 : f32
    %394 = vector.broadcast %cst_243 : f32 to vector<32x1xf32>
    %395 = arith.subf %394, %388 : vector<32x1xf32>
    %396 = arith.mulf %395, %393 : vector<32x1xf32>
    %397 = arith.mulf %388, %366 : vector<32x1xf32>
    %398 = arith.addf %396, %397 : vector<32x1xf32>
    %c0_244 = arith.constant 0 : index
    %c3_245 = arith.constant 3 : index
    %399 = vector.load %arg23[%c0_244, %c3_245] : memref<32x4xf32, #tpu.memory_space<vmem>>, vector<32x1xf32>
    tpu.vector_store %arg23[%c0_244, %c3_245], %398 {strides = array<i32>} : memref<32x4xf32, #tpu.memory_space<vmem>>, vector<32x1xf32>,
    %c0_246 = arith.constant 0 : index
    %c1_247 = arith.constant 1 : index
    %400 = vector.load %arg22[%c0_246, %c1_247] : memref<32x2xf32, #tpu.memory_space<vmem>>, vector<32x1xf32>
    tpu.vector_store %arg22[%c0_246, %c1_247], %398 {strides = array<i32>} : memref<32x2xf32, #tpu.memory_space<vmem>>, vector<32x1xf32>,
    %c0_248 = arith.constant 0 : index
    %c0_249 = arith.constant 0 : index
    %401 = vector.load %arg18[%c0_248, %c0_249] : memref<3x32xbf16, #tpu.memory_space<vmem>>, vector<3x32xbf16>
    %c0_250 = arith.constant 0 : index
    %c0_251 = arith.constant 0 : index
    %402 = vector.load %arg23[%c0_250, %c0_251] : memref<32x4xf32, #tpu.memory_space<vmem>>, vector<32x4xf32>
    %403 = arith.truncf %402 : vector<32x4xf32> to vector<32x4xbf16>
    %cst_252 = arith.constant dense<0.000000e+00> : vector<3x4xf32>
    %404 = tpu.matmul %401, %403, %cst_252 {dimension_numbers = #tpu.dot_dimension_numbers<[1], [0], [0], [1], [0, 0, 1, 1], [], []>} : vector<3x32xbf16>, vector<32x4xbf16>, vector<3x4xf32> -> vector<3x4xf32>
    %c0_253 = arith.constant 0 : index
    %c0_254 = arith.constant 0 : index
    %405 = vector.load %arg19[%c0_253, %c0_254] : memref<3x1xf32, #tpu.memory_space<vmem>>, vector<3x1xf32>
    %406 = vector.broadcast %405 : vector<3x1xf32> to vector<3x4xf32>
    %407 = arith.addf %404, %406 : vector<3x4xf32>
    %c0_255 = arith.constant 0 : index
    %c0_256 = arith.constant 0 : index
    %408 = vector.load %arg20[%c0_255, %c0_256] : memref<3x4xf32, #tpu.memory_space<vmem>>, vector<3x4xf32>
    tpu.vector_store %arg20[%c0_255, %c0_256], %407 {strides = array<i32>} : memref<3x4xf32, #tpu.memory_space<vmem>>, vector<3x4xf32>,
    %409 = vector.extract_strided_slice %407 {offsets = [0, 0], sizes = [1, 4], strides = [1, 1]} : vector<3x4xf32> to vector<1x4xf32>
    %c0_i32 = arith.constant 0 : i32
    %410 = vector.broadcast %c0_i32 : i32 to vector<1x4xi32>
    %411 = vector.extract_strided_slice %407 {offsets = [1, 0], sizes = [1, 4], strides = [1, 1]} : vector<3x4xf32> to vector<1x4xf32>
    %412 = arith.cmpf ogt, %411, %409 : vector<1x4xf32>
    %413 = arith.select %412, %411, %409 : vector<1x4xi1>, vector<1x4xf32>
    %c1_i32 = arith.constant 1 : i32
    %414 = vector.broadcast %c1_i32 : i32 to vector<1x4xi32>
    %415 = arith.select %412, %414, %410 : vector<1x4xi1>, vector<1x4xi32>
    %416 = vector.extract_strided_slice %407 {offsets = [2, 0], sizes = [1, 4], strides = [1, 1]} : vector<3x4xf32> to vector<1x4xf32>
    %417 = arith.cmpf ogt, %416, %413 : vector<1x4xf32>
    %c2_i32 = arith.constant 2 : i32
    %418 = vector.broadcast %c2_i32 : i32 to vector<1x4xi32>
    %419 = arith.select %417, %418, %415 : vector<1x4xi1>, vector<1x4xi32>
    %c1_i32_257 = arith.constant 1 : i32
    %420 = vector.broadcast %c1_i32_257 : i32 to vector<1x4xi32>
    %421 = arith.addi %419, %420 : vector<1x4xi32>
    %c0_258 = arith.constant 0 : index
    %c0_259 = arith.constant 0 : index
    %422 = vector.load %arg21[%c0_258, %c0_259] : memref<1x4xi32, #tpu.memory_space<vmem>>, vector<1x4xi32>
    tpu.vector_store %arg21[%c0_258, %c0_259], %421 {strides = array<i32>} : memref<1x4xi32, #tpu.memory_space<vmem>>, vector<1x4xi32>,
    return
  }
  func.func @transform_0(%arg0: i32) -> (i32, i32) {
    %c0_i32 = arith.constant 0 : i32
    %c0_i32_0 = arith.constant 0 : i32
    %c0_i32_1 = arith.constant 0 : i32
    return %c0_i32, %c0_i32_0 : i32, i32
  }
  func.func @transform_1(%arg0: i32) -> (i32, i32) {
    %c0_i32 = arith.constant 0 : i32
    %c0_i32_0 = arith.constant 0 : i32
    %c0_i32_1 = arith.constant 0 : i32
    return %c0_i32, %c0_i32_0 : i32, i32
  }
  func.func @transform_2(%arg0: i32) -> (i32, i32) {
    %c0_i32 = arith.constant 0 : i32
    %c0_i32_0 = arith.constant 0 : i32
    %c0_i32_1 = arith.constant 0 : i32
    return %c0_i32, %c0_i32_0 : i32, i32
  }
  func.func @transform_3(%arg0: i32) -> (i32, i32, i32) {
    %c0_i32 = arith.constant 0 : i32
    %c0_i32_0 = arith.constant 0 : i32
    %c0_i32_1 = arith.constant 0 : i32
    %c0_i32_2 = arith.constant 0 : i32
    return %c0_i32, %c0_i32_0, %c0_i32_1 : i32, i32, i32
  }
  func.func @transform_4(%arg0: i32) -> (i32, i32) {
    %c0_i32 = arith.constant 0 : i32
    %c0_i32_0 = arith.constant 0 : i32
    %c0_i32_1 = arith.constant 0 : i32
    return %c0_i32, %c0_i32_0 : i32, i32
  }
  func.func @transform_5(%arg0: i32) -> (i32, i32, i32) {
    %c0_i32 = arith.constant 0 : i32
    %c0_i32_0 = arith.constant 0 : i32
    %c0_i32_1 = arith.constant 0 : i32
    %c0_i32_2 = arith.constant 0 : i32
    return %c0_i32, %c0_i32_0, %c0_i32_1 : i32, i32, i32
  }
  func.func @transform_6(%arg0: i32) -> (i32, i32, i32) {
    %c0_i32 = arith.constant 0 : i32
    %c0_i32_0 = arith.constant 0 : i32
    %c0_i32_1 = arith.constant 0 : i32
    %c0_i32_2 = arith.constant 0 : i32
    return %c0_i32, %c0_i32_0, %c0_i32_1 : i32, i32, i32
  }
  func.func @transform_7(%arg0: i32) -> (i32, i32) {
    %c0_i32 = arith.constant 0 : i32
    %c0_i32_0 = arith.constant 0 : i32
    %c0_i32_1 = arith.constant 0 : i32
    return %c0_i32, %c0_i32_0 : i32, i32
  }
  func.func @transform_8(%arg0: i32) -> (i32, i32, i32) {
    %c0_i32 = arith.constant 0 : i32
    %c0_i32_0 = arith.constant 0 : i32
    %c0_i32_1 = arith.constant 0 : i32
    %c0_i32_2 = arith.constant 0 : i32
    return %c0_i32, %c0_i32_0, %c0_i32_1 : i32, i32, i32
  }
  func.func @transform_9(%arg0: i32) -> (i32, i32) {
    %c0_i32 = arith.constant 0 : i32
    %c0_i32_0 = arith.constant 0 : i32
    %c0_i32_1 = arith.constant 0 : i32
    return %c0_i32, %c0_i32_0 : i32, i32
  }
  func.func @transform_10(%arg0: i32) -> (i32, i32, i32) {
    %c0_i32 = arith.constant 0 : i32
    %c0_i32_0 = arith.constant 0 : i32
    %c0_i32_1 = arith.constant 0 : i32
    %c0_i32_2 = arith.constant 0 : i32
    return %c0_i32, %c0_i32_0, %c0_i32_1 : i32, i32, i32
  }
  func.func @transform_11(%arg0: i32) -> (i32, i32) {
    %c0_i32 = arith.constant 0 : i32
    %c0_i32_0 = arith.constant 0 : i32
    %c0_i32_1 = arith.constant 0 : i32
    return %c0_i32, %c0_i32_0 : i32, i32
  }
  func.func @transform_12(%arg0: i32) -> (i32, i32) {
    %c0_i32 = arith.constant 0 : i32
    %c0_i32_0 = arith.constant 0 : i32
    %c0_i32_1 = arith.constant 0 : i32
    return %c0_i32, %c0_i32_0 : i32, i32
  }
  func.func @transform_13(%arg0: i32) -> (i32, i32) {
    %c0_i32 = arith.constant 0 : i32
    %c0_i32_0 = arith.constant 0 : i32
    %c0_i32_1 = arith.constant 0 : i32
    return %c0_i32, %c0_i32_0 : i32, i32
  }
  func.func @transform_14(%arg0: i32) -> (i32, i32) {
    %c0_i32 = arith.constant 0 : i32
    %c0_i32_0 = arith.constant 0 : i32
    %c0_i32_1 = arith.constant 0 : i32
    return %c0_i32, %c0_i32_0 : i32, i32
  }
  func.func @transform_15(%arg0: i32) -> (i32, i32) {
    %c0_i32 = arith.constant 0 : i32
    %c0_i32_0 = arith.constant 0 : i32
    %c0_i32_1 = arith.constant 0 : i32
    return %c0_i32, %c0_i32_0 : i32, i32
  }
  func.func @transform_16(%arg0: i32) -> (i32, i32) {
    %c0_i32 = arith.constant 0 : i32
    %c0_i32_0 = arith.constant 0 : i32
    %c0_i32_1 = arith.constant 0 : i32
    return %c0_i32, %c0_i32_0 : i32, i32
  }
  func.func @transform_17(%arg0: i32) -> (i32, i32) {
    %c0_i32 = arith.constant 0 : i32
    %c0_i32_0 = arith.constant 0 : i32
    %c0_i32_1 = arith.constant 0 : i32
    return %c0_i32, %c0_i32_0 : i32, i32
  }
  func.func @transform_18(%arg0: i32) -> (i32, i32) {
    %c0_i32 = arith.constant 0 : i32
    %c0_i32_0 = arith.constant 0 : i32
    %c0_i32_1 = arith.constant 0 : i32
    return %c0_i32, %c0_i32_0 : i32, i32
  }
  func.func @transform_19(%arg0: i32) -> (i32, i32) {
    %c0_i32 = arith.constant 0 : i32
    %c0_i32_0 = arith.constant 0 : i32
    %c0_i32_1 = arith.constant 0 : i32
    return %c0_i32, %c0_i32_0 : i32, i32
  }
  func.func @transform_20(%arg0: i32) -> (i32, i32) {
    %c0_i32 = arith.constant 0 : i32
    %c0_i32_0 = arith.constant 0 : i32
    %c0_i32_1 = arith.constant 0 : i32
    return %c0_i32, %c0_i32_0 : i32, i32
  }
  func.func @transform_21(%arg0: i32) -> (i32, i32) {
    %c0_i32 = arith.constant 0 : i32
    %c0_i32_0 = arith.constant 0 : i32
    %c0_i32_1 = arith.constant 0 : i32
    return %c0_i32, %c0_i32_0 : i32, i32
  }
}

</mosaic_0001>

<llo_original>
// kernel: model1_forward.1
$region0: #{model1_forward.1}
  #allocation0 [shape = 'u32[]', space=smem, size = 0x4, offset = 0x4, fixed_abs, tag = 'smem constant byte address 0x4 - core index']
  #allocation1 [shape = 'u32[144,128]{1,0:T(1,128)}', space=vmem, size = 0x12000, scoped, tag = 'internal scratch']
  #allocation2 [shape = 'f32[32,4]{1,0:T(8,128)}', space=vmem, size = 0x4000, scoped, tag = 'scratch operand']
  %s0 = inlined_call_operand.vmem [shape: bf16[48,1152], index: 0, kind: input, shape index: {}]
  %s1 = inlined_call_operand.vmem [shape: bf16[2,4], index: 1, kind: input, shape index: {}]
  %s2 = inlined_call_operand.vmem [shape: f32[32,2], index: 2, kind: input, shape index: {}]
  %s3 = inlined_call_operand.vmem [shape: bf16[4,32,48], index: 3, kind: input, shape index: {}]
  %s4 = inlined_call_operand.vmem [shape: f32[32,1], index: 4, kind: input, shape index: {}]
  %s5 = inlined_call_operand.vmem [shape: bf16[4,1024,256], index: 5, kind: input, shape index: {}]
  %s6 = inlined_call_operand.vmem [shape: bf16[16,64,32], index: 6, kind: input, shape index: {}]
  %s7 = inlined_call_operand.vmem [shape: f32[64,1], index: 7, kind: input, shape index: {}]
  %s8 = inlined_call_operand.vmem [shape: bf16[9,32,64], index: 8, kind: input, shape index: {}]
  %s9 = inlined_call_operand.vmem [shape: f32[32,1], index: 9, kind: input, shape index: {}]
  %s10 = inlined_call_operand.vmem [shape: bf16[16,32,32], index: 10, kind: input, shape index: {}]
  %s11 = inlined_call_operand.vmem [shape: f32[32,1], index: 11, kind: input, shape index: {}]
  %s12 = inlined_call_operand.vmem [shape: bf16[96,32], index: 12, kind: input, shape index: {}]
  %s13 = inlined_call_operand.vmem [shape: bf16[96,2], index: 13, kind: input, shape index: {}]
  %s14 = inlined_call_operand.vmem [shape: f32[96,1], index: 14, kind: input, shape index: {}]
  %s15 = inlined_call_operand.vmem [shape: bf16[96,32], index: 15, kind: input, shape index: {}]
  %s16 = inlined_call_operand.vmem [shape: f32[96,1], index: 16, kind: input, shape index: {}]
  %s17 = inlined_call_operand.vmem [shape: bf16[3,32], index: 17, kind: input, shape index: {}]
  %s18 = inlined_call_operand.vmem [shape: f32[3,1], index: 18, kind: input, shape index: {}]
  %s19 = inlined_call_operand.vmem [shape: f32[3,4], index: 19, kind: output, shape index: {0}]
  %s20 = inlined_call_operand.hbm [shape: s32[1,4], index: 20, kind: output, shape index: {1}]
  %s21 = inlined_call_operand.vmem [shape: f32[32,2], index: 21, kind: output, shape index: {2}]
  %22 = xla_tuple %s19, %s20, %s21
  %s23 = sld [smem:[#allocation0]]
  $region102: #{model1_forward.1} parent=0
    _
  %s25 = ssub.s32 1, %s23
  %s26 = scalar_select 0, %s25, %s23
  $region1: #{model1_forward.1} parent=0
    #allocation3 [shape = 'u8[512]{0}', space=vmem, size = 0x400, scoped, tag = 'output window, operand 1, single buffered']
    #allocation4 [shape = 's32[1]{0}', space=sflag, size = 0x4, scoped, tag = 'scoped memory for model1_forward.1']
    %27 = vsyncpa [#allocation4], 0
    // Predicated region
    $region2: #{model1_forward.1} parent=1 // pred_check
      _
    $region3: #{model1_forward.1} parent=1 // pred_check_branch
      %29 = sbr.rel (0) target = $region5
    $region4: #{model1_forward.1} parent=1 // pred_region
      _
    $region5: #{model1_forward.1} parent=1 // pred_fallthru
      _
    // Predicated region
    $region6: #{model1_forward.1} parent=1 // pred_check
      _
    $region7: #{model1_forward.1} parent=1 // pred_check_branch
      %31 = sbr.rel (0) target = $region9
    $region8: #{model1_forward.1} parent=1 // pred_region
      _
    $region9: #{model1_forward.1} parent=1 // pred_fallthru
      _
    // Predicated region
    $region10: #{model1_forward.1} parent=1 // pred_check
      _
    $region11: #{model1_forward.1} parent=1 // pred_check_branch
      %33 = sbr.rel (0) target = $region13
    $region12: #{model1_forward.1} parent=1 // pred_region
      _
    $region13: #{model1_forward.1} parent=1 // pred_fallthru
      _
    // Predicated region
    $region14: #{model1_forward.1} parent=1 // pred_check
      _
    $region15: #{model1_forward.1} parent=1 // pred_check_branch
      %35 = sbr.rel (0) target = $region17
    $region16: #{model1_forward.1} parent=1 // pred_region
      _
    $region17: #{model1_forward.1} parent=1 // pred_fallthru
      _
    // Predicated region
    $region18: #{model1_forward.1} parent=1 // pred_check
      _
    $region19: #{model1_forward.1} parent=1 // pred_check_branch
      %37 = sbr.rel (0) target = $region21
    $region20: #{model1_forward.1} parent=1 // pred_region
      _
    $region21: #{model1_forward.1} parent=1 // pred_fallthru
      _
    // Predicated region
    $region22: #{model1_forward.1} parent=1 // pred_check
      _
    $region23: #{model1_forward.1} parent=1 // pred_check_branch
      %39 = sbr.rel (0) target = $region25
    $region24: #{model1_forward.1} parent=1 // pred_region
      _
    $region25: #{model1_forward.1} parent=1 // pred_fallthru
      _
    // Predicated region
    $region26: #{model1_forward.1} parent=1 // pred_check
      _
    $region27: #{model1_forward.1} parent=1 // pred_check_branch
      %41 = sbr.rel (0) target = $region29
    $region28: #{model1_forward.1} parent=1 // pred_region
      _
    $region29: #{model1_forward.1} parent=1 // pred_fallthru
      _
    // Predicated region
    $region30: #{model1_forward.1} parent=1 // pred_check
      _
    $region31: #{model1_forward.1} parent=1 // pred_check_branch
      %43 = sbr.rel (0) target = $region33
    $region32: #{model1_forward.1} parent=1 // pred_region
      _
    $region33: #{model1_forward.1} parent=1 // pred_fallthru
      _
    // Predicated region
    $region34: #{model1_forward.1} parent=1 // pred_check
      _
    $region35: #{model1_forward.1} parent=1 // pred_check_branch
      %45 = sbr.rel (0) target = $region37
    $region36: #{model1_forward.1} parent=1 // pred_region
      _
    $region37: #{model1_forward.1} parent=1 // pred_fallthru
      _
    // Predicated region
    $region38: #{model1_forward.1} parent=1 // pred_check
      _
    $region39: #{model1_forward.1} parent=1 // pred_check_branch
      %47 = sbr.rel (0) target = $region41
    $region40: #{model1_forward.1} parent=1 // pred_region
      _
    $region41: #{model1_forward.1} parent=1 // pred_fallthru
      _
    // Predicated region
    $region42: #{model1_forward.1} parent=1 // pred_check
      _
    $region43: #{model1_forward.1} parent=1 // pred_check_branch
      %49 = sbr.rel (0) target = $region45
    $region44: #{model1_forward.1} parent=1 // pred_region
      _
    $region45: #{model1_forward.1} parent=1 // pred_fallthru
      _
    // Predicated region
    $region46: #{model1_forward.1} parent=1 // pred_check
      _
    $region47: #{model1_forward.1} parent=1 // pred_check_branch
      %51 = sbr.rel (0) target = $region49
    $region48: #{model1_forward.1} parent=1 // pred_region
      _
    $region49: #{model1_forward.1} parent=1 // pred_fallthru
      _
    // Predicated region
    $region50: #{model1_forward.1} parent=1 // pred_check
      _
    $region51: #{model1_forward.1} parent=1 // pred_check_branch
      %53 = sbr.rel (0) target = $region53
    $region52: #{model1_forward.1} parent=1 // pred_region
      _
    $region53: #{model1_forward.1} parent=1 // pred_fallthru
      _
    // Predicated region
    $region54: #{model1_forward.1} parent=1 // pred_check
      _
    $region55: #{model1_forward.1} parent=1 // pred_check_branch
      %55 = sbr.rel (0) target = $region57
    $region56: #{model1_forward.1} parent=1 // pred_region
      _
    $region57: #{model1_forward.1} parent=1 // pred_fallthru
      _
    // Predicated region
    $region58: #{model1_forward.1} parent=1 // pred_check
      _
    $region59: #{model1_forward.1} parent=1 // pred_check_branch
      %57 = sbr.rel (0) target = $region61
    $region60: #{model1_forward.1} parent=1 // pred_region
      _
    $region61: #{model1_forward.1} parent=1 // pred_fallthru
      _
    // Predicated region
    $region62: #{model1_forward.1} parent=1 // pred_check
      _
    $region63: #{model1_forward.1} parent=1 // pred_check_branch
      %59 = sbr.rel (0) target = $region65
    $region64: #{model1_forward.1} parent=1 // pred_region
      _
    $region65: #{model1_forward.1} parent=1 // pred_fallthru
      _
    // Predicated region
    $region66: #{model1_forward.1} parent=1 // pred_check
      _
    $region67: #{model1_forward.1} parent=1 // pred_check_branch
      %61 = sbr.rel (0) target = $region69
    $region68: #{model1_forward.1} parent=1 // pred_region
      _
    $region69: #{model1_forward.1} parent=1 // pred_fallthru
      _
    // Predicated region
    $region70: #{model1_forward.1} parent=1 // pred_check
      _
    $region71: #{model1_forward.1} parent=1 // pred_check_branch
      %63 = sbr.rel (0) target = $region73
    $region72: #{model1_forward.1} parent=1 // pred_region
      _
    $region73: #{model1_forward.1} parent=1 // pred_fallthru
      _
    // Predicated region
    $region74: #{model1_forward.1} parent=1 // pred_check
      _
    $region75: #{model1_forward.1} parent=1 // pred_check_branch
      %65 = sbr.rel (0) target = $region77
    $region76: #{model1_forward.1} parent=1 // pred_region
      _
    $region77: #{model1_forward.1} parent=1 // pred_fallthru
      _
    %v67 = vld [vmem:[%s3] sm:$0xf]
    %v68 = vld [vmem:[%s3 + $0x4] sm:$0xf]
    %v69 = vld [vmem:[%s3 + $0x8] sm:$0xf]
    %v70 = vld [vmem:[%s3 + $0xc] sm:$0xf]
    %v71 = vld [vmem:[%s0] sm:$0xff]
    %v72 = vld [vmem:[%s0 + $0x8] sm:$0xff]
    %v73 = vld [vmem:[%s0 + $0x10] sm:$0xff]
    %v74 = vld [vmem:[%s0 + $0x18] sm:$0xff]
    %v75 = vld [vmem:[%s0 + $0x24] sm:$0xff]
    %v76 = vld [vmem:[%s0 + $0x2c] sm:$0xff]
    %v77 = vld [vmem:[%s0 + $0x34] sm:$0xff]
    %v78 = vld [vmem:[%s0 + $0x3c] sm:$0xff]
    %v79 = vld [vmem:[%s0 + $0x48] sm:$0xff]
    %v80 = vld [vmem:[%s0 + $0x50] sm:$0xff]
    %v81 = vld [vmem:[%s0 + $0x58] sm:$0xff]
    %v82 = vld [vmem:[%s0 + $0x60] sm:$0xff]
    %v83 = vld [vmem:[%s0 + $0x6c] sm:$0xff]
    %v84 = vld [vmem:[%s0 + $0x74] sm:$0xff]
    %v85 = vld [vmem:[%s0 + $0x7c] sm:$0xff]
    %v86 = vld [vmem:[%s0 + $0x84] sm:$0xff]
    %v87 = vld [vmem:[%s0 + $0x90] sm:$0xff]
    %v88 = vld [vmem:[%s0 + $0x98] sm:$0xff]
    %v89 = vld [vmem:[%s0 + $0xa0] sm:$0xff]
    %v90 = vld [vmem:[%s0 + $0xa8] sm:$0xff]
    %v91 = vld [vmem:[%s0 + $0xb4] sm:$0xff]
    %v92 = vld [vmem:[%s0 + $0xbc] sm:$0xff]
    %v93 = vld [vmem:[%s0 + $0xc4] sm:$0xff]
    %v94 = vld [vmem:[%s0 + $0xcc] sm:$0xff]
    %s95 = scalar_lea.vmem %s3, 16
    %v96 = vld [vmem:[%s95] sm:$0xf]
    %v97 = vld [vmem:[%s95 + $0x4] sm:$0xf]
    %v98 = vld [vmem:[%s95 + $0x8] sm:$0xf]
    %v99 = vld [vmem:[%s95 + $0xc] sm:$0xf]
    %v100 = vld [vmem:[%s0] sm:$0xff]
    %v101 = vld [vmem:[%s0 + $0x8] sm:$0xff]
    %v102 = vld [vmem:[%s0 + $0x10] sm:$0xff]
    %v103 = vld [vmem:[%s0 + $0x18] sm:$0xff]
    %v104 = vld [vmem:[%s0 + $0x20] sm:$0xf]
    %v105 = vld [vmem:[%s0 + $0x24] sm:$0xff]
    %v106 = vld [vmem:[%s0 + $0x2c] sm:$0xff]
    %v107 = vld [vmem:[%s0 + $0x34] sm:$0xff]
    %v108 = vld [vmem:[%s0 + $0x3c] sm:$0xff]
    %v109 = vld [vmem:[%s0 + $0x44] sm:$0xf]
    %v110 = vld [vmem:[%s0 + $0x48] sm:$0xff]
    %v111 = vld [vmem:[%s0 + $0x50] sm:$0xff]
    %v112 = vld [vmem:[%s0 + $0x58] sm:$0xff]
    %v113 = vld [vmem:[%s0 + $0x60] sm:$0xff]
    %v114 = vld [vmem:[%s0 + $0x68] sm:$0xf]
    %v115 = vld [vmem:[%s0 + $0x6c] sm:$0xff]
    %v116 = vld [vmem:[%s0 + $0x74] sm:$0xff]
    %v117 = vld [vmem:[%s0 + $0x7c] sm:$0xff]
    %v118 = vld [vmem:[%s0 + $0x84] sm:$0xff]
    %v119 = vld [vmem:[%s0 + $0x8c] sm:$0xf]
    %v120 = vld [vmem:[%s0 + $0x90] sm:$0xff]
    %v121 = vld [vmem:[%s0 + $0x98] sm:$0xff]
    %v122 = vld [vmem:[%s0 + $0xa0] sm:$0xff]
    %v123 = vld [vmem:[%s0 + $0xa8] sm:$0xff]
    %v124 = vld [vmem:[%s0 + $0xb0] sm:$0xf]
    %v125 = vld [vmem:[%s0 + $0xb4] sm:$0xff]
    %v126 = vld [vmem:[%s0 + $0xbc] sm:$0xff]
    %v127 = vld [vmem:[%s0 + $0xc4] sm:$0xff]
    %v128 = vld [vmem:[%s0 + $0xcc] sm:$0xff]
    %v129 = vld [vmem:[%s0 + $0xd4] sm:$0xf]
    %v134 = vunpack.c.l.b16 %v96
    %v135 = vunpack.c.l.b16 %v97
    %v136 = vunpack.c.l.b16 %v98
    %v137 = vunpack.c.l.b16 %v99
    %v138 = vpack.c.b16 %v135, %v134
    %v139 = vpack.c.b16 %v137, %v136
    %v170 = vunpack.c.l.b16 %v100
    %v171 = vunpack.c.h.b16 %v100
    %v172 = vunpack.c.l.b16 %v101
    %v173 = vunpack.c.h.b16 %v101
    %v174 = vunpack.c.l.b16 %v102
    %v175 = vunpack.c.h.b16 %v102
    %v176 = vunpack.c.l.b16 %v103
    %v177 = vunpack.c.h.b16 %v103
    %v178 = vunpack.c.l.b16 %v104
    %v179 = vunpack.c.l.b16 %v105
    %v180 = vunpack.c.h.b16 %v105
    %v181 = vunpack.c.l.b16 %v106
    %v182 = vunpack.c.h.b16 %v106
    %v183 = vunpack.c.l.b16 %v107
    %v184 = vunpack.c.h.b16 %v107
    %v185 = vunpack.c.l.b16 %v108
    %v186 = vunpack.c.h.b16 %v108
    %v187 = vunpack.c.l.b16 %v109
    %v188 = vunpack.c.l.b16 %v110
    %v189 = vunpack.c.h.b16 %v110
    %v190 = vunpack.c.l.b16 %v111
    %v191 = vunpack.c.h.b16 %v111
    %v192 = vunpack.c.l.b16 %v112
    %v193 = vunpack.c.h.b16 %v112
    %v194 = vunpack.c.l.b16 %v113
    %v195 = vunpack.c.h.b16 %v113
    %v196 = vunpack.c.l.b16 %v114
    %v197 = vunpack.c.l.b16 %v115
    %v198 = vunpack.c.h.b16 %v115
    %v199 = vunpack.c.l.b16 %v116
    %v200 = vunpack.c.h.b16 %v116
    %v201 = vunpack.c.l.b16 %v117
    %v202 = vunpack.c.h.b16 %v117
    %v203 = vunpack.c.l.b16 %v118
    %v204 = vunpack.c.h.b16 %v118
    %v205 = vunpack.c.l.b16 %v119
    %v206 = vunpack.c.l.b16 %v120
    %v207 = vunpack.c.h.b16 %v120
    %v208 = vunpack.c.l.b16 %v121
    %v209 = vunpack.c.h.b16 %v121
    %v210 = vunpack.c.l.b16 %v122
    %v211 = vunpack.c.h.b16 %v122
    %v212 = vunpack.c.l.b16 %v123
    %v213 = vunpack.c.h.b16 %v123
    %v214 = vunpack.c.l.b16 %v124
    %v215 = vunpack.c.l.b16 %v125
    %v216 = vunpack.c.h.b16 %v125
    %v217 = vunpack.c.l.b16 %v126
    %v218 = vunpack.c.h.b16 %v126
    %v219 = vunpack.c.l.b16 %v127
    %v220 = vunpack.c.h.b16 %v127
    %v221 = vunpack.c.l.b16 %v128
    %v222 = vunpack.c.h.b16 %v128
    %v223 = vunpack.c.l.b16 %v129
    %v224 = vpack.c.b16 %v179, %v170
    %v225 = vpack.c.b16 %v180, %v171
    %v226 = vpack.c.b16 %v181, %v172
    %v227 = vpack.c.b16 %v182, %v173
    %v228 = vpack.c.b16 %v183, %v174
    %v229 = vpack.c.b16 %v184, %v175
    %v230 = vpack.c.b16 %v185, %v176
    %v231 = vpack.c.b16 %v186, %v177
    %v232 = vpack.c.b16 %v187, %v178
    %v233 = vpack.c.b16 %v197, %v188
    %v234 = vpack.c.b16 %v198, %v189
    %v235 = vpack.c.b16 %v199, %v190
    %v236 = vpack.c.b16 %v200, %v191
    %v237 = vpack.c.b16 %v201, %v192
    %v238 = vpack.c.b16 %v202, %v193
    %v239 = vpack.c.b16 %v203, %v194
    %v240 = vpack.c.b16 %v204, %v195
    %v241 = vpack.c.b16 %v205, %v196
    %v242 = vpack.c.b16 %v215, %v206
    %v243 = vpack.c.b16 %v216, %v207
    %v244 = vpack.c.b16 %v217, %v208
    %v245 = vpack.c.b16 %v218, %v209
    %v246 = vpack.c.b16 %v219, %v210
    %v247 = vpack.c.b16 %v220, %v211
    %v248 = vpack.c.b16 %v221, %v212
    %v249 = vpack.c.b16 %v222, %v213
    %v250 = vpack.c.b16 %v223, %v214
    %251 = vrot.lane.b32.xlu0 %v224, 124
    %v252 = vpop.permute.xlu0 %251
    %253 = vrot.lane.b32.xlu0 %v225, 124
    %v254 = vpop.permute.xlu0 %253
    %255 = vrot.lane.b32.xlu0 %v226, 124
    %v256 = vpop.permute.xlu0 %255
    %257 = vrot.lane.b32.xlu0 %v227, 124
    %v258 = vpop.permute.xlu0 %257
    %259 = vrot.lane.b32.xlu0 %v228, 124
    %v260 = vpop.permute.xlu0 %259
    %261 = vrot.lane.b32.xlu0 %v229, 124
    %v262 = vpop.permute.xlu0 %261
    %263 = vrot.lane.b32.xlu0 %v230, 124
    %v264 = vpop.permute.xlu0 %263
    %265 = vrot.lane.b32.xlu0 %v231, 124
    %v266 = vpop.permute.xlu0 %265
    %267 = vrot.lane.b32.xlu0 %v232, 124
    %v268 = vpop.permute.xlu0 %267
    %269 = vrot.lane.b32.xlu0 %v233, 124
    %v270 = vpop.permute.xlu0 %269
    %271 = vrot.lane.b32.xlu0 %v234, 124
    %v272 = vpop.permute.xlu0 %271
    %273 = vrot.lane.b32.xlu0 %v235, 124
    %v274 = vpop.permute.xlu0 %273
    %275 = vrot.lane.b32.xlu0 %v236, 124
    %v276 = vpop.permute.xlu0 %275
    %277 = vrot.lane.b32.xlu0 %v237, 124
    %v278 = vpop.permute.xlu0 %277
    %279 = vrot.lane.b32.xlu0 %v238, 124
    %v280 = vpop.permute.xlu0 %279
    %281 = vrot.lane.b32.xlu0 %v239, 124
    %v282 = vpop.permute.xlu0 %281
    %283 = vrot.lane.b32.xlu0 %v240, 124
    %v284 = vpop.permute.xlu0 %283
    %285 = vrot.lane.b32.xlu0 %v241, 124
    %v286 = vpop.permute.xlu0 %285
    %287 = vrot.lane.b32.xlu0 %v242, 124
    %v288 = vpop.permute.xlu0 %287
    %289 = vrot.lane.b32.xlu0 %v243, 124
    %v290 = vpop.permute.xlu0 %289
    %291 = vrot.lane.b32.xlu0 %v244, 124
    %v292 = vpop.permute.xlu0 %291
    %293 = vrot.lane.b32.xlu0 %v245, 124
    %v294 = vpop.permute.xlu0 %293
    %295 = vrot.lane.b32.xlu0 %v246, 124
    %v296 = vpop.permute.xlu0 %295
    %297 = vrot.lane.b32.xlu0 %v247, 124
    %v298 = vpop.permute.xlu0 %297
    %299 = vrot.lane.b32.xlu0 %v248, 124
    %v300 = vpop.permute.xlu0 %299
    %301 = vrot.lane.b32.xlu0 %v249, 124
    %v302 = vpop.permute.xlu0 %301
    %303 = vrot.lane.b32.xlu0 %v250, 124
    %v304 = vpop.permute.xlu0 %303
    %vm305 = vcmask 1014784
    %v306 = vsel %vm305, %v252, %v254
    %v307 = vsel %vm305, %v254, %v256
    %v308 = vsel %vm305, %v256, %v258
    %v309 = vsel %vm305, %v258, %v260
    %v310 = vsel %vm305, %v260, %v262
    %v311 = vsel %vm305, %v262, %v264
    %v312 = vsel %vm305, %v264, %v266
    %v313 = vsel %vm305, %v266, %v268
    %v314 = vsel %vm305, %v270, %v272
    %v315 = vsel %vm305, %v272, %v274
    %v316 = vsel %vm305, %v274, %v276
    %v317 = vsel %vm305, %v276, %v278
    %v318 = vsel %vm305, %v278, %v280
    %v319 = vsel %vm305, %v280, %v282
    %v320 = vsel %vm305, %v282, %v284
    %v321 = vsel %vm305, %v284, %v286
    %v322 = vsel %vm305, %v288, %v290
    %v323 = vsel %vm305, %v290, %v292
    %v324 = vsel %vm305, %v292, %v294
    %v325 = vsel %vm305, %v294, %v296
    %v326 = vsel %vm305, %v296, %v298
    %v327 = vsel %vm305, %v298, %v300
    %v328 = vsel %vm305, %v300, %v302
    %v329 = vsel %vm305, %v302, %v304
    %vm354 = vcmask 392192
    %v356 = vsel %vm354, %v138, 0
    %v359 = vsel %vm354, %v139, 0
    %361 = vmatprep.subr.bf16.mxu0 %v307
    %362 = vmatpush1.bf16.msra.mxu0 %v306
    %363 = vmatprep.subr.bf16.mxu0 %v315
    %364 = vmatpush1.bf16.msra.mxu0 %v314
    %365 = vmatprep.subr.bf16.mxu0 %v323
    %366 = vmatpush1.bf16.msra.mxu0 %v322
    %367 = vmatprep.subr.bf16.mxu0 0
    %368 = vmatpush1.bf16.msra.mxu0 0
    %369 = vmatprep.subr.bf16.mxu0 0
    %370 = vmatpush1.bf16.msra.mxu0 0
    %371 = vmatprep.subr.bf16.mxu0 0
    %372 = vmatpush1.bf16.msra.mxu0 0
    %373 = vmatprep.subr.bf16.mxu0 0
    %374 = vmatpush1.bf16.msra.mxu0 0
    %375 = vmatprep.subr.bf16.mxu0 0
    %376 = vmatpush1.bf16.msra.mxu0 0
    %377 = vmatprep.subr.bf16.mxu0 0
    %378 = vmatpush1.bf16.msra.mxu0 0
    %379 = vmatprep.subr.bf16.mxu0 0
    %380 = vmatpush1.bf16.msra.mxu0 0
    %381 = vmatprep.subr.bf16.mxu0 0
    %382 = vmatpush1.bf16.msra.mxu0 0
    %383 = vmatprep.subr.bf16.mxu0 0
    %384 = vmatpush1.bf16.msra.mxu0 0
    %385 = vmatprep.subr.bf16.mxu0 0
    %386 = vmatpush1.bf16.msra.mxu0 0
    %387 = vmatprep.subr.bf16.mxu0 0
    %388 = vmatpush1.bf16.msra.mxu0 0
    %389 = vmatprep.subr.bf16.mxu0 0
    %390 = vmatpush1.bf16.msra.mxu0 0
    %391 = vmatprep.subr.bf16.mxu0 0
    %392 = vmatpush1.bf16.msra.mxu0 0
    %393 = vmatprep.mubr.bf16.mxu0 0
    %394 = vmatmul.mubr.bf16.gmra.mrb[0].mxu0 %v356
    %v395 = vpop.f32.mrb[0].mxu0
    %v396 = vadd.f32 0.0, %v395
    %v397 = vpop.f32.mrb[0].mxu0
    %v398 = vadd.f32 0.0, %v397
    %v399 = vpop.f32.mrb[0].mxu0
    %v400 = vadd.f32 0.0, %v399
    %v401 = vpop.f32.mrb[0].mxu0
    %v402 = vadd.f32 0.0, %v401
    %403 = vmatprep.mubr.bf16.mxu0 0
    %404 = vmatmul.mubr.bf16.gmra.mrb[0].mxu0 %v359
    %v405 = vpop.f32.mrb[0].mxu0
    %v406 = vadd.f32 0.0, %v405
    %v407 = vpop.f32.mrb[0].mxu0
    %v408 = vadd.f32 0.0, %v407
    %v409 = vpop.f32.mrb[0].mxu0
    %v410 = vadd.f32 0.0, %v409
    %v411 = vpop.f32.mrb[0].mxu0
    %v412 = vadd.f32 0.0, %v411
    %413 = vdwg.mxu0
    %414 = vmatprep.subr.bf16.mxu0 %v309
    %415 = vmatpush1.bf16.msra.mxu0 %v308
    %416 = vmatprep.subr.bf16.mxu0 %v317
    %417 = vmatpush1.bf16.msra.mxu0 %v316
    %418 = vmatprep.subr.bf16.mxu0 %v325
    %419 = vmatpush1.bf16.msra.mxu0 %v324
    %420 = vmatprep.subr.bf16.mxu0 0
    %421 = vmatpush1.bf16.msra.mxu0 0
    %422 = vmatprep.subr.bf16.mxu0 0
    %423 = vmatpush1.bf16.msra.mxu0 0
    %424 = vmatprep.subr.bf16.mxu0 0
    %425 = vmatpush1.bf16.msra.mxu0 0
    %426 = vmatprep.subr.bf16.mxu0 0
    %427 = vmatpush1.bf16.msra.mxu0 0
    %428 = vmatprep.subr.bf16.mxu0 0
    %429 = vmatpush1.bf16.msra.mxu0 0
    %430 = vmatprep.subr.bf16.mxu0 0
    %431 = vmatpush1.bf16.msra.mxu0 0
    %432 = vmatprep.subr.bf16.mxu0 0
    %433 = vmatpush1.bf16.msra.mxu0 0
    %434 = vmatprep.subr.bf16.mxu0 0
    %435 = vmatpush1.bf16.msra.mxu0 0
    %436 = vmatprep.subr.bf16.mxu0 0
    %437 = vmatpush1.bf16.msra.mxu0 0
    %438 = vmatprep.subr.bf16.mxu0 0
    %439 = vmatpush1.bf16.msra.mxu0 0
    %440 = vmatprep.subr.bf16.mxu0 0
    %441 = vmatpush1.bf16.msra.mxu0 0
    %442 = vmatprep.subr.bf16.mxu0 0
    %443 = vmatpush1.bf16.msra.mxu0 0
    %444 = vmatprep.subr.bf16.mxu0 0
    %445 = vmatpush1.bf16.msra.mxu0 0
    %446 = vmatprep.mubr.bf16.mxu0 0
    %447 = vmatmul.mubr.bf16.gmra.mrb[0].mxu0 %v356
    %v448 = vpop.f32.mrb[0].mxu0
    %v449 = vadd.f32 0.0, %v448
    %v450 = vpop.f32.mrb[0].mxu0
    %v451 = vadd.f32 0.0, %v450
    %v452 = vpop.f32.mrb[0].mxu0
    %v453 = vadd.f32 0.0, %v452
    %v454 = vpop.f32.mrb[0].mxu0
    %v455 = vadd.f32 0.0, %v454
    %456 = vmatprep.mubr.bf16.mxu0 0
    %457 = vmatmul.mubr.bf16.gmra.mrb[0].mxu0 %v359
    %v458 = vpop.f32.mrb[0].mxu0
    %v459 = vadd.f32 0.0, %v458
    %v460 = vpop.f32.mrb[0].mxu0
    %v461 = vadd.f32 0.0, %v460
    %v462 = vpop.f32.mrb[0].mxu0
    %v463 = vadd.f32 0.0, %v462
    %v464 = vpop.f32.mrb[0].mxu0
    %v465 = vadd.f32 0.0, %v464
    %466 = vdwg.mxu0
    %467 = vmatprep.subr.bf16.mxu0 %v311
    %468 = vmatpush1.bf16.msra.mxu0 %v310
    %469 = vmatprep.subr.bf16.mxu0 %v319
    %470 = vmatpush1.bf16.msra.mxu0 %v318
    %471 = vmatprep.subr.bf16.mxu0 %v327
    %472 = vmatpush1.bf16.msra.mxu0 %v326
    %473 = vmatprep.subr.bf16.mxu0 0
    %474 = vmatpush1.bf16.msra.mxu0 0
    %475 = vmatprep.subr.bf16.mxu0 0
    %476 = vmatpush1.bf16.msra.mxu0 0
    %477 = vmatprep.subr.bf16.mxu0 0
    %478 = vmatpush1.bf16.msra.mxu0 0
    %479 = vmatprep.subr.bf16.mxu0 0
    %480 = vmatpush1.bf16.msra.mxu0 0
    %481 = vmatprep.subr.bf16.mxu0 0
    %482 = vmatpush1.bf16.msra.mxu0 0
    %483 = vmatprep.subr.bf16.mxu0 0
    %484 = vmatpush1.bf16.msra.mxu0 0
    %485 = vmatprep.subr.bf16.mxu0 0
    %486 = vmatpush1.bf16.msra.mxu0 0
    %487 = vmatprep.subr.bf16.mxu0 0
    %488 = vmatpush1.bf16.msra.mxu0 0
    %489 = vmatprep.subr.bf16.mxu0 0
    %490 = vmatpush1.bf16.msra.mxu0 0
    %491 = vmatprep.subr.bf16.mxu0 0
    %492 = vmatpush1.bf16.msra.mxu0 0
    %493 = vmatprep.subr.bf16.mxu0 0
    %494 = vmatpush1.bf16.msra.mxu0 0
    %495 = vmatprep.subr.bf16.mxu0 0
    %496 = vmatpush1.bf16.msra.mxu0 0
    %497 = vmatprep.subr.bf16.mxu0 0
    %498 = vmatpush1.bf16.msra.mxu0 0
    %499 = vmatprep.mubr.bf16.mxu0 0
    %500 = vmatmul.mubr.bf16.gmra.mrb[0].mxu0 %v356
    %v501 = vpop.f32.mrb[0].mxu0
    %v502 = vadd.f32 0.0, %v501
    %v503 = vpop.f32.mrb[0].mxu0
    %v504 = vadd.f32 0.0, %v503
    %v505 = vpop.f32.mrb[0].mxu0
    %v506 = vadd.f32 0.0, %v505
    %v507 = vpop.f32.mrb[0].mxu0
    %v508 = vadd.f32 0.0, %v507
    %509 = vmatprep.mubr.bf16.mxu0 0
    %510 = vmatmul.mubr.bf16.gmra.mrb[0].mxu0 %v359
    %v511 = vpop.f32.mrb[0].mxu0
    %v512 = vadd.f32 0.0, %v511
    %v513 = vpop.f32.mrb[0].mxu0
    %v514 = vadd.f32 0.0, %v513
    %v515 = vpop.f32.mrb[0].mxu0
    %v516 = vadd.f32 0.0, %v515
    %v517 = vpop.f32.mrb[0].mxu0
    %v518 = vadd.f32 0.0, %v517
    %519 = vdwg.mxu0
    %520 = vmatprep.subr.bf16.mxu0 %v313
    %521 = vmatpush1.bf16.msra.mxu0 %v312
    %522 = vmatprep.subr.bf16.mxu0 %v321
    %523 = vmatpush1.bf16.msra.mxu0 %v320
    %524 = vmatprep.subr.bf16.mxu0 %v329
    %525 = vmatpush1.bf16.msra.mxu0 %v328
    %526 = vmatprep.subr.bf16.mxu0 0
    %527 = vmatpush1.bf16.msra.mxu0 0
    %528 = vmatprep.subr.bf16.mxu0 0
    %529 = vmatpush1.bf16.msra.mxu0 0
    %530 = vmatprep.subr.bf16.mxu0 0
    %531 = vmatpush1.bf16.msra.mxu0 0
    %532 = vmatprep.subr.bf16.mxu0 0
    %533 = vmatpush1.bf16.msra.mxu0 0
    %534 = vmatprep.subr.bf16.mxu0 0
    %535 = vmatpush1.bf16.msra.mxu0 0
    %536 = vmatprep.subr.bf16.mxu0 0
    %537 = vmatpush1.bf16.msra.mxu0 0
    %538 = vmatprep.subr.bf16.mxu0 0
    %539 = vmatpush1.bf16.msra.mxu0 0
    %540 = vmatprep.subr.bf16.mxu0 0
    %541 = vmatpush1.bf16.msra.mxu0 0
    %542 = vmatprep.subr.bf16.mxu0 0
    %543 = vmatpush1.bf16.msra.mxu0 0
    %544 = vmatprep.subr.bf16.mxu0 0
    %545 = vmatpush1.bf16.msra.mxu0 0
    %546 = vmatprep.subr.bf16.mxu0 0
    %547 = vmatpush1.bf16.msra.mxu0 0
    %548 = vmatprep.subr.bf16.mxu0 0
    %549 = vmatpush1.bf16.msra.mxu0 0
    %550 = vmatprep.subr.bf16.mxu0 0
    %551 = vmatpush1.bf16.msra.mxu0 0
    %552 = vmatprep.mubr.bf16.mxu0 0
    %553 = vmatmul.mubr.bf16.gmra.mrb[0].mxu0 %v356
    %v554 = vpop.f32.mrb[0].mxu0
    %v555 = vadd.f32 0.0, %v554
    %v556 = vpop.f32.mrb[0].mxu0
    %v557 = vadd.f32 0.0, %v556
    %v558 = vpop.f32.mrb[0].mxu0
    %v559 = vadd.f32 0.0, %v558
    %v560 = vpop.f32.mrb[0].mxu0
    %v561 = vadd.f32 0.0, %v560
    %562 = vmatprep.mubr.bf16.mxu0 0
    %563 = vmatmul.mubr.bf16.gmra.mrb[0].mxu0 %v359
    %v564 = vpop.f32.mrb[0].mxu0
    %v565 = vadd.f32 0.0, %v564
    %v566 = vpop.f32.mrb[0].mxu0
    %v567 = vadd.f32 0.0, %v566
    %v568 = vpop.f32.mrb[0].mxu0
    %v569 = vadd.f32 0.0, %v568
    %v570 = vpop.f32.mrb[0].mxu0
    %v571 = vadd.f32 0.0, %v570
    %572 = vdwg.mxu0
    %v577 = vunpack.c.l.b16 %v67
    %v578 = vunpack.c.l.b16 %v68
    %v579 = vunpack.c.l.b16 %v69
    %v580 = vunpack.c.l.b16 %v70
    %v581 = vpack.c.b16 %v578, %v577
    %v582 = vpack.c.b16 %v580, %v579
    %v607 = vunpack.c.l.b16 %v71
    %v608 = vunpack.c.h.b16 %v71
    %v609 = vunpack.c.l.b16 %v72
    %v610 = vunpack.c.h.b16 %v72
    %v611 = vunpack.c.l.b16 %v73
    %v612 = vunpack.c.h.b16 %v73
    %v613 = vunpack.c.l.b16 %v74
    %v614 = vunpack.c.h.b16 %v74
    %v615 = vunpack.c.l.b16 %v75
    %v616 = vunpack.c.h.b16 %v75
    %v617 = vunpack.c.l.b16 %v76
    %v618 = vunpack.c.h.b16 %v76
    %v619 = vunpack.c.l.b16 %v77
    %v620 = vunpack.c.h.b16 %v77
    %v621 = vunpack.c.l.b16 %v78
    %v622 = vunpack.c.h.b16 %v78
    %v623 = vunpack.c.l.b16 %v79
    %v624 = vunpack.c.h.b16 %v79
    %v625 = vunpack.c.l.b16 %v80
    %v626 = vunpack.c.h.b16 %v80
    %v627 = vunpack.c.l.b16 %v81
    %v628 = vunpack.c.h.b16 %v81
    %v629 = vunpack.c.l.b16 %v82
    %v630 = vunpack.c.h.b16 %v82
    %v631 = vunpack.c.l.b16 %v83
    %v632 = vunpack.c.h.b16 %v83
    %v633 = vunpack.c.l.b16 %v84
    %v634 = vunpack.c.h.b16 %v84
    %v635 = vunpack.c.l.b16 %v85
    %v636 = vunpack.c.h.b16 %v85
    %v637 = vunpack.c.l.b16 %v86
    %v638 = vunpack.c.h.b16 %v86
    %v639 = vunpack.c.l.b16 %v87
    %v640 = vunpack.c.h.b16 %v87
    %v641 = vunpack.c.l.b16 %v88
    %v642 = vunpack.c.h.b16 %v88
    %v643 = vunpack.c.l.b16 %v89
    %v644 = vunpack.c.h.b16 %v89
    %v645 = vunpack.c.l.b16 %v90
    %v646 = vunpack.c.h.b16 %v90
    %v647 = vunpack.c.l.b16 %v91
    %v648 = vunpack.c.h.b16 %v91
    %v649 = vunpack.c.l.b16 %v92
    %v650 = vunpack.c.h.b16 %v92
    %v651 = vunpack.c.l.b16 %v93
    %v652 = vunpack.c.h.b16 %v93
    %v653 = vunpack.c.l.b16 %v94
    %v654 = vunpack.c.h.b16 %v94
    %v655 = vpack.c.b16 %v615, %v607
    %v656 = vpack.c.b16 %v616, %v608
    %v657 = vpack.c.b16 %v617, %v609
    %v658 = vpack.c.b16 %v618, %v610
    %v659 = vpack.c.b16 %v619, %v611
    %v660 = vpack.c.b16 %v620, %v612
    %v661 = vpack.c.b16 %v621, %v613
    %v662 = vpack.c.b16 %v622, %v614
    %v663 = vpack.c.b16 %v631, %v623
    %v664 = vpack.c.b16 %v632, %v624
    %v665 = vpack.c.b16 %v633, %v625
    %v666 = vpack.c.b16 %v634, %v626
    %v667 = vpack.c.b16 %v635, %v627
    %v668 = vpack.c.b16 %v636, %v628
    %v669 = vpack.c.b16 %v637, %v629
    %v670 = vpack.c.b16 %v638, %v630
    %v671 = vpack.c.b16 %v647, %v639
    %v672 = vpack.c.b16 %v648, %v640
    %v673 = vpack.c.b16 %v649, %v641
    %v674 = vpack.c.b16 %v650, %v642
    %v675 = vpack.c.b16 %v651, %v643
    %v676 = vpack.c.b16 %v652, %v644
    %v677 = vpack.c.b16 %v653, %v645
    %v678 = vpack.c.b16 %v654, %v646
    %v704 = vsel %vm354, %v581, 0
    %v707 = vsel %vm354, %v582, 0
    %709 = vmatprep.subr.bf16.mxu0 %v656
    %710 = vmatpush1.bf16.msra.mxu0 %v655
    %711 = vmatprep.subr.bf16.mxu0 %v664
    %712 = vmatpush1.bf16.msra.mxu0 %v663
    %713 = vmatprep.subr.bf16.mxu0 %v672
    %714 = vmatpush1.bf16.msra.mxu0 %v671
    %715 = vmatprep.subr.bf16.mxu0 0
    %716 = vmatpush1.bf16.msra.mxu0 0
    %717 = vmatprep.subr.bf16.mxu0 0
    %718 = vmatpush1.bf16.msra.mxu0 0
    %719 = vmatprep.subr.bf16.mxu0 0
    %720 = vmatpush1.bf16.msra.mxu0 0
    %721 = vmatprep.subr.bf16.mxu0 0
    %722 = vmatpush1.bf16.msra.mxu0 0
    %723 = vmatprep.subr.bf16.mxu0 0
    %724 = vmatpush1.bf16.msra.mxu0 0
    %725 = vmatprep.subr.bf16.mxu0 0
    %726 = vmatpush1.bf16.msra.mxu0 0
    %727 = vmatprep.subr.bf16.mxu0 0
    %728 = vmatpush1.bf16.msra.mxu0 0
    %729 = vmatprep.subr.bf16.mxu0 0
    %730 = vmatpush1.bf16.msra.mxu0 0
    %731 = vmatprep.subr.bf16.mxu0 0
    %732 = vmatpush1.bf16.msra.mxu0 0
    %733 = vmatprep.subr.bf16.mxu0 0
    %734 = vmatpush1.bf16.msra.mxu0 0
    %735 = vmatprep.subr.bf16.mxu0 0
    %736 = vmatpush1.bf16.msra.mxu0 0
    %737 = vmatprep.subr.bf16.mxu0 0
    %738 = vmatpush1.bf16.msra.mxu0 0
    %739 = vmatprep.subr.bf16.mxu0 0
    %740 = vmatpush1.bf16.msra.mxu0 0
    %741 = vmatprep.mubr.bf16.mxu0 0
    %742 = vmatmul.mubr.bf16.gmra.mrb[0].mxu0 %v704
    %v743 = vpop.f32.mrb[0].mxu0
    %v744 = vadd.f32 %v396, %v743
    %v745 = vpop.f32.mrb[0].mxu0
    %v746 = vadd.f32 %v398, %v745
    %v747 = vpop.f32.mrb[0].mxu0
    %v748 = vadd.f32 %v400, %v747
    %v749 = vpop.f32.mrb[0].mxu0
    %v750 = vadd.f32 %v402, %v749
    %751 = vmatprep.mubr.bf16.mxu0 0
    %752 = vmatmul.mubr.bf16.gmra.mrb[0].mxu0 %v707
    %v753 = vpop.f32.mrb[0].mxu0
    %v754 = vadd.f32 %v406, %v753
    %v755 = vpop.f32.mrb[0].mxu0
    %v756 = vadd.f32 %v408, %v755
    %v757 = vpop.f32.mrb[0].mxu0
    %v758 = vadd.f32 %v410, %v757
    %v759 = vpop.f32.mrb[0].mxu0
    %v760 = vadd.f32 %v412, %v759
    %761 = vdwg.mxu0
    %762 = vmatprep.subr.bf16.mxu0 %v658
    %763 = vmatpush1.bf16.msra.mxu0 %v657
    %764 = vmatprep.subr.bf16.mxu0 %v666
    %765 = vmatpush1.bf16.msra.mxu0 %v665
    %766 = vmatprep.subr.bf16.mxu0 %v674
    %767 = vmatpush1.bf16.msra.mxu0 %v673
    %768 = vmatprep.subr.bf16.mxu0 0
    %769 = vmatpush1.bf16.msra.mxu0 0
    %770 = vmatprep.subr.bf16.mxu0 0
    %771 = vmatpush1.bf16.msra.mxu0 0
    %772 = vmatprep.subr.bf16.mxu0 0
    %773 = vmatpush1.bf16.msra.mxu0 0
    %774 = vmatprep.subr.bf16.mxu0 0
    %775 = vmatpush1.bf16.msra.mxu0 0
    %776 = vmatprep.subr.bf16.mxu0 0
    %777 = vmatpush1.bf16.msra.mxu0 0
    %778 = vmatprep.subr.bf16.mxu0 0
    %779 = vmatpush1.bf16.msra.mxu0 0
    %780 = vmatprep.subr.bf16.mxu0 0
    %781 = vmatpush1.bf16.msra.mxu0 0
    %782 = vmatprep.subr.bf16.mxu0 0
    %783 = vmatpush1.bf16.msra.mxu0 0
    %784 = vmatprep.subr.bf16.mxu0 0
    %785 = vmatpush1.bf16.msra.mxu0 0
    %786 = vmatprep.subr.bf16.mxu0 0
    %787 = vmatpush1.bf16.msra.mxu0 0
    %788 = vmatprep.subr.bf16.mxu0 0
    %789 = vmatpush1.bf16.msra.mxu0 0
    %790 = vmatprep.subr.bf16.mxu0 0
    %791 = vmatpush1.bf16.msra.mxu0 0
    %792 = vmatprep.subr.bf16.mxu0 0
    %793 = vmatpush1.bf16.msra.mxu0 0
    %794 = vmatprep.mubr.bf16.mxu0 0
    %795 = vmatmul.mubr.bf16.gmra.mrb[0].mxu0 %v704
    %v796 = vpop.f32.mrb[0].mxu0
    %v797 = vadd.f32 %v449, %v796
    %v798 = vpop.f32.mrb[0].mxu0
    %v799 = vadd.f32 %v451, %v798
    %v800 = vpop.f32.mrb[0].mxu0
    %v801 = vadd.f32 %v453, %v800
    %v802 = vpop.f32.mrb[0].mxu0
    %v803 = vadd.f32 %v455, %v802
    %804 = vmatprep.mubr.bf16.mxu0 0
    %805 = vmatmul.mubr.bf16.gmra.mrb[0].mxu0 %v707
    %v806 = vpop.f32.mrb[0].mxu0
    %v807 = vadd.f32 %v459, %v806
    %v808 = vpop.f32.mrb[0].mxu0
    %v809 = vadd.f32 %v461, %v808
    %v810 = vpop.f32.mrb[0].mxu0
    %v811 = vadd.f32 %v463, %v810
    %v812 = vpop.f32.mrb[0].mxu0
    %v813 = vadd.f32 %v465, %v812
    %814 = vdwg.mxu0
    %815 = vmatprep.subr.bf16.mxu0 %v660
    %816 = vmatpush1.bf16.msra.mxu0 %v659
    %817 = vmatprep.subr.bf16.mxu0 %v668
    %818 = vmatpush1.bf16.msra.mxu0 %v667
    %819 = vmatprep.subr.bf16.mxu0 %v676
    %820 = vmatpush1.bf16.msra.mxu0 %v675
    %821 = vmatprep.subr.bf16.mxu0 0
    %822 = vmatpush1.bf16.msra.mxu0 0
    %823 = vmatprep.subr.bf16.mxu0 0
    %824 = vmatpush1.bf16.msra.mxu0 0
    %825 = vmatprep.subr.bf16.mxu0 0
    %826 = vmatpush1.bf16.msra.mxu0 0
    %827 = vmatprep.subr.bf16.mxu0 0
    %828 = vmatpush1.bf16.msra.mxu0 0
    %829 = vmatprep.subr.bf16.mxu0 0
    %830 = vmatpush1.bf16.msra.mxu0 0
    %831 = vmatprep.subr.bf16.mxu0 0
    %832 = vmatpush1.bf16.msra.mxu0 0
    %833 = vmatprep.subr.bf16.mxu0 0
    %834 = vmatpush1.bf16.msra.mxu0 0
    %835 = vmatprep.subr.bf16.mxu0 0
    %836 = vmatpush1.bf16.msra.mxu0 0
    %837 = vmatprep.subr.bf16.mxu0 0
    %838 = vmatpush1.bf16.msra.mxu0 0
    %839 = vmatprep.subr.bf16.mxu0 0
    %840 = vmatpush1.bf16.msra.mxu0 0
    %841 = vmatprep.subr.bf16.mxu0 0
    %842 = vmatpush1.bf16.msra.mxu0 0
    %843 = vmatprep.subr.bf16.mxu0 0
    %844 = vmatpush1.bf16.msra.mxu0 0
    %845 = vmatprep.subr.bf16.mxu0 0
    %846 = vmatpush1.bf16.msra.mxu0 0
    %847 = vmatprep.mubr.bf16.mxu0 0
    %848 = vmatmul.mubr.bf16.gmra.mrb[0].mxu0 %v704
    %v849 = vpop.f32.mrb[0].mxu0
    %v850 = vadd.f32 %v502, %v849
    %v851 = vpop.f32.mrb[0].mxu0
    %v852 = vadd.f32 %v504, %v851
    %v853 = vpop.f32.mrb[0].mxu0
    %v854 = vadd.f32 %v506, %v853
    %v855 = vpop.f32.mrb[0].mxu0
    %v856 = vadd.f32 %v508, %v855
    %857 = vmatprep.mubr.bf16.mxu0 0
    %858 = vmatmul.mubr.bf16.gmra.mrb[0].mxu0 %v707
    %v859 = vpop.f32.mrb[0].mxu0
    %v860 = vadd.f32 %v512, %v859
    %v861 = vpop.f32.mrb[0].mxu0
    %v862 = vadd.f32 %v514, %v861
    %v863 = vpop.f32.mrb[0].mxu0
    %v864 = vadd.f32 %v516, %v863
    %v865 = vpop.f32.mrb[0].mxu0
    %v866 = vadd.f32 %v518, %v865
    %867 = vdwg.mxu0
    %868 = vmatprep.subr.bf16.mxu0 %v662
    %869 = vmatpush1.bf16.msra.mxu0 %v661
    %870 = vmatprep.subr.bf16.mxu0 %v670
    %871 = vmatpush1.bf16.msra.mxu0 %v669
    %872 = vmatprep.subr.bf16.mxu0 %v678
    %873 = vmatpush1.bf16.msra.mxu0 %v677
    %874 = vmatprep.subr.bf16.mxu0 0
    %875 = vmatpush1.bf16.msra.mxu0 0
    %876 = vmatprep.subr.bf16.mxu0 0
    %877 = vmatpush1.bf16.msra.mxu0 0
    %878 = vmatprep.subr.bf16.mxu0 0
    %879 = vmatpush1.bf16.msra.mxu0 0
    %880 = vmatprep.subr.bf16.mxu0 0
    %881 = vmatpush1.bf16.msra.mxu0 0
    %882 = vmatprep.subr.bf16.mxu0 0
    %883 = vmatpush1.bf16.msra.mxu0 0
    %884 = vmatprep.subr.bf16.mxu0 0
    %885 = vmatpush1.bf16.msra.mxu0 0
    %886 = vmatprep.subr.bf16.mxu0 0
    %887 = vmatpush1.bf16.msra.mxu0 0
    %888 = vmatprep.subr.bf16.mxu0 0
    %889 = vmatpush1.bf16.msra.mxu0 0
    %890 = vmatprep.subr.bf16.mxu0 0
    %891 = vmatpush1.bf16.msra.mxu0 0
    %892 = vmatprep.subr.bf16.mxu0 0
    %893 = vmatpush1.bf16.msra.mxu0 0
    %894 = vmatprep.subr.bf16.mxu0 0
    %895 = vmatpush1.bf16.msra.mxu0 0
    %896 = vmatprep.subr.bf16.mxu0 0
    %897 = vmatpush1.bf16.msra.mxu0 0
    %898 = vmatprep.subr.bf16.mxu0 0
    %899 = vmatpush1.bf16.msra.mxu0 0
    %900 = vmatprep.mubr.bf16.mxu0 0
    %901 = vmatmul.mubr.bf16.gmra.mrb[0].mxu0 %v704
    %v902 = vpop.f32.mrb[0].mxu0
    %v903 = vadd.f32 %v555, %v902
    %v904 = vpop.f32.mrb[0].mxu0
    %v905 = vadd.f32 %v557, %v904
    %v906 = vpop.f32.mrb[0].mxu0
    %v907 = vadd.f32 %v559, %v906
    %v908 = vpop.f32.mrb[0].mxu0
    %v909 = vadd.f32 %v561, %v908
    %910 = vmatprep.mubr.bf16.mxu0 0
    %911 = vmatmul.mubr.bf16.gmra.mrb[0].mxu0 %v707
    %v912 = vpop.f32.mrb[0].mxu0
    %v913 = vadd.f32 %v565, %v912
    %v914 = vpop.f32.mrb[0].mxu0
    %v915 = vadd.f32 %v567, %v914
    %v916 = vpop.f32.mrb[0].mxu0
    %v917 = vadd.f32 %v569, %v916
    %v918 = vpop.f32.mrb[0].mxu0
    %v919 = vadd.f32 %v571, %v918
    %920 = vdwg.mxu0
    %s921 = scalar_lea.vmem %s3, 32
    %v922 = vld [vmem:[%s921] sm:$0xf]
    %v923 = vld [vmem:[%s921 + $0x4] sm:$0xf]
    %v924 = vld [vmem:[%s921 + $0x8] sm:$0xf]
    %v925 = vld [vmem:[%s921 + $0xc] sm:$0xf]
    %v930 = vunpack.c.l.b16 %v922
    %v931 = vunpack.c.l.b16 %v923
    %v932 = vunpack.c.l.b16 %v924
    %v933 = vunpack.c.l.b16 %v925
    %v934 = vpack.c.b16 %v931, %v930
    %v935 = vpack.c.b16 %v933, %v932
    %936 = vrot.lane.b32.xlu0 %v224, 64
    %v937 = vpop.permute.xlu0 %936
    %938 = vrot.lane.b32.xlu0 %v225, 64
    %v939 = vpop.permute.xlu0 %938
    %940 = vrot.lane.b32.xlu0 %v226, 64
    %v941 = vpop.permute.xlu0 %940
    %942 = vrot.lane.b32.xlu0 %v227, 64
    %v943 = vpop.permute.xlu0 %942
    %944 = vrot.lane.b32.xlu0 %v228, 64
    %v945 = vpop.permute.xlu0 %944
    %946 = vrot.lane.b32.xlu0 %v229, 64
    %v947 = vpop.permute.xlu0 %946
    %948 = vrot.lane.b32.xlu0 %v230, 64
    %v949 = vpop.permute.xlu0 %948
    %950 = vrot.lane.b32.xlu0 %v231, 64
    %v951 = vpop.permute.xlu0 %950
    %952 = vrot.lane.b32.xlu0 %v232, 64
    %v953 = vpop.permute.xlu0 %952
    %954 = vrot.lane.b32.xlu0 %v233, 64
    %v955 = vpop.permute.xlu0 %954
    %956 = vrot.lane.b32.xlu0 %v234, 64
    %v957 = vpop.permute.xlu0 %956
    %958 = vrot.lane.b32.xlu0 %v235, 64
    %v959 = vpop.permute.xlu0 %958
    %960 = vrot.lane.b32.xlu0 %v236, 64
    %v961 = vpop.permute.xlu0 %960
    %962 = vrot.lane.b32.xlu0 %v237, 64
    %v963 = vpop.permute.xlu0 %962
    %964 = vrot.lane.b32.xlu0 %v238, 64
    %v965 = vpop.permute.xlu0 %964
    %966 = vrot.lane.b32.xlu0 %v239, 64
    %v967 = vpop.permute.xlu0 %966
    %968 = vrot.lane.b32.xlu0 %v240, 64
    %v969 = vpop.permute.xlu0 %968
    %970 = vrot.lane.b32.xlu0 %v241, 64
    %v971 = vpop.permute.xlu0 %970
    %972 = vrot.lane.b32.xlu0 %v242, 64
    %v973 = vpop.permute.xlu0 %972
    %974 = vrot.lane.b32.xlu0 %v243, 64
    %v975 = vpop.permute.xlu0 %974
    %976 = vrot.lane.b32.xlu0 %v244, 64
    %v977 = vpop.permute.xlu0 %976
    %978 = vrot.lane.b32.xlu0 %v245, 64
    %v979 = vpop.permute.xlu0 %978
    %980 = vrot.lane.b32.xlu0 %v246, 64
    %v981 = vpop.permute.xlu0 %980
    %982 = vrot.lane.b32.xlu0 %v247, 64
    %v983 = vpop.permute.xlu0 %982
    %984 = vrot.lane.b32.xlu0 %v248, 64
    %v985 = vpop.permute.xlu0 %984
    %986 = vrot.lane.b32.xlu0 %v249, 64
    %v987 = vpop.permute.xlu0 %986
    %988 = vrot.lane.b32.xlu0 %v250, 64
    %v989 = vpop.permute.xlu0 %988
    %vm990 = vcmask 523264
    %v991 = vsel %vm990, %v937, %v939
    %v992 = vsel %vm990, %v939, %v941
    %v993 = vsel %vm990, %v941, %v943
    %v994 = vsel %vm990, %v943, %v945
    %v995 = vsel %vm990, %v945, %v947
    %v996 = vsel %vm990, %v947, %v949
    %v997 = vsel %vm990, %v949, %v951
    %v998 = vsel %vm990, %v951, %v953
    %v999 = vsel %vm990, %v955, %v957
    %v1000 = vsel %vm990, %v957, %v959
    %v1001 = vsel %vm990, %v959, %v961
    %v1002 = vsel %vm990, %v961, %v963
    %v1003 = vsel %vm990, %v963, %v965
    %v1004 = vsel %vm990, %v965, %v967
    %v1005 = vsel %vm990, %v967, %v969
    %v1006 = vsel %vm990, %v969, %v971
    %v1007 = vsel %vm990, %v973, %v975
    %v1008 = vsel %vm990, %v975, %v977
    %v1009 = vsel %vm990, %v977, %v979
    %v1010 = vsel %vm990, %v979, %v981
    %v1011 = vsel %vm990, %v981, %v983
    %v1012 = vsel %vm990, %v983, %v985
    %v1013 = vsel %vm990, %v985, %v987
    %v1014 = vsel %vm990, %v987, %v989
    %v1040 = vsel %vm354, %v934, 0
    %v1043 = vsel %vm354, %v935, 0
    %1045 = vmatprep.subr.bf16.mxu0 %v992
    %1046 = vmatpush1.bf16.msra.mxu0 %v991
    %1047 = vmatprep.subr.bf16.mxu0 %v1000
    %1048 = vmatpush1.bf16.msra.mxu0 %v999
    %1049 = vmatprep.subr.bf16.mxu0 %v1008
    %1050 = vmatpush1.bf16.msra.mxu0 %v1007
    %1051 = vmatprep.subr.bf16.mxu0 0
    %1052 = vmatpush1.bf16.msra.mxu0 0
    %1053 = vmatprep.subr.bf16.mxu0 0
    %1054 = vmatpush1.bf16.msra.mxu0 0
    %1055 = vmatprep.subr.bf16.mxu0 0
    %1056 = vmatpush1.bf16.msra.mxu0 0
    %1057 = vmatprep.subr.bf16.mxu0 0
    %1058 = vmatpush1.bf16.msra.mxu0 0
    %1059 = vmatprep.subr.bf16.mxu0 0
    %1060 = vmatpush1.bf16.msra.mxu0 0
    %1061 = vmatprep.subr.bf16.mxu0 0
    %1062 = vmatpush1.bf16.msra.mxu0 0
    %1063 = vmatprep.subr.bf16.mxu0 0
    %1064 = vmatpush1.bf16.msra.mxu0 0
    %1065 = vmatprep.subr.bf16.mxu0 0
    %1066 = vmatpush1.bf16.msra.mxu0 0
    %1067 = vmatprep.subr.bf16.mxu0 0
    %1068 = vmatpush1.bf16.msra.mxu0 0
    %1069 = vmatprep.subr.bf16.mxu0 0
    %1070 = vmatpush1.bf16.msra.mxu0 0
    %1071 = vmatprep.subr.bf16.mxu0 0
    %1072 = vmatpush1.bf16.msra.mxu0 0
    %1073 = vmatprep.subr.bf16.mxu0 0
    %1074 = vmatpush1.bf16.msra.mxu0 0
    %1075 = vmatprep.subr.bf16.mxu0 0
    %1076 = vmatpush1.bf16.msra.mxu0 0
    %1077 = vmatprep.mubr.bf16.mxu0 0
    %1078 = vmatmul.mubr.bf16.gmra.mrb[0].mxu0 %v1040
    %v1079 = vpop.f32.mrb[0].mxu0
    %v1080 = vadd.f32 0.0, %v1079
    %v1081 = vpop.f32.mrb[0].mxu0
    %v1082 = vadd.f32 0.0, %v1081
    %v1083 = vpop.f32.mrb[0].mxu0
    %v1084 = vadd.f32 0.0, %v1083
    %v1085 = vpop.f32.mrb[0].mxu0
    %v1086 = vadd.f32 0.0, %v1085
    %1087 = vmatprep.mubr.bf16.mxu0 0
    %1088 = vmatmul.mubr.bf16.gmra.mrb[0].mxu0 %v1043
    %v1089 = vpop.f32.mrb[0].mxu0
    %v1090 = vadd.f32 0.0, %v1089
    %v1091 = vpop.f32.mrb[0].mxu0
    %v1092 = vadd.f32 0.0, %v1091
    %v1093 = vpop.f32.mrb[0].mxu0
    %v1094 = vadd.f32 0.0, %v1093
    %v1095 = vpop.f32.mrb[0].mxu0
    %v1096 = vadd.f32 0.0, %v1095
    %1097 = vdwg.mxu0
    %1098 = vmatprep.subr.bf16.mxu0 %v994
    %1099 = vmatpush1.bf16.msra.mxu0 %v993
    %1100 = vmatprep.subr.bf16.mxu0 %v1002
    %1101 = vmatpush1.bf16.msra.mxu0 %v1001
    %1102 = vmatprep.subr.bf16.mxu0 %v1010
    %1103 = vmatpush1.bf16.msra.mxu0 %v1009
    %1104 = vmatprep.subr.bf16.mxu0 0
    %1105 = vmatpush1.bf16.msra.mxu0 0
    %1106 = vmatprep.subr.bf16.mxu0 0
    %1107 = vmatpush1.bf16.msra.mxu0 0
    %1108 = vmatprep.subr.bf16.mxu0 0
    %1109 = vmatpush1.bf16.msra.mxu0 0
    %1110 = vmatprep.subr.bf16.mxu0 0
    %1111 = vmatpush1.bf16.msra.mxu0 0
    %1112 = vmatprep.subr.bf16.mxu0 0
    %1113 = vmatpush1.bf16.msra.mxu0 0
    %1114 = vmatprep.subr.bf16.mxu0 0
    %1115 = vmatpush1.bf16.msra.mxu0 0
    %1116 = vmatprep.subr.bf16.mxu0 0
    %1117 = vmatpush1.bf16.msra.mxu0 0
    %1118 = vmatprep.subr.bf16.mxu0 0
    %1119 = vmatpush1.bf16.msra.mxu0 0
    %1120 = vmatprep.subr.bf16.mxu0 0
    %1121 = vmatpush1.bf16.msra.mxu0 0
    %1122 = vmatprep.subr.bf16.mxu0 0
    %1123 = vmatpush1.bf16.msra.mxu0 0
    %1124 = vmatprep.subr.bf16.mxu0 0
    %1125 = vmatpush1.bf16.msra.mxu0 0
    %1126 = vmatprep.subr.bf16.mxu0 0
    %1127 = vmatpush1.bf16.msra.mxu0 0
    %1128 = vmatprep.subr.bf16.mxu0 0
    %1129 = vmatpush1.bf16.msra.mxu0 0
    %1130 = vmatprep.mubr.bf16.mxu0 0
    %1131 = vmatmul.mubr.bf16.gmra.mrb[0].mxu0 %v1040
    %v1132 = vpop.f32.mrb[0].mxu0
    %v1133 = vadd.f32 0.0, %v1132
    %v1134 = vpop.f32.mrb[0].mxu0
    %v1135 = vadd.f32 0.0, %v1134
    %v1136 = vpop.f32.mrb[0].mxu0
    %v1137 = vadd.f32 0.0, %v1136
    %v1138 = vpop.f32.mrb[0].mxu0
    %v1139 = vadd.f32 0.0, %v1138
    %1140 = vmatprep.mubr.bf16.mxu0 0
    %1141 = vmatmul.mubr.bf16.gmra.mrb[0].mxu0 %v1043
    %v1142 = vpop.f32.mrb[0].mxu0
    %v1143 = vadd.f32 0.0, %v1142
    %v1144 = vpop.f32.mrb[0].mxu0
    %v1145 = vadd.f32 0.0, %v1144
    %v1146 = vpop.f32.mrb[0].mxu0
    %v1147 = vadd.f32 0.0, %v1146
    %v1148 = vpop.f32.mrb[0].mxu0
    %v1149 = vadd.f32 0.0, %v1148
    %1150 = vdwg.mxu0
    %1151 = vmatprep.subr.bf16.mxu0 %v996
    %1152 = vmatpush1.bf16.msra.mxu0 %v995
    %1153 = vmatprep.subr.bf16.mxu0 %v1004
    %1154 = vmatpush1.bf16.msra.mxu0 %v1003
    %1155 = vmatprep.subr.bf16.mxu0 %v1012
    %1156 = vmatpush1.bf16.msra.mxu0 %v1011
    %1157 = vmatprep.subr.bf16.mxu0 0
    %1158 = vmatpush1.bf16.msra.mxu0 0
    %1159 = vmatprep.subr.bf16.mxu0 0
    %1160 = vmatpush1.bf16.msra.mxu0 0
    %1161 = vmatprep.subr.bf16.mxu0 0
    %1162 = vmatpush1.bf16.msra.mxu0 0
    %1163 = vmatprep.subr.bf16.mxu0 0
    %1164 = vmatpush1.bf16.msra.mxu0 0
    %1165 = vmatprep.subr.bf16.mxu0 0
    %1166 = vmatpush1.bf16.msra.mxu0 0
    %1167 = vmatprep.subr.bf16.mxu0 0
    %1168 = vmatpush1.bf16.msra.mxu0 0
    %1169 = vmatprep.subr.bf16.mxu0 0
    %1170 = vmatpush1.bf16.msra.mxu0 0
    %1171 = vmatprep.subr.bf16.mxu0 0
    %1172 = vmatpush1.bf16.msra.mxu0 0
    %1173 = vmatprep.subr.bf16.mxu0 0
    %1174 = vmatpush1.bf16.msra.mxu0 0
    %1175 = vmatprep.subr.bf16.mxu0 0
    %1176 = vmatpush1.bf16.msra.mxu0 0
    %1177 = vmatprep.subr.bf16.mxu0 0
    %1178 = vmatpush1.bf16.msra.mxu0 0
    %1179 = vmatprep.subr.bf16.mxu0 0
    %1180 = vmatpush1.bf16.msra.mxu0 0
    %1181 = vmatprep.subr.bf16.mxu0 0
    %1182 = vmatpush1.bf16.msra.mxu0 0
    %1183 = vmatprep.mubr.bf16.mxu0 0
    %1184 = vmatmul.mubr.bf16.gmra.mrb[0].mxu0 %v1040
    %v1185 = vpop.f32.mrb[0].mxu0
    %v1186 = vadd.f32 0.0, %v1185
    %v1187 = vpop.f32.mrb[0].mxu0
    %v1188 = vadd.f32 0.0, %v1187
    %v1189 = vpop.f32.mrb[0].mxu0
    %v1190 = vadd.f32 0.0, %v1189
    %v1191 = vpop.f32.mrb[0].mxu0
    %v1192 = vadd.f32 0.0, %v1191
    %1193 = vmatprep.mubr.bf16.mxu0 0
    %1194 = vmatmul.mubr.bf16.gmra.mrb[0].mxu0 %v1043
    %v1195 = vpop.f32.mrb[0].mxu0
    %v1196 = vadd.f32 0.0, %v1195
    %v1197 = vpop.f32.mrb[0].mxu0
    %v1198 = vadd.f32 0.0, %v1197
    %v1199 = vpop.f32.mrb[0].mxu0
    %v1200 = vadd.f32 0.0, %v1199
    %v1201 = vpop.f32.mrb[0].mxu0
    %v1202 = vadd.f32 0.0, %v1201
    %1203 = vdwg.mxu0
    %1204 = vmatprep.subr.bf16.mxu0 %v998
    %1205 = vmatpush1.bf16.msra.mxu0 %v997
    %1206 = vmatprep.subr.bf16.mxu0 %v1006
    %1207 = vmatpush1.bf16.msra.mxu0 %v1005
    %1208 = vmatprep.subr.bf16.mxu0 %v1014
    %1209 = vmatpush1.bf16.msra.mxu0 %v1013
    %1210 = vmatprep.subr.bf16.mxu0 0
    %1211 = vmatpush1.bf16.msra.mxu0 0
    %1212 = vmatprep.subr.bf16.mxu0 0
    %1213 = vmatpush1.bf16.msra.mxu0 0
    %1214 = vmatprep.subr.bf16.mxu0 0
    %1215 = vmatpush1.bf16.msra.mxu0 0
    %1216 = vmatprep.subr.bf16.mxu0 0
    %1217 = vmatpush1.bf16.msra.mxu0 0
    %1218 = vmatprep.subr.bf16.mxu0 0
    %1219 = vmatpush1.bf16.msra.mxu0 0
    %1220 = vmatprep.subr.bf16.mxu0 0
    %1221 = vmatpush1.bf16.msra.mxu0 0
    %1222 = vmatprep.subr.bf16.mxu0 0
    %1223 = vmatpush1.bf16.msra.mxu0 0
    %1224 = vmatprep.subr.bf16.mxu0 0
    %1225 = vmatpush1.bf16.msra.mxu0 0
    %1226 = vmatprep.subr.bf16.mxu0 0
    %1227 = vmatpush1.bf16.msra.mxu0 0
    %1228 = vmatprep.subr.bf16.mxu0 0
    %1229 = vmatpush1.bf16.msra.mxu0 0
    %1230 = vmatprep.subr.bf16.mxu0 0
    %1231 = vmatpush1.bf16.msra.mxu0 0
    %1232 = vmatprep.subr.bf16.mxu0 0
    %1233 = vmatpush1.bf16.msra.mxu0 0
    %1234 = vmatprep.subr.bf16.mxu0 0
    %1235 = vmatpush1.bf16.msra.mxu0 0
    %1236 = vmatprep.mubr.bf16.mxu0 0
    %1237 = vmatmul.mubr.bf16.gmra.mrb[0].mxu0 %v1040
    %v1238 = vpop.f32.mrb[0].mxu0
    %v1239 = vadd.f32 0.0, %v1238
    %v1240 = vpop.f32.mrb[0].mxu0
    %v1241 = vadd.f32 0.0, %v1240
    %v1242 = vpop.f32.mrb[0].mxu0
    %v1243 = vadd.f32 0.0, %v1242
    %v1244 = vpop.f32.mrb[0].mxu0
    %v1245 = vadd.f32 0.0, %v1244
    %1246 = vmatprep.mubr.bf16.mxu0 0
    %1247 = vmatmul.mubr.bf16.gmra.mrb[0].mxu0 %v1043
    %v1248 = vpop.f32.mrb[0].mxu0
    %v1249 = vadd.f32 0.0, %v1248
    %v1250 = vpop.f32.mrb[0].mxu0
    %v1251 = vadd.f32 0.0, %v1250
    %v1252 = vpop.f32.mrb[0].mxu0
    %v1253 = vadd.f32 0.0, %v1252
    %v1254 = vpop.f32.mrb[0].mxu0
    %v1255 = vadd.f32 0.0, %v1254
    %1256 = vdwg.mxu0
    %v1257 = vadd.f32 %v744, %v1080
    %v1258 = vadd.f32 %v746, %v1082
    %v1259 = vadd.f32 %v797, %v1133
    %v1260 = vadd.f32 %v799, %v1135
    %v1261 = vadd.f32 %v850, %v1186
    %v1262 = vadd.f32 %v852, %v1188
    %v1263 = vadd.f32 %v903, %v1239
    %v1264 = vadd.f32 %v905, %v1241
    %v1265 = vadd.f32 %v748, %v1084
    %v1266 = vadd.f32 %v750, %v1086
    %v1267 = vadd.f32 %v801, %v1137
    %v1268 = vadd.f32 %v803, %v1139
    %v1269 = vadd.f32 %v854, %v1190
    %v1270 = vadd.f32 %v856, %v1192
    %v1271 = vadd.f32 %v907, %v1243
    %v1272 = vadd.f32 %v909, %v1245
    %v1273 = vadd.f32 %v754, %v1090
    %v1274 = vadd.f32 %v756, %v1092
    %v1275 = vadd.f32 %v807, %v1143
    %v1276 = vadd.f32 %v809, %v1145
    %v1277 = vadd.f32 %v860, %v1196
    %v1278 = vadd.f32 %v862, %v1198
    %v1279 = vadd.f32 %v913, %v1249
    %v1280 = vadd.f32 %v915, %v1251
    %v1281 = vadd.f32 %v758, %v1094
    %v1282 = vadd.f32 %v760, %v1096
    %v1283 = vadd.f32 %v811, %v1147
    %v1284 = vadd.f32 %v813, %v1149
    %v1285 = vadd.f32 %v864, %v1200
    %v1286 = vadd.f32 %v866, %v1202
    %v1287 = vadd.f32 %v917, %v1253
    %v1288 = vadd.f32 %v919, %v1255
    %s1289 = scalar_lea.vmem %s3, 48
    %v1290 = vld [vmem:[%s1289] sm:$0xf]
    %v1291 = vld [vmem:[%s1289 + $0x4] sm:$0xf]
    %v1292 = vld [vmem:[%s1289 + $0x8] sm:$0xf]
    %v1293 = vld [vmem:[%s1289 + $0xc] sm:$0xf]
    %v1298 = vunpack.c.l.b16 %v1290
    %v1299 = vunpack.c.l.b16 %v1291
    %v1300 = vunpack.c.l.b16 %v1292
    %v1301 = vunpack.c.l.b16 %v1293
    %v1302 = vpack.c.b16 %v1299, %v1298
    %v1303 = vpack.c.b16 %v1301, %v1300
    %1304 = vrot.lane.b32.xlu0 %v224, 60
    %v1305 = vpop.permute.xlu0 %1304
    %1306 = vrot.lane.b32.xlu0 %v225, 60
    %v1307 = vpop.permute.xlu0 %1306
    %1308 = vrot.lane.b32.xlu0 %v226, 60
    %v1309 = vpop.permute.xlu0 %1308
    %1310 = vrot.lane.b32.xlu0 %v227, 60
    %v1311 = vpop.permute.xlu0 %1310
    %1312 = vrot.lane.b32.xlu0 %v228, 60
    %v1313 = vpop.permute.xlu0 %1312
    %1314 = vrot.lane.b32.xlu0 %v229, 60
    %v1315 = vpop.permute.xlu0 %1314
    %1316 = vrot.lane.b32.xlu0 %v230, 60
    %v1317 = vpop.permute.xlu0 %1316
    %1318 = vrot.lane.b32.xlu0 %v231, 60
    %v1319 = vpop.permute.xlu0 %1318
    %1320 = vrot.lane.b32.xlu0 %v232, 60
    %v1321 = vpop.permute.xlu0 %1320
    %1322 = vrot.lane.b32.xlu0 %v233, 60
    %v1323 = vpop.permute.xlu0 %1322
    %1324 = vrot.lane.b32.xlu0 %v234, 60
    %v1325 = vpop.permute.xlu0 %1324
    %1326 = vrot.lane.b32.xlu0 %v235, 60
    %v1327 = vpop.permute.xlu0 %1326
    %1328 = vrot.lane.b32.xlu0 %v236, 60
    %v1329 = vpop.permute.xlu0 %1328
    %1330 = vrot.lane.b32.xlu0 %v237, 60
    %v1331 = vpop.permute.xlu0 %1330
    %1332 = vrot.lane.b32.xlu0 %v238, 60
    %v1333 = vpop.permute.xlu0 %1332
    %1334 = vrot.lane.b32.xlu0 %v239, 60
    %v1335 = vpop.permute.xlu0 %1334
    %1336 = vrot.lane.b32.xlu0 %v240, 60
    %v1337 = vpop.permute.xlu0 %1336
    %1338 = vrot.lane.b32.xlu0 %v241, 60
    %v1339 = vpop.permute.xlu0 %1338
    %1340 = vrot.lane.b32.xlu0 %v242, 60
    %v1341 = vpop.permute.xlu0 %1340
    %1342 = vrot.lane.b32.xlu0 %v243, 60
    %v1343 = vpop.permute.xlu0 %1342
    %1344 = vrot.lane.b32.xlu0 %v244, 60
    %v1345 = vpop.permute.xlu0 %1344
    %1346 = vrot.lane.b32.xlu0 %v245, 60
    %v1347 = vpop.permute.xlu0 %1346
    %1348 = vrot.lane.b32.xlu0 %v246, 60
    %v1349 = vpop.permute.xlu0 %1348
    %1350 = vrot.lane.b32.xlu0 %v247, 60
    %v1351 = vpop.permute.xlu0 %1350
    %1352 = vrot.lane.b32.xlu0 %v248, 60
    %v1353 = vpop.permute.xlu0 %1352
    %1354 = vrot.lane.b32.xlu0 %v249, 60
    %v1355 = vpop.permute.xlu0 %1354
    %1356 = vrot.lane.b32.xlu0 %v250, 60
    %v1357 = vpop.permute.xlu0 %1356
    %vm1358 = vcmask 490496
    %v1359 = vsel %vm1358, %v1305, %v1307
    %v1360 = vsel %vm1358, %v1307, %v1309
    %v1361 = vsel %vm1358, %v1309, %v1311
    %v1362 = vsel %vm1358, %v1311, %v1313
    %v1363 = vsel %vm1358, %v1313, %v1315
    %v1364 = vsel %vm1358, %v1315, %v1317
    %v1365 = vsel %vm1358, %v1317, %v1319
    %v1366 = vsel %vm1358, %v1319, %v1321
    %v1367 = vsel %vm1358, %v1323, %v1325
    %v1368 = vsel %vm1358, %v1325, %v1327
    %v1369 = vsel %vm1358, %v1327, %v1329
    %v1370 = vsel %vm1358, %v1329, %v1331
    %v1371 = vsel %vm1358, %v1331, %v1333
    %v1372 = vsel %vm1358, %v1333, %v1335
    %v1373 = vsel %vm1358, %v1335, %v1337
    %v1374 = vsel %vm1358, %v1337, %v1339
    %v1375 = vsel %vm1358, %v1341, %v1343
    %v1376 = vsel %vm1358, %v1343, %v1345
    %v1377 = vsel %vm1358, %v1345, %v1347
    %v1378 = vsel %vm1358, %v1347, %v1349
    %v1379 = vsel %vm1358, %v1349, %v1351
    %v1380 = vsel %vm1358, %v1351, %v1353
    %v1381 = vsel %vm1358, %v1353, %v1355
    %v1382 = vsel %vm1358, %v1355, %v1357
    %v1408 = vsel %vm354, %v1302, 0
    %v1411 = vsel %vm354, %v1303, 0
    %1413 = vmatprep.subr.bf16.mxu0 %v1360
    %1414 = vmatpush1.bf16.msra.mxu0 %v1359
    %1415 = vmatprep.subr.bf16.mxu0 %v1368
    %1416 = vmatpush1.bf16.msra.mxu0 %v1367
    %1417 = vmatprep.subr.bf16.mxu0 %v1376
    %1418 = vmatpush1.bf16.msra.mxu0 %v1375
    %1419 = vmatprep.subr.bf16.mxu0 0
    %1420 = vmatpush1.bf16.msra.mxu0 0
    %1421 = vmatprep.subr.bf16.mxu0 0
    %1422 = vmatpush1.bf16.msra.mxu0 0
    %1423 = vmatprep.subr.bf16.mxu0 0
    %1424 = vmatpush1.bf16.msra.mxu0 0
    %1425 = vmatprep.subr.bf16.mxu0 0
    %1426 = vmatpush1.bf16.msra.mxu0 0
    %1427 = vmatprep.subr.bf16.mxu0 0
    %1428 = vmatpush1.bf16.msra.mxu0 0
    %1429 = vmatprep.subr.bf16.mxu0 0
    %1430 = vmatpush1.bf16.msra.mxu0 0
    %1431 = vmatprep.subr.bf16.mxu0 0
    %1432 = vmatpush1.bf16.msra.mxu0 0
    %1433 = vmatprep.subr.bf16.mxu0 0
    %1434 = vmatpush1.bf16.msra.mxu0 0
    %1435 = vmatprep.subr.bf16.mxu0 0
    %1436 = vmatpush1.bf16.msra.mxu0 0
    %1437 = vmatprep.subr.bf16.mxu0 0
    %1438 = vmatpush1.bf16.msra.mxu0 0
    %1439 = vmatprep.subr.bf16.mxu0 0
    %1440 = vmatpush1.bf16.msra.mxu0 0
    %1441 = vmatprep.subr.bf16.mxu0 0
    %1442 = vmatpush1.bf16.msra.mxu0 0
    %1443 = vmatprep.subr.bf16.mxu0 0
    %1444 = vmatpush1.bf16.msra.mxu0 0
    %1445 = vmatprep.mubr.bf16.mxu0 0
    %1446 = vmatmul.mubr.bf16.gmra.mrb[0].mxu0 %v1408
    %v1447 = vpop.f32.mrb[0].mxu0
    %v1448 = vadd.f32 0.0, %v1447
    %v1449 = vpop.f32.mrb[0].mxu0
    %v1450 = vadd.f32 0.0, %v1449
    %v1451 = vpop.f32.mrb[0].mxu0
    %v1452 = vadd.f32 0.0, %v1451
    %v1453 = vpop.f32.mrb[0].mxu0
    %v1454 = vadd.f32 0.0, %v1453
    %1455 = vmatprep.mubr.bf16.mxu0 0
    %1456 = vmatmul.mubr.bf16.gmra.mrb[0].mxu0 %v1411
    %v1457 = vpop.f32.mrb[0].mxu0
    %v1458 = vadd.f32 0.0, %v1457
    %v1459 = vpop.f32.mrb[0].mxu0
    %v1460 = vadd.f32 0.0, %v1459
    %v1461 = vpop.f32.mrb[0].mxu0
    %v1462 = vadd.f32 0.0, %v1461
    %v1463 = vpop.f32.mrb[0].mxu0
    %v1464 = vadd.f32 0.0, %v1463
    %1465 = vdwg.mxu0
    %1466 = vmatprep.subr.bf16.mxu0 %v1362
    %1467 = vmatpush1.bf16.msra.mxu0 %v1361
    %1468 = vmatprep.subr.bf16.mxu0 %v1370
    %1469 = vmatpush1.bf16.msra.mxu0 %v1369
    %1470 = vmatprep.subr.bf16.mxu0 %v1378
    %1471 = vmatpush1.bf16.msra.mxu0 %v1377
    %1472 = vmatprep.subr.bf16.mxu0 0
    %1473 = vmatpush1.bf16.msra.mxu0 0
    %1474 = vmatprep.subr.bf16.mxu0 0
    %1475 = vmatpush1.bf16.msra.mxu0 0
    %1476 = vmatprep.subr.bf16.mxu0 0
    %1477 = vmatpush1.bf16.msra.mxu0 0
    %1478 = vmatprep.subr.bf16.mxu0 0
    %1479 = vmatpush1.bf16.msra.mxu0 0
    %1480 = vmatprep.subr.bf16.mxu0 0
    %1481 = vmatpush1.bf16.msra.mxu0 0
    %1482 = vmatprep.subr.bf16.mxu0 0
    %1483 = vmatpush1.bf16.msra.mxu0 0
    %1484 = vmatprep.subr.bf16.mxu0 0
    %1485 = vmatpush1.bf16.msra.mxu0 0
    %1486 = vmatprep.subr.bf16.mxu0 0
    %1487 = vmatpush1.bf16.msra.mxu0 0
    %1488 = vmatprep.subr.bf16.mxu0 0
    %1489 = vmatpush1.bf16.msra.mxu0 0
    %1490 = vmatprep.subr.bf16.mxu0 0
    %1491 = vmatpush1.bf16.msra.mxu0 0
    %1492 = vmatprep.subr.bf16.mxu0 0
    %1493 = vmatpush1.bf16.msra.mxu0 0
    %1494 = vmatprep.subr.bf16.mxu0 0
    %1495 = vmatpush1.bf16.msra.mxu0 0
    %1496 = vmatprep.subr.bf16.mxu0 0
    %1497 = vmatpush1.bf16.msra.mxu0 0
    %1498 = vmatprep.mubr.bf16.mxu0 0
    %1499 = vmatmul.mubr.bf16.gmra.mrb[0].mxu0 %v1408
    %v1500 = vpop.f32.mrb[0].mxu0
    %v1501 = vadd.f32 0.0, %v1500
    %v1502 = vpop.f32.mrb[0].mxu0
    %v1503 = vadd.f32 0.0, %v1502
    %v1504 = vpop.f32.mrb[0].mxu0
    %v1505 = vadd.f32 0.0, %v1504
    %v1506 = vpop.f32.mrb[0].mxu0
    %v1507 = vadd.f32 0.0, %v1506
    %1508 = vmatprep.mubr.bf16.mxu0 0
    %1509 = vmatmul.mubr.bf16.gmra.mrb[0].mxu0 %v1411
    %v1510 = vpop.f32.mrb[0].mxu0
    %v1511 = vadd.f32 0.0, %v1510
    %v1512 = vpop.f32.mrb[0].mxu0
    %v1513 = vadd.f32 0.0, %v1512
    %v1514 = vpop.f32.mrb[0].mxu0
    %v1515 = vadd.f32 0.0, %v1514
    %v1516 = vpop.f32.mrb[0].mxu0
    %v1517 = vadd.f32 0.0, %v1516
    %1518 = vdwg.mxu0
    %1519 = vmatprep.subr.bf16.mxu0 %v1364
    %1520 = vmatpush1.bf16.msra.mxu0 %v1363
    %1521 = vmatprep.subr.bf16.mxu0 %v1372
    %1522 = vmatpush1.bf16.msra.mxu0 %v1371
    %1523 = vmatprep.subr.bf16.mxu0 %v1380
    %1524 = vmatpush1.bf16.msra.mxu0 %v1379
    %1525 = vmatprep.subr.bf16.mxu0 0
    %1526 = vmatpush1.bf16.msra.mxu0 0
    %1527 = vmatprep.subr.bf16.mxu0 0
    %1528 = vmatpush1.bf16.msra.mxu0 0
    %1529 = vmatprep.subr.bf16.mxu0 0
    %1530 = vmatpush1.bf16.msra.mxu0 0
    %1531 = vmatprep.subr.bf16.mxu0 0
    %1532 = vmatpush1.bf16.msra.mxu0 0
    %1533 = vmatprep.subr.bf16.mxu0 0
    %1534 = vmatpush1.bf16.msra.mxu0 0
    %1535 = vmatprep.subr.bf16.mxu0 0
    %1536 = vmatpush1.bf16.msra.mxu0 0
    %1537 = vmatprep.subr.bf16.mxu0 0
    %1538 = vmatpush1.bf16.msra.mxu0 0
    %1539 = vmatprep.subr.bf16.mxu0 0
    %1540 = vmatpush1.bf16.msra.mxu0 0
    %1541 = vmatprep.subr.bf16.mxu0 0
    %1542 = vmatpush1.bf16.msra.mxu0 0
    %1543 = vmatprep.subr.bf16.mxu0 0
    %1544 = vmatpush1.bf16.msra.mxu0 0
    %1545 = vmatprep.subr.bf16.mxu0 0
    %1546 = vmatpush1.bf16.msra.mxu0 0
    %1547 = vmatprep.subr.bf16.mxu0 0
    %1548 = vmatpush1.bf16.msra.mxu0 0
    %1549 = vmatprep.subr.bf16.mxu0 0
    %1550 = vmatpush1.bf16.msra.mxu0 0
    %1551 = vmatprep.mubr.bf16.mxu0 0
    %1552 = vmatmul.mubr.bf16.gmra.mrb[0].mxu0 %v1408
    %v1553 = vpop.f32.mrb[0].mxu0
    %v1554 = vadd.f32 0.0, %v1553
    %v1555 = vpop.f32.mrb[0].mxu0
    %v1556 = vadd.f32 0.0, %v1555
    %v1557 = vpop.f32.mrb[0].mxu0
    %v1558 = vadd.f32 0.0, %v1557
    %v1559 = vpop.f32.mrb[0].mxu0
    %v1560 = vadd.f32 0.0, %v1559
    %1561 = vmatprep.mubr.bf16.mxu0 0
    %1562 = vmatmul.mubr.bf16.gmra.mrb[0].mxu0 %v1411
    %v1563 = vpop.f32.mrb[0].mxu0
    %v1564 = vadd.f32 0.0, %v1563
    %v1565 = vpop.f32.mrb[0].mxu0
    %v1566 = vadd.f32 0.0, %v1565
    %v1567 = vpop.f32.mrb[0].mxu0
    %v1568 = vadd.f32 0.0, %v1567
    %v1569 = vpop.f32.mrb[0].mxu0
    %v1570 = vadd.f32 0.0, %v1569
    %1571 = vdwg.mxu0
    %1572 = vmatprep.subr.bf16.mxu0 %v1366
    %1573 = vmatpush1.bf16.msra.mxu0 %v1365
    %1574 = vmatprep.subr.bf16.mxu0 %v1374
    %1575 = vmatpush1.bf16.msra.mxu0 %v1373
    %1576 = vmatprep.subr.bf16.mxu0 %v1382
    %1577 = vmatpush1.bf16.msra.mxu0 %v1381
    %1578 = vmatprep.subr.bf16.mxu0 0
    %1579 = vmatpush1.bf16.msra.mxu0 0
    %1580 = vmatprep.subr.bf16.mxu0 0
    %1581 = vmatpush1.bf16.msra.mxu0 0
    %1582 = vmatprep.subr.bf16.mxu0 0
    %1583 = vmatpush1.bf16.msra.mxu0 0
    %1584 = vmatprep.subr.bf16.mxu0 0
    %1585 = vmatpush1.bf16.msra.mxu0 0
    %1586 = vmatprep.subr.bf16.mxu0 0
    %1587 = vmatpush1.bf16.msra.mxu0 0
    %1588 = vmatprep.subr.bf16.mxu0 0
    %1589 = vmatpush1.bf16.msra.mxu0 0
    %1590 = vmatprep.subr.bf16.mxu0 0
    %1591 = vmatpush1.bf16.msra.mxu0 0
    %1592 = vmatprep.subr.bf16.mxu0 0
    %1593 = vmatpush1.bf16.msra.mxu0 0
    %1594 = vmatprep.subr.bf16.mxu0 0
    %1595 = vmatpush1.bf16.msra.mxu0 0
    %1596 = vmatprep.subr.bf16.mxu0 0
    %1597 = vmatpush1.bf16.msra.mxu0 0
    %1598 = vmatprep.subr.bf16.mxu0 0
    %1599 = vmatpush1.bf16.msra.mxu0 0
    %1600 = vmatprep.subr.bf16.mxu0 0
    %1601 = vmatpush1.bf16.msra.mxu0 0
    %1602 = vmatprep.subr.bf16.mxu0 0
    %1603 = vmatpush1.bf16.msra.mxu0 0
    %1604 = vmatprep.mubr.bf16.mxu0 0
    %1605 = vmatmul.mubr.bf16.gmra.mrb[0].mxu0 %v1408
    %v1606 = vpop.f32.mrb[0].mxu0
    %v1607 = vadd.f32 0.0, %v1606
    %v1608 = vpop.f32.mrb[0].mxu0
    %v1609 = vadd.f32 0.0, %v1608
    %v1610 = vpop.f32.mrb[0].mxu0
    %v1611 = vadd.f32 0.0, %v1610
    %v1612 = vpop.f32.mrb[0].mxu0
    %v1613 = vadd.f32 0.0, %v1612
    %1614 = vmatprep.mubr.bf16.mxu0 0
    %1615 = vmatmul.mubr.bf16.gmra.mrb[0].mxu0 %v1411
    %v1616 = vpop.f32.mrb[0].mxu0
    %v1617 = vadd.f32 0.0, %v1616
    %v1618 = vpop.f32.mrb[0].mxu0
    %v1619 = vadd.f32 0.0, %v1618
    %v1620 = vpop.f32.mrb[0].mxu0
    %v1621 = vadd.f32 0.0, %v1620
    %v1622 = vpop.f32.mrb[0].mxu0
    %v1623 = vadd.f32 0.0, %v1622
    %1624 = vdwg.mxu0
    %v1625 = vadd.f32 %v1257, %v1448
    %v1626 = vadd.f32 %v1258, %v1450
    %v1627 = vadd.f32 %v1259, %v1501
    %v1628 = vadd.f32 %v1260, %v1503
    %v1629 = vadd.f32 %v1261, %v1554
    %v1630 = vadd.f32 %v1262, %v1556
    %v1631 = vadd.f32 %v1263, %v1607
    %v1632 = vadd.f32 %v1264, %v1609
    %v1633 = vadd.f32 %v1265, %v1452
    %v1634 = vadd.f32 %v1266, %v1454
    %v1635 = vadd.f32 %v1267, %v1505
    %v1636 = vadd.f32 %v1268, %v1507
    %v1637 = vadd.f32 %v1269, %v1558
    %v1638 = vadd.f32 %v1270, %v1560
    %v1639 = vadd.f32 %v1271, %v1611
    %v1640 = vadd.f32 %v1272, %v1613
    %v1641 = vadd.f32 %v1273, %v1458
    %v1642 = vadd.f32 %v1274, %v1460
    %v1643 = vadd.f32 %v1275, %v1511
    %v1644 = vadd.f32 %v1276, %v1513
    %v1645 = vadd.f32 %v1277, %v1564
    %v1646 = vadd.f32 %v1278, %v1566
    %v1647 = vadd.f32 %v1279, %v1617
    %v1648 = vadd.f32 %v1280, %v1619
    %v1649 = vadd.f32 %v1281, %v1462
    %v1650 = vadd.f32 %v1282, %v1464
    %v1651 = vadd.f32 %v1283, %v1515
    %v1652 = vadd.f32 %v1284, %v1517
    %v1653 = vadd.f32 %v1285, %v1568
    %v1654 = vadd.f32 %v1286, %v1570
    %v1655 = vadd.f32 %v1287, %v1621
    %v1656 = vadd.f32 %v1288, %v1623
    %v1657 = vld [vmem:[%s4] sm:$0xff]
    %v1658 = vld [vmem:[%s4 + $0x8] sm:$0xff]
    %v1659 = vld [vmem:[%s4 + $0x10] sm:$0xff]
    %v1660 = vld [vmem:[%s4 + $0x18] sm:$0xff]
    %1662 = vset.pattern.permute.xlu0 0
    %1663 = vperm.xlu0 %1662, %v1657
    %v1664 = vpop.permute.xlu0 %1663
    %1667 = vset.pattern.permute.xlu0 0
    %1668 = vperm.xlu0 %1667, %v1658
    %v1669 = vpop.permute.xlu0 %1668
    %1672 = vset.pattern.permute.xlu0 0
    %1673 = vperm.xlu0 %1672, %v1659
    %v1674 = vpop.permute.xlu0 %1673
    %1677 = vset.pattern.permute.xlu0 0
    %1678 = vperm.xlu0 %1677, %v1660
    %v1679 = vpop.permute.xlu0 %1678
    %v1681 = vadd.f32 %v1625, %v1664
    %v1682 = vadd.f32 %v1626, %v1664
    %v1683 = vadd.f32 %v1627, %v1664
    %v1684 = vadd.f32 %v1628, %v1664
    %v1685 = vadd.f32 %v1629, %v1664
    %v1686 = vadd.f32 %v1630, %v1664
    %v1687 = vadd.f32 %v1631, %v1664
    %v1688 = vadd.f32 %v1632, %v1664
    %v1689 = vadd.f32 %v1633, %v1669
    %v1690 = vadd.f32 %v1634, %v1669
    %v1691 = vadd.f32 %v1635, %v1669
    %v1692 = vadd.f32 %v1636, %v1669
    %v1693 = vadd.f32 %v1637, %v1669
    %v1694 = vadd.f32 %v1638, %v1669
    %v1695 = vadd.f32 %v1639, %v1669
    %v1696 = vadd.f32 %v1640, %v1669
    %v1697 = vadd.f32 %v1641, %v1674
    %v1698 = vadd.f32 %v1642, %v1674
    %v1699 = vadd.f32 %v1643, %v1674
    %v1700 = vadd.f32 %v1644, %v1674
    %v1701 = vadd.f32 %v1645, %v1674
    %v1702 = vadd.f32 %v1646, %v1674
    %v1703 = vadd.f32 %v1647, %v1674
    %v1704 = vadd.f32 %v1648, %v1674
    %v1705 = vadd.f32 %v1649, %v1679
    %v1706 = vadd.f32 %v1650, %v1679
    %v1707 = vadd.f32 %v1651, %v1679
    %v1708 = vadd.f32 %v1652, %v1679
    %v1709 = vadd.f32 %v1653, %v1679
    %v1710 = vadd.f32 %v1654, %v1679
    %v1711 = vadd.f32 %v1655, %v1679
    %v1712 = vadd.f32 %v1656, %v1679
    %v1713 = vmax.f32 %v1681, 0.0
    %v1714 = vmax.f32 %v1682, 0.0
    %v1715 = vmax.f32 %v1683, 0.0
    %v1716 = vmax.f32 %v1684, 0.0
    %v1717 = vmax.f32 %v1685, 0.0
    %v1718 = vmax.f32 %v1686, 0.0
    %v1719 = vmax.f32 %v1687, 0.0
    %v1720 = vmax.f32 %v1688, 0.0
    %v1721 = vmax.f32 %v1689, 0.0
    %v1722 = vmax.f32 %v1690, 0.0
    %v1723 = vmax.f32 %v1691, 0.0
    %v1724 = vmax.f32 %v1692, 0.0
    %v1725 = vmax.f32 %v1693, 0.0
    %v1726 = vmax.f32 %v1694, 0.0
    %v1727 = vmax.f32 %v1695, 0.0
    %v1728 = vmax.f32 %v1696, 0.0
    %v1729 = vmax.f32 %v1697, 0.0
    %v1730 = vmax.f32 %v1698, 0.0
    %v1731 = vmax.f32 %v1699, 0.0
    %v1732 = vmax.f32 %v1700, 0.0
    %v1733 = vmax.f32 %v1701, 0.0
    %v1734 = vmax.f32 %v1702, 0.0
    %v1735 = vmax.f32 %v1703, 0.0
    %v1736 = vmax.f32 %v1704, 0.0
    %v1737 = vmax.f32 %v1705, 0.0
    %v1738 = vmax.f32 %v1706, 0.0
    %v1739 = vmax.f32 %v1707, 0.0
    %v1740 = vmax.f32 %v1708, 0.0
    %v1741 = vmax.f32 %v1709, 0.0
    %v1742 = vmax.f32 %v1710, 0.0
    %v1743 = vmax.f32 %v1711, 0.0
    %v1744 = vmax.f32 %v1712, 0.0
    %v1745 = vpack.c.bf16 %v1721, %v1713
    %v1746 = vpack.c.bf16 %v1722, %v1714
    %v1747 = vpack.c.bf16 %v1723, %v1715
    %v1748 = vpack.c.bf16 %v1724, %v1716
    %v1749 = vpack.c.bf16 %v1725, %v1717
    %v1750 = vpack.c.bf16 %v1726, %v1718
    %v1751 = vpack.c.bf16 %v1727, %v1719
    %v1752 = vpack.c.bf16 %v1728, %v1720
    %v1753 = vpack.c.bf16 %v1737, %v1729
    %v1754 = vpack.c.bf16 %v1738, %v1730
    %v1755 = vpack.c.bf16 %v1739, %v1731
    %v1756 = vpack.c.bf16 %v1740, %v1732
    %v1757 = vpack.c.bf16 %v1741, %v1733
    %v1758 = vpack.c.bf16 %v1742, %v1734
    %v1759 = vpack.c.bf16 %v1743, %v1735
    %v1760 = vpack.c.bf16 %v1744, %v1736
    %v1761 = vld [vmem:[%s5] sm:$0xff]
    %v1762 = vld [vmem:[%s5 + $0x8] sm:$0xff]
    %v1763 = vld [vmem:[%s5 + $0x10] sm:$0xff]
    %v1764 = vld [vmem:[%s5 + $0x18] sm:$0xff]
    %v1765 = vld [vmem:[%s5 + $0x20] sm:$0xff]
    %v1766 = vld [vmem:[%s5 + $0x28] sm:$0xff]
    %v1767 = vld [vmem:[%s5 + $0x30] sm:$0xff]
    %v1768 = vld [vmem:[%s5 + $0x38] sm:$0xff]
    %v1769 = vld [vmem:[%s5 + $0x40] sm:$0xff]
    %v1770 = vld [vmem:[%s5 + $0x48] sm:$0xff]
    %v1771 = vld [vmem:[%s5 + $0x50] sm:$0xff]
    %v1772 = vld [vmem:[%s5 + $0x58] sm:$0xff]
    %v1773 = vld [vmem:[%s5 + $0x60] sm:$0xff]
    %v1774 = vld [vmem:[%s5 + $0x68] sm:$0xff]
    %v1775 = vld [vmem:[%s5 + $0x70] sm:$0xff]
    %v1776 = vld [vmem:[%s5 + $0x78] sm:$0xff]
    %v1777 = vld [vmem:[%s5 + $0x80] sm:$0xff]
    %v1778 = vld [vmem:[%s5 + $0x88] sm:$0xff]
    %v1779 = vld [vmem:[%s5 + $0x90] sm:$0xff]
    %v1780 = vld [vmem:[%s5 + $0x98] sm:$0xff]
    %v1781 = vld [vmem:[%s5 + $0xa0] sm:$0xff]
    %v1782 = vld [vmem:[%s5 + $0xa8] sm:$0xff]
    %v1783 = vld [vmem:[%s5 + $0xb0] sm:$0xff]
    %v1784 = vld [vmem:[%s5 + $0xb8] sm:$0xff]
    %v1785 = vld [vmem:[%s5 + $0xc0] sm:$0xff]
    %v1786 = vld [vmem:[%s5 + $0xc8] sm:$0xff]
    %v1787 = vld [vmem:[%s5 + $0xd0] sm:$0xff]
    %v1788 = vld [vmem:[%s5 + $0xd8] sm:$0xff]
    %v1789 = vld [vmem:[%s5 + $0xe0] sm:$0xff]
    %v1790 = vld [vmem:[%s5 + $0xe8] sm:$0xff]
    %v1791 = vld [vmem:[%s5 + $0xf0] sm:$0xff]
    %v1792 = vld [vmem:[%s5 + $0xf8] sm:$0xff]
    %v1793 = vld [vmem:[%s5 + $0x100] sm:$0xff]
    %v1794 = vld [vmem:[%s5 + $0x108] sm:$0xff]
    %v1795 = vld [vmem:[%s5 + $0x110] sm:$0xff]
    %v1796 = vld [vmem:[%s5 + $0x118] sm:$0xff]
    %v1797 = vld [vmem:[%s5 + $0x120] sm:$0xff]
    %v1798 = vld [vmem:[%s5 + $0x128] sm:$0xff]
    %v1799 = vld [vmem:[%s5 + $0x130] sm:$0xff]
    %v1800 = vld [vmem:[%s5 + $0x138] sm:$0xff]
    %v1801 = vld [vmem:[%s5 + $0x140] sm:$0xff]
    %v1802 = vld [vmem:[%s5 + $0x148] sm:$0xff]
    %v1803 = vld [vmem:[%s5 + $0x150] sm:$0xff]
    %v1804 = vld [vmem:[%s5 + $0x158] sm:$0xff]
    %v1805 = vld [vmem:[%s5 + $0x160] sm:$0xff]
    %v1806 = vld [vmem:[%s5 + $0x168] sm:$0xff]
    %v1807 = vld [vmem:[%s5 + $0x170] sm:$0xff]
    %v1808 = vld [vmem:[%s5 + $0x178] sm:$0xff]
    %v1809 = vld [vmem:[%s5 + $0x180] sm:$0xff]
    %v1810 = vld [vmem:[%s5 + $0x188] sm:$0xff]
    %v1811 = vld [vmem:[%s5 + $0x190] sm:$0xff]
    %v1812 = vld [vmem:[%s5 + $0x198] sm:$0xff]
    %v1813 = vld [vmem:[%s5 + $0x1a0] sm:$0xff]
    %v1814 = vld [vmem:[%s5 + $0x1a8] sm:$0xff]
    %v1815 = vld [vmem:[%s5 + $0x1b0] sm:$0xff]
    %v1816 = vld [vmem:[%s5 + $0x1b8] sm:$0xff]
    %v1817 = vld [vmem:[%s5 + $0x1c0] sm:$0xff]
    %v1818 = vld [vmem:[%s5 + $0x1c8] sm:$0xff]
    %v1819 = vld [vmem:[%s5 + $0x1d0] sm:$0xff]
    %v1820 = vld [vmem:[%s5 + $0x1d8] sm:$0xff]
    %v1821 = vld [vmem:[%s5 + $0x1e0] sm:$0xff]
    %v1822 = vld [vmem:[%s5 + $0x1e8] sm:$0xff]
    %v1823 = vld [vmem:[%s5 + $0x1f0] sm:$0xff]
    %v1824 = vld [vmem:[%s5 + $0x1f8] sm:$0xff]
    %v1825 = vld [vmem:[%s5 + $0x200] sm:$0xff]
    %v1826 = vld [vmem:[%s5 + $0x208] sm:$0xff]
    %v1827 = vld [vmem:[%s5 + $0x210] sm:$0xff]
    %v1828 = vld [vmem:[%s5 + $0x218] sm:$0xff]
    %v1829 = vld [vmem:[%s5 + $0x220] sm:$0xff]
    %v1830 = vld [vmem:[%s5 + $0x228] sm:$0xff]
    %v1831 = vld [vmem:[%s5 + $0x230] sm:$0xff]
    %v1832 = vld [vmem:[%s5 + $0x238] sm:$0xff]
    %v1833 = vld [vmem:[%s5 + $0x240] sm:$0xff]
    %v1834 = vld [vmem:[%s5 + $0x248] sm:$0xff]
    %v1835 = vld [vmem:[%s5 + $0x250] sm:$0xff]
    %v1836 = vld [vmem:[%s5 + $0x258] sm:$0xff]
    %v1837 = vld [vmem:[%s5 + $0x260] sm:$0xff]
    %v1838 = vld [vmem:[%s5 + $0x268] sm:$0xff]
    %v1839 = vld [vmem:[%s5 + $0x270] sm:$0xff]
    %v1840 = vld [vmem:[%s5 + $0x278] sm:$0xff]
    %v1841 = vld [vmem:[%s5 + $0x280] sm:$0xff]
    %v1842 = vld [vmem:[%s5 + $0x288] sm:$0xff]
    %v1843 = vld [vmem:[%s5 + $0x290] sm:$0xff]
    %v1844 = vld [vmem:[%s5 + $0x298] sm:$0xff]
    %v1845 = vld [vmem:[%s5 + $0x2a0] sm:$0xff]
    %v1846 = vld [vmem:[%s5 + $0x2a8] sm:$0xff]
    %v1847 = vld [vmem:[%s5 + $0x2b0] sm:$0xff]
    %v1848 = vld [vmem:[%s5 + $0x2b8] sm:$0xff]
    %v1849 = vld [vmem:[%s5 + $0x2c0] sm:$0xff]
    %v1850 = vld [vmem:[%s5 + $0x2c8] sm:$0xff]
    %v1851 = vld [vmem:[%s5 + $0x2d0] sm:$0xff]
    %v1852 = vld [vmem:[%s5 + $0x2d8] sm:$0xff]
    %v1853 = vld [vmem:[%s5 + $0x2e0] sm:$0xff]
    %v1854 = vld [vmem:[%s5 + $0x2e8] sm:$0xff]
    %v1855 = vld [vmem:[%s5 + $0x2f0] sm:$0xff]
    %v1856 = vld [vmem:[%s5 + $0x2f8] sm:$0xff]
    %v1857 = vld [vmem:[%s5 + $0x300] sm:$0xff]
    %v1858 = vld [vmem:[%s5 + $0x308] sm:$0xff]
    %v1859 = vld [vmem:[%s5 + $0x310] sm:$0xff]
    %v1860 = vld [vmem:[%s5 + $0x318] sm:$0xff]
    %v1861 = vld [vmem:[%s5 + $0x320] sm:$0xff]
    %v1862 = vld [vmem:[%s5 + $0x328] sm:$0xff]
    %v1863 = vld [vmem:[%s5 + $0x330] sm:$0xff]
    %v1864 = vld [vmem:[%s5 + $0x338] sm:$0xff]
    %v1865 = vld [vmem:[%s5 + $0x340] sm:$0xff]
    %v1866 = vld [vmem:[%s5 + $0x348] sm:$0xff]
    %v1867 = vld [vmem:[%s5 + $0x350] sm:$0xff]
    %v1868 = vld [vmem:[%s5 + $0x358] sm:$0xff]
    %v1869 = vld [vmem:[%s5 + $0x360] sm:$0xff]
    %v1870 = vld [vmem:[%s5 + $0x368] sm:$0xff]
    %v1871 = vld [vmem:[%s5 + $0x370] sm:$0xff]
    %v1872 = vld [vmem:[%s5 + $0x378] sm:$0xff]
    %v1873 = vld [vmem:[%s5 + $0x380] sm:$0xff]
    %v1874 = vld [vmem:[%s5 + $0x388] sm:$0xff]
    %v1875 = vld [vmem:[%s5 + $0x390] sm:$0xff]
    %v1876 = vld [vmem:[%s5 + $0x398] sm:$0xff]
    %v1877 = vld [vmem:[%s5 + $0x3a0] sm:$0xff]
    %v1878 = vld [vmem:[%s5 + $0x3a8] sm:$0xff]
    %v1879 = vld [vmem:[%s5 + $0x3b0] sm:$0xff]
    %v1880 = vld [vmem:[%s5 + $0x3b8] sm:$0xff]
    %v1881 = vld [vmem:[%s5 + $0x3c0] sm:$0xff]
    %v1882 = vld [vmem:[%s5 + $0x3c8] sm:$0xff]
    %v1883 = vld [vmem:[%s5 + $0x3d0] sm:$0xff]
    %v1884 = vld [vmem:[%s5 + $0x3d8] sm:$0xff]
    %v1885 = vld [vmem:[%s5 + $0x3e0] sm:$0xff]
    %v1886 = vld [vmem:[%s5 + $0x3e8] sm:$0xff]
    %v1887 = vld [vmem:[%s5 + $0x3f0] sm:$0xff]
    %v1888 = vld [vmem:[%s5 + $0x3f8] sm:$0xff]
    %v2017 = vunpack.c.l.b16 %v1761
    %v2018 = vunpack.c.h.b16 %v1761
    %v2019 = vunpack.c.l.b16 %v1762
    %v2020 = vunpack.c.h.b16 %v1762
    %v2021 = vunpack.c.l.b16 %v1763
    %v2022 = vunpack.c.h.b16 %v1763
    %v2023 = vunpack.c.l.b16 %v1764
    %v2024 = vunpack.c.h.b16 %v1764
    %v2025 = vunpack.c.l.b16 %v1765
    %v2026 = vunpack.c.h.b16 %v1765
    %v2027 = vunpack.c.l.b16 %v1766
    %v2028 = vunpack.c.h.b16 %v1766
    %v2029 = vunpack.c.l.b16 %v1767
    %v2030 = vunpack.c.h.b16 %v1767
    %v2031 = vunpack.c.l.b16 %v1768
    %v2032 = vunpack.c.h.b16 %v1768
    %v2033 = vunpack.c.l.b16 %v1769
    %v2034 = vunpack.c.h.b16 %v1769
    %v2035 = vunpack.c.l.b16 %v1770
    %v2036 = vunpack.c.h.b16 %v1770
    %v2037 = vunpack.c.l.b16 %v1771
    %v2038 = vunpack.c.h.b16 %v1771
    %v2039 = vunpack.c.l.b16 %v1772
    %v2040 = vunpack.c.h.b16 %v1772
    %v2041 = vunpack.c.l.b16 %v1773
    %v2042 = vunpack.c.h.b16 %v1773
    %v2043 = vunpack.c.l.b16 %v1774
    %v2044 = vunpack.c.h.b16 %v1774
    %v2045 = vunpack.c.l.b16 %v1775
    %v2046 = vunpack.c.h.b16 %v1775
    %v2047 = vunpack.c.l.b16 %v1776
    %v2048 = vunpack.c.h.b16 %v1776
    %v2049 = vunpack.c.l.b16 %v1777
    %v2050 = vunpack.c.h.b16 %v1777
    %v2051 = vunpack.c.l.b16 %v1778
    %v2052 = vunpack.c.h.b16 %v1778
    %v2053 = vunpack.c.l.b16 %v1779
    %v2054 = vunpack.c.h.b16 %v1779
    %v2055 = vunpack.c.l.b16 %v1780
    %v2056 = vunpack.c.h.b16 %v1780
    %v2057 = vunpack.c.l.b16 %v1781
    %v2058 = vunpack.c.h.b16 %v1781
    %v2059 = vunpack.c.l.b16 %v1782
    %v2060 = vunpack.c.h.b16 %v1782
    %v2061 = vunpack.c.l.b16 %v1783
    %v2062 = vunpack.c.h.b16 %v1783
    %v2063 = vunpack.c.l.b16 %v1784
    %v2064 = vunpack.c.h.b16 %v1784
    %v2065 = vunpack.c.l.b16 %v1785
    %v2066 = vunpack.c.h.b16 %v1785
    %v2067 = vunpack.c.l.b16 %v1786
    %v2068 = vunpack.c.h.b16 %v1786
    %v2069 = vunpack.c.l.b16 %v1787
    %v2070 = vunpack.c.h.b16 %v1787
    %v2071 = vunpack.c.l.b16 %v1788
    %v2072 = vunpack.c.h.b16 %v1788
    %v2073 = vunpack.c.l.b16 %v1789
    %v2074 = vunpack.c.h.b16 %v1789
    %v2075 = vunpack.c.l.b16 %v1790
    %v2076 = vunpack.c.h.b16 %v1790
    %v2077 = vunpack.c.l.b16 %v1791
    %v2078 = vunpack.c.h.b16 %v1791
    %v2079 = vunpack.c.l.b16 %v1792
    %v2080 = vunpack.c.h.b16 %v1792
    %v2081 = vunpack.c.l.b16 %v1793
    %v2082 = vunpack.c.h.b16 %v1793
    %v2083 = vunpack.c.l.b16 %v1794
    %v2084 = vunpack.c.h.b16 %v1794
    %v2085 = vunpack.c.l.b16 %v1795
    %v2086 = vunpack.c.h.b16 %v1795
    %v2087 = vunpack.c.l.b16 %v1796
    %v2088 = vunpack.c.h.b16 %v1796
    %v2089 = vunpack.c.l.b16 %v1797
    %v2090 = vunpack.c.h.b16 %v1797
    %v2091 = vunpack.c.l.b16 %v1798
    %v2092 = vunpack.c.h.b16 %v1798
    %v2093 = vunpack.c.l.b16 %v1799
    %v2094 = vunpack.c.h.b16 %v1799
    %v2095 = vunpack.c.l.b16 %v1800
    %v2096 = vunpack.c.h.b16 %v1800
    %v2097 = vunpack.c.l.b16 %v1801
    %v2098 = vunpack.c.h.b16 %v1801
    %v2099 = vunpack.c.l.b16 %v1802
    %v2100 = vunpack.c.h.b16 %v1802
    %v2101 = vunpack.c.l.b16 %v1803
    %v2102 = vunpack.c.h.b16 %v1803
    %v2103 = vunpack.c.l.b16 %v1804
    %v2104 = vunpack.c.h.b16 %v1804
    %v2105 = vunpack.c.l.b16 %v1805
    %v2106 = vunpack.c.h.b16 %v1805
    %v2107 = vunpack.c.l.b16 %v1806
    %v2108 = vunpack.c.h.b16 %v1806
    %v2109 = vunpack.c.l.b16 %v1807
    %v2110 = vunpack.c.h.b16 %v1807
    %v2111 = vunpack.c.l.b16 %v1808
    %v2112 = vunpack.c.h.b16 %v1808
    %v2113 = vunpack.c.l.b16 %v1809
    %v2114 = vunpack.c.h.b16 %v1809
    %v2115 = vunpack.c.l.b16 %v1810
    %v2116 = vunpack.c.h.b16 %v1810
    %v2117 = vunpack.c.l.b16 %v1811
    %v2118 = vunpack.c.h.b16 %v1811
    %v2119 = vunpack.c.l.b16 %v1812
    %v2120 = vunpack.c.h.b16 %v1812
    %v2121 = vunpack.c.l.b16 %v1813
    %v2122 = vunpack.c.h.b16 %v1813
    %v2123 = vunpack.c.l.b16 %v1814
    %v2124 = vunpack.c.h.b16 %v1814
    %v2125 = vunpack.c.l.b16 %v1815
    %v2126 = vunpack.c.h.b16 %v1815
    %v2127 = vunpack.c.l.b16 %v1816
    %v2128 = vunpack.c.h.b16 %v1816
    %v2129 = vunpack.c.l.b16 %v1817
    %v2130 = vunpack.c.h.b16 %v1817
    %v2131 = vunpack.c.l.b16 %v1818
    %v2132 = vunpack.c.h.b16 %v1818
    %v2133 = vunpack.c.l.b16 %v1819
    %v2134 = vunpack.c.h.b16 %v1819
    %v2135 = vunpack.c.l.b16 %v1820
    %v2136 = vunpack.c.h.b16 %v1820
    %v2137 = vunpack.c.l.b16 %v1821
    %v2138 = vunpack.c.h.b16 %v1821
    %v2139 = vunpack.c.l.b16 %v1822
    %v2140 = vunpack.c.h.b16 %v1822
    %v2141 = vunpack.c.l.b16 %v1823
    %v2142 = vunpack.c.h.b16 %v1823
    %v2143 = vunpack.c.l.b16 %v1824
    %v2144 = vunpack.c.h.b16 %v1824
    %v2145 = vunpack.c.l.b16 %v1825
    %v2146 = vunpack.c.h.b16 %v1825
    %v2147 = vunpack.c.l.b16 %v1826
    %v2148 = vunpack.c.h.b16 %v1826
    %v2149 = vunpack.c.l.b16 %v1827
    %v2150 = vunpack.c.h.b16 %v1827
    %v2151 = vunpack.c.l.b16 %v1828
    %v2152 = vunpack.c.h.b16 %v1828
    %v2153 = vunpack.c.l.b16 %v1829
    %v2154 = vunpack.c.h.b16 %v1829
    %v2155 = vunpack.c.l.b16 %v1830
    %v2156 = vunpack.c.h.b16 %v1830
    %v2157 = vunpack.c.l.b16 %v1831
    %v2158 = vunpack.c.h.b16 %v1831
    %v2159 = vunpack.c.l.b16 %v1832
    %v2160 = vunpack.c.h.b16 %v1832
    %v2161 = vunpack.c.l.b16 %v1833
    %v2162 = vunpack.c.h.b16 %v1833
    %v2163 = vunpack.c.l.b16 %v1834
    %v2164 = vunpack.c.h.b16 %v1834
    %v2165 = vunpack.c.l.b16 %v1835
    %v2166 = vunpack.c.h.b16 %v1835
    %v2167 = vunpack.c.l.b16 %v1836
    %v2168 = vunpack.c.h.b16 %v1836
    %v2169 = vunpack.c.l.b16 %v1837
    %v2170 = vunpack.c.h.b16 %v1837
    %v2171 = vunpack.c.l.b16 %v1838
    %v2172 = vunpack.c.h.b16 %v1838
    %v2173 = vunpack.c.l.b16 %v1839
    %v2174 = vunpack.c.h.b16 %v1839
    %v2175 = vunpack.c.l.b16 %v1840
    %v2176 = vunpack.c.h.b16 %v1840
    %v2177 = vunpack.c.l.b16 %v1841
    %v2178 = vunpack.c.h.b16 %v1841
    %v2179 = vunpack.c.l.b16 %v1842
    %v2180 = vunpack.c.h.b16 %v1842
    %v2181 = vunpack.c.l.b16 %v1843
    %v2182 = vunpack.c.h.b16 %v1843
    %v2183 = vunpack.c.l.b16 %v1844
    %v2184 = vunpack.c.h.b16 %v1844
    %v2185 = vunpack.c.l.b16 %v1845
    %v2186 = vunpack.c.h.b16 %v1845
    %v2187 = vunpack.c.l.b16 %v1846
    %v2188 = vunpack.c.h.b16 %v1846
    %v2189 = vunpack.c.l.b16 %v1847
    %v2190 = vunpack.c.h.b16 %v1847
    %v2191 = vunpack.c.l.b16 %v1848
    %v2192 = vunpack.c.h.b16 %v1848
    %v2193 = vunpack.c.l.b16 %v1849
    %v2194 = vunpack.c.h.b16 %v1849
    %v2195 = vunpack.c.l.b16 %v1850
    %v2196 = vunpack.c.h.b16 %v1850
    %v2197 = vunpack.c.l.b16 %v1851
    %v2198 = vunpack.c.h.b16 %v1851
    %v2199 = vunpack.c.l.b16 %v1852
    %v2200 = vunpack.c.h.b16 %v1852
    %v2201 = vunpack.c.l.b16 %v1853
    %v2202 = vunpack.c.h.b16 %v1853
    %v2203 = vunpack.c.l.b16 %v1854
    %v2204 = vunpack.c.h.b16 %v1854
    %v2205 = vunpack.c.l.b16 %v1855
    %v2206 = vunpack.c.h.b16 %v1855
    %v2207 = vunpack.c.l.b16 %v1856
    %v2208 = vunpack.c.h.b16 %v1856
    %v2209 = vunpack.c.l.b16 %v1857
    %v2210 = vunpack.c.h.b16 %v1857
    %v2211 = vunpack.c.l.b16 %v1858
    %v2212 = vunpack.c.h.b16 %v1858
    %v2213 = vunpack.c.l.b16 %v1859
    %v2214 = vunpack.c.h.b16 %v1859
    %v2215 = vunpack.c.l.b16 %v1860
    %v2216 = vunpack.c.h.b16 %v1860
    %v2217 = vunpack.c.l.b16 %v1861
    %v2218 = vunpack.c.h.b16 %v1861
    %v2219 = vunpack.c.l.b16 %v1862
    %v2220 = vunpack.c.h.b16 %v1862
    %v2221 = vunpack.c.l.b16 %v1863
    %v2222 = vunpack.c.h.b16 %v1863
    %v2223 = vunpack.c.l.b16 %v1864
    %v2224 = vunpack.c.h.b16 %v1864
    %v2225 = vunpack.c.l.b16 %v1865
    %v2226 = vunpack.c.h.b16 %v1865
    %v2227 = vunpack.c.l.b16 %v1866
    %v2228 = vunpack.c.h.b16 %v1866
    %v2229 = vunpack.c.l.b16 %v1867
    %v2230 = vunpack.c.h.b16 %v1867
    %v2231 = vunpack.c.l.b16 %v1868
    %v2232 = vunpack.c.h.b16 %v1868
    %v2233 = vunpack.c.l.b16 %v1869
    %v2234 = vunpack.c.h.b16 %v1869
    %v2235 = vunpack.c.l.b16 %v1870
    %v2236 = vunpack.c.h.b16 %v1870
    %v2237 = vunpack.c.l.b16 %v1871
    %v2238 = vunpack.c.h.b16 %v1871
    %v2239 = vunpack.c.l.b16 %v1872
    %v2240 = vunpack.c.h.b16 %v1872
    %v2241 = vunpack.c.l.b16 %v1873
    %v2242 = vunpack.c.h.b16 %v1873
    %v2243 = vunpack.c.l.b16 %v1874
    %v2244 = vunpack.c.h.b16 %v1874
    %v2245 = vunpack.c.l.b16 %v1875
    %v2246 = vunpack.c.h.b16 %v1875
    %v2247 = vunpack.c.l.b16 %v1876
    %v2248 = vunpack.c.h.b16 %v1876
    %v2249 = vunpack.c.l.b16 %v1877
    %v2250 = vunpack.c.h.b16 %v1877
    %v2251 = vunpack.c.l.b16 %v1878
    %v2252 = vunpack.c.h.b16 %v1878
    %v2253 = vunpack.c.l.b16 %v1879
    %v2254 = vunpack.c.h.b16 %v1879
    %v2255 = vunpack.c.l.b16 %v1880
    %v2256 = vunpack.c.h.b16 %v1880
    %v2257 = vunpack.c.l.b16 %v1881
    %v2258 = vunpack.c.h.b16 %v1881
    %v2259 = vunpack.c.l.b16 %v1882
    %v2260 = vunpack.c.h.b16 %v1882
    %v2261 = vunpack.c.l.b16 %v1883
    %v2262 = vunpack.c.h.b16 %v1883
    %v2263 = vunpack.c.l.b16 %v1884
    %v2264 = vunpack.c.h.b16 %v1884
    %v2265 = vunpack.c.l.b16 %v1885
    %v2266 = vunpack.c.h.b16 %v1885
    %v2267 = vunpack.c.l.b16 %v1886
    %v2268 = vunpack.c.h.b16 %v1886
    %v2269 = vunpack.c.l.b16 %v1887
    %v2270 = vunpack.c.h.b16 %v1887
    %v2271 = vunpack.c.l.b16 %v1888
    %v2272 = vunpack.c.h.b16 %v1888
    %v2273 = vpack.c.b16 %v2019, %v2017
    %v2274 = vpack.c.b16 %v2020, %v2018
    %v2275 = vpack.c.b16 %v2023, %v2021
    %v2276 = vpack.c.b16 %v2024, %v2022
    %v2277 = vpack.c.b16 %v2027, %v2025
    %v2278 = vpack.c.b16 %v2028, %v2026
    %v2279 = vpack.c.b16 %v2031, %v2029
    %v2280 = vpack.c.b16 %v2032, %v2030
    %v2281 = vpack.c.b16 %v2035, %v2033
    %v2282 = vpack.c.b16 %v2036, %v2034
    %v2283 = vpack.c.b16 %v2039, %v2037
    %v2284 = vpack.c.b16 %v2040, %v2038
    %v2285 = vpack.c.b16 %v2043, %v2041
    %v2286 = vpack.c.b16 %v2044, %v2042
    %v2287 = vpack.c.b16 %v2047, %v2045
    %v2288 = vpack.c.b16 %v2048, %v2046
    %v2289 = vpack.c.b16 %v2051, %v2049
    %v2290 = vpack.c.b16 %v2052, %v2050
    %v2291 = vpack.c.b16 %v2055, %v2053
    %v2292 = vpack.c.b16 %v2056, %v2054
    %v2293 = vpack.c.b16 %v2059, %v2057
    %v2294 = vpack.c.b16 %v2060, %v2058
    %v2295 = vpack.c.b16 %v2063, %v2061
    %v2296 = vpack.c.b16 %v2064, %v2062
    %v2297 = vpack.c.b16 %v2067, %v2065
    %v2298 = vpack.c.b16 %v2068, %v2066
    %v2299 = vpack.c.b16 %v2071, %v2069
    %v2300 = vpack.c.b16 %v2072, %v2070
    %v2301 = vpack.c.b16 %v2075, %v2073
    %v2302 = vpack.c.b16 %v2076, %v2074
    %v2303 = vpack.c.b16 %v2079, %v2077
    %v2304 = vpack.c.b16 %v2080, %v2078
    %v2305 = vpack.c.b16 %v2083, %v2081
    %v2306 = vpack.c.b16 %v2084, %v2082
    %v2307 = vpack.c.b16 %v2087, %v2085
    %v2308 = vpack.c.b16 %v2088, %v2086
    %v2309 = vpack.c.b16 %v2091, %v2089
    %v2310 = vpack.c.b16 %v2092, %v2090
    %v2311 = vpack.c.b16 %v2095, %v2093
    %v2312 = vpack.c.b16 %v2096, %v2094
    %v2313 = vpack.c.b16 %v2099, %v2097
    %v2314 = vpack.c.b16 %v2100, %v2098
    %v2315 = vpack.c.b16 %v2103, %v2101
    %v2316 = vpack.c.b16 %v2104, %v2102
    %v2317 = vpack.c.b16 %v2107, %v2105
    %v2318 = vpack.c.b16 %v2108, %v2106
    %v2319 = vpack.c.b16 %v2111, %v2109
    %v2320 = vpack.c.b16 %v2112, %v2110
    %v2321 = vpack.c.b16 %v2115, %v2113
    %v2322 = vpack.c.b16 %v2116, %v2114
    %v2323 = vpack.c.b16 %v2119, %v2117
    %v2324 = vpack.c.b16 %v2120, %v2118
    %v2325 = vpack.c.b16 %v2123, %v2121
    %v2326 = vpack.c.b16 %v2124, %v2122
    %v2327 = vpack.c.b16 %v2127, %v2125
    %v2328 = vpack.c.b16 %v2128, %v2126
    %v2329 = vpack.c.b16 %v2131, %v2129
    %v2330 = vpack.c.b16 %v2132, %v2130
    %v2331 = vpack.c.b16 %v2135, %v2133
    %v2332 = vpack.c.b16 %v2136, %v2134
    %v2333 = vpack.c.b16 %v2139, %v2137
    %v2334 = vpack.c.b16 %v2140, %v2138
    %v2335 = vpack.c.b16 %v2143, %v2141
    %v2336 = vpack.c.b16 %v2144, %v2142
    %v2337 = vpack.c.b16 %v2147, %v2145
    %v2338 = vpack.c.b16 %v2148, %v2146
    %v2339 = vpack.c.b16 %v2151, %v2149
    %v2340 = vpack.c.b16 %v2152, %v2150
    %v2341 = vpack.c.b16 %v2155, %v2153
    %v2342 = vpack.c.b16 %v2156, %v2154
    %v2343 = vpack.c.b16 %v2159, %v2157
    %v2344 = vpack.c.b16 %v2160, %v2158
    %v2345 = vpack.c.b16 %v2163, %v2161
    %v2346 = vpack.c.b16 %v2164, %v2162
    %v2347 = vpack.c.b16 %v2167, %v2165
    %v2348 = vpack.c.b16 %v2168, %v2166
    %v2349 = vpack.c.b16 %v2171, %v2169
    %v2350 = vpack.c.b16 %v2172, %v2170
    %v2351 = vpack.c.b16 %v2175, %v2173
    %v2352 = vpack.c.b16 %v2176, %v2174
    %v2353 = vpack.c.b16 %v2179, %v2177
    %v2354 = vpack.c.b16 %v2180, %v2178
    %v2355 = vpack.c.b16 %v2183, %v2181
    %v2356 = vpack.c.b16 %v2184, %v2182
    %v2357 = vpack.c.b16 %v2187, %v2185
    %v2358 = vpack.c.b16 %v2188, %v2186
    %v2359 = vpack.c.b16 %v2191, %v2189
    %v2360 = vpack.c.b16 %v2192, %v2190
    %v2361 = vpack.c.b16 %v2195, %v2193
    %v2362 = vpack.c.b16 %v2196, %v2194
    %v2363 = vpack.c.b16 %v2199, %v2197
    %v2364 = vpack.c.b16 %v2200, %v2198
    %v2365 = vpack.c.b16 %v2203, %v2201
    %v2366 = vpack.c.b16 %v2204, %v2202
    %v2367 = vpack.c.b16 %v2207, %v2205
    %v2368 = vpack.c.b16 %v2208, %v2206
    %v2369 = vpack.c.b16 %v2211, %v2209
    %v2370 = vpack.c.b16 %v2212, %v2210
    %v2371 = vpack.c.b16 %v2215, %v2213
    %v2372 = vpack.c.b16 %v2216, %v2214
    %v2373 = vpack.c.b16 %v2219, %v2217
    %v2374 = vpack.c.b16 %v2220, %v2218
    %v2375 = vpack.c.b16 %v2223, %v2221
    %v2376 = vpack.c.b16 %v2224, %v2222
    %v2377 = vpack.c.b16 %v2227, %v2225
    %v2378 = vpack.c.b16 %v2228, %v2226
    %v2379 = vpack.c.b16 %v2231, %v2229
    %v2380 = vpack.c.b16 %v2232, %v2230
    %v2381 = vpack.c.b16 %v2235, %v2233
    %v2382 = vpack.c.b16 %v2236, %v2234
    %v2383 = vpack.c.b16 %v2239, %v2237
    %v2384 = vpack.c.b16 %v2240, %v2238
    %v2385 = vpack.c.b16 %v2243, %v2241
    %v2386 = vpack.c.b16 %v2244, %v2242
    %v2387 = vpack.c.b16 %v2247, %v2245
    %v2388 = vpack.c.b16 %v2248, %v2246
    %v2389 = vpack.c.b16 %v2251, %v2249
    %v2390 = vpack.c.b16 %v2252, %v2250
    %v2391 = vpack.c.b16 %v2255, %v2253
    %v2392 = vpack.c.b16 %v2256, %v2254
    %v2393 = vpack.c.b16 %v2259, %v2257
    %v2394 = vpack.c.b16 %v2260, %v2258
    %v2395 = vpack.c.b16 %v2263, %v2261
    %v2396 = vpack.c.b16 %v2264, %v2262
    %v2397 = vpack.c.b16 %v2267, %v2265
    %v2398 = vpack.c.b16 %v2268, %v2266
    %v2399 = vpack.c.b16 %v2271, %v2269
    %v2400 = vpack.c.b16 %v2272, %v2270
    %2529 = vmatprep.subr.bf16.mxu0 %v2274
    %2530 = vmatpush1.bf16.msra.mxu0 %v2273
    %2531 = vmatprep.subr.bf16.mxu0 %v2276
    %2532 = vmatpush1.bf16.msra.mxu0 %v2275
    %2533 = vmatprep.subr.bf16.mxu0 %v2278
    %2534 = vmatpush1.bf16.msra.mxu0 %v2277
    %2535 = vmatprep.subr.bf16.mxu0 %v2280
    %2536 = vmatpush1.bf16.msra.mxu0 %v2279
    %2537 = vmatprep.subr.bf16.mxu0 %v2282
    %2538 = vmatpush1.bf16.msra.mxu0 %v2281
    %2539 = vmatprep.subr.bf16.mxu0 %v2284
    %2540 = vmatpush1.bf16.msra.mxu0 %v2283
    %2541 = vmatprep.subr.bf16.mxu0 %v2286
    %2542 = vmatpush1.bf16.msra.mxu0 %v2285
    %2543 = vmatprep.subr.bf16.mxu0 %v2288
    %2544 = vmatpush1.bf16.msra.mxu0 %v2287
    %2545 = vmatprep.subr.bf16.mxu0 %v2290
    %2546 = vmatpush1.bf16.msra.mxu0 %v2289
    %2547 = vmatprep.subr.bf16.mxu0 %v2292
    %2548 = vmatpush1.bf16.msra.mxu0 %v2291
    %2549 = vmatprep.subr.bf16.mxu0 %v2294
    %2550 = vmatpush1.bf16.msra.mxu0 %v2293
    %2551 = vmatprep.subr.bf16.mxu0 %v2296
    %2552 = vmatpush1.bf16.msra.mxu0 %v2295
    %2553 = vmatprep.subr.bf16.mxu0 %v2298
    %2554 = vmatpush1.bf16.msra.mxu0 %v2297
    %2555 = vmatprep.subr.bf16.mxu0 %v2300
    %2556 = vmatpush1.bf16.msra.mxu0 %v2299
    %2557 = vmatprep.subr.bf16.mxu0 %v2302
    %2558 = vmatpush1.bf16.msra.mxu0 %v2301
    %2559 = vmatprep.subr.bf16.mxu0 %v2304
    %2560 = vmatpush1.bf16.msra.mxu0 %v2303
    %2561 = vmatprep.mubr.bf16.mxu0 %v1746
    %2562 = vmatmul.mubr.bf16.gmra.mrb[0].mxu0 %v1745
    %v2563 = vpop.f32.mrb[0].mxu0
    %v2564 = vadd.f32 0.0, %v2563
    %v2565 = vpop.f32.mrb[0].mxu0
    %v2566 = vadd.f32 0.0, %v2565
    %v2567 = vpop.f32.mrb[0].mxu0
    %v2568 = vadd.f32 0.0, %v2567
    %v2569 = vpop.f32.mrb[0].mxu0
    %v2570 = vadd.f32 0.0, %v2569
    %2571 = vmatprep.mubr.bf16.mxu0 %v1754
    %2572 = vmatmul.mubr.bf16.gmra.mrb[0].mxu0 %v1753
    %v2573 = vpop.f32.mrb[0].mxu0
    %v2574 = vadd.f32 0.0, %v2573
    %v2575 = vpop.f32.mrb[0].mxu0
    %v2576 = vadd.f32 0.0, %v2575
    %v2577 = vpop.f32.mrb[0].mxu0
    %v2578 = vadd.f32 0.0, %v2577
    %v2579 = vpop.f32.mrb[0].mxu0
    %v2580 = vadd.f32 0.0, %v2579
    %2581 = vdwg.mxu0
    %2582 = vmatprep.subr.bf16.mxu0 %v2306
    %2583 = vmatpush1.bf16.msra.mxu0 %v2305
    %2584 = vmatprep.subr.bf16.mxu0 %v2308
    %2585 = vmatpush1.bf16.msra.mxu0 %v2307
    %2586 = vmatprep.subr.bf16.mxu0 %v2310
    %2587 = vmatpush1.bf16.msra.mxu0 %v2309
    %2588 = vmatprep.subr.bf16.mxu0 %v2312
    %2589 = vmatpush1.bf16.msra.mxu0 %v2311
    %2590 = vmatprep.subr.bf16.mxu0 %v2314
    %2591 = vmatpush1.bf16.msra.mxu0 %v2313
    %2592 = vmatprep.subr.bf16.mxu0 %v2316
    %2593 = vmatpush1.bf16.msra.mxu0 %v2315
    %2594 = vmatprep.subr.bf16.mxu0 %v2318
    %2595 = vmatpush1.bf16.msra.mxu0 %v2317
    %2596 = vmatprep.subr.bf16.mxu0 %v2320
    %2597 = vmatpush1.bf16.msra.mxu0 %v2319
    %2598 = vmatprep.subr.bf16.mxu0 %v2322
    %2599 = vmatpush1.bf16.msra.mxu0 %v2321
    %2600 = vmatprep.subr.bf16.mxu0 %v2324
    %2601 = vmatpush1.bf16.msra.mxu0 %v2323
    %2602 = vmatprep.subr.bf16.mxu0 %v2326
    %2603 = vmatpush1.bf16.msra.mxu0 %v2325
    %2604 = vmatprep.subr.bf16.mxu0 %v2328
    %2605 = vmatpush1.bf16.msra.mxu0 %v2327
    %2606 = vmatprep.subr.bf16.mxu0 %v2330
    %2607 = vmatpush1.bf16.msra.mxu0 %v2329
    %2608 = vmatprep.subr.bf16.mxu0 %v2332
    %2609 = vmatpush1.bf16.msra.mxu0 %v2331
    %2610 = vmatprep.subr.bf16.mxu0 %v2334
    %2611 = vmatpush1.bf16.msra.mxu0 %v2333
    %2612 = vmatprep.subr.bf16.mxu0 %v2336
    %2613 = vmatpush1.bf16.msra.mxu0 %v2335
    %2614 = vmatprep.mubr.bf16.mxu0 %v1748
    %2615 = vmatmul.mubr.bf16.gmra.mrb[0].mxu0 %v1747
    %v2616 = vpop.f32.mrb[0].mxu0
    %v2617 = vadd.f32 %v2564, %v2616
    %v2618 = vpop.f32.mrb[0].mxu0
    %v2619 = vadd.f32 %v2566, %v2618
    %v2620 = vpop.f32.mrb[0].mxu0
    %v2621 = vadd.f32 %v2568, %v2620
    %v2622 = vpop.f32.mrb[0].mxu0
    %v2623 = vadd.f32 %v2570, %v2622
    %2624 = vmatprep.mubr.bf16.mxu0 %v1756
    %2625 = vmatmul.mubr.bf16.gmra.mrb[0].mxu0 %v1755
    %v2626 = vpop.f32.mrb[0].mxu0
    %v2627 = vadd.f32 %v2574, %v2626
    %v2628 = vpop.f32.mrb[0].mxu0
    %v2629 = vadd.f32 %v2576, %v2628
    %v2630 = vpop.f32.mrb[0].mxu0
    %v2631 = vadd.f32 %v2578, %v2630
    %v2632 = vpop.f32.mrb[0].mxu0
    %v2633 = vadd.f32 %v2580, %v2632
    %2634 = vdwg.mxu0
    %2635 = vmatprep.subr.bf16.mxu0 %v2338
    %2636 = vmatpush1.bf16.msra.mxu0 %v2337
    %2637 = vmatprep.subr.bf16.mxu0 %v2340
    %2638 = vmatpush1.bf16.msra.mxu0 %v2339
    %2639 = vmatprep.subr.bf16.mxu0 %v2342
    %2640 = vmatpush1.bf16.msra.mxu0 %v2341
    %2641 = vmatprep.subr.bf16.mxu0 %v2344
    %2642 = vmatpush1.bf16.msra.mxu0 %v2343
    %2643 = vmatprep.subr.bf16.mxu0 %v2346
    %2644 = vmatpush1.bf16.msra.mxu0 %v2345
    %2645 = vmatprep.subr.bf16.mxu0 %v2348
    %2646 = vmatpush1.bf16.msra.mxu0 %v2347
    %2647 = vmatprep.subr.bf16.mxu0 %v2350
    %2648 = vmatpush1.bf16.msra.mxu0 %v2349
    %2649 = vmatprep.subr.bf16.mxu0 %v2352
    %2650 = vmatpush1.bf16.msra.mxu0 %v2351
    %2651 = vmatprep.subr.bf16.mxu0 %v2354
    %2652 = vmatpush1.bf16.msra.mxu0 %v2353
    %2653 = vmatprep.subr.bf16.mxu0 %v2356
    %2654 = vmatpush1.bf16.msra.mxu0 %v2355
    %2655 = vmatprep.subr.bf16.mxu0 %v2358
    %2656 = vmatpush1.bf16.msra.mxu0 %v2357
    %2657 = vmatprep.subr.bf16.mxu0 %v2360
    %2658 = vmatpush1.bf16.msra.mxu0 %v2359
    %2659 = vmatprep.subr.bf16.mxu0 %v2362
    %2660 = vmatpush1.bf16.msra.mxu0 %v2361
    %2661 = vmatprep.subr.bf16.mxu0 %v2364
    %2662 = vmatpush1.bf16.msra.mxu0 %v2363
    %2663 = vmatprep.subr.bf16.mxu0 %v2366
    %2664 = vmatpush1.bf16.msra.mxu0 %v2365
    %2665 = vmatprep.subr.bf16.mxu0 %v2368
    %2666 = vmatpush1.bf16.msra.mxu0 %v2367
    %2667 = vmatprep.mubr.bf16.mxu0 %v1750
    %2668 = vmatmul.mubr.bf16.gmra.mrb[0].mxu0 %v1749
    %v2669 = vpop.f32.mrb[0].mxu0
    %v2670 = vadd.f32 %v2617, %v2669
    %v2671 = vpop.f32.mrb[0].mxu0
    %v2672 = vadd.f32 %v2619, %v2671
    %v2673 = vpop.f32.mrb[0].mxu0
    %v2674 = vadd.f32 %v2621, %v2673
    %v2675 = vpop.f32.mrb[0].mxu0
    %v2676 = vadd.f32 %v2623, %v2675
    %2677 = vmatprep.mubr.bf16.mxu0 %v1758
    %2678 = vmatmul.mubr.bf16.gmra.mrb[0].mxu0 %v1757
    %v2679 = vpop.f32.mrb[0].mxu0
    %v2680 = vadd.f32 %v2627, %v2679
    %v2681 = vpop.f32.mrb[0].mxu0
    %v2682 = vadd.f32 %v2629, %v2681
    %v2683 = vpop.f32.mrb[0].mxu0
    %v2684 = vadd.f32 %v2631, %v2683
    %v2685 = vpop.f32.mrb[0].mxu0
    %v2686 = vadd.f32 %v2633, %v2685
    %2687 = vdwg.mxu0
    %2688 = vmatprep.subr.bf16.mxu0 %v2370
    %2689 = vmatpush1.bf16.msra.mxu0 %v2369
    %2690 = vmatprep.subr.bf16.mxu0 %v2372
    %2691 = vmatpush1.bf16.msra.mxu0 %v2371
    %2692 = vmatprep.subr.bf16.mxu0 %v2374
    %2693 = vmatpush1.bf16.msra.mxu0 %v2373
    %2694 = vmatprep.subr.bf16.mxu0 %v2376
    %2695 = vmatpush1.bf16.msra.mxu0 %v2375
    %2696 = vmatprep.subr.bf16.mxu0 %v2378
    %2697 = vmatpush1.bf16.msra.mxu0 %v2377
    %2698 = vmatprep.subr.bf16.mxu0 %v2380
    %2699 = vmatpush1.bf16.msra.mxu0 %v2379
    %2700 = vmatprep.subr.bf16.mxu0 %v2382
    %2701 = vmatpush1.bf16.msra.mxu0 %v2381
    %2702 = vmatprep.subr.bf16.mxu0 %v2384
    %2703 = vmatpush1.bf16.msra.mxu0 %v2383
    %2704 = vmatprep.subr.bf16.mxu0 %v2386
    %2705 = vmatpush1.bf16.msra.mxu0 %v2385
    %2706 = vmatprep.subr.bf16.mxu0 %v2388
    %2707 = vmatpush1.bf16.msra.mxu0 %v2387
    %2708 = vmatprep.subr.bf16.mxu0 %v2390
    %2709 = vmatpush1.bf16.msra.mxu0 %v2389
    %2710 = vmatprep.subr.bf16.mxu0 %v2392
    %2711 = vmatpush1.bf16.msra.mxu0 %v2391
    %2712 = vmatprep.subr.bf16.mxu0 %v2394
    %2713 = vmatpush1.bf16.msra.mxu0 %v2393
    %2714 = vmatprep.subr.bf16.mxu0 %v2396
    %2715 = vmatpush1.bf16.msra.mxu0 %v2395
    %2716 = vmatprep.subr.bf16.mxu0 %v2398
    %2717 = vmatpush1.bf16.msra.mxu0 %v2397
    %2718 = vmatprep.subr.bf16.mxu0 %v2400
    %2719 = vmatpush1.bf16.msra.mxu0 %v2399
    %2720 = vmatprep.mubr.bf16.mxu0 %v1752
    %2721 = vmatmul.mubr.bf16.gmra.mrb[0].mxu0 %v1751
    %v2722 = vpop.f32.mrb[0].mxu0
    %v2723 = vadd.f32 %v2670, %v2722
    %v2724 = vpop.f32.mrb[0].mxu0
    %v2725 = vadd.f32 %v2672, %v2724
    %v2726 = vpop.f32.mrb[0].mxu0
    %v2727 = vadd.f32 %v2674, %v2726
    %v2728 = vpop.f32.mrb[0].mxu0
    %v2729 = vadd.f32 %v2676, %v2728
    %2730 = vmatprep.mubr.bf16.mxu0 %v1760
    %2731 = vmatmul.mubr.bf16.gmra.mrb[0].mxu0 %v1759
    %v2732 = vpop.f32.mrb[0].mxu0
    %v2733 = vadd.f32 %v2680, %v2732
    %v2734 = vpop.f32.mrb[0].mxu0
    %v2735 = vadd.f32 %v2682, %v2734
    %v2736 = vpop.f32.mrb[0].mxu0
    %v2737 = vadd.f32 %v2684, %v2736
    %v2738 = vpop.f32.mrb[0].mxu0
    %v2739 = vadd.f32 %v2686, %v2738
    %2740 = vdwg.mxu0
    %v2741 = vpack.c.bf16 %v2727, %v2723
    %v2742 = vpack.c.bf16 %v2729, %v2725
    %v2743 = vpack.c.bf16 %v2737, %v2733
    %v2744 = vpack.c.bf16 %v2739, %v2735
    %s2745 = scalar_lea.vmem %s5, 1024
    %v2746 = vld [vmem:[%s2745] sm:$0xff]
    %v2747 = vld [vmem:[%s2745 + $0x8] sm:$0xff]
    %v2748 = vld [vmem:[%s2745 + $0x10] sm:$0xff]
    %v2749 = vld [vmem:[%s2745 + $0x18] sm:$0xff]
    %v2750 = vld [vmem:[%s2745 + $0x20] sm:$0xff]
    %v2751 = vld [vmem:[%s2745 + $0x28] sm:$0xff]
    %v2752 = vld [vmem:[%s2745 + $0x30] sm:$0xff]
    %v2753 = vld [vmem:[%s2745 + $0x38] sm:$0xff]
    %v2754 = vld [vmem:[%s2745 + $0x40] sm:$0xff]
    %v2755 = vld [vmem:[%s2745 + $0x48] sm:$0xff]
    %v2756 = vld [vmem:[%s2745 + $0x50] sm:$0xff]
    %v2757 = vld [vmem:[%s2745 + $0x58] sm:$0xff]
    %v2758 = vld [vmem:[%s2745 + $0x60] sm:$0xff]
    %v2759 = vld [vmem:[%s2745 + $0x68] sm:$0xff]
    %v2760 = vld [vmem:[%s2745 + $0x70] sm:$0xff]
    %v2761 = vld [vmem:[%s2745 + $0x78] sm:$0xff]
    %v2762 = vld [vmem:[%s2745 + $0x80] sm:$0xff]
    %v2763 = vld [vmem:[%s2745 + $0x88] sm:$0xff]
    %v2764 = vld [vmem:[%s2745 + $0x90] sm:$0xff]
    %v2765 = vld [vmem:[%s2745 + $0x98] sm:$0xff]
    %v2766 = vld [vmem:[%s2745 + $0xa0] sm:$0xff]
    %v2767 = vld [vmem:[%s2745 + $0xa8] sm:$0xff]
    %v2768 = vld [vmem:[%s2745 + $0xb0] sm:$0xff]
    %v2769 = vld [vmem:[%s2745 + $0xb8] sm:$0xff]
    %v2770 = vld [vmem:[%s2745 + $0xc0] sm:$0xff]
    %v2771 = vld [vmem:[%s2745 + $0xc8] sm:$0xff]
    %v2772 = vld [vmem:[%s2745 + $0xd0] sm:$0xff]
    %v2773 = vld [vmem:[%s2745 + $0xd8] sm:$0xff]
    %v2774 = vld [vmem:[%s2745 + $0xe0] sm:$0xff]
    %v2775 = vld [vmem:[%s2745 + $0xe8] sm:$0xff]
    %v2776 = vld [vmem:[%s2745 + $0xf0] sm:$0xff]
    %v2777 = vld [vmem:[%s2745 + $0xf8] sm:$0xff]
    %v2778 = vld [vmem:[%s2745 + $0x100] sm:$0xff]
    %v2779 = vld [vmem:[%s2745 + $0x108] sm:$0xff]
    %v2780 = vld [vmem:[%s2745 + $0x110] sm:$0xff]
    %v2781 = vld [vmem:[%s2745 + $0x118] sm:$0xff]
    %v2782 = vld [vmem:[%s2745 + $0x120] sm:$0xff]
    %v2783 = vld [vmem:[%s2745 + $0x128] sm:$0xff]
    %v2784 = vld [vmem:[%s2745 + $0x130] sm:$0xff]
    %v2785 = vld [vmem:[%s2745 + $0x138] sm:$0xff]
    %v2786 = vld [vmem:[%s2745 + $0x140] sm:$0xff]
    %v2787 = vld [vmem:[%s2745 + $0x148] sm:$0xff]
    %v2788 = vld [vmem:[%s2745 + $0x150] sm:$0xff]
    %v2789 = vld [vmem:[%s2745 + $0x158] sm:$0xff]
    %v2790 = vld [vmem:[%s2745 + $0x160] sm:$0xff]
    %v2791 = vld [vmem:[%s2745 + $0x168] sm:$0xff]
    %v2792 = vld [vmem:[%s2745 + $0x170] sm:$0xff]
    %v2793 = vld [vmem:[%s2745 + $0x178] sm:$0xff]
    %v2794 = vld [vmem:[%s2745 + $0x180] sm:$0xff]
    %v2795 = vld [vmem:[%s2745 + $0x188] sm:$0xff]
    %v2796 = vld [vmem:[%s2745 + $0x190] sm:$0xff]
    %v2797 = vld [vmem:[%s2745 + $0x198] sm:$0xff]
    %v2798 = vld [vmem:[%s2745 + $0x1a0] sm:$0xff]
    %v2799 = vld [vmem:[%s2745 + $0x1a8] sm:$0xff]
    %v2800 = vld [vmem:[%s2745 + $0x1b0] sm:$0xff]
    %v2801 = vld [vmem:[%s2745 + $0x1b8] sm:$0xff]
    %v2802 = vld [vmem:[%s2745 + $0x1c0] sm:$0xff]
    %v2803 = vld [vmem:[%s2745 + $0x1c8] sm:$0xff]
    %v2804 = vld [vmem:[%s2745 + $0x1d0] sm:$0xff]
    %v2805 = vld [vmem:[%s2745 + $0x1d8] sm:$0xff]
    %v2806 = vld [vmem:[%s2745 + $0x1e0] sm:$0xff]
    %v2807 = vld [vmem:[%s2745 + $0x1e8] sm:$0xff]
    %v2808 = vld [vmem:[%s2745 + $0x1f0] sm:$0xff]
    %v2809 = vld [vmem:[%s2745 + $0x1f8] sm:$0xff]
    %v2810 = vld [vmem:[%s2745 + $0x200] sm:$0xff]
    %v2811 = vld [vmem:[%s2745 + $0x208] sm:$0xff]
    %v2812 = vld [vmem:[%s2745 + $0x210] sm:$0xff]
    %v2813 = vld [vmem:[%s2745 + $0x218] sm:$0xff]
    %v2814 = vld [vmem:[%s2745 + $0x220] sm:$0xff]
    %v2815 = vld [vmem:[%s2745 + $0x228] sm:$0xff]
    %v2816 = vld [vmem:[%s2745 + $0x230] sm:$0xff]
    %v2817 = vld [vmem:[%s2745 + $0x238] sm:$0xff]
    %v2818 = vld [vmem:[%s2745 + $0x240] sm:$0xff]
    %v2819 = vld [vmem:[%s2745 + $0x248] sm:$0xff]
    %v2820 = vld [vmem:[%s2745 + $0x250] sm:$0xff]
    %v2821 = vld [vmem:[%s2745 + $0x258] sm:$0xff]
    %v2822 = vld [vmem:[%s2745 + $0x260] sm:$0xff]
    %v2823 = vld [vmem:[%s2745 + $0x268] sm:$0xff]
    %v2824 = vld [vmem:[%s2745 + $0x270] sm:$0xff]
    %v2825 = vld [vmem:[%s2745 + $0x278] sm:$0xff]
    %v2826 = vld [vmem:[%s2745 + $0x280] sm:$0xff]
    %v2827 = vld [vmem:[%s2745 + $0x288] sm:$0xff]
    %v2828 = vld [vmem:[%s2745 + $0x290] sm:$0xff]
    %v2829 = vld [vmem:[%s2745 + $0x298] sm:$0xff]
    %v2830 = vld [vmem:[%s2745 + $0x2a0] sm:$0xff]
    %v2831 = vld [vmem:[%s2745 + $0x2a8] sm:$0xff]
    %v2832 = vld [vmem:[%s2745 + $0x2b0] sm:$0xff]
    %v2833 = vld [vmem:[%s2745 + $0x2b8] sm:$0xff]
    %v2834 = vld [vmem:[%s2745 + $0x2c0] sm:$0xff]
    %v2835 = vld [vmem:[%s2745 + $0x2c8] sm:$0xff]
    %v2836 = vld [vmem:[%s2745 + $0x2d0] sm:$0xff]
    %v2837 = vld [vmem:[%s2745 + $0x2d8] sm:$0xff]
    %v2838 = vld [vmem:[%s2745 + $0x2e0] sm:$0xff]
    %v2839 = vld [vmem:[%s2745 + $0x2e8] sm:$0xff]
    %v2840 = vld [vmem:[%s2745 + $0x2f0] sm:$0xff]
    %v2841 = vld [vmem:[%s2745 + $0x2f8] sm:$0xff]
    %v2842 = vld [vmem:[%s2745 + $0x300] sm:$0xff]
    %v2843 = vld [vmem:[%s2745 + $0x308] sm:$0xff]
    %v2844 = vld [vmem:[%s2745 + $0x310] sm:$0xff]
    %v2845 = vld [vmem:[%s2745 + $0x318] sm:$0xff]
    %v2846 = vld [vmem:[%s2745 + $0x320] sm:$0xff]
    %v2847 = vld [vmem:[%s2745 + $0x328] sm:$0xff]
    %v2848 = vld [vmem:[%s2745 + $0x330] sm:$0xff]
    %v2849 = vld [vmem:[%s2745 + $0x338] sm:$0xff]
    %v2850 = vld [vmem:[%s2745 + $0x340] sm:$0xff]
    %v2851 = vld [vmem:[%s2745 + $0x348] sm:$0xff]
    %v2852 = vld [vmem:[%s2745 + $0x350] sm:$0xff]
    %v2853 = vld [vmem:[%s2745 + $0x358] sm:$0xff]
    %v2854 = vld [vmem:[%s2745 + $0x360] sm:$0xff]
    %v2855 = vld [vmem:[%s2745 + $0x368] sm:$0xff]
    %v2856 = vld [vmem:[%s2745 + $0x370] sm:$0xff]
    %v2857 = vld [vmem:[%s2745 + $0x378] sm:$0xff]
    %v2858 = vld [vmem:[%s2745 + $0x380] sm:$0xff]
    %v2859 = vld [vmem:[%s2745 + $0x388] sm:$0xff]
    %v2860 = vld [vmem:[%s2745 + $0x390] sm:$0xff]
    %v2861 = vld [vmem:[%s2745 + $0x398] sm:$0xff]
    %v2862 = vld [vmem:[%s2745 + $0x3a0] sm:$0xff]
    %v2863 = vld [vmem:[%s2745 + $0x3a8] sm:$0xff]
    %v2864 = vld [vmem:[%s2745 + $0x3b0] sm:$0xff]
    %v2865 = vld [vmem:[%s2745 + $0x3b8] sm:$0xff]
    %v2866 = vld [vmem:[%s2745 + $0x3c0] sm:$0xff]
    %v2867 = vld [vmem:[%s2745 + $0x3c8] sm:$0xff]
    %v2868 = vld [vmem:[%s2745 + $0x3d0] sm:$0xff]
    %v2869 = vld [vmem:[%s2745 + $0x3d8] sm:$0xff]
    %v2870 = vld [vmem:[%s2745 + $0x3e0] sm:$0xff]
    %v2871 = vld [vmem:[%s2745 + $0x3e8] sm:$0xff]
    %v2872 = vld [vmem:[%s2745 + $0x3f0] sm:$0xff]
    %v2873 = vld [vmem:[%s2745 + $0x3f8] sm:$0xff]
    %v3002 = vunpack.c.l.b16 %v2746
    %v3003 = vunpack.c.h.b16 %v2746
    %v3004 = vunpack.c.l.b16 %v2747
    %v3005 = vunpack.c.h.b16 %v2747
    %v3006 = vunpack.c.l.b16 %v2748
    %v3007 = vunpack.c.h.b16 %v2748
    %v3008 = vunpack.c.l.b16 %v2749
    %v3009 = vunpack.c.h.b16 %v2749
    %v3010 = vunpack.c.l.b16 %v2750
    %v3011 = vunpack.c.h.b16 %v2750
    %v3012 = vunpack.c.l.b16 %v2751
    %v3013 = vunpack.c.h.b16 %v2751
    %v3014 = vunpack.c.l.b16 %v2752
    %v3015 = vunpack.c.h.b16 %v2752
    %v3016 = vunpack.c.l.b16 %v2753
    %v3017 = vunpack.c.h.b16 %v2753
    %v3018 = vunpack.c.l.b16 %v2754
    %v3019 = vunpack.c.h.b16 %v2754
    %v3020 = vunpack.c.l.b16 %v2755
    %v3021 = vunpack.c.h.b16 %v2755
    %v3022 = vunpack.c.l.b16 %v2756
    %v3023 = vunpack.c.h.b16 %v2756
    %v3024 = vunpack.c.l.b16 %v2757
    %v3025 = vunpack.c.h.b16 %v2757
    %v3026 = vunpack.c.l.b16 %v2758
    %v3027 = vunpack.c.h.b16 %v2758
    %v3028 = vunpack.c.l.b16 %v2759
    %v3029 = vunpack.c.h.b16 %v2759
    %v3030 = vunpack.c.l.b16 %v2760
    %v3031 = vunpack.c.h.b16 %v2760
    %v3032 = vunpack.c.l.b16 %v2761
    %v3033 = vunpack.c.h.b16 %v2761
    %v3034 = vunpack.c.l.b16 %v2762
    %v3035 = vunpack.c.h.b16 %v2762
    %v3036 = vunpack.c.l.b16 %v2763
    %v3037 = vunpack.c.h.b16 %v2763
    %v3038 = vunpack.c.l.b16 %v2764
    %v3039 = vunpack.c.h.b16 %v2764
    %v3040 = vunpack.c.l.b16 %v2765
    %v3041 = vunpack.c.h.b16 %v2765
    %v3042 = vunpack.c.l.b16 %v2766
    %v3043 = vunpack.c.h.b16 %v2766
    %v3044 = vunpack.c.l.b16 %v2767
    %v3045 = vunpack.c.h.b16 %v2767
    %v3046 = vunpack.c.l.b16 %v2768
    %v3047 = vunpack.c.h.b16 %v2768
    %v3048 = vunpack.c.l.b16 %v2769
    %v3049 = vunpack.c.h.b16 %v2769
    %v3050 = vunpack.c.l.b16 %v2770
    %v3051 = vunpack.c.h.b16 %v2770
    %v3052 = vunpack.c.l.b16 %v2771
    %v3053 = vunpack.c.h.b16 %v2771
    %v3054 = vunpack.c.l.b16 %v2772
    %v3055 = vunpack.c.h.b16 %v2772
    %v3056 = vunpack.c.l.b16 %v2773
    %v3057 = vunpack.c.h.b16 %v2773
    %v3058 = vunpack.c.l.b16 %v2774
    %v3059 = vunpack.c.h.b16 %v2774
    %v3060 = vunpack.c.l.b16 %v2775
    %v3061 = vunpack.c.h.b16 %v2775
    %v3062 = vunpack.c.l.b16 %v2776
    %v3063 = vunpack.c.h.b16 %v2776
    %v3064 = vunpack.c.l.b16 %v2777
    %v3065 = vunpack.c.h.b16 %v2777
    %v3066 = vunpack.c.l.b16 %v2778
    %v3067 = vunpack.c.h.b16 %v2778
    %v3068 = vunpack.c.l.b16 %v2779
    %v3069 = vunpack.c.h.b16 %v2779
    %v3070 = vunpack.c.l.b16 %v2780
    %v3071 = vunpack.c.h.b16 %v2780
    %v3072 = vunpack.c.l.b16 %v2781
    %v3073 = vunpack.c.h.b16 %v2781
    %v3074 = vunpack.c.l.b16 %v2782
    %v3075 = vunpack.c.h.b16 %v2782
    %v3076 = vunpack.c.l.b16 %v2783
    %v3077 = vunpack.c.h.b16 %v2783
    %v3078 = vunpack.c.l.b16 %v2784
    %v3079 = vunpack.c.h.b16 %v2784
    %v3080 = vunpack.c.l.b16 %v2785
    %v3081 = vunpack.c.h.b16 %v2785
    %v3082 = vunpack.c.l.b16 %v2786
    %v3083 = vunpack.c.h.b16 %v2786
    %v3084 = vunpack.c.l.b16 %v2787
    %v3085 = vunpack.c.h.b16 %v2787
    %v3086 = vunpack.c.l.b16 %v2788
    %v3087 = vunpack.c.h.b16 %v2788
    %v3088 = vunpack.c.l.b16 %v2789
    %v3089 = vunpack.c.h.b16 %v2789
    %v3090 = vunpack.c.l.b16 %v2790
    %v3091 = vunpack.c.h.b16 %v2790
    %v3092 = vunpack.c.l.b16 %v2791
    %v3093 = vunpack.c.h.b16 %v2791
    %v3094 = vunpack.c.l.b16 %v2792
    %v3095 = vunpack.c.h.b16 %v2792
    %v3096 = vunpack.c.l.b16 %v2793
    %v3097 = vunpack.c.h.b16 %v2793
    %v3098 = vunpack.c.l.b16 %v2794
    %v3099 = vunpack.c.h.b16 %v2794
    %v3100 = vunpack.c.l.b16 %v2795
    %v3101 = vunpack.c.h.b16 %v2795
    %v3102 = vunpack.c.l.b16 %v2796
    %v3103 = vunpack.c.h.b16 %v2796
    %v3104 = vunpack.c.l.b16 %v2797
    %v3105 = vunpack.c.h.b16 %v2797
    %v3106 = vunpack.c.l.b16 %v2798
    %v3107 = vunpack.c.h.b16 %v2798
    %v3108 = vunpack.c.l.b16 %v2799
    %v3109 = vunpack.c.h.b16 %v2799
    %v3110 = vunpack.c.l.b16 %v2800
    %v3111 = vunpack.c.h.b16 %v2800
    %v3112 = vunpack.c.l.b16 %v2801
    %v3113 = vunpack.c.h.b16 %v2801
    %v3114 = vunpack.c.l.b16 %v2802
    %v3115 = vunpack.c.h.b16 %v2802
    %v3116 = vunpack.c.l.b16 %v2803
    %v3117 = vunpack.c.h.b16 %v2803
    %v3118 = vunpack.c.l.b16 %v2804
    %v3119 = vunpack.c.h.b16 %v2804
    %v3120 = vunpack.c.l.b16 %v2805
    %v3121 = vunpack.c.h.b16 %v2805
    %v3122 = vunpack.c.l.b16 %v2806
    %v3123 = vunpack.c.h.b16 %v2806
    %v3124 = vunpack.c.l.b16 %v2807
    %v3125 = vunpack.c.h.b16 %v2807
    %v3126 = vunpack.c.l.b16 %v2808
    %v3127 = vunpack.c.h.b16 %v2808
    %v3128 = vunpack.c.l.b16 %v2809
    %v3129 = vunpack.c.h.b16 %v2809
    %v3130 = vunpack.c.l.b16 %v2810
    %v3131 = vunpack.c.h.b16 %v2810
    %v3132 = vunpack.c.l.b16 %v2811
    %v3133 = vunpack.c.h.b16 %v2811
    %v3134 = vunpack.c.l.b16 %v2812
    %v3135 = vunpack.c.h.b16 %v2812
    %v3136 = vunpack.c.l.b16 %v2813
    %v3137 = vunpack.c.h.b16 %v2813
    %v3138 = vunpack.c.l.b16 %v2814
    %v3139 = vunpack.c.h.b16 %v2814
    %v3140 = vunpack.c.l.b16 %v2815
    %v3141 = vunpack.c.h.b16 %v2815
    %v3142 = vunpack.c.l.b16 %v2816
    %v3143 = vunpack.c.h.b16 %v2816
    %v3144 = vunpack.c.l.b16 %v2817
    %v3145 = vunpack.c.h.b16 %v2817
    %v3146 = vunpack.c.l.b16 %v2818
    %v3147 = vunpack.c.h.b16 %v2818
    %v3148 = vunpack.c.l.b16 %v2819
    %v3149 = vunpack.c.h.b16 %v2819
    %v3150 = vunpack.c.l.b16 %v2820
    %v3151 = vunpack.c.h.b16 %v2820
    %v3152 = vunpack.c.l.b16 %v2821
    %v3153 = vunpack.c.h.b16 %v2821
    %v3154 = vunpack.c.l.b16 %v2822
    %v3155 = vunpack.c.h.b16 %v2822
    %v3156 = vunpack.c.l.b16 %v2823
    %v3157 = vunpack.c.h.b16 %v2823
    %v3158 = vunpack.c.l.b16 %v2824
    %v3159 = vunpack.c.h.b16 %v2824
    %v3160 = vunpack.c.l.b16 %v2825
    %v3161 = vunpack.c.h.b16 %v2825
    %v3162 = vunpack.c.l.b16 %v2826
    %v3163 = vunpack.c.h.b16 %v2826
    %v3164 = vunpack.c.l.b16 %v2827
    %v3165 = vunpack.c.h.b16 %v2827
    %v3166 = vunpack.c.l.b16 %v2828
    %v3167 = vunpack.c.h.b16 %v2828
    %v3168 = vunpack.c.l.b16 %v2829
    %v3169 = vunpack.c.h.b16 %v2829
    %v3170 = vunpack.c.l.b16 %v2830
    %v3171 = vunpack.c.h.b16 %v2830
    %v3172 = vunpack.c.l.b16 %v2831
    %v3173 = vunpack.c.h.b16 %v2831
    %v3174 = vunpack.c.l.b16 %v2832
    %v3175 = vunpack.c.h.b16 %v2832
    %v3176 = vunpack.c.l.b16 %v2833
    %v3177 = vunpack.c.h.b16 %v2833
    %v3178 = vunpack.c.l.b16 %v2834
    %v3179 = vunpack.c.h.b16 %v2834
    %v3180 = vunpack.c.l.b16 %v2835
    %v3181 = vunpack.c.h.b16 %v2835
    %v3182 = vunpack.c.l.b16 %v2836
    %v3183 = vunpack.c.h.b16 %v2836
    %v3184 = vunpack.c.l.b16 %v2837
    %v3185 = vunpack.c.h.b16 %v2837
    %v3186 = vunpack.c.l.b16 %v2838
    %v3187 = vunpack.c.h.b16 %v2838
    %v3188 = vunpack.c.l.b16 %v2839
    %v3189 = vunpack.c.h.b16 %v2839
    %v3190 = vunpack.c.l.b16 %v2840
    %v3191 = vunpack.c.h.b16 %v2840
    %v3192 = vunpack.c.l.b16 %v2841
    %v3193 = vunpack.c.h.b16 %v2841
    %v3194 = vunpack.c.l.b16 %v2842
    %v3195 = vunpack.c.h.b16 %v2842
    %v3196 = vunpack.c.l.b16 %v2843
    %v3197 = vunpack.c.h.b16 %v2843
    %v3198 = vunpack.c.l.b16 %v2844
    %v3199 = vunpack.c.h.b16 %v2844
    %v3200 = vunpack.c.l.b16 %v2845
    %v3201 = vunpack.c.h.b16 %v2845
    %v3202 = vunpack.c.l.b16 %v2846
    %v3203 = vunpack.c.h.b16 %v2846
    %v3204 = vunpack.c.l.b16 %v2847
    %v3205 = vunpack.c.h.b16 %v2847
    %v3206 = vunpack.c.l.b16 %v2848
    %v3207 = vunpack.c.h.b16 %v2848
    %v3208 = vunpack.c.l.b16 %v2849
    %v3209 = vunpack.c.h.b16 %v2849
    %v3210 = vunpack.c.l.b16 %v2850
    %v3211 = vunpack.c.h.b16 %v2850
    %v3212 = vunpack.c.l.b16 %v2851
    %v3213 = vunpack.c.h.b16 %v2851
    %v3214 = vunpack.c.l.b16 %v2852
    %v3215 = vunpack.c.h.b16 %v2852
    %v3216 = vunpack.c.l.b16 %v2853
    %v3217 = vunpack.c.h.b16 %v2853
    %v3218 = vunpack.c.l.b16 %v2854
    %v3219 = vunpack.c.h.b16 %v2854
    %v3220 = vunpack.c.l.b16 %v2855
    %v3221 = vunpack.c.h.b16 %v2855
    %v3222 = vunpack.c.l.b16 %v2856
    %v3223 = vunpack.c.h.b16 %v2856
    %v3224 = vunpack.c.l.b16 %v2857
    %v3225 = vunpack.c.h.b16 %v2857
    %v3226 = vunpack.c.l.b16 %v2858
    %v3227 = vunpack.c.h.b16 %v2858
    %v3228 = vunpack.c.l.b16 %v2859
    %v3229 = vunpack.c.h.b16 %v2859
    %v3230 = vunpack.c.l.b16 %v2860
    %v3231 = vunpack.c.h.b16 %v2860
    %v3232 = vunpack.c.l.b16 %v2861
    %v3233 = vunpack.c.h.b16 %v2861
    %v3234 = vunpack.c.l.b16 %v2862
    %v3235 = vunpack.c.h.b16 %v2862
    %v3236 = vunpack.c.l.b16 %v2863
    %v3237 = vunpack.c.h.b16 %v2863
    %v3238 = vunpack.c.l.b16 %v2864
    %v3239 = vunpack.c.h.b16 %v2864
    %v3240 = vunpack.c.l.b16 %v2865
    %v3241 = vunpack.c.h.b16 %v2865
    %v3242 = vunpack.c.l.b16 %v2866
    %v3243 = vunpack.c.h.b16 %v2866
    %v3244 = vunpack.c.l.b16 %v2867
    %v3245 = vunpack.c.h.b16 %v2867
    %v3246 = vunpack.c.l.b16 %v2868
    %v3247 = vunpack.c.h.b16 %v2868
    %v3248 = vunpack.c.l.b16 %v2869
    %v3249 = vunpack.c.h.b16 %v2869
    %v3250 = vunpack.c.l.b16 %v2870
    %v3251 = vunpack.c.h.b16 %v2870
    %v3252 = vunpack.c.l.b16 %v2871
    %v3253 = vunpack.c.h.b16 %v2871
    %v3254 = vunpack.c.l.b16 %v2872
    %v3255 = vunpack.c.h.b16 %v2872
    %v3256 = vunpack.c.l.b16 %v2873
    %v3257 = vunpack.c.h.b16 %v2873
    %v3258 = vpack.c.b16 %v3004, %v3002
    %v3259 = vpack.c.b16 %v3005, %v3003
    %v3260 = vpack.c.b16 %v3008, %v3006
    %v3261 = vpack.c.b16 %v3009, %v3007
    %v3262 = vpack.c.b16 %v3012, %v3010
    %v3263 = vpack.c.b16 %v3013, %v3011
    %v3264 = vpack.c.b16 %v3016, %v3014
    %v3265 = vpack.c.b16 %v3017, %v3015
    %v3266 = vpack.c.b16 %v3020, %v3018
    %v3267 = vpack.c.b16 %v3021, %v3019
    %v3268 = vpack.c.b16 %v3024, %v3022
    %v3269 = vpack.c.b16 %v3025, %v3023
    %v3270 = vpack.c.b16 %v3028, %v3026
    %v3271 = vpack.c.b16 %v3029, %v3027
    %v3272 = vpack.c.b16 %v3032, %v3030
    %v3273 = vpack.c.b16 %v3033, %v3031
    %v3274 = vpack.c.b16 %v3036, %v3034
    %v3275 = vpack.c.b16 %v3037, %v3035
    %v3276 = vpack.c.b16 %v3040, %v3038
    %v3277 = vpack.c.b16 %v3041, %v3039
    %v3278 = vpack.c.b16 %v3044, %v3042
    %v3279 = vpack.c.b16 %v3045, %v3043
    %v3280 = vpack.c.b16 %v3048, %v3046
    %v3281 = vpack.c.b16 %v3049, %v3047
    %v3282 = vpack.c.b16 %v3052, %v3050
    %v3283 = vpack.c.b16 %v3053, %v3051
    %v3284 = vpack.c.b16 %v3056, %v3054
    %v3285 = vpack.c.b16 %v3057, %v3055
    %v3286 = vpack.c.b16 %v3060, %v3058
    %v3287 = vpack.c.b16 %v3061, %v3059
    %v3288 = vpack.c.b16 %v3064, %v3062
    %v3289 = vpack.c.b16 %v3065, %v3063
    %v3290 = vpack.c.b16 %v3068, %v3066
    %v3291 = vpack.c.b16 %v3069, %v3067
    %v3292 = vpack.c.b16 %v3072, %v3070
    %v3293 = vpack.c.b16 %v3073, %v3071
    %v3294 = vpack.c.b16 %v3076, %v3074
    %v3295 = vpack.c.b16 %v3077, %v3075
    %v3296 = vpack.c.b16 %v3080, %v3078
    %v3297 = vpack.c.b16 %v3081, %v3079
    %v3298 = vpack.c.b16 %v3084, %v3082
    %v3299 = vpack.c.b16 %v3085, %v3083
    %v3300 = vpack.c.b16 %v3088, %v3086
    %v3301 = vpack.c.b16 %v3089, %v3087
    %v3302 = vpack.c.b16 %v3092, %v3090
    %v3303 = vpack.c.b16 %v3093, %v3091
    %v3304 = vpack.c.b16 %v3096, %v3094
    %v3305 = vpack.c.b16 %v3097, %v3095
    %v3306 = vpack.c.b16 %v3100, %v3098
    %v3307 = vpack.c.b16 %v3101, %v3099
    %v3308 = vpack.c.b16 %v3104, %v3102
    %v3309 = vpack.c.b16 %v3105, %v3103
    %v3310 = vpack.c.b16 %v3108, %v3106
    %v3311 = vpack.c.b16 %v3109, %v3107
    %v3312 = vpack.c.b16 %v3112, %v3110
    %v3313 = vpack.c.b16 %v3113, %v3111
    %v3314 = vpack.c.b16 %v3116, %v3114
    %v3315 = vpack.c.b16 %v3117, %v3115
    %v3316 = vpack.c.b16 %v3120, %v3118
    %v3317 = vpack.c.b16 %v3121, %v3119
    %v3318 = vpack.c.b16 %v3124, %v3122
    %v3319 = vpack.c.b16 %v3125, %v3123
    %v3320 = vpack.c.b16 %v3128, %v3126
    %v3321 = vpack.c.b16 %v3129, %v3127
    %v3322 = vpack.c.b16 %v3132, %v3130
    %v3323 = vpack.c.b16 %v3133, %v3131
    %v3324 = vpack.c.b16 %v3136, %v3134
    %v3325 = vpack.c.b16 %v3137, %v3135
    %v3326 = vpack.c.b16 %v3140, %v3138
    %v3327 = vpack.c.b16 %v3141, %v3139
    %v3328 = vpack.c.b16 %v3144, %v3142
    %v3329 = vpack.c.b16 %v3145, %v3143
    %v3330 = vpack.c.b16 %v3148, %v3146
    %v3331 = vpack.c.b16 %v3149, %v3147
    %v3332 = vpack.c.b16 %v3152, %v3150
    %v3333 = vpack.c.b16 %v3153, %v3151
    %v3334 = vpack.c.b16 %v3156, %v3154
    %v3335 = vpack.c.b16 %v3157, %v3155
    %v3336 = vpack.c.b16 %v3160, %v3158
    %v3337 = vpack.c.b16 %v3161, %v3159
    %v3338 = vpack.c.b16 %v3164, %v3162
    %v3339 = vpack.c.b16 %v3165, %v3163
    %v3340 = vpack.c.b16 %v3168, %v3166
    %v3341 = vpack.c.b16 %v3169, %v3167
    %v3342 = vpack.c.b16 %v3172, %v3170
    %v3343 = vpack.c.b16 %v3173, %v3171
    %v3344 = vpack.c.b16 %v3176, %v3174
    %v3345 = vpack.c.b16 %v3177, %v3175
    %v3346 = vpack.c.b16 %v3180, %v3178
    %v3347 = vpack.c.b16 %v3181, %v3179
    %v3348 = vpack.c.b16 %v3184, %v3182
    %v3349 = vpack.c.b16 %v3185, %v3183
    %v3350 = vpack.c.b16 %v3188, %v3186
    %v3351 = vpack.c.b16 %v3189, %v3187
    %v3352 = vpack.c.b16 %v3192, %v3190
    %v3353 = vpack.c.b16 %v3193, %v3191
    %v3354 = vpack.c.b16 %v3196, %v3194
    %v3355 = vpack.c.b16 %v3197, %v3195
    %v3356 = vpack.c.b16 %v3200, %v3198
    %v3357 = vpack.c.b16 %v3201, %v3199
    %v3358 = vpack.c.b16 %v3204, %v3202
    %v3359 = vpack.c.b16 %v3205, %v3203
    %v3360 = vpack.c.b16 %v3208, %v3206
    %v3361 = vpack.c.b16 %v3209, %v3207
    %v3362 = vpack.c.b16 %v3212, %v3210
    %v3363 = vpack.c.b16 %v3213, %v3211
    %v3364 = vpack.c.b16 %v3216, %v3214
    %v3365 = vpack.c.b16 %v3217, %v3215
    %v3366 = vpack.c.b16 %v3220, %v3218
    %v3367 = vpack.c.b16 %v3221, %v3219
    %v3368 = vpack.c.b16 %v3224, %v3222
    %v3369 = vpack.c.b16 %v3225, %v3223
    %v3370 = vpack.c.b16 %v3228, %v3226
    %v3371 = vpack.c.b16 %v3229, %v3227
    %v3372 = vpack.c.b16 %v3232, %v3230
    %v3373 = vpack.c.b16 %v3233, %v3231
    %v3374 = vpack.c.b16 %v3236, %v3234
    %v3375 = vpack.c.b16 %v3237, %v3235
    %v3376 = vpack.c.b16 %v3240, %v3238
    %v3377 = vpack.c.b16 %v3241, %v3239
    %v3378 = vpack.c.b16 %v3244, %v3242
    %v3379 = vpack.c.b16 %v3245, %v3243
    %v3380 = vpack.c.b16 %v3248, %v3246
    %v3381 = vpack.c.b16 %v3249, %v3247
    %v3382 = vpack.c.b16 %v3252, %v3250
    %v3383 = vpack.c.b16 %v3253, %v3251
    %v3384 = vpack.c.b16 %v3256, %v3254
    %v3385 = vpack.c.b16 %v3257, %v3255
    %3514 = vmatprep.subr.bf16.mxu0 %v3259
    %3515 = vmatpush1.bf16.msra.mxu0 %v3258
    %3516 = vmatprep.subr.bf16.mxu0 %v3261
    %3517 = vmatpush1.bf16.msra.mxu0 %v3260
    %3518 = vmatprep.subr.bf16.mxu0 %v3263
    %3519 = vmatpush1.bf16.msra.mxu0 %v3262
    %3520 = vmatprep.subr.bf16.mxu0 %v3265
    %3521 = vmatpush1.bf16.msra.mxu0 %v3264
    %3522 = vmatprep.subr.bf16.mxu0 %v3267
    %3523 = vmatpush1.bf16.msra.mxu0 %v3266
    %3524 = vmatprep.subr.bf16.mxu0 %v3269
    %3525 = vmatpush1.bf16.msra.mxu0 %v3268
    %3526 = vmatprep.subr.bf16.mxu0 %v3271
    %3527 = vmatpush1.bf16.msra.mxu0 %v3270
    %3528 = vmatprep.subr.bf16.mxu0 %v3273
    %3529 = vmatpush1.bf16.msra.mxu0 %v3272
    %3530 = vmatprep.subr.bf16.mxu0 %v3275
    %3531 = vmatpush1.bf16.msra.mxu0 %v3274
    %3532 = vmatprep.subr.bf16.mxu0 %v3277
    %3533 = vmatpush1.bf16.msra.mxu0 %v3276
    %3534 = vmatprep.subr.bf16.mxu0 %v3279
    %3535 = vmatpush1.bf16.msra.mxu0 %v3278
    %3536 = vmatprep.subr.bf16.mxu0 %v3281
    %3537 = vmatpush1.bf16.msra.mxu0 %v3280
    %3538 = vmatprep.subr.bf16.mxu0 %v3283
    %3539 = vmatpush1.bf16.msra.mxu0 %v3282
    %3540 = vmatprep.subr.bf16.mxu0 %v3285
    %3541 = vmatpush1.bf16.msra.mxu0 %v3284
    %3542 = vmatprep.subr.bf16.mxu0 %v3287
    %3543 = vmatpush1.bf16.msra.mxu0 %v3286
    %3544 = vmatprep.subr.bf16.mxu0 %v3289
    %3545 = vmatpush1.bf16.msra.mxu0 %v3288
    %3546 = vmatprep.mubr.bf16.mxu0 %v1746
    %3547 = vmatmul.mubr.bf16.gmra.mrb[0].mxu0 %v1745
    %v3548 = vpop.f32.mrb[0].mxu0
    %v3549 = vadd.f32 0.0, %v3548
    %v3550 = vpop.f32.mrb[0].mxu0
    %v3551 = vadd.f32 0.0, %v3550
    %v3552 = vpop.f32.mrb[0].mxu0
    %v3553 = vadd.f32 0.0, %v3552
    %v3554 = vpop.f32.mrb[0].mxu0
    %v3555 = vadd.f32 0.0, %v3554
    %3556 = vmatprep.mubr.bf16.mxu0 %v1754
    %3557 = vmatmul.mubr.bf16.gmra.mrb[0].mxu0 %v1753
    %v3558 = vpop.f32.mrb[0].mxu0
    %v3559 = vadd.f32 0.0, %v3558
    %v3560 = vpop.f32.mrb[0].mxu0
    %v3561 = vadd.f32 0.0, %v3560
    %v3562 = vpop.f32.mrb[0].mxu0
    %v3563 = vadd.f32 0.0, %v3562
    %v3564 = vpop.f32.mrb[0].mxu0
    %v3565 = vadd.f32 0.0, %v3564
    %3566 = vdwg.mxu0
    %3567 = vmatprep.subr.bf16.mxu0 %v3291
    %3568 = vmatpush1.bf16.msra.mxu0 %v3290
    %3569 = vmatprep.subr.bf16.mxu0 %v3293
    %3570 = vmatpush1.bf16.msra.mxu0 %v3292
    %3571 = vmatprep.subr.bf16.mxu0 %v3295
    %3572 = vmatpush1.bf16.msra.mxu0 %v3294
    %3573 = vmatprep.subr.bf16.mxu0 %v3297
    %3574 = vmatpush1.bf16.msra.mxu0 %v3296
    %3575 = vmatprep.subr.bf16.mxu0 %v3299
    %3576 = vmatpush1.bf16.msra.mxu0 %v3298
    %3577 = vmatprep.subr.bf16.mxu0 %v3301
    %3578 = vmatpush1.bf16.msra.mxu0 %v3300
    %3579 = vmatprep.subr.bf16.mxu0 %v3303
    %3580 = vmatpush1.bf16.msra.mxu0 %v3302
    %3581 = vmatprep.subr.bf16.mxu0 %v3305
    %3582 = vmatpush1.bf16.msra.mxu0 %v3304
    %3583 = vmatprep.subr.bf16.mxu0 %v3307
    %3584 = vmatpush1.bf16.msra.mxu0 %v3306
    %3585 = vmatprep.subr.bf16.mxu0 %v3309
    %3586 = vmatpush1.bf16.msra.mxu0 %v3308
    %3587 = vmatprep.subr.bf16.mxu0 %v3311
    %3588 = vmatpush1.bf16.msra.mxu0 %v3310
    %3589 = vmatprep.subr.bf16.mxu0 %v3313
    %3590 = vmatpush1.bf16.msra.mxu0 %v3312
    %3591 = vmatprep.subr.bf16.mxu0 %v3315
    %3592 = vmatpush1.bf16.msra.mxu0 %v3314
    %3593 = vmatprep.subr.bf16.mxu0 %v3317
    %3594 = vmatpush1.bf16.msra.mxu0 %v3316
    %3595 = vmatprep.subr.bf16.mxu0 %v3319
    %3596 = vmatpush1.bf16.msra.mxu0 %v3318
    %3597 = vmatprep.subr.bf16.mxu0 %v3321
    %3598 = vmatpush1.bf16.msra.mxu0 %v3320
    %3599 = vmatprep.mubr.bf16.mxu0 %v1748
    %3600 = vmatmul.mubr.bf16.gmra.mrb[0].mxu0 %v1747
    %v3601 = vpop.f32.mrb[0].mxu0
    %v3602 = vadd.f32 %v3549, %v3601
    %v3603 = vpop.f32.mrb[0].mxu0
    %v3604 = vadd.f32 %v3551, %v3603
    %v3605 = vpop.f32.mrb[0].mxu0
    %v3606 = vadd.f32 %v3553, %v3605
    %v3607 = vpop.f32.mrb[0].mxu0
    %v3608 = vadd.f32 %v3555, %v3607
    %3609 = vmatprep.mubr.bf16.mxu0 %v1756
    %3610 = vmatmul.mubr.bf16.gmra.mrb[0].mxu0 %v1755
    %v3611 = vpop.f32.mrb[0].mxu0
    %v3612 = vadd.f32 %v3559, %v3611
    %v3613 = vpop.f32.mrb[0].mxu0
    %v3614 = vadd.f32 %v3561, %v3613
    %v3615 = vpop.f32.mrb[0].mxu0
    %v3616 = vadd.f32 %v3563, %v3615
    %v3617 = vpop.f32.mrb[0].mxu0
    %v3618 = vadd.f32 %v3565, %v3617
    %3619 = vdwg.mxu0
    %3620 = vmatprep.subr.bf16.mxu0 %v3323
    %3621 = vmatpush1.bf16.msra.mxu0 %v3322
    %3622 = vmatprep.subr.bf16.mxu0 %v3325
    %3623 = vmatpush1.bf16.msra.mxu0 %v3324
    %3624 = vmatprep.subr.bf16.mxu0 %v3327
    %3625 = vmatpush1.bf16.msra.mxu0 %v3326
    %3626 = vmatprep.subr.bf16.mxu0 %v3329
    %3627 = vmatpush1.bf16.msra.mxu0 %v3328
    %3628 = vmatprep.subr.bf16.mxu0 %v3331
    %3629 = vmatpush1.bf16.msra.mxu0 %v3330
    %3630 = vmatprep.subr.bf16.mxu0 %v3333
    %3631 = vmatpush1.bf16.msra.mxu0 %v3332
    %3632 = vmatprep.subr.bf16.mxu0 %v3335
    %3633 = vmatpush1.bf16.msra.mxu0 %v3334
    %3634 = vmatprep.subr.bf16.mxu0 %v3337
    %3635 = vmatpush1.bf16.msra.mxu0 %v3336
    %3636 = vmatprep.subr.bf16.mxu0 %v3339
    %3637 = vmatpush1.bf16.msra.mxu0 %v3338
    %3638 = vmatprep.subr.bf16.mxu0 %v3341
    %3639 = vmatpush1.bf16.msra.mxu0 %v3340
    %3640 = vmatprep.subr.bf16.mxu0 %v3343
    %3641 = vmatpush1.bf16.msra.mxu0 %v3342
    %3642 = vmatprep.subr.bf16.mxu0 %v3345
    %3643 = vmatpush1.bf16.msra.mxu0 %v3344
    %3644 = vmatprep.subr.bf16.mxu0 %v3347
    %3645 = vmatpush1.bf16.msra.mxu0 %v3346
    %3646 = vmatprep.subr.bf16.mxu0 %v3349
    %3647 = vmatpush1.bf16.msra.mxu0 %v3348
    %3648 = vmatprep.subr.bf16.mxu0 %v3351
    %3649 = vmatpush1.bf16.msra.mxu0 %v3350
    %3650 = vmatprep.subr.bf16.mxu0 %v3353
    %3651 = vmatpush1.bf16.msra.mxu0 %v3352
    %3652 = vmatprep.mubr.bf16.mxu0 %v1750
    %3653 = vmatmul.mubr.bf16.gmra.mrb[0].mxu0 %v1749
    %v3654 = vpop.f32.mrb[0].mxu0
    %v3655 = vadd.f32 %v3602, %v3654
    %v3656 = vpop.f32.mrb[0].mxu0
    %v3657 = vadd.f32 %v3604, %v3656
    %v3658 = vpop.f32.mrb[0].mxu0
    %v3659 = vadd.f32 %v3606, %v3658
    %v3660 = vpop.f32.mrb[0].mxu0
    %v3661 = vadd.f32 %v3608, %v3660
    %3662 = vmatprep.mubr.bf16.mxu0 %v1758
    %3663 = vmatmul.mubr.bf16.gmra.mrb[0].mxu0 %v1757
    %v3664 = vpop.f32.mrb[0].mxu0
    %v3665 = vadd.f32 %v3612, %v3664
    %v3666 = vpop.f32.mrb[0].mxu0
    %v3667 = vadd.f32 %v3614, %v3666
    %v3668 = vpop.f32.mrb[0].mxu0
    %v3669 = vadd.f32 %v3616, %v3668
    %v3670 = vpop.f32.mrb[0].mxu0
    %v3671 = vadd.f32 %v3618, %v3670
    %3672 = vdwg.mxu0
    %3673 = vmatprep.subr.bf16.mxu0 %v3355
    %3674 = vmatpush1.bf16.msra.mxu0 %v3354
    %3675 = vmatprep.subr.bf16.mxu0 %v3357
    %3676 = vmatpush1.bf16.msra.mxu0 %v3356
    %3677 = vmatprep.subr.bf16.mxu0 %v3359
    %3678 = vmatpush1.bf16.msra.mxu0 %v3358
    %3679 = vmatprep.subr.bf16.mxu0 %v3361
    %3680 = vmatpush1.bf16.msra.mxu0 %v3360
    %3681 = vmatprep.subr.bf16.mxu0 %v3363
    %3682 = vmatpush1.bf16.msra.mxu0 %v3362
    %3683 = vmatprep.subr.bf16.mxu0 %v3365
    %3684 = vmatpush1.bf16.msra.mxu0 %v3364
    %3685 = vmatprep.subr.bf16.mxu0 %v3367
    %3686 = vmatpush1.bf16.msra.mxu0 %v3366
    %3687 = vmatprep.subr.bf16.mxu0 %v3369
    %3688 = vmatpush1.bf16.msra.mxu0 %v3368
    %3689 = vmatprep.subr.bf16.mxu0 %v3371
    %3690 = vmatpush1.bf16.msra.mxu0 %v3370
    %3691 = vmatprep.subr.bf16.mxu0 %v3373
    %3692 = vmatpush1.bf16.msra.mxu0 %v3372
    %3693 = vmatprep.subr.bf16.mxu0 %v3375
    %3694 = vmatpush1.bf16.msra.mxu0 %v3374
    %3695 = vmatprep.subr.bf16.mxu0 %v3377
    %3696 = vmatpush1.bf16.msra.mxu0 %v3376
    %3697 = vmatprep.subr.bf16.mxu0 %v3379
    %3698 = vmatpush1.bf16.msra.mxu0 %v3378
    %3699 = vmatprep.subr.bf16.mxu0 %v3381
    %3700 = vmatpush1.bf16.msra.mxu0 %v3380
    %3701 = vmatprep.subr.bf16.mxu0 %v3383
    %3702 = vmatpush1.bf16.msra.mxu0 %v3382
    %3703 = vmatprep.subr.bf16.mxu0 %v3385
    %3704 = vmatpush1.bf16.msra.mxu0 %v3384
    %3705 = vmatprep.mubr.bf16.mxu0 %v1752
    %3706 = vmatmul.mubr.bf16.gmra.mrb[0].mxu0 %v1751
    %v3707 = vpop.f32.mrb[0].mxu0
    %v3708 = vadd.f32 %v3655, %v3707
    %v3709 = vpop.f32.mrb[0].mxu0
    %v3710 = vadd.f32 %v3657, %v3709
    %v3711 = vpop.f32.mrb[0].mxu0
    %v3712 = vadd.f32 %v3659, %v3711
    %v3713 = vpop.f32.mrb[0].mxu0
    %v3714 = vadd.f32 %v3661, %v3713
    %3715 = vmatprep.mubr.bf16.mxu0 %v1760
    %3716 = vmatmul.mubr.bf16.gmra.mrb[0].mxu0 %v1759
    %v3717 = vpop.f32.mrb[0].mxu0
    %v3718 = vadd.f32 %v3665, %v3717
    %v3719 = vpop.f32.mrb[0].mxu0
    %v3720 = vadd.f32 %v3667, %v3719
    %v3721 = vpop.f32.mrb[0].mxu0
    %v3722 = vadd.f32 %v3669, %v3721
    %v3723 = vpop.f32.mrb[0].mxu0
    %v3724 = vadd.f32 %v3671, %v3723
    %3725 = vdwg.mxu0
    %v3726 = vpack.c.bf16 %v3712, %v3708
    %v3727 = vpack.c.bf16 %v3714, %v3710
    %v3728 = vpack.c.bf16 %v3722, %v3718
    %v3729 = vpack.c.bf16 %v3724, %v3720
    %s3730 = scalar_lea.vmem %s5, 2048
    %v3731 = vld [vmem:[%s3730] sm:$0xff]
    %v3732 = vld [vmem:[%s3730 + $0x8] sm:$0xff]
    %v3733 = vld [vmem:[%s3730 + $0x10] sm:$0xff]
    %v3734 = vld [vmem:[%s3730 + $0x18] sm:$0xff]
    %v3735 = vld [vmem:[%s3730 + $0x20] sm:$0xff]
    %v3736 = vld [vmem:[%s3730 + $0x28] sm:$0xff]
    %v3737 = vld [vmem:[%s3730 + $0x30] sm:$0xff]
    %v3738 = vld [vmem:[%s3730 + $0x38] sm:$0xff]
    %v3739 = vld [vmem:[%s3730 + $0x40] sm:$0xff]
    %v3740 = vld [vmem:[%s3730 + $0x48] sm:$0xff]
    %v3741 = vld [vmem:[%s3730 + $0x50] sm:$0xff]
    %v3742 = vld [vmem:[%s3730 + $0x58] sm:$0xff]
    %v3743 = vld [vmem:[%s3730 + $0x60] sm:$0xff]
    %v3744 = vld [vmem:[%s3730 + $0x68] sm:$0xff]
    %v3745 = vld [vmem:[%s3730 + $0x70] sm:$0xff]
    %v3746 = vld [vmem:[%s3730 + $0x78] sm:$0xff]
    %v3747 = vld [vmem:[%s3730 + $0x80] sm:$0xff]
    %v3748 = vld [vmem:[%s3730 + $0x88] sm:$0xff]
    %v3749 = vld [vmem:[%s3730 + $0x90] sm:$0xff]
    %v3750 = vld [vmem:[%s3730 + $0x98] sm:$0xff]
    %v3751 = vld [vmem:[%s3730 + $0xa0] sm:$0xff]
    %v3752 = vld [vmem:[%s3730 + $0xa8] sm:$0xff]
    %v3753 = vld [vmem:[%s3730 + $0xb0] sm:$0xff]
    %v3754 = vld [vmem:[%s3730 + $0xb8] sm:$0xff]
    %v3755 = vld [vmem:[%s3730 + $0xc0] sm:$0xff]
    %v3756 = vld [vmem:[%s3730 + $0xc8] sm:$0xff]
    %v3757 = vld [vmem:[%s3730 + $0xd0] sm:$0xff]
    %v3758 = vld [vmem:[%s3730 + $0xd8] sm:$0xff]
    %v3759 = vld [vmem:[%s3730 + $0xe0] sm:$0xff]
    %v3760 = vld [vmem:[%s3730 + $0xe8] sm:$0xff]
    %v3761 = vld [vmem:[%s3730 + $0xf0] sm:$0xff]
    %v3762 = vld [vmem:[%s3730 + $0xf8] sm:$0xff]
    %v3763 = vld [vmem:[%s3730 + $0x100] sm:$0xff]
    %v3764 = vld [vmem:[%s3730 + $0x108] sm:$0xff]
    %v3765 = vld [vmem:[%s3730 + $0x110] sm:$0xff]
    %v3766 = vld [vmem:[%s3730 + $0x118] sm:$0xff]
    %v3767 = vld [vmem:[%s3730 + $0x120] sm:$0xff]
    %v3768 = vld [vmem:[%s3730 + $0x128] sm:$0xff]
    %v3769 = vld [vmem:[%s3730 + $0x130] sm:$0xff]
    %v3770 = vld [vmem:[%s3730 + $0x138] sm:$0xff]
    %v3771 = vld [vmem:[%s3730 + $0x140] sm:$0xff]
    %v3772 = vld [vmem:[%s3730 + $0x148] sm:$0xff]
    %v3773 = vld [vmem:[%s3730 + $0x150] sm:$0xff]
    %v3774 = vld [vmem:[%s3730 + $0x158] sm:$0xff]
    %v3775 = vld [vmem:[%s3730 + $0x160] sm:$0xff]
    %v3776 = vld [vmem:[%s3730 + $0x168] sm:$0xff]
    %v3777 = vld [vmem:[%s3730 + $0x170] sm:$0xff]
    %v3778 = vld [vmem:[%s3730 + $0x178] sm:$0xff]
    %v3779 = vld [vmem:[%s3730 + $0x180] sm:$0xff]
    %v3780 = vld [vmem:[%s3730 + $0x188] sm:$0xff]
    %v3781 = vld [vmem:[%s3730 + $0x190] sm:$0xff]
    %v3782 = vld [vmem:[%s3730 + $0x198] sm:$0xff]
    %v3783 = vld [vmem:[%s3730 + $0x1a0] sm:$0xff]
    %v3784 = vld [vmem:[%s3730 + $0x1a8] sm:$0xff]
    %v3785 = vld [vmem:[%s3730 + $0x1b0] sm:$0xff]
    %v3786 = vld [vmem:[%s3730 + $0x1b8] sm:$0xff]
    %v3787 = vld [vmem:[%s3730 + $0x1c0] sm:$0xff]
    %v3788 = vld [vmem:[%s3730 + $0x1c8] sm:$0xff]
    %v3789 = vld [vmem:[%s3730 + $0x1d0] sm:$0xff]
    %v3790 = vld [vmem:[%s3730 + $0x1d8] sm:$0xff]
    %v3791 = vld [vmem:[%s3730 + $0x1e0] sm:$0xff]
    %v3792 = vld [vmem:[%s3730 + $0x1e8] sm:$0xff]
    %v3793 = vld [vmem:[%s3730 + $0x1f0] sm:$0xff]
    %v3794 = vld [vmem:[%s3730 + $0x1f8] sm:$0xff]
    %v3795 = vld [vmem:[%s3730 + $0x200] sm:$0xff]
    %v3796 = vld [vmem:[%s3730 + $0x208] sm:$0xff]
    %v3797 = vld [vmem:[%s3730 + $0x210] sm:$0xff]
    %v3798 = vld [vmem:[%s3730 + $0x218] sm:$0xff]
    %v3799 = vld [vmem:[%s3730 + $0x220] sm:$0xff]
    %v3800 = vld [vmem:[%s3730 + $0x228] sm:$0xff]
    %v3801 = vld [vmem:[%s3730 + $0x230] sm:$0xff]
    %v3802 = vld [vmem:[%s3730 + $0x238] sm:$0xff]
    %v3803 = vld [vmem:[%s3730 + $0x240] sm:$0xff]
    %v3804 = vld [vmem:[%s3730 + $0x248] sm:$0xff]
    %v3805 = vld [vmem:[%s3730 + $0x250] sm:$0xff]
    %v3806 = vld [vmem:[%s3730 + $0x258] sm:$0xff]
    %v3807 = vld [vmem:[%s3730 + $0x260] sm:$0xff]
    %v3808 = vld [vmem:[%s3730 + $0x268] sm:$0xff]
    %v3809 = vld [vmem:[%s3730 + $0x270] sm:$0xff]
    %v3810 = vld [vmem:[%s3730 + $0x278] sm:$0xff]
    %v3811 = vld [vmem:[%s3730 + $0x280] sm:$0xff]
    %v3812 = vld [vmem:[%s3730 + $0x288] sm:$0xff]
    %v3813 = vld [vmem:[%s3730 + $0x290] sm:$0xff]
    %v3814 = vld [vmem:[%s3730 + $0x298] sm:$0xff]
    %v3815 = vld [vmem:[%s3730 + $0x2a0] sm:$0xff]
    %v3816 = vld [vmem:[%s3730 + $0x2a8] sm:$0xff]
    %v3817 = vld [vmem:[%s3730 + $0x2b0] sm:$0xff]
    %v3818 = vld [vmem:[%s3730 + $0x2b8] sm:$0xff]
    %v3819 = vld [vmem:[%s3730 + $0x2c0] sm:$0xff]
    %v3820 = vld [vmem:[%s3730 + $0x2c8] sm:$0xff]
    %v3821 = vld [vmem:[%s3730 + $0x2d0] sm:$0xff]
    %v3822 = vld [vmem:[%s3730 + $0x2d8] sm:$0xff]
    %v3823 = vld [vmem:[%s3730 + $0x2e0] sm:$0xff]
    %v3824 = vld [vmem:[%s3730 + $0x2e8] sm:$0xff]
    %v3825 = vld [vmem:[%s3730 + $0x2f0] sm:$0xff]
    %v3826 = vld [vmem:[%s3730 + $0x2f8] sm:$0xff]
    %v3827 = vld [vmem:[%s3730 + $0x300] sm:$0xff]
    %v3828 = vld [vmem:[%s3730 + $0x308] sm:$0xff]
    %v3829 = vld [vmem:[%s3730 + $0x310] sm:$0xff]
    %v3830 = vld [vmem:[%s3730 + $0x318] sm:$0xff]
    %v3831 = vld [vmem:[%s3730 + $0x320] sm:$0xff]
    %v3832 = vld [vmem:[%s3730 + $0x328] sm:$0xff]
    %v3833 = vld [vmem:[%s3730 + $0x330] sm:$0xff]
    %v3834 = vld [vmem:[%s3730 + $0x338] sm:$0xff]
    %v3835 = vld [vmem:[%s3730 + $0x340] sm:$0xff]
    %v3836 = vld [vmem:[%s3730 + $0x348] sm:$0xff]
    %v3837 = vld [vmem:[%s3730 + $0x350] sm:$0xff]
    %v3838 = vld [vmem:[%s3730 + $0x358] sm:$0xff]
    %v3839 = vld [vmem:[%s3730 + $0x360] sm:$0xff]
    %v3840 = vld [vmem:[%s3730 + $0x368] sm:$0xff]
    %v3841 = vld [vmem:[%s3730 + $0x370] sm:$0xff]
    %v3842 = vld [vmem:[%s3730 + $0x378] sm:$0xff]
    %v3843 = vld [vmem:[%s3730 + $0x380] sm:$0xff]
    %v3844 = vld [vmem:[%s3730 + $0x388] sm:$0xff]
    %v3845 = vld [vmem:[%s3730 + $0x390] sm:$0xff]
    %v3846 = vld [vmem:[%s3730 + $0x398] sm:$0xff]
    %v3847 = vld [vmem:[%s3730 + $0x3a0] sm:$0xff]
    %v3848 = vld [vmem:[%s3730 + $0x3a8] sm:$0xff]
    %v3849 = vld [vmem:[%s3730 + $0x3b0] sm:$0xff]
    %v3850 = vld [vmem:[%s3730 + $0x3b8] sm:$0xff]
    %v3851 = vld [vmem:[%s3730 + $0x3c0] sm:$0xff]
    %v3852 = vld [vmem:[%s3730 + $0x3c8] sm:$0xff]
    %v3853 = vld [vmem:[%s3730 + $0x3d0] sm:$0xff]
    %v3854 = vld [vmem:[%s3730 + $0x3d8] sm:$0xff]
    %v3855 = vld [vmem:[%s3730 + $0x3e0] sm:$0xff]
    %v3856 = vld [vmem:[%s3730 + $0x3e8] sm:$0xff]
    %v3857 = vld [vmem:[%s3730 + $0x3f0] sm:$0xff]
    %v3858 = vld [vmem:[%s3730 + $0x3f8] sm:$0xff]
    %v3987 = vunpack.c.l.b16 %v3731
    %v3988 = vunpack.c.h.b16 %v3731
    %v3989 = vunpack.c.l.b16 %v3732
    %v3990 = vunpack.c.h.b16 %v3732
    %v3991 = vunpack.c.l.b16 %v3733
    %v3992 = vunpack.c.h.b16 %v3733
    %v3993 = vunpack.c.l.b16 %v3734
    %v3994 = vunpack.c.h.b16 %v3734
    %v3995 = vunpack.c.l.b16 %v3735
    %v3996 = vunpack.c.h.b16 %v3735
    %v3997 = vunpack.c.l.b16 %v3736
    %v3998 = vunpack.c.h.b16 %v3736
    %v3999 = vunpack.c.l.b16 %v3737
    %v4000 = vunpack.c.h.b16 %v3737
    %v4001 = vunpack.c.l.b16 %v3738
    %v4002 = vunpack.c.h.b16 %v3738
    %v4003 = vunpack.c.l.b16 %v3739
    %v4004 = vunpack.c.h.b16 %v3739
    %v4005 = vunpack.c.l.b16 %v3740
    %v4006 = vunpack.c.h.b16 %v3740
    %v4007 = vunpack.c.l.b16 %v3741
    %v4008 = vunpack.c.h.b16 %v3741
    %v4009 = vunpack.c.l.b16 %v3742
    %v4010 = vunpack.c.h.b16 %v3742
    %v4011 = vunpack.c.l.b16 %v3743
    %v4012 = vunpack.c.h.b16 %v3743
    %v4013 = vunpack.c.l.b16 %v3744
    %v4014 = vunpack.c.h.b16 %v3744
    %v4015 = vunpack.c.l.b16 %v3745
    %v4016 = vunpack.c.h.b16 %v3745
    %v4017 = vunpack.c.l.b16 %v3746
    %v4018 = vunpack.c.h.b16 %v3746
    %v4019 = vunpack.c.l.b16 %v3747
    %v4020 = vunpack.c.h.b16 %v3747
    %v4021 = vunpack.c.l.b16 %v3748
    %v4022 = vunpack.c.h.b16 %v3748
    %v4023 = vunpack.c.l.b16 %v3749
    %v4024 = vunpack.c.h.b16 %v3749
    %v4025 = vunpack.c.l.b16 %v3750
    %v4026 = vunpack.c.h.b16 %v3750
    %v4027 = vunpack.c.l.b16 %v3751
    %v4028 = vunpack.c.h.b16 %v3751
    %v4029 = vunpack.c.l.b16 %v3752
    %v4030 = vunpack.c.h.b16 %v3752
    %v4031 = vunpack.c.l.b16 %v3753
    %v4032 = vunpack.c.h.b16 %v3753
    %v4033 = vunpack.c.l.b16 %v3754
    %v4034 = vunpack.c.h.b16 %v3754
    %v4035 = vunpack.c.l.b16 %v3755
    %v4036 = vunpack.c.h.b16 %v3755
    %v4037 = vunpack.c.l.b16 %v3756
    %v4038 = vunpack.c.h.b16 %v3756
    %v4039 = vunpack.c.l.b16 %v3757
    %v4040 = vunpack.c.h.b16 %v3757
    %v4041 = vunpack.c.l.b16 %v3758
    %v4042 = vunpack.c.h.b16 %v3758
    %v4043 = vunpack.c.l.b16 %v3759
    %v4044 = vunpack.c.h.b16 %v3759
    %v4045 = vunpack.c.l.b16 %v3760
    %v4046 = vunpack.c.h.b16 %v3760
    %v4047 = vunpack.c.l.b16 %v3761
    %v4048 = vunpack.c.h.b16 %v3761
    %v4049 = vunpack.c.l.b16 %v3762
    %v4050 = vunpack.c.h.b16 %v3762
    %v4051 = vunpack.c.l.b16 %v3763
    %v4052 = vunpack.c.h.b16 %v3763
    %v4053 = vunpack.c.l.b16 %v3764
    %v4054 = vunpack.c.h.b16 %v3764
    %v4055 = vunpack.c.l.b16 %v3765
    %v4056 = vunpack.c.h.b16 %v3765
    %v4057 = vunpack.c.l.b16 %v3766
    %v4058 = vunpack.c.h.b16 %v3766
    %v4059 = vunpack.c.l.b16 %v3767
    %v4060 = vunpack.c.h.b16 %v3767
    %v4061 = vunpack.c.l.b16 %v3768
    %v4062 = vunpack.c.h.b16 %v3768
    %v4063 = vunpack.c.l.b16 %v3769
    %v4064 = vunpack.c.h.b16 %v3769
    %v4065 = vunpack.c.l.b16 %v3770
    %v4066 = vunpack.c.h.b16 %v3770
    %v4067 = vunpack.c.l.b16 %v3771
    %v4068 = vunpack.c.h.b16 %v3771
    %v4069 = vunpack.c.l.b16 %v3772
    %v4070 = vunpack.c.h.b16 %v3772
    %v4071 = vunpack.c.l.b16 %v3773
    %v4072 = vunpack.c.h.b16 %v3773
    %v4073 = vunpack.c.l.b16 %v3774
    %v4074 = vunpack.c.h.b16 %v3774
    %v4075 = vunpack.c.l.b16 %v3775
    %v4076 = vunpack.c.h.b16 %v3775
    %v4077 = vunpack.c.l.b16 %v3776
    %v4078 = vunpack.c.h.b16 %v3776
    %v4079 = vunpack.c.l.b16 %v3777
    %v4080 = vunpack.c.h.b16 %v3777
    %v4081 = vunpack.c.l.b16 %v3778
    %v4082 = vunpack.c.h.b16 %v3778
    %v4083 = vunpack.c.l.b16 %v3779
    %v4084 = vunpack.c.h.b16 %v3779
    %v4085 = vunpack.c.l.b16 %v3780
    %v4086 = vunpack.c.h.b16 %v3780
    %v4087 = vunpack.c.l.b16 %v3781
    %v4088 = vunpack.c.h.b16 %v3781
    %v4089 = vunpack.c.l.b16 %v3782
    %v4090 = vunpack.c.h.b16 %v3782
    %v4091 = vunpack.c.l.b16 %v3783
    %v4092 = vunpack.c.h.b16 %v3783
    %v4093 = vunpack.c.l.b16 %v3784
    %v4094 = vunpack.c.h.b16 %v3784
    %v4095 = vunpack.c.l.b16 %v3785
    %v4096 = vunpack.c.h.b16 %v3785
    %v4097 = vunpack.c.l.b16 %v3786
    %v4098 = vunpack.c.h.b16 %v3786
    %v4099 = vunpack.c.l.b16 %v3787
    %v4100 = vunpack.c.h.b16 %v3787
    %v4101 = vunpack.c.l.b16 %v3788
    %v4102 = vunpack.c.h.b16 %v3788
    %v4103 = vunpack.c.l.b16 %v3789
    %v4104 = vunpack.c.h.b16 %v3789
    %v4105 = vunpack.c.l.b16 %v3790
    %v4106 = vunpack.c.h.b16 %v3790
    %v4107 = vunpack.c.l.b16 %v3791
    %v4108 = vunpack.c.h.b16 %v3791
    %v4109 = vunpack.c.l.b16 %v3792
    %v4110 = vunpack.c.h.b16 %v3792
    %v4111 = vunpack.c.l.b16 %v3793
    %v4112 = vunpack.c.h.b16 %v3793
    %v4113 = vunpack.c.l.b16 %v3794
    %v4114 = vunpack.c.h.b16 %v3794
    %v4115 = vunpack.c.l.b16 %v3795
    %v4116 = vunpack.c.h.b16 %v3795
    %v4117 = vunpack.c.l.b16 %v3796
    %v4118 = vunpack.c.h.b16 %v3796
    %v4119 = vunpack.c.l.b16 %v3797
    %v4120 = vunpack.c.h.b16 %v3797
    %v4121 = vunpack.c.l.b16 %v3798
    %v4122 = vunpack.c.h.b16 %v3798
    %v4123 = vunpack.c.l.b16 %v3799
    %v4124 = vunpack.c.h.b16 %v3799
    %v4125 = vunpack.c.l.b16 %v3800
    %v4126 = vunpack.c.h.b16 %v3800
    %v4127 = vunpack.c.l.b16 %v3801
    %v4128 = vunpack.c.h.b16 %v3801
    %v4129 = vunpack.c.l.b16 %v3802
    %v4130 = vunpack.c.h.b16 %v3802
    %v4131 = vunpack.c.l.b16 %v3803
    %v4132 = vunpack.c.h.b16 %v3803
    %v4133 = vunpack.c.l.b16 %v3804
    %v4134 = vunpack.c.h.b16 %v3804
    %v4135 = vunpack.c.l.b16 %v3805
    %v4136 = vunpack.c.h.b16 %v3805
    %v4137 = vunpack.c.l.b16 %v3806
    %v4138 = vunpack.c.h.b16 %v3806
    %v4139 = vunpack.c.l.b16 %v3807
    %v4140 = vunpack.c.h.b16 %v3807
    %v4141 = vunpack.c.l.b16 %v3808
    %v4142 = vunpack.c.h.b16 %v3808
    %v4143 = vunpack.c.l.b16 %v3809
    %v4144 = vunpack.c.h.b16 %v3809
    %v4145 = vunpack.c.l.b16 %v3810
    %v4146 = vunpack.c.h.b16 %v3810
    %v4147 = vunpack.c.l.b16 %v3811
    %v4148 = vunpack.c.h.b16 %v3811
    %v4149 = vunpack.c.l.b16 %v3812
    %v4150 = vunpack.c.h.b16 %v3812
    %v4151 = vunpack.c.l.b16 %v3813
    %v4152 = vunpack.c.h.b16 %v3813
    %v4153 = vunpack.c.l.b16 %v3814
    %v4154 = vunpack.c.h.b16 %v3814
    %v4155 = vunpack.c.l.b16 %v3815
    %v4156 = vunpack.c.h.b16 %v3815
    %v4157 = vunpack.c.l.b16 %v3816
    %v4158 = vunpack.c.h.b16 %v3816
    %v4159 = vunpack.c.l.b16 %v3817
    %v4160 = vunpack.c.h.b16 %v3817
    %v4161 = vunpack.c.l.b16 %v3818
    %v4162 = vunpack.c.h.b16 %v3818
    %v4163 = vunpack.c.l.b16 %v3819
    %v4164 = vunpack.c.h.b16 %v3819
    %v4165 = vunpack.c.l.b16 %v3820
    %v4166 = vunpack.c.h.b16 %v3820
    %v4167 = vunpack.c.l.b16 %v3821
    %v4168 = vunpack.c.h.b16 %v3821
    %v4169 = vunpack.c.l.b16 %v3822
    %v4170 = vunpack.c.h.b16 %v3822
    %v4171 = vunpack.c.l.b16 %v3823
    %v4172 = vunpack.c.h.b16 %v3823
    %v4173 = vunpack.c.l.b16 %v3824
    %v4174 = vunpack.c.h.b16 %v3824
    %v4175 = vunpack.c.l.b16 %v3825
    %v4176 = vunpack.c.h.b16 %v3825
    %v4177 = vunpack.c.l.b16 %v3826
    %v4178 = vunpack.c.h.b16 %v3826
    %v4179 = vunpack.c.l.b16 %v3827
    %v4180 = vunpack.c.h.b16 %v3827
    %v4181 = vunpack.c.l.b16 %v3828
    %v4182 = vunpack.c.h.b16 %v3828
    %v4183 = vunpack.c.l.b16 %v3829
    %v4184 = vunpack.c.h.b16 %v3829
    %v4185 = vunpack.c.l.b16 %v3830
    %v4186 = vunpack.c.h.b16 %v3830
    %v4187 = vunpack.c.l.b16 %v3831
    %v4188 = vunpack.c.h.b16 %v3831
    %v4189 = vunpack.c.l.b16 %v3832
    %v4190 = vunpack.c.h.b16 %v3832
    %v4191 = vunpack.c.l.b16 %v3833
    %v4192 = vunpack.c.h.b16 %v3833
    %v4193 = vunpack.c.l.b16 %v3834
    %v4194 = vunpack.c.h.b16 %v3834
    %v4195 = vunpack.c.l.b16 %v3835
    %v4196 = vunpack.c.h.b16 %v3835
    %v4197 = vunpack.c.l.b16 %v3836
    %v4198 = vunpack.c.h.b16 %v3836
    %v4199 = vunpack.c.l.b16 %v3837
    %v4200 = vunpack.c.h.b16 %v3837
    %v4201 = vunpack.c.l.b16 %v3838
    %v4202 = vunpack.c.h.b16 %v3838
    %v4203 = vunpack.c.l.b16 %v3839
    %v4204 = vunpack.c.h.b16 %v3839
    %v4205 = vunpack.c.l.b16 %v3840
    %v4206 = vunpack.c.h.b16 %v3840
    %v4207 = vunpack.c.l.b16 %v3841
    %v4208 = vunpack.c.h.b16 %v3841
    %v4209 = vunpack.c.l.b16 %v3842
    %v4210 = vunpack.c.h.b16 %v3842
    %v4211 = vunpack.c.l.b16 %v3843
    %v4212 = vunpack.c.h.b16 %v3843
    %v4213 = vunpack.c.l.b16 %v3844
    %v4214 = vunpack.c.h.b16 %v3844
    %v4215 = vunpack.c.l.b16 %v3845
    %v4216 = vunpack.c.h.b16 %v3845
    %v4217 = vunpack.c.l.b16 %v3846
    %v4218 = vunpack.c.h.b16 %v3846
    %v4219 = vunpack.c.l.b16 %v3847
    %v4220 = vunpack.c.h.b16 %v3847
    %v4221 = vunpack.c.l.b16 %v3848
    %v4222 = vunpack.c.h.b16 %v3848
    %v4223 = vunpack.c.l.b16 %v3849
    %v4224 = vunpack.c.h.b16 %v3849
    %v4225 = vunpack.c.l.b16 %v3850
    %v4226 = vunpack.c.h.b16 %v3850
    %v4227 = vunpack.c.l.b16 %v3851
    %v4228 = vunpack.c.h.b16 %v3851
    %v4229 = vunpack.c.l.b16 %v3852
    %v4230 = vunpack.c.h.b16 %v3852
    %v4231 = vunpack.c.l.b16 %v3853
    %v4232 = vunpack.c.h.b16 %v3853
    %v4233 = vunpack.c.l.b16 %v3854
    %v4234 = vunpack.c.h.b16 %v3854
    %v4235 = vunpack.c.l.b16 %v3855
    %v4236 = vunpack.c.h.b16 %v3855
    %v4237 = vunpack.c.l.b16 %v3856
    %v4238 = vunpack.c.h.b16 %v3856
    %v4239 = vunpack.c.l.b16 %v3857
    %v4240 = vunpack.c.h.b16 %v3857
    %v4241 = vunpack.c.l.b16 %v3858
    %v4242 = vunpack.c.h.b16 %v3858
    %v4243 = vpack.c.b16 %v3989, %v3987
    %v4244 = vpack.c.b16 %v3990, %v3988
    %v4245 = vpack.c.b16 %v3993, %v3991
    %v4246 = vpack.c.b16 %v3994, %v3992
    %v4247 = vpack.c.b16 %v3997, %v3995
    %v4248 = vpack.c.b16 %v3998, %v3996
    %v4249 = vpack.c.b16 %v4001, %v3999
    %v4250 = vpack.c.b16 %v4002, %v4000
    %v4251 = vpack.c.b16 %v4005, %v4003
    %v4252 = vpack.c.b16 %v4006, %v4004
    %v4253 = vpack.c.b16 %v4009, %v4007
    %v4254 = vpack.c.b16 %v4010, %v4008
    %v4255 = vpack.c.b16 %v4013, %v4011
    %v4256 = vpack.c.b16 %v4014, %v4012
    %v4257 = vpack.c.b16 %v4017, %v4015
    %v4258 = vpack.c.b16 %v4018, %v4016
    %v4259 = vpack.c.b16 %v4021, %v4019
    %v4260 = vpack.c.b16 %v4022, %v4020
    %v4261 = vpack.c.b16 %v4025, %v4023
    %v4262 = vpack.c.b16 %v4026, %v4024
    %v4263 = vpack.c.b16 %v4029, %v4027
    %v4264 = vpack.c.b16 %v4030, %v4028
    %v4265 = vpack.c.b16 %v4033, %v4031
    %v4266 = vpack.c.b16 %v4034, %v4032
    %v4267 = vpack.c.b16 %v4037, %v4035
    %v4268 = vpack.c.b16 %v4038, %v4036
    %v4269 = vpack.c.b16 %v4041, %v4039
    %v4270 = vpack.c.b16 %v4042, %v4040
    %v4271 = vpack.c.b16 %v4045, %v4043
    %v4272 = vpack.c.b16 %v4046, %v4044
    %v4273 = vpack.c.b16 %v4049, %v4047
    %v4274 = vpack.c.b16 %v4050, %v4048
    %v4275 = vpack.c.b16 %v4053, %v4051
    %v4276 = vpack.c.b16 %v4054, %v4052
    %v4277 = vpack.c.b16 %v4057, %v4055
    %v4278 = vpack.c.b16 %v4058, %v4056
    %v4279 = vpack.c.b16 %v4061, %v4059
    %v4280 = vpack.c.b16 %v4062, %v4060
    %v4281 = vpack.c.b16 %v4065, %v4063
    %v4282 = vpack.c.b16 %v4066, %v4064
    %v4283 = vpack.c.b16 %v4069, %v4067
    %v4284 = vpack.c.b16 %v4070, %v4068
    %v4285 = vpack.c.b16 %v4073, %v4071
    %v4286 = vpack.c.b16 %v4074, %v4072
    %v4287 = vpack.c.b16 %v4077, %v4075
    %v4288 = vpack.c.b16 %v4078, %v4076
    %v4289 = vpack.c.b16 %v4081, %v4079
    %v4290 = vpack.c.b16 %v4082, %v4080
    %v4291 = vpack.c.b16 %v4085, %v4083
    %v4292 = vpack.c.b16 %v4086, %v4084
    %v4293 = vpack.c.b16 %v4089, %v4087
    %v4294 = vpack.c.b16 %v4090, %v4088
    %v4295 = vpack.c.b16 %v4093, %v4091
    %v4296 = vpack.c.b16 %v4094, %v4092
    %v4297 = vpack.c.b16 %v4097, %v4095
    %v4298 = vpack.c.b16 %v4098, %v4096
    %v4299 = vpack.c.b16 %v4101, %v4099
    %v4300 = vpack.c.b16 %v4102, %v4100
    %v4301 = vpack.c.b16 %v4105, %v4103
    %v4302 = vpack.c.b16 %v4106, %v4104
    %v4303 = vpack.c.b16 %v4109, %v4107
    %v4304 = vpack.c.b16 %v4110, %v4108
    %v4305 = vpack.c.b16 %v4113, %v4111
    %v4306 = vpack.c.b16 %v4114, %v4112
    %v4307 = vpack.c.b16 %v4117, %v4115
    %v4308 = vpack.c.b16 %v4118, %v4116
    %v4309 = vpack.c.b16 %v4121, %v4119
    %v4310 = vpack.c.b16 %v4122, %v4120
    %v4311 = vpack.c.b16 %v4125, %v4123
    %v4312 = vpack.c.b16 %v4126, %v4124
    %v4313 = vpack.c.b16 %v4129, %v4127
    %v4314 = vpack.c.b16 %v4130, %v4128
    %v4315 = vpack.c.b16 %v4133, %v4131
    %v4316 = vpack.c.b16 %v4134, %v4132
    %v4317 = vpack.c.b16 %v4137, %v4135
    %v4318 = vpack.c.b16 %v4138, %v4136
    %v4319 = vpack.c.b16 %v4141, %v4139
    %v4320 = vpack.c.b16 %v4142, %v4140
    %v4321 = vpack.c.b16 %v4145, %v4143
    %v4322 = vpack.c.b16 %v4146, %v4144
    %v4323 = vpack.c.b16 %v4149, %v4147
    %v4324 = vpack.c.b16 %v4150, %v4148
    %v4325 = vpack.c.b16 %v4153, %v4151
    %v4326 = vpack.c.b16 %v4154, %v4152
    %v4327 = vpack.c.b16 %v4157, %v4155
    %v4328 = vpack.c.b16 %v4158, %v4156
    %v4329 = vpack.c.b16 %v4161, %v4159
    %v4330 = vpack.c.b16 %v4162, %v4160
    %v4331 = vpack.c.b16 %v4165, %v4163
    %v4332 = vpack.c.b16 %v4166, %v4164
    %v4333 = vpack.c.b16 %v4169, %v4167
    %v4334 = vpack.c.b16 %v4170, %v4168
    %v4335 = vpack.c.b16 %v4173, %v4171
    %v4336 = vpack.c.b16 %v4174, %v4172
    %v4337 = vpack.c.b16 %v4177, %v4175
    %v4338 = vpack.c.b16 %v4178, %v4176
    %v4339 = vpack.c.b16 %v4181, %v4179
    %v4340 = vpack.c.b16 %v4182, %v4180
    %v4341 = vpack.c.b16 %v4185, %v4183
    %v4342 = vpack.c.b16 %v4186, %v4184
    %v4343 = vpack.c.b16 %v4189, %v4187
    %v4344 = vpack.c.b16 %v4190, %v4188
    %v4345 = vpack.c.b16 %v4193, %v4191
    %v4346 = vpack.c.b16 %v4194, %v4192
    %v4347 = vpack.c.b16 %v4197, %v4195
    %v4348 = vpack.c.b16 %v4198, %v4196
    %v4349 = vpack.c.b16 %v4201, %v4199
    %v4350 = vpack.c.b16 %v4202, %v4200
    %v4351 = vpack.c.b16 %v4205, %v4203
    %v4352 = vpack.c.b16 %v4206, %v4204
    %v4353 = vpack.c.b16 %v4209, %v4207
    %v4354 = vpack.c.b16 %v4210, %v4208
    %v4355 = vpack.c.b16 %v4213, %v4211
    %v4356 = vpack.c.b16 %v4214, %v4212
    %v4357 = vpack.c.b16 %v4217, %v4215
    %v4358 = vpack.c.b16 %v4218, %v4216
    %v4359 = vpack.c.b16 %v4221, %v4219
    %v4360 = vpack.c.b16 %v4222, %v4220
    %v4361 = vpack.c.b16 %v4225, %v4223
    %v4362 = vpack.c.b16 %v4226, %v4224
    %v4363 = vpack.c.b16 %v4229, %v4227
    %v4364 = vpack.c.b16 %v4230, %v4228
    %v4365 = vpack.c.b16 %v4233, %v4231
    %v4366 = vpack.c.b16 %v4234, %v4232
    %v4367 = vpack.c.b16 %v4237, %v4235
    %v4368 = vpack.c.b16 %v4238, %v4236
    %v4369 = vpack.c.b16 %v4241, %v4239
    %v4370 = vpack.c.b16 %v4242, %v4240
    %4499 = vmatprep.subr.bf16.mxu0 %v4244
    %4500 = vmatpush1.bf16.msra.mxu0 %v4243
    %4501 = vmatprep.subr.bf16.mxu0 %v4246
    %4502 = vmatpush1.bf16.msra.mxu0 %v4245
    %4503 = vmatprep.subr.bf16.mxu0 %v4248
    %4504 = vmatpush1.bf16.msra.mxu0 %v4247
    %4505 = vmatprep.subr.bf16.mxu0 %v4250
    %4506 = vmatpush1.bf16.msra.mxu0 %v4249
    %4507 = vmatprep.subr.bf16.mxu0 %v4252
    %4508 = vmatpush1.bf16.msra.mxu0 %v4251
    %4509 = vmatprep.subr.bf16.mxu0 %v4254
    %4510 = vmatpush1.bf16.msra.mxu0 %v4253
    %4511 = vmatprep.subr.bf16.mxu0 %v4256
    %4512 = vmatpush1.bf16.msra.mxu0 %v4255
    %4513 = vmatprep.subr.bf16.mxu0 %v4258
    %4514 = vmatpush1.bf16.msra.mxu0 %v4257
    %4515 = vmatprep.subr.bf16.mxu0 %v4260
    %4516 = vmatpush1.bf16.msra.mxu0 %v4259
    %4517 = vmatprep.subr.bf16.mxu0 %v4262
    %4518 = vmatpush1.bf16.msra.mxu0 %v4261
    %4519 = vmatprep.subr.bf16.mxu0 %v4264
    %4520 = vmatpush1.bf16.msra.mxu0 %v4263
    %4521 = vmatprep.subr.bf16.mxu0 %v4266
    %4522 = vmatpush1.bf16.msra.mxu0 %v4265
    %4523 = vmatprep.subr.bf16.mxu0 %v4268
    %4524 = vmatpush1.bf16.msra.mxu0 %v4267
    %4525 = vmatprep.subr.bf16.mxu0 %v4270
    %4526 = vmatpush1.bf16.msra.mxu0 %v4269
    %4527 = vmatprep.subr.bf16.mxu0 %v4272
    %4528 = vmatpush1.bf16.msra.mxu0 %v4271
    %4529 = vmatprep.subr.bf16.mxu0 %v4274
    %4530 = vmatpush1.bf16.msra.mxu0 %v4273
    %4531 = vmatprep.mubr.bf16.mxu0 %v1746
    %4532 = vmatmul.mubr.bf16.gmra.mrb[0].mxu0 %v1745
    %v4533 = vpop.f32.mrb[0].mxu0
    %v4534 = vadd.f32 0.0, %v4533
    %v4535 = vpop.f32.mrb[0].mxu0
    %v4536 = vadd.f32 0.0, %v4535
    %v4537 = vpop.f32.mrb[0].mxu0
    %v4538 = vadd.f32 0.0, %v4537
    %v4539 = vpop.f32.mrb[0].mxu0
    %v4540 = vadd.f32 0.0, %v4539
    %4541 = vmatprep.mubr.bf16.mxu0 %v1754
    %4542 = vmatmul.mubr.bf16.gmra.mrb[0].mxu0 %v1753
    %v4543 = vpop.f32.mrb[0].mxu0
    %v4544 = vadd.f32 0.0, %v4543
    %v4545 = vpop.f32.mrb[0].mxu0
    %v4546 = vadd.f32 0.0, %v4545
    %v4547 = vpop.f32.mrb[0].mxu0
    %v4548 = vadd.f32 0.0, %v4547
    %v4549 = vpop.f32.mrb[0].mxu0
    %v4550 = vadd.f32 0.0, %v4549
    %4551 = vdwg.mxu0
    %4552 = vmatprep.subr.bf16.mxu0 %v4276
    %4553 = vmatpush1.bf16.msra.mxu0 %v4275
    %4554 = vmatprep.subr.bf16.mxu0 %v4278
    %4555 = vmatpush1.bf16.msra.mxu0 %v4277
    %4556 = vmatprep.subr.bf16.mxu0 %v4280
    %4557 = vmatpush1.bf16.msra.mxu0 %v4279
    %4558 = vmatprep.subr.bf16.mxu0 %v4282
    %4559 = vmatpush1.bf16.msra.mxu0 %v4281
    %4560 = vmatprep.subr.bf16.mxu0 %v4284
    %4561 = vmatpush1.bf16.msra.mxu0 %v4283
    %4562 = vmatprep.subr.bf16.mxu0 %v4286
    %4563 = vmatpush1.bf16.msra.mxu0 %v4285
    %4564 = vmatprep.subr.bf16.mxu0 %v4288
    %4565 = vmatpush1.bf16.msra.mxu0 %v4287
    %4566 = vmatprep.subr.bf16.mxu0 %v4290
    %4567 = vmatpush1.bf16.msra.mxu0 %v4289
    %4568 = vmatprep.subr.bf16.mxu0 %v4292
    %4569 = vmatpush1.bf16.msra.mxu0 %v4291
    %4570 = vmatprep.subr.bf16.mxu0 %v4294
    %4571 = vmatpush1.bf16.msra.mxu0 %v4293
    %4572 = vmatprep.subr.bf16.mxu0 %v4296
    %4573 = vmatpush1.bf16.msra.mxu0 %v4295
    %4574 = vmatprep.subr.bf16.mxu0 %v4298
    %4575 = vmatpush1.bf16.msra.mxu0 %v4297
    %4576 = vmatprep.subr.bf16.mxu0 %v4300
    %4577 = vmatpush1.bf16.msra.mxu0 %v4299
    %4578 = vmatprep.subr.bf16.mxu0 %v4302
    %4579 = vmatpush1.bf16.msra.mxu0 %v4301
    %4580 = vmatprep.subr.bf16.mxu0 %v4304
    %4581 = vmatpush1.bf16.msra.mxu0 %v4303
    %4582 = vmatprep.subr.bf16.mxu0 %v4306
    %4583 = vmatpush1.bf16.msra.mxu0 %v4305
    %4584 = vmatprep.mubr.bf16.mxu0 %v1748
    %4585 = vmatmul.mubr.bf16.gmra.mrb[0].mxu0 %v1747
    %v4586 = vpop.f32.mrb[0].mxu0
    %v4587 = vadd.f32 %v4534, %v4586
    %v4588 = vpop.f32.mrb[0].mxu0
    %v4589 = vadd.f32 %v4536, %v4588
    %v4590 = vpop.f32.mrb[0].mxu0
    %v4591 = vadd.f32 %v4538, %v4590
    %v4592 = vpop.f32.mrb[0].mxu0
    %v4593 = vadd.f32 %v4540, %v4592
    %4594 = vmatprep.mubr.bf16.mxu0 %v1756
    %4595 = vmatmul.mubr.bf16.gmra.mrb[0].mxu0 %v1755
    %v4596 = vpop.f32.mrb[0].mxu0
    %v4597 = vadd.f32 %v4544, %v4596
    %v4598 = vpop.f32.mrb[0].mxu0
    %v4599 = vadd.f32 %v4546, %v4598
    %v4600 = vpop.f32.mrb[0].mxu0
    %v4601 = vadd.f32 %v4548, %v4600
    %v4602 = vpop.f32.mrb[0].mxu0
    %v4603 = vadd.f32 %v4550, %v4602
    %4604 = vdwg.mxu0
    %4605 = vmatprep.subr.bf16.mxu0 %v4308
    %4606 = vmatpush1.bf16.msra.mxu0 %v4307
    %4607 = vmatprep.subr.bf16.mxu0 %v4310
    %4608 = vmatpush1.bf16.msra.mxu0 %v4309
    %4609 = vmatprep.subr.bf16.mxu0 %v4312
    %4610 = vmatpush1.bf16.msra.mxu0 %v4311
    %4611 = vmatprep.subr.bf16.mxu0 %v4314
    %4612 = vmatpush1.bf16.msra.mxu0 %v4313
    %4613 = vmatprep.subr.bf16.mxu0 %v4316
    %4614 = vmatpush1.bf16.msra.mxu0 %v4315
    %4615 = vmatprep.subr.bf16.mxu0 %v4318
    %4616 = vmatpush1.bf16.msra.mxu0 %v4317
    %4617 = vmatprep.subr.bf16.mxu0 %v4320
    %4618 = vmatpush1.bf16.msra.mxu0 %v4319
    %4619 = vmatprep.subr.bf16.mxu0 %v4322
    %4620 = vmatpush1.bf16.msra.mxu0 %v4321
    %4621 = vmatprep.subr.bf16.mxu0 %v4324
    %4622 = vmatpush1.bf16.msra.mxu0 %v4323
    %4623 = vmatprep.subr.bf16.mxu0 %v4326
    %4624 = vmatpush1.bf16.msra.mxu0 %v4325
    %4625 = vmatprep.subr.bf16.mxu0 %v4328
    %4626 = vmatpush1.bf16.msra.mxu0 %v4327
    %4627 = vmatprep.subr.bf16.mxu0 %v4330
    %4628 = vmatpush1.bf16.msra.mxu0 %v4329
    %4629 = vmatprep.subr.bf16.mxu0 %v4332
    %4630 = vmatpush1.bf16.msra.mxu0 %v4331
    %4631 = vmatprep.subr.bf16.mxu0 %v4334
    %4632 = vmatpush1.bf16.msra.mxu0 %v4333
    %4633 = vmatprep.subr.bf16.mxu0 %v4336
    %4634 = vmatpush1.bf16.msra.mxu0 %v4335
    %4635 = vmatprep.subr.bf16.mxu0 %v4338
    %4636 = vmatpush1.bf16.msra.mxu0 %v4337
    %4637 = vmatprep.mubr.bf16.mxu0 %v1750
    %4638 = vmatmul.mubr.bf16.gmra.mrb[0].mxu0 %v1749
    %v4639 = vpop.f32.mrb[0].mxu0
    %v4640 = vadd.f32 %v4587, %v4639
    %v4641 = vpop.f32.mrb[0].mxu0
    %v4642 = vadd.f32 %v4589, %v4641
    %v4643 = vpop.f32.mrb[0].mxu0
    %v4644 = vadd.f32 %v4591, %v4643
    %v4645 = vpop.f32.mrb[0].mxu0
    %v4646 = vadd.f32 %v4593, %v4645
    %4647 = vmatprep.mubr.bf16.mxu0 %v1758
    %4648 = vmatmul.mubr.bf16.gmra.mrb[0].mxu0 %v1757
    %v4649 = vpop.f32.mrb[0].mxu0
    %v4650 = vadd.f32 %v4597, %v4649
    %v4651 = vpop.f32.mrb[0].mxu0
    %v4652 = vadd.f32 %v4599, %v4651
    %v4653 = vpop.f32.mrb[0].mxu0
    %v4654 = vadd.f32 %v4601, %v4653
    %v4655 = vpop.f32.mrb[0].mxu0
    %v4656 = vadd.f32 %v4603, %v4655
    %4657 = vdwg.mxu0
    %4658 = vmatprep.subr.bf16.mxu0 %v4340
    %4659 = vmatpush1.bf16.msra.mxu0 %v4339
    %4660 = vmatprep.subr.bf16.mxu0 %v4342
    %4661 = vmatpush1.bf16.msra.mxu0 %v4341
    %4662 = vmatprep.subr.bf16.mxu0 %v4344
    %4663 = vmatpush1.bf16.msra.mxu0 %v4343
    %4664 = vmatprep.subr.bf16.mxu0 %v4346
    %4665 = vmatpush1.bf16.msra.mxu0 %v4345
    %4666 = vmatprep.subr.bf16.mxu0 %v4348
    %4667 = vmatpush1.bf16.msra.mxu0 %v4347
    %4668 = vmatprep.subr.bf16.mxu0 %v4350
    %4669 = vmatpush1.bf16.msra.mxu0 %v4349
    %4670 = vmatprep.subr.bf16.mxu0 %v4352
    %4671 = vmatpush1.bf16.msra.mxu0 %v4351
    %4672 = vmatprep.subr.bf16.mxu0 %v4354
    %4673 = vmatpush1.bf16.msra.mxu0 %v4353
    %4674 = vmatprep.subr.bf16.mxu0 %v4356
    %4675 = vmatpush1.bf16.msra.mxu0 %v4355
    %4676 = vmatprep.subr.bf16.mxu0 %v4358
    %4677 = vmatpush1.bf16.msra.mxu0 %v4357
    %4678 = vmatprep.subr.bf16.mxu0 %v4360
    %4679 = vmatpush1.bf16.msra.mxu0 %v4359
    %4680 = vmatprep.subr.bf16.mxu0 %v4362
    %4681 = vmatpush1.bf16.msra.mxu0 %v4361
    %4682 = vmatprep.subr.bf16.mxu0 %v4364
    %4683 = vmatpush1.bf16.msra.mxu0 %v4363
    %4684 = vmatprep.subr.bf16.mxu0 %v4366
    %4685 = vmatpush1.bf16.msra.mxu0 %v4365
    %4686 = vmatprep.subr.bf16.mxu0 %v4368
    %4687 = vmatpush1.bf16.msra.mxu0 %v4367
    %4688 = vmatprep.subr.bf16.mxu0 %v4370
    %4689 = vmatpush1.bf16.msra.mxu0 %v4369
    %4690 = vmatprep.mubr.bf16.mxu0 %v1752
    %4691 = vmatmul.mubr.bf16.gmra.mrb[0].mxu0 %v1751
    %v4692 = vpop.f32.mrb[0].mxu0
    %v4693 = vadd.f32 %v4640, %v4692
    %v4694 = vpop.f32.mrb[0].mxu0
    %v4695 = vadd.f32 %v4642, %v4694
    %v4696 = vpop.f32.mrb[0].mxu0
    %v4697 = vadd.f32 %v4644, %v4696
    %v4698 = vpop.f32.mrb[0].mxu0
    %v4699 = vadd.f32 %v4646, %v4698
    %4700 = vmatprep.mubr.bf16.mxu0 %v1760
    %4701 = vmatmul.mubr.bf16.gmra.mrb[0].mxu0 %v1759
    %v4702 = vpop.f32.mrb[0].mxu0
    %v4703 = vadd.f32 %v4650, %v4702
    %v4704 = vpop.f32.mrb[0].mxu0
    %v4705 = vadd.f32 %v4652, %v4704
    %v4706 = vpop.f32.mrb[0].mxu0
    %v4707 = vadd.f32 %v4654, %v4706
    %v4708 = vpop.f32.mrb[0].mxu0
    %v4709 = vadd.f32 %v4656, %v4708
    %4710 = vdwg.mxu0
    %v4711 = vpack.c.bf16 %v4697, %v4693
    %v4712 = vpack.c.bf16 %v4699, %v4695
    %v4713 = vpack.c.bf16 %v4707, %v4703
    %v4714 = vpack.c.bf16 %v4709, %v4705
    %s4715 = scalar_lea.vmem %s5, 3072
    %v4716 = vld [vmem:[%s4715] sm:$0xff]
    %v4717 = vld [vmem:[%s4715 + $0x8] sm:$0xff]
    %v4718 = vld [vmem:[%s4715 + $0x10] sm:$0xff]
    %v4719 = vld [vmem:[%s4715 + $0x18] sm:$0xff]
    %v4720 = vld [vmem:[%s4715 + $0x20] sm:$0xff]
    %v4721 = vld [vmem:[%s4715 + $0x28] sm:$0xff]
    %v4722 = vld [vmem:[%s4715 + $0x30] sm:$0xff]
    %v4723 = vld [vmem:[%s4715 + $0x38] sm:$0xff]
    %v4724 = vld [vmem:[%s4715 + $0x40] sm:$0xff]
    %v4725 = vld [vmem:[%s4715 + $0x48] sm:$0xff]
    %v4726 = vld [vmem:[%s4715 + $0x50] sm:$0xff]
    %v4727 = vld [vmem:[%s4715 + $0x58] sm:$0xff]
    %v4728 = vld [vmem:[%s4715 + $0x60] sm:$0xff]
    %v4729 = vld [vmem:[%s4715 + $0x68] sm:$0xff]
    %v4730 = vld [vmem:[%s4715 + $0x70] sm:$0xff]
    %v4731 = vld [vmem:[%s4715 + $0x78] sm:$0xff]
    %v4732 = vld [vmem:[%s4715 + $0x80] sm:$0xff]
    %v4733 = vld [vmem:[%s4715 + $0x88] sm:$0xff]
    %v4734 = vld [vmem:[%s4715 + $0x90] sm:$0xff]
    %v4735 = vld [vmem:[%s4715 + $0x98] sm:$0xff]
    %v4736 = vld [vmem:[%s4715 + $0xa0] sm:$0xff]
    %v4737 = vld [vmem:[%s4715 + $0xa8] sm:$0xff]
    %v4738 = vld [vmem:[%s4715 + $0xb0] sm:$0xff]
    %v4739 = vld [vmem:[%s4715 + $0xb8] sm:$0xff]
    %v4740 = vld [vmem:[%s4715 + $0xc0] sm:$0xff]
    %v4741 = vld [vmem:[%s4715 + $0xc8] sm:$0xff]
    %v4742 = vld [vmem:[%s4715 + $0xd0] sm:$0xff]
    %v4743 = vld [vmem:[%s4715 + $0xd8] sm:$0xff]
    %v4744 = vld [vmem:[%s4715 + $0xe0] sm:$0xff]
    %v4745 = vld [vmem:[%s4715 + $0xe8] sm:$0xff]
    %v4746 = vld [vmem:[%s4715 + $0xf0] sm:$0xff]
    %v4747 = vld [vmem:[%s4715 + $0xf8] sm:$0xff]
    %v4748 = vld [vmem:[%s4715 + $0x100] sm:$0xff]
    %v4749 = vld [vmem:[%s4715 + $0x108] sm:$0xff]
    %v4750 = vld [vmem:[%s4715 + $0x110] sm:$0xff]
    %v4751 = vld [vmem:[%s4715 + $0x118] sm:$0xff]
    %v4752 = vld [vmem:[%s4715 + $0x120] sm:$0xff]
    %v4753 = vld [vmem:[%s4715 + $0x128] sm:$0xff]
    %v4754 = vld [vmem:[%s4715 + $0x130] sm:$0xff]
    %v4755 = vld [vmem:[%s4715 + $0x138] sm:$0xff]
    %v4756 = vld [vmem:[%s4715 + $0x140] sm:$0xff]
    %v4757 = vld [vmem:[%s4715 + $0x148] sm:$0xff]
    %v4758 = vld [vmem:[%s4715 + $0x150] sm:$0xff]
    %v4759 = vld [vmem:[%s4715 + $0x158] sm:$0xff]
    %v4760 = vld [vmem:[%s4715 + $0x160] sm:$0xff]
    %v4761 = vld [vmem:[%s4715 + $0x168] sm:$0xff]
    %v4762 = vld [vmem:[%s4715 + $0x170] sm:$0xff]
    %v4763 = vld [vmem:[%s4715 + $0x178] sm:$0xff]
    %v4764 = vld [vmem:[%s4715 + $0x180] sm:$0xff]
    %v4765 = vld [vmem:[%s4715 + $0x188] sm:$0xff]
    %v4766 = vld [vmem:[%s4715 + $0x190] sm:$0xff]
    %v4767 = vld [vmem:[%s4715 + $0x198] sm:$0xff]
    %v4768 = vld [vmem:[%s4715 + $0x1a0] sm:$0xff]
    %v4769 = vld [vmem:[%s4715 + $0x1a8] sm:$0xff]
    %v4770 = vld [vmem:[%s4715 + $0x1b0] sm:$0xff]
    %v4771 = vld [vmem:[%s4715 + $0x1b8] sm:$0xff]
    %v4772 = vld [vmem:[%s4715 + $0x1c0] sm:$0xff]
    %v4773 = vld [vmem:[%s4715 + $0x1c8] sm:$0xff]
    %v4774 = vld [vmem:[%s4715 + $0x1d0] sm:$0xff]
    %v4775 = vld [vmem:[%s4715 + $0x1d8] sm:$0xff]
    %v4776 = vld [vmem:[%s4715 + $0x1e0] sm:$0xff]
    %v4777 = vld [vmem:[%s4715 + $0x1e8] sm:$0xff]
    %v4778 = vld [vmem:[%s4715 + $0x1f0] sm:$0xff]
    %v4779 = vld [vmem:[%s4715 + $0x1f8] sm:$0xff]
    %v4780 = vld [vmem:[%s4715 + $0x200] sm:$0xff]
    %v4781 = vld [vmem:[%s4715 + $0x208] sm:$0xff]
    %v4782 = vld [vmem:[%s4715 + $0x210] sm:$0xff]
    %v4783 = vld [vmem:[%s4715 + $0x218] sm:$0xff]
    %v4784 = vld [vmem:[%s4715 + $0x220] sm:$0xff]
    %v4785 = vld [vmem:[%s4715 + $0x228] sm:$0xff]
    %v4786 = vld [vmem:[%s4715 + $0x230] sm:$0xff]
    %v4787 = vld [vmem:[%s4715 + $0x238] sm:$0xff]
    %v4788 = vld [vmem:[%s4715 + $0x240] sm:$0xff]
    %v4789 = vld [vmem:[%s4715 + $0x248] sm:$0xff]
    %v4790 = vld [vmem:[%s4715 + $0x250] sm:$0xff]
    %v4791 = vld [vmem:[%s4715 + $0x258] sm:$0xff]
    %v4792 = vld [vmem:[%s4715 + $0x260] sm:$0xff]
    %v4793 = vld [vmem:[%s4715 + $0x268] sm:$0xff]
    %v4794 = vld [vmem:[%s4715 + $0x270] sm:$0xff]
    %v4795 = vld [vmem:[%s4715 + $0x278] sm:$0xff]
    %v4796 = vld [vmem:[%s4715 + $0x280] sm:$0xff]
    %v4797 = vld [vmem:[%s4715 + $0x288] sm:$0xff]
    %v4798 = vld [vmem:[%s4715 + $0x290] sm:$0xff]
    %v4799 = vld [vmem:[%s4715 + $0x298] sm:$0xff]
    %v4800 = vld [vmem:[%s4715 + $0x2a0] sm:$0xff]
    %v4801 = vld [vmem:[%s4715 + $0x2a8] sm:$0xff]
    %v4802 = vld [vmem:[%s4715 + $0x2b0] sm:$0xff]
    %v4803 = vld [vmem:[%s4715 + $0x2b8] sm:$0xff]
    %v4804 = vld [vmem:[%s4715 + $0x2c0] sm:$0xff]
    %v4805 = vld [vmem:[%s4715 + $0x2c8] sm:$0xff]
    %v4806 = vld [vmem:[%s4715 + $0x2d0] sm:$0xff]
    %v4807 = vld [vmem:[%s4715 + $0x2d8] sm:$0xff]
    %v4808 = vld [vmem:[%s4715 + $0x2e0] sm:$0xff]
    %v4809 = vld [vmem:[%s4715 + $0x2e8] sm:$0xff]
    %v4810 = vld [vmem:[%s4715 + $0x2f0] sm:$0xff]
    %v4811 = vld [vmem:[%s4715 + $0x2f8] sm:$0xff]
    %v4812 = vld [vmem:[%s4715 + $0x300] sm:$0xff]
    %v4813 = vld [vmem:[%s4715 + $0x308] sm:$0xff]
    %v4814 = vld [vmem:[%s4715 + $0x310] sm:$0xff]
    %v4815 = vld [vmem:[%s4715 + $0x318] sm:$0xff]
    %v4816 = vld [vmem:[%s4715 + $0x320] sm:$0xff]
    %v4817 = vld [vmem:[%s4715 + $0x328] sm:$0xff]
    %v4818 = vld [vmem:[%s4715 + $0x330] sm:$0xff]
    %v4819 = vld [vmem:[%s4715 + $0x338] sm:$0xff]
    %v4820 = vld [vmem:[%s4715 + $0x340] sm:$0xff]
    %v4821 = vld [vmem:[%s4715 + $0x348] sm:$0xff]
    %v4822 = vld [vmem:[%s4715 + $0x350] sm:$0xff]
    %v4823 = vld [vmem:[%s4715 + $0x358] sm:$0xff]
    %v4824 = vld [vmem:[%s4715 + $0x360] sm:$0xff]
    %v4825 = vld [vmem:[%s4715 + $0x368] sm:$0xff]
    %v4826 = vld [vmem:[%s4715 + $0x370] sm:$0xff]
    %v4827 = vld [vmem:[%s4715 + $0x378] sm:$0xff]
    %v4828 = vld [vmem:[%s4715 + $0x380] sm:$0xff]
    %v4829 = vld [vmem:[%s4715 + $0x388] sm:$0xff]
    %v4830 = vld [vmem:[%s4715 + $0x390] sm:$0xff]
    %v4831 = vld [vmem:[%s4715 + $0x398] sm:$0xff]
    %v4832 = vld [vmem:[%s4715 + $0x3a0] sm:$0xff]
    %v4833 = vld [vmem:[%s4715 + $0x3a8] sm:$0xff]
    %v4834 = vld [vmem:[%s4715 + $0x3b0] sm:$0xff]
    %v4835 = vld [vmem:[%s4715 + $0x3b8] sm:$0xff]
    %v4836 = vld [vmem:[%s4715 + $0x3c0] sm:$0xff]
    %v4837 = vld [vmem:[%s4715 + $0x3c8] sm:$0xff]
    %v4838 = vld [vmem:[%s4715 + $0x3d0] sm:$0xff]
    %v4839 = vld [vmem:[%s4715 + $0x3d8] sm:$0xff]
    %v4840 = vld [vmem:[%s4715 + $0x3e0] sm:$0xff]
    %v4841 = vld [vmem:[%s4715 + $0x3e8] sm:$0xff]
    %v4842 = vld [vmem:[%s4715 + $0x3f0] sm:$0xff]
    %v4843 = vld [vmem:[%s4715 + $0x3f8] sm:$0xff]
    %v4972 = vunpack.c.l.b16 %v4716
    %v4973 = vunpack.c.h.b16 %v4716
    %v4974 = vunpack.c.l.b16 %v4717
    %v4975 = vunpack.c.h.b16 %v4717
    %v4976 = vunpack.c.l.b16 %v4718
    %v4977 = vunpack.c.h.b16 %v4718
    %v4978 = vunpack.c.l.b16 %v4719
    %v4979 = vunpack.c.h.b16 %v4719
    %v4980 = vunpack.c.l.b16 %v4720
    %v4981 = vunpack.c.h.b16 %v4720
    %v4982 = vunpack.c.l.b16 %v4721
    %v4983 = vunpack.c.h.b16 %v4721
    %v4984 = vunpack.c.l.b16 %v4722
    %v4985 = vunpack.c.h.b16 %v4722
    %v4986 = vunpack.c.l.b16 %v4723
    %v4987 = vunpack.c.h.b16 %v4723
    %v4988 = vunpack.c.l.b16 %v4724
    %v4989 = vunpack.c.h.b16 %v4724
    %v4990 = vunpack.c.l.b16 %v4725
    %v4991 = vunpack.c.h.b16 %v4725
    %v4992 = vunpack.c.l.b16 %v4726
    %v4993 = vunpack.c.h.b16 %v4726
    %v4994 = vunpack.c.l.b16 %v4727
    %v4995 = vunpack.c.h.b16 %v4727
    %v4996 = vunpack.c.l.b16 %v4728
    %v4997 = vunpack.c.h.b16 %v4728
    %v4998 = vunpack.c.l.b16 %v4729
    %v4999 = vunpack.c.h.b16 %v4729
    %v5000 = vunpack.c.l.b16 %v4730
    %v5001 = vunpack.c.h.b16 %v4730
    %v5002 = vunpack.c.l.b16 %v4731
    %v5003 = vunpack.c.h.b16 %v4731
    %v5004 = vunpack.c.l.b16 %v4732
    %v5005 = vunpack.c.h.b16 %v4732
    %v5006 = vunpack.c.l.b16 %v4733
    %v5007 = vunpack.c.h.b16 %v4733
    %v5008 = vunpack.c.l.b16 %v4734
    %v5009 = vunpack.c.h.b16 %v4734
    %v5010 = vunpack.c.l.b16 %v4735
    %v5011 = vunpack.c.h.b16 %v4735
    %v5012 = vunpack.c.l.b16 %v4736
    %v5013 = vunpack.c.h.b16 %v4736
    %v5014 = vunpack.c.l.b16 %v4737
    %v5015 = vunpack.c.h.b16 %v4737
    %v5016 = vunpack.c.l.b16 %v4738
    %v5017 = vunpack.c.h.b16 %v4738
    %v5018 = vunpack.c.l.b16 %v4739
    %v5019 = vunpack.c.h.b16 %v4739
    %v5020 = vunpack.c.l.b16 %v4740
    %v5021 = vunpack.c.h.b16 %v4740
    %v5022 = vunpack.c.l.b16 %v4741
    %v5023 = vunpack.c.h.b16 %v4741
    %v5024 = vunpack.c.l.b16 %v4742
    %v5025 = vunpack.c.h.b16 %v4742
    %v5026 = vunpack.c.l.b16 %v4743
    %v5027 = vunpack.c.h.b16 %v4743
    %v5028 = vunpack.c.l.b16 %v4744
    %v5029 = vunpack.c.h.b16 %v4744
    %v5030 = vunpack.c.l.b16 %v4745
    %v5031 = vunpack.c.h.b16 %v4745
    %v5032 = vunpack.c.l.b16 %v4746
    %v5033 = vunpack.c.h.b16 %v4746
    %v5034 = vunpack.c.l.b16 %v4747
    %v5035 = vunpack.c.h.b16 %v4747
    %v5036 = vunpack.c.l.b16 %v4748
    %v5037 = vunpack.c.h.b16 %v4748
    %v5038 = vunpack.c.l.b16 %v4749
    %v5039 = vunpack.c.h.b16 %v4749
    %v5040 = vunpack.c.l.b16 %v4750
    %v5041 = vunpack.c.h.b16 %v4750
    %v5042 = vunpack.c.l.b16 %v4751
    %v5043 = vunpack.c.h.b16 %v4751
    %v5044 = vunpack.c.l.b16 %v4752
    %v5045 = vunpack.c.h.b16 %v4752
    %v5046 = vunpack.c.l.b16 %v4753
    %v5047 = vunpack.c.h.b16 %v4753
    %v5048 = vunpack.c.l.b16 %v4754
    %v5049 = vunpack.c.h.b16 %v4754
    %v5050 = vunpack.c.l.b16 %v4755
    %v5051 = vunpack.c.h.b16 %v4755
    %v5052 = vunpack.c.l.b16 %v4756
    %v5053 = vunpack.c.h.b16 %v4756
    %v5054 = vunpack.c.l.b16 %v4757
    %v5055 = vunpack.c.h.b16 %v4757
    %v5056 = vunpack.c.l.b16 %v4758
    %v5057 = vunpack.c.h.b16 %v4758
    %v5058 = vunpack.c.l.b16 %v4759
    %v5059 = vunpack.c.h.b16 %v4759
    %v5060 = vunpack.c.l.b16 %v4760
    %v5061 = vunpack.c.h.b16 %v4760
    %v5062 = vunpack.c.l.b16 %v4761
    %v5063 = vunpack.c.h.b16 %v4761
    %v5064 = vunpack.c.l.b16 %v4762
    %v5065 = vunpack.c.h.b16 %v4762
    %v5066 = vunpack.c.l.b16 %v4763
    %v5067 = vunpack.c.h.b16 %v4763
    %v5068 = vunpack.c.l.b16 %v4764
    %v5069 = vunpack.c.h.b16 %v4764
    %v5070 = vunpack.c.l.b16 %v4765
    %v5071 = vunpack.c.h.b16 %v4765
    %v5072 = vunpack.c.l.b16 %v4766
    %v5073 = vunpack.c.h.b16 %v4766
    %v5074 = vunpack.c.l.b16 %v4767
    %v5075 = vunpack.c.h.b16 %v4767
    %v5076 = vunpack.c.l.b16 %v4768
    %v5077 = vunpack.c.h.b16 %v4768
    %v5078 = vunpack.c.l.b16 %v4769
    %v5079 = vunpack.c.h.b16 %v4769
    %v5080 = vunpack.c.l.b16 %v4770
    %v5081 = vunpack.c.h.b16 %v4770
    %v5082 = vunpack.c.l.b16 %v4771
    %v5083 = vunpack.c.h.b16 %v4771
    %v5084 = vunpack.c.l.b16 %v4772
    %v5085 = vunpack.c.h.b16 %v4772
    %v5086 = vunpack.c.l.b16 %v4773
    %v5087 = vunpack.c.h.b16 %v4773
    %v5088 = vunpack.c.l.b16 %v4774
    %v5089 = vunpack.c.h.b16 %v4774
    %v5090 = vunpack.c.l.b16 %v4775
    %v5091 = vunpack.c.h.b16 %v4775
    %v5092 = vunpack.c.l.b16 %v4776
    %v5093 = vunpack.c.h.b16 %v4776
    %v5094 = vunpack.c.l.b16 %v4777
    %v5095 = vunpack.c.h.b16 %v4777
    %v5096 = vunpack.c.l.b16 %v4778
    %v5097 = vunpack.c.h.b16 %v4778
    %v5098 = vunpack.c.l.b16 %v4779
    %v5099 = vunpack.c.h.b16 %v4779
    %v5100 = vunpack.c.l.b16 %v4780
    %v5101 = vunpack.c.h.b16 %v4780
    %v5102 = vunpack.c.l.b16 %v4781
    %v5103 = vunpack.c.h.b16 %v4781
    %v5104 = vunpack.c.l.b16 %v4782
    %v5105 = vunpack.c.h.b16 %v4782
    %v5106 = vunpack.c.l.b16 %v4783
    %v5107 = vunpack.c.h.b16 %v4783
    %v5108 = vunpack.c.l.b16 %v4784
    %v5109 = vunpack.c.h.b16 %v4784
    %v5110 = vunpack.c.l.b16 %v4785
    %v5111 = vunpack.c.h.b16 %v4785
    %v5112 = vunpack.c.l.b16 %v4786
    %v5113 = vunpack.c.h.b16 %v4786
    %v5114 = vunpack.c.l.b16 %v4787
    %v5115 = vunpack.c.h.b16 %v4787
    %v5116 = vunpack.c.l.b16 %v4788
    %v5117 = vunpack.c.h.b16 %v4788
    %v5118 = vunpack.c.l.b16 %v4789
    %v5119 = vunpack.c.h.b16 %v4789
    %v5120 = vunpack.c.l.b16 %v4790
    %v5121 = vunpack.c.h.b16 %v4790
    %v5122 = vunpack.c.l.b16 %v4791
    %v5123 = vunpack.c.h.b16 %v4791
    %v5124 = vunpack.c.l.b16 %v4792
    %v5125 = vunpack.c.h.b16 %v4792
    %v5126 = vunpack.c.l.b16 %v4793
    %v5127 = vunpack.c.h.b16 %v4793
    %v5128 = vunpack.c.l.b16 %v4794
    %v5129 = vunpack.c.h.b16 %v4794
    %v5130 = vunpack.c.l.b16 %v4795
    %v5131 = vunpack.c.h.b16 %v4795
    %v5132 = vunpack.c.l.b16 %v4796
    %v5133 = vunpack.c.h.b16 %v4796
    %v5134 = vunpack.c.l.b16 %v4797
    %v5135 = vunpack.c.h.b16 %v4797
    %v5136 = vunpack.c.l.b16 %v4798
    %v5137 = vunpack.c.h.b16 %v4798
    %v5138 = vunpack.c.l.b16 %v4799
    %v5139 = vunpack.c.h.b16 %v4799
    %v5140 = vunpack.c.l.b16 %v4800
    %v5141 = vunpack.c.h.b16 %v4800
    %v5142 = vunpack.c.l.b16 %v4801
    %v5143 = vunpack.c.h.b16 %v4801
    %v5144 = vunpack.c.l.b16 %v4802
    %v5145 = vunpack.c.h.b16 %v4802
    %v5146 = vunpack.c.l.b16 %v4803
    %v5147 = vunpack.c.h.b16 %v4803
    %v5148 = vunpack.c.l.b16 %v4804
    %v5149 = vunpack.c.h.b16 %v4804
    %v5150 = vunpack.c.l.b16 %v4805
    %v5151 = vunpack.c.h.b16 %v4805
    %v5152 = vunpack.c.l.b16 %v4806
    %v5153 = vunpack.c.h.b16 %v4806
    %v5154 = vunpack.c.l.b16 %v4807
    %v5155 = vunpack.c.h.b16 %v4807
    %v5156 = vunpack.c.l.b16 %v4808
    %v5157 = vunpack.c.h.b16 %v4808
    %v5158 = vunpack.c.l.b16 %v4809
    %v5159 = vunpack.c.h.b16 %v4809
    %v5160 = vunpack.c.l.b16 %v4810
    %v5161 = vunpack.c.h.b16 %v4810
    %v5162 = vunpack.c.l.b16 %v4811
    %v5163 = vunpack.c.h.b16 %v4811
    %v5164 = vunpack.c.l.b16 %v4812
    %v5165 = vunpack.c.h.b16 %v4812
    %v5166 = vunpack.c.l.b16 %v4813
    %v5167 = vunpack.c.h.b16 %v4813
    %v5168 = vunpack.c.l.b16 %v4814
    %v5169 = vunpack.c.h.b16 %v4814
    %v5170 = vunpack.c.l.b16 %v4815
    %v5171 = vunpack.c.h.b16 %v4815
    %v5172 = vunpack.c.l.b16 %v4816
    %v5173 = vunpack.c.h.b16 %v4816
    %v5174 = vunpack.c.l.b16 %v4817
    %v5175 = vunpack.c.h.b16 %v4817
    %v5176 = vunpack.c.l.b16 %v4818
    %v5177 = vunpack.c.h.b16 %v4818
    %v5178 = vunpack.c.l.b16 %v4819
    %v5179 = vunpack.c.h.b16 %v4819
    %v5180 = vunpack.c.l.b16 %v4820
    %v5181 = vunpack.c.h.b16 %v4820
    %v5182 = vunpack.c.l.b16 %v4821
    %v5183 = vunpack.c.h.b16 %v4821
    %v5184 = vunpack.c.l.b16 %v4822
    %v5185 = vunpack.c.h.b16 %v4822
    %v5186 = vunpack.c.l.b16 %v4823
    %v5187 = vunpack.c.h.b16 %v4823
    %v5188 = vunpack.c.l.b16 %v4824
    %v5189 = vunpack.c.h.b16 %v4824
    %v5190 = vunpack.c.l.b16 %v4825
    %v5191 = vunpack.c.h.b16 %v4825
    %v5192 = vunpack.c.l.b16 %v4826
    %v5193 = vunpack.c.h.b16 %v4826
    %v5194 = vunpack.c.l.b16 %v4827
    %v5195 = vunpack.c.h.b16 %v4827
    %v5196 = vunpack.c.l.b16 %v4828
    %v5197 = vunpack.c.h.b16 %v4828
    %v5198 = vunpack.c.l.b16 %v4829
    %v5199 = vunpack.c.h.b16 %v4829
    %v5200 = vunpack.c.l.b16 %v4830
    %v5201 = vunpack.c.h.b16 %v4830
    %v5202 = vunpack.c.l.b16 %v4831
    %v5203 = vunpack.c.h.b16 %v4831
    %v5204 = vunpack.c.l.b16 %v4832
    %v5205 = vunpack.c.h.b16 %v4832
    %v5206 = vunpack.c.l.b16 %v4833
    %v5207 = vunpack.c.h.b16 %v4833
    %v5208 = vunpack.c.l.b16 %v4834
    %v5209 = vunpack.c.h.b16 %v4834
    %v5210 = vunpack.c.l.b16 %v4835
    %v5211 = vunpack.c.h.b16 %v4835
    %v5212 = vunpack.c.l.b16 %v4836
    %v5213 = vunpack.c.h.b16 %v4836
    %v5214 = vunpack.c.l.b16 %v4837
    %v5215 = vunpack.c.h.b16 %v4837
    %v5216 = vunpack.c.l.b16 %v4838
    %v5217 = vunpack.c.h.b16 %v4838
    %v5218 = vunpack.c.l.b16 %v4839
    %v5219 = vunpack.c.h.b16 %v4839
    %v5220 = vunpack.c.l.b16 %v4840
    %v5221 = vunpack.c.h.b16 %v4840
    %v5222 = vunpack.c.l.b16 %v4841
    %v5223 = vunpack.c.h.b16 %v4841
    %v5224 = vunpack.c.l.b16 %v4842
    %v5225 = vunpack.c.h.b16 %v4842
    %v5226 = vunpack.c.l.b16 %v4843
    %v5227 = vunpack.c.h.b16 %v4843
    %v5228 = vpack.c.b16 %v4974, %v4972
    %v5229 = vpack.c.b16 %v4975, %v4973
    %v5230 = vpack.c.b16 %v4978, %v4976
    %v5231 = vpack.c.b16 %v4979, %v4977
    %v5232 = vpack.c.b16 %v4982, %v4980
    %v5233 = vpack.c.b16 %v4983, %v4981
    %v5234 = vpack.c.b16 %v4986, %v4984
    %v5235 = vpack.c.b16 %v4987, %v4985
    %v5236 = vpack.c.b16 %v4990, %v4988
    %v5237 = vpack.c.b16 %v4991, %v4989
    %v5238 = vpack.c.b16 %v4994, %v4992
    %v5239 = vpack.c.b16 %v4995, %v4993
    %v5240 = vpack.c.b16 %v4998, %v4996
    %v5241 = vpack.c.b16 %v4999, %v4997
    %v5242 = vpack.c.b16 %v5002, %v5000
    %v5243 = vpack.c.b16 %v5003, %v5001
    %v5244 = vpack.c.b16 %v5006, %v5004
    %v5245 = vpack.c.b16 %v5007, %v5005
    %v5246 = vpack.c.b16 %v5010, %v5008
    %v5247 = vpack.c.b16 %v5011, %v5009
    %v5248 = vpack.c.b16 %v5014, %v5012
    %v5249 = vpack.c.b16 %v5015, %v5013
    %v5250 = vpack.c.b16 %v5018, %v5016
    %v5251 = vpack.c.b16 %v5019, %v5017
    %v5252 = vpack.c.b16 %v5022, %v5020
    %v5253 = vpack.c.b16 %v5023, %v5021
    %v5254 = vpack.c.b16 %v5026, %v5024
    %v5255 = vpack.c.b16 %v5027, %v5025
    %v5256 = vpack.c.b16 %v5030, %v5028
    %v5257 = vpack.c.b16 %v5031, %v5029
    %v5258 = vpack.c.b16 %v5034, %v5032
    %v5259 = vpack.c.b16 %v5035, %v5033
    %v5260 = vpack.c.b16 %v5038, %v5036
    %v5261 = vpack.c.b16 %v5039, %v5037
    %v5262 = vpack.c.b16 %v5042, %v5040
    %v5263 = vpack.c.b16 %v5043, %v5041
    %v5264 = vpack.c.b16 %v5046, %v5044
    %v5265 = vpack.c.b16 %v5047, %v5045
    %v5266 = vpack.c.b16 %v5050, %v5048
    %v5267 = vpack.c.b16 %v5051, %v5049
    %v5268 = vpack.c.b16 %v5054, %v5052
    %v5269 = vpack.c.b16 %v5055, %v5053
    %v5270 = vpack.c.b16 %v5058, %v5056
    %v5271 = vpack.c.b16 %v5059, %v5057
    %v5272 = vpack.c.b16 %v5062, %v5060
    %v5273 = vpack.c.b16 %v5063, %v5061
    %v5274 = vpack.c.b16 %v5066, %v5064
    %v5275 = vpack.c.b16 %v5067, %v5065
    %v5276 = vpack.c.b16 %v5070, %v5068
    %v5277 = vpack.c.b16 %v5071, %v5069
    %v5278 = vpack.c.b16 %v5074, %v5072
    %v5279 = vpack.c.b16 %v5075, %v5073
    %v5280 = vpack.c.b16 %v5078, %v5076
    %v5281 = vpack.c.b16 %v5079, %v5077
    %v5282 = vpack.c.b16 %v5082, %v5080
    %v5283 = vpack.c.b16 %v5083, %v5081
    %v5284 = vpack.c.b16 %v5086, %v5084
    %v5285 = vpack.c.b16 %v5087, %v5085
    %v5286 = vpack.c.b16 %v5090, %v5088
    %v5287 = vpack.c.b16 %v5091, %v5089
    %v5288 = vpack.c.b16 %v5094, %v5092
    %v5289 = vpack.c.b16 %v5095, %v5093
    %v5290 = vpack.c.b16 %v5098, %v5096
    %v5291 = vpack.c.b16 %v5099, %v5097
    %v5292 = vpack.c.b16 %v5102, %v5100
    %v5293 = vpack.c.b16 %v5103, %v5101
    %v5294 = vpack.c.b16 %v5106, %v5104
    %v5295 = vpack.c.b16 %v5107, %v5105
    %v5296 = vpack.c.b16 %v5110, %v5108
    %v5297 = vpack.c.b16 %v5111, %v5109
    %v5298 = vpack.c.b16 %v5114, %v5112
    %v5299 = vpack.c.b16 %v5115, %v5113
    %v5300 = vpack.c.b16 %v5118, %v5116
    %v5301 = vpack.c.b16 %v5119, %v5117
    %v5302 = vpack.c.b16 %v5122, %v5120
    %v5303 = vpack.c.b16 %v5123, %v5121
    %v5304 = vpack.c.b16 %v5126, %v5124
    %v5305 = vpack.c.b16 %v5127, %v5125
    %v5306 = vpack.c.b16 %v5130, %v5128
    %v5307 = vpack.c.b16 %v5131, %v5129
    %v5308 = vpack.c.b16 %v5134, %v5132
    %v5309 = vpack.c.b16 %v5135, %v5133
    %v5310 = vpack.c.b16 %v5138, %v5136
    %v5311 = vpack.c.b16 %v5139, %v5137
    %v5312 = vpack.c.b16 %v5142, %v5140
    %v5313 = vpack.c.b16 %v5143, %v5141
    %v5314 = vpack.c.b16 %v5146, %v5144
    %v5315 = vpack.c.b16 %v5147, %v5145
    %v5316 = vpack.c.b16 %v5150, %v5148
    %v5317 = vpack.c.b16 %v5151, %v5149
    %v5318 = vpack.c.b16 %v5154, %v5152
    %v5319 = vpack.c.b16 %v5155, %v5153
    %v5320 = vpack.c.b16 %v5158, %v5156
    %v5321 = vpack.c.b16 %v5159, %v5157
    %v5322 = vpack.c.b16 %v5162, %v5160
    %v5323 = vpack.c.b16 %v5163, %v5161
    %v5324 = vpack.c.b16 %v5166, %v5164
    %v5325 = vpack.c.b16 %v5167, %v5165
    %v5326 = vpack.c.b16 %v5170, %v5168
    %v5327 = vpack.c.b16 %v5171, %v5169
    %v5328 = vpack.c.b16 %v5174, %v5172
    %v5329 = vpack.c.b16 %v5175, %v5173
    %v5330 = vpack.c.b16 %v5178, %v5176
    %v5331 = vpack.c.b16 %v5179, %v5177
    %v5332 = vpack.c.b16 %v5182, %v5180
    %v5333 = vpack.c.b16 %v5183, %v5181
    %v5334 = vpack.c.b16 %v5186, %v5184
    %v5335 = vpack.c.b16 %v5187, %v5185
    %v5336 = vpack.c.b16 %v5190, %v5188
    %v5337 = vpack.c.b16 %v5191, %v5189
    %v5338 = vpack.c.b16 %v5194, %v5192
    %v5339 = vpack.c.b16 %v5195, %v5193
    %v5340 = vpack.c.b16 %v5198, %v5196
    %v5341 = vpack.c.b16 %v5199, %v5197
    %v5342 = vpack.c.b16 %v5202, %v5200
    %v5343 = vpack.c.b16 %v5203, %v5201
    %v5344 = vpack.c.b16 %v5206, %v5204
    %v5345 = vpack.c.b16 %v5207, %v5205
    %v5346 = vpack.c.b16 %v5210, %v5208
    %v5347 = vpack.c.b16 %v5211, %v5209
    %v5348 = vpack.c.b16 %v5214, %v5212
    %v5349 = vpack.c.b16 %v5215, %v5213
    %v5350 = vpack.c.b16 %v5218, %v5216
    %v5351 = vpack.c.b16 %v5219, %v5217
    %v5352 = vpack.c.b16 %v5222, %v5220
    %v5353 = vpack.c.b16 %v5223, %v5221
    %v5354 = vpack.c.b16 %v5226, %v5224
    %v5355 = vpack.c.b16 %v5227, %v5225
    %5484 = vmatprep.subr.bf16.mxu0 %v5229
    %5485 = vmatpush1.bf16.msra.mxu0 %v5228
    %5486 = vmatprep.subr.bf16.mxu0 %v5231
    %5487 = vmatpush1.bf16.msra.mxu0 %v5230
    %5488 = vmatprep.subr.bf16.mxu0 %v5233
    %5489 = vmatpush1.bf16.msra.mxu0 %v5232
    %5490 = vmatprep.subr.bf16.mxu0 %v5235
    %5491 = vmatpush1.bf16.msra.mxu0 %v5234
    %5492 = vmatprep.subr.bf16.mxu0 %v5237
    %5493 = vmatpush1.bf16.msra.mxu0 %v5236
    %5494 = vmatprep.subr.bf16.mxu0 %v5239
    %5495 = vmatpush1.bf16.msra.mxu0 %v5238
    %5496 = vmatprep.subr.bf16.mxu0 %v5241
    %5497 = vmatpush1.bf16.msra.mxu0 %v5240
    %5498 = vmatprep.subr.bf16.mxu0 %v5243
    %5499 = vmatpush1.bf16.msra.mxu0 %v5242
    %5500 = vmatprep.subr.bf16.mxu0 %v5245
    %5501 = vmatpush1.bf16.msra.mxu0 %v5244
    %5502 = vmatprep.subr.bf16.mxu0 %v5247
    %5503 = vmatpush1.bf16.msra.mxu0 %v5246
    %5504 = vmatprep.subr.bf16.mxu0 %v5249
    %5505 = vmatpush1.bf16.msra.mxu0 %v5248
    %5506 = vmatprep.subr.bf16.mxu0 %v5251
    %5507 = vmatpush1.bf16.msra.mxu0 %v5250
    %5508 = vmatprep.subr.bf16.mxu0 %v5253
    %5509 = vmatpush1.bf16.msra.mxu0 %v5252
    %5510 = vmatprep.subr.bf16.mxu0 %v5255
    %5511 = vmatpush1.bf16.msra.mxu0 %v5254
    %5512 = vmatprep.subr.bf16.mxu0 %v5257
    %5513 = vmatpush1.bf16.msra.mxu0 %v5256
    %5514 = vmatprep.subr.bf16.mxu0 %v5259
    %5515 = vmatpush1.bf16.msra.mxu0 %v5258
    %5516 = vmatprep.mubr.bf16.mxu0 %v1746
    %5517 = vmatmul.mubr.bf16.gmra.mrb[0].mxu0 %v1745
    %v5518 = vpop.f32.mrb[0].mxu0
    %v5519 = vadd.f32 0.0, %v5518
    %v5520 = vpop.f32.mrb[0].mxu0
    %v5521 = vadd.f32 0.0, %v5520
    %v5522 = vpop.f32.mrb[0].mxu0
    %v5523 = vadd.f32 0.0, %v5522
    %v5524 = vpop.f32.mrb[0].mxu0
    %v5525 = vadd.f32 0.0, %v5524
    %5526 = vmatprep.mubr.bf16.mxu0 %v1754
    %5527 = vmatmul.mubr.bf16.gmra.mrb[0].mxu0 %v1753
    %v5528 = vpop.f32.mrb[0].mxu0
    %v5529 = vadd.f32 0.0, %v5528
    %v5530 = vpop.f32.mrb[0].mxu0
    %v5531 = vadd.f32 0.0, %v5530
    %v5532 = vpop.f32.mrb[0].mxu0
    %v5533 = vadd.f32 0.0, %v5532
    %v5534 = vpop.f32.mrb[0].mxu0
    %v5535 = vadd.f32 0.0, %v5534
    %5536 = vdwg.mxu0
    %5537 = vmatprep.subr.bf16.mxu0 %v5261
    %5538 = vmatpush1.bf16.msra.mxu0 %v5260
    %5539 = vmatprep.subr.bf16.mxu0 %v5263
    %5540 = vmatpush1.bf16.msra.mxu0 %v5262
    %5541 = vmatprep.subr.bf16.mxu0 %v5265
    %5542 = vmatpush1.bf16.msra.mxu0 %v5264
    %5543 = vmatprep.subr.bf16.mxu0 %v5267
    %5544 = vmatpush1.bf16.msra.mxu0 %v5266
    %5545 = vmatprep.subr.bf16.mxu0 %v5269
    %5546 = vmatpush1.bf16.msra.mxu0 %v5268
    %5547 = vmatprep.subr.bf16.mxu0 %v5271
    %5548 = vmatpush1.bf16.msra.mxu0 %v5270
    %5549 = vmatprep.subr.bf16.mxu0 %v5273
    %5550 = vmatpush1.bf16.msra.mxu0 %v5272
    %5551 = vmatprep.subr.bf16.mxu0 %v5275
    %5552 = vmatpush1.bf16.msra.mxu0 %v5274
    %5553 = vmatprep.subr.bf16.mxu0 %v5277
    %5554 = vmatpush1.bf16.msra.mxu0 %v5276
    %5555 = vmatprep.subr.bf16.mxu0 %v5279
    %5556 = vmatpush1.bf16.msra.mxu0 %v5278
    %5557 = vmatprep.subr.bf16.mxu0 %v5281
    %5558 = vmatpush1.bf16.msra.mxu0 %v5280
    %5559 = vmatprep.subr.bf16.mxu0 %v5283
    %5560 = vmatpush1.bf16.msra.mxu0 %v5282
    %5561 = vmatprep.subr.bf16.mxu0 %v5285
    %5562 = vmatpush1.bf16.msra.mxu0 %v5284
    %5563 = vmatprep.subr.bf16.mxu0 %v5287
    %5564 = vmatpush1.bf16.msra.mxu0 %v5286
    %5565 = vmatprep.subr.bf16.mxu0 %v5289
    %5566 = vmatpush1.bf16.msra.mxu0 %v5288
    %5567 = vmatprep.subr.bf16.mxu0 %v5291
    %5568 = vmatpush1.bf16.msra.mxu0 %v5290
    %5569 = vmatprep.mubr.bf16.mxu0 %v1748
    %5570 = vmatmul.mubr.bf16.gmra.mrb[0].mxu0 %v1747
    %v5571 = vpop.f32.mrb[0].mxu0
    %v5572 = vadd.f32 %v5519, %v5571
    %v5573 = vpop.f32.mrb[0].mxu0
    %v5574 = vadd.f32 %v5521, %v5573
    %v5575 = vpop.f32.mrb[0].mxu0
    %v5576 = vadd.f32 %v5523, %v5575
    %v5577 = vpop.f32.mrb[0].mxu0
    %v5578 = vadd.f32 %v5525, %v5577
    %5579 = vmatprep.mubr.bf16.mxu0 %v1756
    %5580 = vmatmul.mubr.bf16.gmra.mrb[0].mxu0 %v1755
    %v5581 = vpop.f32.mrb[0].mxu0
    %v5582 = vadd.f32 %v5529, %v5581
    %v5583 = vpop.f32.mrb[0].mxu0
    %v5584 = vadd.f32 %v5531, %v5583
    %v5585 = vpop.f32.mrb[0].mxu0
    %v5586 = vadd.f32 %v5533, %v5585
    %v5587 = vpop.f32.mrb[0].mxu0
    %v5588 = vadd.f32 %v5535, %v5587
    %5589 = vdwg.mxu0
    %5590 = vmatprep.subr.bf16.mxu0 %v5293
    %5591 = vmatpush1.bf16.msra.mxu0 %v5292
    %5592 = vmatprep.subr.bf16.mxu0 %v5295
    %5593 = vmatpush1.bf16.msra.mxu0 %v5294
    %5594 = vmatprep.subr.bf16.mxu0 %v5297
    %5595 = vmatpush1.bf16.msra.mxu0 %v5296
    %5596 = vmatprep.subr.bf16.mxu0 %v5299
    %5597 = vmatpush1.bf16.msra.mxu0 %v5298
    %5598 = vmatprep.subr.bf16.mxu0 %v5301
    %5599 = vmatpush1.bf16.msra.mxu0 %v5300
    %5600 = vmatprep.subr.bf16.mxu0 %v5303
    %5601 = vmatpush1.bf16.msra.mxu0 %v5302
    %5602 = vmatprep.subr.bf16.mxu0 %v5305
    %5603 = vmatpush1.bf16.msra.mxu0 %v5304
    %5604 = vmatprep.subr.bf16.mxu0 %v5307
    %5605 = vmatpush1.bf16.msra.mxu0 %v5306
    %5606 = vmatprep.subr.bf16.mxu0 %v5309
    %5607 = vmatpush1.bf16.msra.mxu0 %v5308
    %5608 = vmatprep.subr.bf16.mxu0 %v5311
    %5609 = vmatpush1.bf16.msra.mxu0 %v5310
    %5610 = vmatprep.subr.bf16.mxu0 %v5313
    %5611 = vmatpush1.bf16.msra.mxu0 %v5312
    %5612 = vmatprep.subr.bf16.mxu0 %v5315
    %5613 = vmatpush1.bf16.msra.mxu0 %v5314
    %5614 = vmatprep.subr.bf16.mxu0 %v5317
    %5615 = vmatpush1.bf16.msra.mxu0 %v5316
    %5616 = vmatprep.subr.bf16.mxu0 %v5319
    %5617 = vmatpush1.bf16.msra.mxu0 %v5318
    %5618 = vmatprep.subr.bf16.mxu0 %v5321
    %5619 = vmatpush1.bf16.msra.mxu0 %v5320
    %5620 = vmatprep.subr.bf16.mxu0 %v5323
    %5621 = vmatpush1.bf16.msra.mxu0 %v5322
    %5622 = vmatprep.mubr.bf16.mxu0 %v1750
    %5623 = vmatmul.mubr.bf16.gmra.mrb[0].mxu0 %v1749
    %v5624 = vpop.f32.mrb[0].mxu0
    %v5625 = vadd.f32 %v5572, %v5624
    %v5626 = vpop.f32.mrb[0].mxu0
    %v5627 = vadd.f32 %v5574, %v5626
    %v5628 = vpop.f32.mrb[0].mxu0
    %v5629 = vadd.f32 %v5576, %v5628
    %v5630 = vpop.f32.mrb[0].mxu0
    %v5631 = vadd.f32 %v5578, %v5630
    %5632 = vmatprep.mubr.bf16.mxu0 %v1758
    %5633 = vmatmul.mubr.bf16.gmra.mrb[0].mxu0 %v1757
    %v5634 = vpop.f32.mrb[0].mxu0
    %v5635 = vadd.f32 %v5582, %v5634
    %v5636 = vpop.f32.mrb[0].mxu0
    %v5637 = vadd.f32 %v5584, %v5636
    %v5638 = vpop.f32.mrb[0].mxu0
    %v5639 = vadd.f32 %v5586, %v5638
    %v5640 = vpop.f32.mrb[0].mxu0
    %v5641 = vadd.f32 %v5588, %v5640
    %5642 = vdwg.mxu0
    %5643 = vmatprep.subr.bf16.mxu0 %v5325
    %5644 = vmatpush1.bf16.msra.mxu0 %v5324
    %5645 = vmatprep.subr.bf16.mxu0 %v5327
    %5646 = vmatpush1.bf16.msra.mxu0 %v5326
    %5647 = vmatprep.subr.bf16.mxu0 %v5329
    %5648 = vmatpush1.bf16.msra.mxu0 %v5328
    %5649 = vmatprep.subr.bf16.mxu0 %v5331
    %5650 = vmatpush1.bf16.msra.mxu0 %v5330
    %5651 = vmatprep.subr.bf16.mxu0 %v5333
    %5652 = vmatpush1.bf16.msra.mxu0 %v5332
    %5653 = vmatprep.subr.bf16.mxu0 %v5335
    %5654 = vmatpush1.bf16.msra.mxu0 %v5334
    %5655 = vmatprep.subr.bf16.mxu0 %v5337
    %5656 = vmatpush1.bf16.msra.mxu0 %v5336
    %5657 = vmatprep.subr.bf16.mxu0 %v5339
    %5658 = vmatpush1.bf16.msra.mxu0 %v5338
    %5659 = vmatprep.subr.bf16.mxu0 %v5341
    %5660 = vmatpush1.bf16.msra.mxu0 %v5340
    %5661 = vmatprep.subr.bf16.mxu0 %v5343
    %5662 = vmatpush1.bf16.msra.mxu0 %v5342
    %5663 = vmatprep.subr.bf16.mxu0 %v5345
    %5664 = vmatpush1.bf16.msra.mxu0 %v5344
    %5665 = vmatprep.subr.bf16.mxu0 %v5347
    %5666 = vmatpush1.bf16.msra.mxu0 %v5346
    %5667 = vmatprep.subr.bf16.mxu0 %v5349
    %5668 = vmatpush1.bf16.msra.mxu0 %v5348
    %5669 = vmatprep.subr.bf16.mxu0 %v5351
    %5670 = vmatpush1.bf16.msra.mxu0 %v5350
    %5671 = vmatprep.subr.bf16.mxu0 %v5353
    %5672 = vmatpush1.bf16.msra.mxu0 %v5352
    %5673 = vmatprep.subr.bf16.mxu0 %v5355
    %5674 = vmatpush1.bf16.msra.mxu0 %v5354
    %5675 = vmatprep.mubr.bf16.mxu0 %v1752
    %5676 = vmatmul.mubr.bf16.gmra.mrb[0].mxu0 %v1751
    %v5677 = vpop.f32.mrb[0].mxu0
    %v5678 = vadd.f32 %v5625, %v5677
    %v5679 = vpop.f32.mrb[0].mxu0
    %v5680 = vadd.f32 %v5627, %v5679
    %v5681 = vpop.f32.mrb[0].mxu0
    %v5682 = vadd.f32 %v5629, %v5681
    %v5683 = vpop.f32.mrb[0].mxu0
    %v5684 = vadd.f32 %v5631, %v5683
    %5685 = vmatprep.mubr.bf16.mxu0 %v1760
    %5686 = vmatmul.mubr.bf16.gmra.mrb[0].mxu0 %v1759
    %v5687 = vpop.f32.mrb[0].mxu0
    %v5688 = vadd.f32 %v5635, %v5687
    %v5689 = vpop.f32.mrb[0].mxu0
    %v5690 = vadd.f32 %v5637, %v5689
    %v5691 = vpop.f32.mrb[0].mxu0
    %v5692 = vadd.f32 %v5639, %v5691
    %v5693 = vpop.f32.mrb[0].mxu0
    %v5694 = vadd.f32 %v5641, %v5693
    %5695 = vdwg.mxu0
    %v5696 = vpack.c.bf16 %v5682, %v5678
    %v5697 = vpack.c.bf16 %v5684, %v5680
    %v5698 = vpack.c.bf16 %v5692, %v5688
    %v5699 = vpack.c.bf16 %v5694, %v5690
    %v5700 = vld [vmem:[%s6] sm:$0xf]
    %v5701 = vld [vmem:[%s6 + $0x4] sm:$0xf]
    %v5702 = vld [vmem:[%s6 + $0x8] sm:$0xf]
    %v5703 = vld [vmem:[%s6 + $0xc] sm:$0xf]
    %v5704 = vld [vmem:[%s6 + $0x10] sm:$0xf]
    %v5705 = vld [vmem:[%s6 + $0x14] sm:$0xf]
    %v5706 = vld [vmem:[%s6 + $0x18] sm:$0xf]
    %v5707 = vld [vmem:[%s6 + $0x1c] sm:$0xf]
    %s5708 = scalar_lea.vmem %s6, 32
    %v5709 = vld [vmem:[%s5708] sm:$0xf]
    %v5710 = vld [vmem:[%s5708 + $0x4] sm:$0xf]
    %v5711 = vld [vmem:[%s5708 + $0x8] sm:$0xf]
    %v5712 = vld [vmem:[%s5708 + $0xc] sm:$0xf]
    %v5713 = vld [vmem:[%s5708 + $0x10] sm:$0xf]
    %v5714 = vld [vmem:[%s5708 + $0x14] sm:$0xf]
    %v5715 = vld [vmem:[%s5708 + $0x18] sm:$0xf]
    %v5716 = vld [vmem:[%s5708 + $0x1c] sm:$0xf]
    %v5725 = vunpack.c.l.b16 %v5709
    %v5726 = vunpack.c.l.b16 %v5710
    %v5727 = vunpack.c.l.b16 %v5711
    %v5728 = vunpack.c.l.b16 %v5712
    %v5729 = vunpack.c.l.b16 %v5713
    %v5730 = vunpack.c.l.b16 %v5714
    %v5731 = vunpack.c.l.b16 %v5715
    %v5732 = vunpack.c.l.b16 %v5716
    %v5733 = vpack.c.b16 %v5726, %v5725
    %v5734 = vpack.c.b16 %v5728, %v5727
    %v5735 = vpack.c.b16 %v5730, %v5729
    %v5736 = vpack.c.b16 %v5732, %v5731
    %5741 = vrot.lane.b32.xlu0 %v2741, 124
    %v5742 = vpop.permute.xlu0 %5741
    %5743 = vrot.lane.b32.xlu0 %v2742, 124
    %v5744 = vpop.permute.xlu0 %5743
    %5745 = vrot.lane.b32.xlu0 %v2743, 124
    %v5746 = vpop.permute.xlu0 %5745
    %5747 = vrot.lane.b32.xlu0 %v2744, 124
    %v5748 = vpop.permute.xlu0 %5747
    %v5749 = vsel %vm305, %v5742, %v5744
    %v5750 = vsel %vm305, %v5746, %v5748
    %vm5755 = vcmask 261120
    %v5757 = vsel %vm5755, %v5733, 0
    %v5760 = vsel %vm5755, %v5734, 0
    %v5763 = vsel %vm5755, %v5735, 0
    %v5766 = vsel %vm5755, %v5736, 0
    %5768 = vmatprep.subr.bf16.mxu0 %v5744
    %5769 = vmatpush1.bf16.msra.mxu0 %v5749
    %5770 = vmatprep.subr.bf16.mxu0 %v5748
    %5771 = vmatpush1.bf16.msra.mxu0 %v5750
    %5772 = vmatprep.subr.bf16.mxu0 0
    %5773 = vmatpush1.bf16.msra.mxu0 0
    %5774 = vmatprep.subr.bf16.mxu0 0
    %5775 = vmatpush1.bf16.msra.mxu0 0
    %5776 = vmatprep.subr.bf16.mxu0 0
    %5777 = vmatpush1.bf16.msra.mxu0 0
    %5778 = vmatprep.subr.bf16.mxu0 0
    %5779 = vmatpush1.bf16.msra.mxu0 0
    %5780 = vmatprep.subr.bf16.mxu0 0
    %5781 = vmatpush1.bf16.msra.mxu0 0
    %5782 = vmatprep.subr.bf16.mxu0 0
    %5783 = vmatpush1.bf16.msra.mxu0 0
    %5784 = vmatprep.subr.bf16.mxu0 0
    %5785 = vmatpush1.bf16.msra.mxu0 0
    %5786 = vmatprep.subr.bf16.mxu0 0
    %5787 = vmatpush1.bf16.msra.mxu0 0
    %5788 = vmatprep.subr.bf16.mxu0 0
    %5789 = vmatpush1.bf16.msra.mxu0 0
    %5790 = vmatprep.subr.bf16.mxu0 0
    %5791 = vmatpush1.bf16.msra.mxu0 0
    %5792 = vmatprep.subr.bf16.mxu0 0
    %5793 = vmatpush1.bf16.msra.mxu0 0
    %5794 = vmatprep.subr.bf16.mxu0 0
    %5795 = vmatpush1.bf16.msra.mxu0 0
    %5796 = vmatprep.subr.bf16.mxu0 0
    %5797 = vmatpush1.bf16.msra.mxu0 0
    %5798 = vmatprep.subr.bf16.mxu0 0
    %5799 = vmatpush1.bf16.msra.mxu0 0
    %5800 = vmatprep.mubr.bf16.mxu0 0
    %5801 = vmatmul.mubr.bf16.gmra.mrb[0].mxu0 %v5757
    %v5802 = vpop.f32.mrb[0].mxu0
    %v5803 = vadd.f32 0.0, %v5802
    %v5804 = vpop.f32.mrb[0].mxu0
    %v5805 = vadd.f32 0.0, %v5804
    %v5806 = vpop.f32.mrb[0].mxu0
    %v5807 = vadd.f32 0.0, %v5806
    %v5808 = vpop.f32.mrb[0].mxu0
    %v5809 = vadd.f32 0.0, %v5808
    %5810 = vmatprep.mubr.bf16.mxu0 0
    %5811 = vmatmul.mubr.bf16.gmra.mrb[0].mxu0 %v5760
    %v5812 = vpop.f32.mrb[0].mxu0
    %v5813 = vadd.f32 0.0, %v5812
    %v5814 = vpop.f32.mrb[0].mxu0
    %v5815 = vadd.f32 0.0, %v5814
    %v5816 = vpop.f32.mrb[0].mxu0
    %v5817 = vadd.f32 0.0, %v5816
    %v5818 = vpop.f32.mrb[0].mxu0
    %v5819 = vadd.f32 0.0, %v5818
    %5820 = vmatprep.mubr.bf16.mxu0 0
    %5821 = vmatmul.mubr.bf16.gmra.mrb[0].mxu0 %v5763
    %v5822 = vpop.f32.mrb[0].mxu0
    %v5823 = vadd.f32 0.0, %v5822
    %v5824 = vpop.f32.mrb[0].mxu0
    %v5825 = vadd.f32 0.0, %v5824
    %v5826 = vpop.f32.mrb[0].mxu0
    %v5827 = vadd.f32 0.0, %v5826
    %v5828 = vpop.f32.mrb[0].mxu0
    %v5829 = vadd.f32 0.0, %v5828
    %5830 = vmatprep.mubr.bf16.mxu0 0
    %5831 = vmatmul.mubr.bf16.gmra.mrb[0].mxu0 %v5766
    %v5832 = vpop.f32.mrb[0].mxu0
    %v5833 = vadd.f32 0.0, %v5832
    %v5834 = vpop.f32.mrb[0].mxu0
    %v5835 = vadd.f32 0.0, %v5834
    %v5836 = vpop.f32.mrb[0].mxu0
    %v5837 = vadd.f32 0.0, %v5836
    %v5838 = vpop.f32.mrb[0].mxu0
    %v5839 = vadd.f32 0.0, %v5838
    %5840 = vdwg.mxu0
    %v5849 = vunpack.c.l.b16 %v5700
    %v5850 = vunpack.c.l.b16 %v5701
    %v5851 = vunpack.c.l.b16 %v5702
    %v5852 = vunpack.c.l.b16 %v5703
    %v5853 = vunpack.c.l.b16 %v5704
    %v5854 = vunpack.c.l.b16 %v5705
    %v5855 = vunpack.c.l.b16 %v5706
    %v5856 = vunpack.c.l.b16 %v5707
    %v5857 = vpack.c.b16 %v5850, %v5849
    %v5858 = vpack.c.b16 %v5852, %v5851
    %v5859 = vpack.c.b16 %v5854, %v5853
    %v5860 = vpack.c.b16 %v5856, %v5855
    %v5862 = vsel %vm5755, %v5857, 0
    %v5865 = vsel %vm5755, %v5858, 0
    %v5868 = vsel %vm5755, %v5859, 0
    %v5871 = vsel %vm5755, %v5860, 0
    %5873 = vmatprep.subr.bf16.mxu0 %v2742
    %5874 = vmatpush1.bf16.msra.mxu0 %v2741
    %5875 = vmatprep.subr.bf16.mxu0 %v2744
    %5876 = vmatpush1.bf16.msra.mxu0 %v2743
    %5877 = vmatprep.subr.bf16.mxu0 0
    %5878 = vmatpush1.bf16.msra.mxu0 0
    %5879 = vmatprep.subr.bf16.mxu0 0
    %5880 = vmatpush1.bf16.msra.mxu0 0
    %5881 = vmatprep.subr.bf16.mxu0 0
    %5882 = vmatpush1.bf16.msra.mxu0 0
    %5883 = vmatprep.subr.bf16.mxu0 0
    %5884 = vmatpush1.bf16.msra.mxu0 0
    %5885 = vmatprep.subr.bf16.mxu0 0
    %5886 = vmatpush1.bf16.msra.mxu0 0
    %5887 = vmatprep.subr.bf16.mxu0 0
    %5888 = vmatpush1.bf16.msra.mxu0 0
    %5889 = vmatprep.subr.bf16.mxu0 0
    %5890 = vmatpush1.bf16.msra.mxu0 0
    %5891 = vmatprep.subr.bf16.mxu0 0
    %5892 = vmatpush1.bf16.msra.mxu0 0
    %5893 = vmatprep.subr.bf16.mxu0 0
    %5894 = vmatpush1.bf16.msra.mxu0 0
    %5895 = vmatprep.subr.bf16.mxu0 0
    %5896 = vmatpush1.bf16.msra.mxu0 0
    %5897 = vmatprep.subr.bf16.mxu0 0
    %5898 = vmatpush1.bf16.msra.mxu0 0
    %5899 = vmatprep.subr.bf16.mxu0 0
    %5900 = vmatpush1.bf16.msra.mxu0 0
    %5901 = vmatprep.subr.bf16.mxu0 0
    %5902 = vmatpush1.bf16.msra.mxu0 0
    %5903 = vmatprep.subr.bf16.mxu0 0
    %5904 = vmatpush1.bf16.msra.mxu0 0
    %5905 = vmatprep.mubr.bf16.mxu0 0
    %5906 = vmatmul.mubr.bf16.gmra.mrb[0].mxu0 %v5862
    %v5907 = vpop.f32.mrb[0].mxu0
    %v5908 = vadd.f32 %v5803, %v5907
    %v5909 = vpop.f32.mrb[0].mxu0
    %v5910 = vadd.f32 %v5805, %v5909
    %v5911 = vpop.f32.mrb[0].mxu0
    %v5912 = vadd.f32 %v5807, %v5911
    %v5913 = vpop.f32.mrb[0].mxu0
    %v5914 = vadd.f32 %v5809, %v5913
    %5915 = vmatprep.mubr.bf16.mxu0 0
    %5916 = vmatmul.mubr.bf16.gmra.mrb[0].mxu0 %v5865
    %v5917 = vpop.f32.mrb[0].mxu0
    %v5918 = vadd.f32 %v5813, %v5917
    %v5919 = vpop.f32.mrb[0].mxu0
    %v5920 = vadd.f32 %v5815, %v5919
    %v5921 = vpop.f32.mrb[0].mxu0
    %v5922 = vadd.f32 %v5817, %v5921
    %v5923 = vpop.f32.mrb[0].mxu0
    %v5924 = vadd.f32 %v5819, %v5923
    %5925 = vmatprep.mubr.bf16.mxu0 0
    %5926 = vmatmul.mubr.bf16.gmra.mrb[0].mxu0 %v5868
    %v5927 = vpop.f32.mrb[0].mxu0
    %v5928 = vadd.f32 %v5823, %v5927
    %v5929 = vpop.f32.mrb[0].mxu0
    %v5930 = vadd.f32 %v5825, %v5929
    %v5931 = vpop.f32.mrb[0].mxu0
    %v5932 = vadd.f32 %v5827, %v5931
    %v5933 = vpop.f32.mrb[0].mxu0
    %v5934 = vadd.f32 %v5829, %v5933
    %5935 = vmatprep.mubr.bf16.mxu0 0
    %5936 = vmatmul.mubr.bf16.gmra.mrb[0].mxu0 %v5871
    %v5937 = vpop.f32.mrb[0].mxu0
    %v5938 = vadd.f32 %v5833, %v5937
    %v5939 = vpop.f32.mrb[0].mxu0
    %v5940 = vadd.f32 %v5835, %v5939
    %v5941 = vpop.f32.mrb[0].mxu0
    %v5942 = vadd.f32 %v5837, %v5941
    %v5943 = vpop.f32.mrb[0].mxu0
    %v5944 = vadd.f32 %v5839, %v5943
    %5945 = vdwg.mxu0
    %s5946 = scalar_lea.vmem %s6, 64
    %v5947 = vld [vmem:[%s5946] sm:$0xf]
    %v5948 = vld [vmem:[%s5946 + $0x4] sm:$0xf]
    %v5949 = vld [vmem:[%s5946 + $0x8] sm:$0xf]
    %v5950 = vld [vmem:[%s5946 + $0xc] sm:$0xf]
    %v5951 = vld [vmem:[%s5946 + $0x10] sm:$0xf]
    %v5952 = vld [vmem:[%s5946 + $0x14] sm:$0xf]
    %v5953 = vld [vmem:[%s5946 + $0x18] sm:$0xf]
    %v5954 = vld [vmem:[%s5946 + $0x1c] sm:$0xf]
    %v5963 = vunpack.c.l.b16 %v5947
    %v5964 = vunpack.c.l.b16 %v5948
    %v5965 = vunpack.c.l.b16 %v5949
    %v5966 = vunpack.c.l.b16 %v5950
    %v5967 = vunpack.c.l.b16 %v5951
    %v5968 = vunpack.c.l.b16 %v5952
    %v5969 = vunpack.c.l.b16 %v5953
    %v5970 = vunpack.c.l.b16 %v5954
    %v5971 = vpack.c.b16 %v5964, %v5963
    %v5972 = vpack.c.b16 %v5966, %v5965
    %v5973 = vpack.c.b16 %v5968, %v5967
    %v5974 = vpack.c.b16 %v5970, %v5969
    %5975 = vrot.lane.b32.xlu0 %v2741, 100
    %v5976 = vpop.permute.xlu0 %5975
    %5977 = vrot.lane.b32.xlu0 %v2742, 100
    %v5978 = vpop.permute.xlu0 %5977
    %5979 = vrot.lane.b32.xlu0 %v2743, 100
    %v5980 = vpop.permute.xlu0 %5979
    %5981 = vrot.lane.b32.xlu0 %v2744, 100
    %v5982 = vpop.permute.xlu0 %5981
    %vm5983 = vcmask 818176
    %v5984 = vsel %vm5983, %v5976, %v5978
    %v5985 = vsel %vm5983, %v5980, %v5982
    %v5991 = vsel %vm5755, %v5971, 0
    %v5994 = vsel %vm5755, %v5972, 0
    %v5997 = vsel %vm5755, %v5973, 0
    %v6000 = vsel %vm5755, %v5974, 0
    %6002 = vmatprep.subr.bf16.mxu0 %v5978
    %6003 = vmatpush1.bf16.msra.mxu0 %v5984
    %6004 = vmatprep.subr.bf16.mxu0 %v5982
    %6005 = vmatpush1.bf16.msra.mxu0 %v5985
    %6006 = vmatprep.subr.bf16.mxu0 0
    %6007 = vmatpush1.bf16.msra.mxu0 0
    %6008 = vmatprep.subr.bf16.mxu0 0
    %6009 = vmatpush1.bf16.msra.mxu0 0
    %6010 = vmatprep.subr.bf16.mxu0 0
    %6011 = vmatpush1.bf16.msra.mxu0 0
    %6012 = vmatprep.subr.bf16.mxu0 0
    %6013 = vmatpush1.bf16.msra.mxu0 0
    %6014 = vmatprep.subr.bf16.mxu0 0
    %6015 = vmatpush1.bf16.msra.mxu0 0
    %6016 = vmatprep.subr.bf16.mxu0 0
    %6017 = vmatpush1.bf16.msra.mxu0 0
    %6018 = vmatprep.subr.bf16.mxu0 0
    %6019 = vmatpush1.bf16.msra.mxu0 0
    %6020 = vmatprep.subr.bf16.mxu0 0
    %6021 = vmatpush1.bf16.msra.mxu0 0
    %6022 = vmatprep.subr.bf16.mxu0 0
    %6023 = vmatpush1.bf16.msra.mxu0 0
    %6024 = vmatprep.subr.bf16.mxu0 0
    %6025 = vmatpush1.bf16.msra.mxu0 0
    %6026 = vmatprep.subr.bf16.mxu0 0
    %6027 = vmatpush1.bf16.msra.mxu0 0
    %6028 = vmatprep.subr.bf16.mxu0 0
    %6029 = vmatpush1.bf16.msra.mxu0 0
    %6030 = vmatprep.subr.bf16.mxu0 0
    %6031 = vmatpush1.bf16.msra.mxu0 0
    %6032 = vmatprep.subr.bf16.mxu0 0
    %6033 = vmatpush1.bf16.msra.mxu0 0
    %6034 = vmatprep.mubr.bf16.mxu0 0
    %6035 = vmatmul.mubr.bf16.gmra.mrb[0].mxu0 %v5991
    %v6036 = vpop.f32.mrb[0].mxu0
    %v6037 = vadd.f32 0.0, %v6036
    %v6038 = vpop.f32.mrb[0].mxu0
    %v6039 = vadd.f32 0.0, %v6038
    %v6040 = vpop.f32.mrb[0].mxu0
    %v6041 = vadd.f32 0.0, %v6040
    %v6042 = vpop.f32.mrb[0].mxu0
    %v6043 = vadd.f32 0.0, %v6042
    %6044 = vmatprep.mubr.bf16.mxu0 0
    %6045 = vmatmul.mubr.bf16.gmra.mrb[0].mxu0 %v5994
    %v6046 = vpop.f32.mrb[0].mxu0
    %v6047 = vadd.f32 0.0, %v6046
    %v6048 = vpop.f32.mrb[0].mxu0
    %v6049 = vadd.f32 0.0, %v6048
    %v6050 = vpop.f32.mrb[0].mxu0
    %v6051 = vadd.f32 0.0, %v6050
    %v6052 = vpop.f32.mrb[0].mxu0
    %v6053 = vadd.f32 0.0, %v6052
    %6054 = vmatprep.mubr.bf16.mxu0 0
    %6055 = vmatmul.mubr.bf16.gmra.mrb[0].mxu0 %v5997
    %v6056 = vpop.f32.mrb[0].mxu0
    %v6057 = vadd.f32 0.0, %v6056
    %v6058 = vpop.f32.mrb[0].mxu0
    %v6059 = vadd.f32 0.0, %v6058
    %v6060 = vpop.f32.mrb[0].mxu0
    %v6061 = vadd.f32 0.0, %v6060
    %v6062 = vpop.f32.mrb[0].mxu0
    %v6063 = vadd.f32 0.0, %v6062
    %6064 = vmatprep.mubr.bf16.mxu0 0
    %6065 = vmatmul.mubr.bf16.gmra.mrb[0].mxu0 %v6000
    %v6066 = vpop.f32.mrb[0].mxu0
    %v6067 = vadd.f32 0.0, %v6066
    %v6068 = vpop.f32.mrb[0].mxu0
    %v6069 = vadd.f32 0.0, %v6068
    %v6070 = vpop.f32.mrb[0].mxu0
    %v6071 = vadd.f32 0.0, %v6070
    %v6072 = vpop.f32.mrb[0].mxu0
    %v6073 = vadd.f32 0.0, %v6072
    %6074 = vdwg.mxu0
    %v6075 = vadd.f32 %v5908, %v6037
    %v6076 = vadd.f32 %v5910, %v6039
    %v6077 = vadd.f32 %v5912, %v6041
    %v6078 = vadd.f32 %v5914, %v6043
    %v6079 = vadd.f32 %v5918, %v6047
    %v6080 = vadd.f32 %v5920, %v6049
    %v6081 = vadd.f32 %v5922, %v6051
    %v6082 = vadd.f32 %v5924, %v6053
    %v6083 = vadd.f32 %v5928, %v6057
    %v6084 = vadd.f32 %v5930, %v6059
    %v6085 = vadd.f32 %v5932, %v6061
    %v6086 = vadd.f32 %v5934, %v6063
    %v6087 = vadd.f32 %v5938, %v6067
    %v6088 = vadd.f32 %v5940, %v6069
    %v6089 = vadd.f32 %v5942, %v6071
    %v6090 = vadd.f32 %v5944, %v6073
    %s6091 = scalar_lea.vmem %s6, 96
    %v6092 = vld [vmem:[%s6091] sm:$0xf]
    %v6093 = vld [vmem:[%s6091 + $0x4] sm:$0xf]
    %v6094 = vld [vmem:[%s6091 + $0x8] sm:$0xf]
    %v6095 = vld [vmem:[%s6091 + $0xc] sm:$0xf]
    %v6096 = vld [vmem:[%s6091 + $0x10] sm:$0xf]
    %v6097 = vld [vmem:[%s6091 + $0x14] sm:$0xf]
    %v6098 = vld [vmem:[%s6091 + $0x18] sm:$0xf]
    %v6099 = vld [vmem:[%s6091 + $0x1c] sm:$0xf]
    %v6108 = vunpack.c.l.b16 %v6092
    %v6109 = vunpack.c.l.b16 %v6093
    %v6110 = vunpack.c.l.b16 %v6094
    %v6111 = vunpack.c.l.b16 %v6095
    %v6112 = vunpack.c.l.b16 %v6096
    %v6113 = vunpack.c.l.b16 %v6097
    %v6114 = vunpack.c.l.b16 %v6098
    %v6115 = vunpack.c.l.b16 %v6099
    %v6116 = vpack.c.b16 %v6109, %v6108
    %v6117 = vpack.c.b16 %v6111, %v6110
    %v6118 = vpack.c.b16 %v6113, %v6112
    %v6119 = vpack.c.b16 %v6115, %v6114
    %6120 = vrot.lane.b32.xlu0 %v2741, 96
    %v6121 = vpop.permute.xlu0 %6120
    %6122 = vrot.lane.b32.xlu0 %v2742, 96
    %v6123 = vpop.permute.xlu0 %6122
    %6124 = vrot.lane.b32.xlu0 %v2743, 96
    %v6125 = vpop.permute.xlu0 %6124
    %6126 = vrot.lane.b32.xlu0 %v2744, 96
    %v6127 = vpop.permute.xlu0 %6126
    %vm6128 = vcmask 785408
    %v6129 = vsel %vm6128, %v6121, %v6123
    %v6130 = vsel %vm6128, %v6125, %v6127
    %v6136 = vsel %vm5755, %v6116, 0
    %v6139 = vsel %vm5755, %v6117, 0
    %v6142 = vsel %vm5755, %v6118, 0
    %v6145 = vsel %vm5755, %v6119, 0
    %6147 = vmatprep.subr.bf16.mxu0 %v6123
    %6148 = vmatpush1.bf16.msra.mxu0 %v6129
    %6149 = vmatprep.subr.bf16.mxu0 %v6127
    %6150 = vmatpush1.bf16.msra.mxu0 %v6130
    %6151 = vmatprep.subr.bf16.mxu0 0
    %6152 = vmatpush1.bf16.msra.mxu0 0
    %6153 = vmatprep.subr.bf16.mxu0 0
    %6154 = vmatpush1.bf16.msra.mxu0 0
    %6155 = vmatprep.subr.bf16.mxu0 0
    %6156 = vmatpush1.bf16.msra.mxu0 0
    %6157 = vmatprep.subr.bf16.mxu0 0
    %6158 = vmatpush1.bf16.msra.mxu0 0
    %6159 = vmatprep.subr.bf16.mxu0 0
    %6160 = vmatpush1.bf16.msra.mxu0 0
    %6161 = vmatprep.subr.bf16.mxu0 0
    %6162 = vmatpush1.bf16.msra.mxu0 0
    %6163 = vmatprep.subr.bf16.mxu0 0
    %6164 = vmatpush1.bf16.msra.mxu0 0
    %6165 = vmatprep.subr.bf16.mxu0 0
    %6166 = vmatpush1.bf16.msra.mxu0 0
    %6167 = vmatprep.subr.bf16.mxu0 0
    %6168 = vmatpush1.bf16.msra.mxu0 0
    %6169 = vmatprep.subr.bf16.mxu0 0
    %6170 = vmatpush1.bf16.msra.mxu0 0
    %6171 = vmatprep.subr.bf16.mxu0 0
    %6172 = vmatpush1.bf16.msra.mxu0 0
    %6173 = vmatprep.subr.bf16.mxu0 0
    %6174 = vmatpush1.bf16.msra.mxu0 0
    %6175 = vmatprep.subr.bf16.mxu0 0
    %6176 = vmatpush1.bf16.msra.mxu0 0
    %6177 = vmatprep.subr.bf16.mxu0 0
    %6178 = vmatpush1.bf16.msra.mxu0 0
    %6179 = vmatprep.mubr.bf16.mxu0 0
    %6180 = vmatmul.mubr.bf16.gmra.mrb[0].mxu0 %v6136
    %v6181 = vpop.f32.mrb[0].mxu0
    %v6182 = vadd.f32 0.0, %v6181
    %v6183 = vpop.f32.mrb[0].mxu0
    %v6184 = vadd.f32 0.0, %v6183
    %v6185 = vpop.f32.mrb[0].mxu0
    %v6186 = vadd.f32 0.0, %v6185
    %v6187 = vpop.f32.mrb[0].mxu0
    %v6188 = vadd.f32 0.0, %v6187
    %6189 = vmatprep.mubr.bf16.mxu0 0
    %6190 = vmatmul.mubr.bf16.gmra.mrb[0].mxu0 %v6139
    %v6191 = vpop.f32.mrb[0].mxu0
    %v6192 = vadd.f32 0.0, %v6191
    %v6193 = vpop.f32.mrb[0].mxu0
    %v6194 = vadd.f32 0.0, %v6193
    %v6195 = vpop.f32.mrb[0].mxu0
    %v6196 = vadd.f32 0.0, %v6195
    %v6197 = vpop.f32.mrb[0].mxu0
    %v6198 = vadd.f32 0.0, %v6197
    %6199 = vmatprep.mubr.bf16.mxu0 0
    %6200 = vmatmul.mubr.bf16.gmra.mrb[0].mxu0 %v6142
    %v6201 = vpop.f32.mrb[0].mxu0
    %v6202 = vadd.f32 0.0, %v6201
    %v6203 = vpop.f32.mrb[0].mxu0
    %v6204 = vadd.f32 0.0, %v6203
    %v6205 = vpop.f32.mrb[0].mxu0
    %v6206 = vadd.f32 0.0, %v6205
    %v6207 = vpop.f32.mrb[0].mxu0
    %v6208 = vadd.f32 0.0, %v6207
    %6209 = vmatprep.mubr.bf16.mxu0 0
    %6210 = vmatmul.mubr.bf16.gmra.mrb[0].mxu0 %v6145
    %v6211 = vpop.f32.mrb[0].mxu0
    %v6212 = vadd.f32 0.0, %v6211
    %v6213 = vpop.f32.mrb[0].mxu0
    %v6214 = vadd.f32 0.0, %v6213
    %v6215 = vpop.f32.mrb[0].mxu0
    %v6216 = vadd.f32 0.0, %v6215
    %v6217 = vpop.f32.mrb[0].mxu0
    %v6218 = vadd.f32 0.0, %v6217
    %6219 = vdwg.mxu0
    %v6220 = vadd.f32 %v6075, %v6182
    %v6221 = vadd.f32 %v6076, %v6184
    %v6222 = vadd.f32 %v6077, %v6186
    %v6223 = vadd.f32 %v6078, %v6188
    %v6224 = vadd.f32 %v6079, %v6192
    %v6225 = vadd.f32 %v6080, %v6194
    %v6226 = vadd.f32 %v6081, %v6196
    %v6227 = vadd.f32 %v6082, %v6198
    %v6228 = vadd.f32 %v6083, %v6202
    %v6229 = vadd.f32 %v6084, %v6204
    %v6230 = vadd.f32 %v6085, %v6206
    %v6231 = vadd.f32 %v6086, %v6208
    %v6232 = vadd.f32 %v6087, %v6212
    %v6233 = vadd.f32 %v6088, %v6214
    %v6234 = vadd.f32 %v6089, %v6216
    %v6235 = vadd.f32 %v6090, %v6218
    %s6236 = scalar_lea.vmem %s6, 128
    %v6237 = vld [vmem:[%s6236] sm:$0xf]
    %v6238 = vld [vmem:[%s6236 + $0x4] sm:$0xf]
    %v6239 = vld [vmem:[%s6236 + $0x8] sm:$0xf]
    %v6240 = vld [vmem:[%s6236 + $0xc] sm:$0xf]
    %v6241 = vld [vmem:[%s6236 + $0x10] sm:$0xf]
    %v6242 = vld [vmem:[%s6236 + $0x14] sm:$0xf]
    %v6243 = vld [vmem:[%s6236 + $0x18] sm:$0xf]
    %v6244 = vld [vmem:[%s6236 + $0x1c] sm:$0xf]
    %v6253 = vunpack.c.l.b16 %v6237
    %v6254 = vunpack.c.l.b16 %v6238
    %v6255 = vunpack.c.l.b16 %v6239
    %v6256 = vunpack.c.l.b16 %v6240
    %v6257 = vunpack.c.l.b16 %v6241
    %v6258 = vunpack.c.l.b16 %v6242
    %v6259 = vunpack.c.l.b16 %v6243
    %v6260 = vunpack.c.l.b16 %v6244
    %v6261 = vpack.c.b16 %v6254, %v6253
    %v6262 = vpack.c.b16 %v6256, %v6255
    %v6263 = vpack.c.b16 %v6258, %v6257
    %v6264 = vpack.c.b16 %v6260, %v6259
    %v6266 = vsel %vm5755, %v6261, 0
    %v6269 = vsel %vm5755, %v6262, 0
    %v6272 = vsel %vm5755, %v6263, 0
    %v6275 = vsel %vm5755, %v6264, 0
    %6277 = vmatprep.subr.bf16.mxu0 %v3727
    %6278 = vmatpush1.bf16.msra.mxu0 %v3726
    %6279 = vmatprep.subr.bf16.mxu0 %v3729
    %6280 = vmatpush1.bf16.msra.mxu0 %v3728
    %6281 = vmatprep.subr.bf16.mxu0 0
    %6282 = vmatpush1.bf16.msra.mxu0 0
    %6283 = vmatprep.subr.bf16.mxu0 0
    %6284 = vmatpush1.bf16.msra.mxu0 0
    %6285 = vmatprep.subr.bf16.mxu0 0
    %6286 = vmatpush1.bf16.msra.mxu0 0
    %6287 = vmatprep.subr.bf16.mxu0 0
    %6288 = vmatpush1.bf16.msra.mxu0 0
    %6289 = vmatprep.subr.bf16.mxu0 0
    %6290 = vmatpush1.bf16.msra.mxu0 0
    %6291 = vmatprep.subr.bf16.mxu0 0
    %6292 = vmatpush1.bf16.msra.mxu0 0
    %6293 = vmatprep.subr.bf16.mxu0 0
    %6294 = vmatpush1.bf16.msra.mxu0 0
    %6295 = vmatprep.subr.bf16.mxu0 0
    %6296 = vmatpush1.bf16.msra.mxu0 0
    %6297 = vmatprep.subr.bf16.mxu0 0
    %6298 = vmatpush1.bf16.msra.mxu0 0
    %6299 = vmatprep.subr.bf16.mxu0 0
    %6300 = vmatpush1.bf16.msra.mxu0 0
    %6301 = vmatprep.subr.bf16.mxu0 0
    %6302 = vmatpush1.bf16.msra.mxu0 0
    %6303 = vmatprep.subr.bf16.mxu0 0
    %6304 = vmatpush1.bf16.msra.mxu0 0
    %6305 = vmatprep.subr.bf16.mxu0 0
    %6306 = vmatpush1.bf16.msra.mxu0 0
    %6307 = vmatprep.subr.bf16.mxu0 0
    %6308 = vmatpush1.bf16.msra.mxu0 0
    %6309 = vmatprep.mubr.bf16.mxu0 0
    %6310 = vmatmul.mubr.bf16.gmra.mrb[0].mxu0 %v6266
    %v6311 = vpop.f32.mrb[0].mxu0
    %v6312 = vadd.f32 0.0, %v6311
    %v6313 = vpop.f32.mrb[0].mxu0
    %v6314 = vadd.f32 0.0, %v6313
    %v6315 = vpop.f32.mrb[0].mxu0
    %v6316 = vadd.f32 0.0, %v6315
    %v6317 = vpop.f32.mrb[0].mxu0
    %v6318 = vadd.f32 0.0, %v6317
    %6319 = vmatprep.mubr.bf16.mxu0 0
    %6320 = vmatmul.mubr.bf16.gmra.mrb[0].mxu0 %v6269
    %v6321 = vpop.f32.mrb[0].mxu0
    %v6322 = vadd.f32 0.0, %v6321
    %v6323 = vpop.f32.mrb[0].mxu0
    %v6324 = vadd.f32 0.0, %v6323
    %v6325 = vpop.f32.mrb[0].mxu0
    %v6326 = vadd.f32 0.0, %v6325
    %v6327 = vpop.f32.mrb[0].mxu0
    %v6328 = vadd.f32 0.0, %v6327
    %6329 = vmatprep.mubr.bf16.mxu0 0
    %6330 = vmatmul.mubr.bf16.gmra.mrb[0].mxu0 %v6272
    %v6331 = vpop.f32.mrb[0].mxu0
    %v6332 = vadd.f32 0.0, %v6331
    %v6333 = vpop.f32.mrb[0].mxu0
    %v6334 = vadd.f32 0.0, %v6333
    %v6335 = vpop.f32.mrb[0].mxu0
    %v6336 = vadd.f32 0.0, %v6335
    %v6337 = vpop.f32.mrb[0].mxu0
    %v6338 = vadd.f32 0.0, %v6337
    %6339 = vmatprep.mubr.bf16.mxu0 0
    %6340 = vmatmul.mubr.bf16.gmra.mrb[0].mxu0 %v6275
    %v6341 = vpop.f32.mrb[0].mxu0
    %v6342 = vadd.f32 0.0, %v6341
    %v6343 = vpop.f32.mrb[0].mxu0
    %v6344 = vadd.f32 0.0, %v6343
    %v6345 = vpop.f32.mrb[0].mxu0
    %v6346 = vadd.f32 0.0, %v6345
    %v6347 = vpop.f32.mrb[0].mxu0
    %v6348 = vadd.f32 0.0, %v6347
    %6349 = vdwg.mxu0
    %v6350 = vadd.f32 %v6220, %v6312
    %v6351 = vadd.f32 %v6221, %v6314
    %v6352 = vadd.f32 %v6222, %v6316
    %v6353 = vadd.f32 %v6223, %v6318
    %v6354 = vadd.f32 %v6224, %v6322
    %v6355 = vadd.f32 %v6225, %v6324
    %v6356 = vadd.f32 %v6226, %v6326
    %v6357 = vadd.f32 %v6227, %v6328
    %v6358 = vadd.f32 %v6228, %v6332
    %v6359 = vadd.f32 %v6229, %v6334
    %v6360 = vadd.f32 %v6230, %v6336
    %v6361 = vadd.f32 %v6231, %v6338
    %v6362 = vadd.f32 %v6232, %v6342
    %v6363 = vadd.f32 %v6233, %v6344
    %v6364 = vadd.f32 %v6234, %v6346
    %v6365 = vadd.f32 %v6235, %v6348
    %s6366 = scalar_lea.vmem %s6, 160
    %v6367 = vld [vmem:[%s6366] sm:$0xf]
    %v6368 = vld [vmem:[%s6366 + $0x4] sm:$0xf]
    %v6369 = vld [vmem:[%s6366 + $0x8] sm:$0xf]
    %v6370 = vld [vmem:[%s6366 + $0xc] sm:$0xf]
    %v6371 = vld [vmem:[%s6366 + $0x10] sm:$0xf]
    %v6372 = vld [vmem:[%s6366 + $0x14] sm:$0xf]
    %v6373 = vld [vmem:[%s6366 + $0x18] sm:$0xf]
    %v6374 = vld [vmem:[%s6366 + $0x1c] sm:$0xf]
    %v6383 = vunpack.c.l.b16 %v6367
    %v6384 = vunpack.c.l.b16 %v6368
    %v6385 = vunpack.c.l.b16 %v6369
    %v6386 = vunpack.c.l.b16 %v6370
    %v6387 = vunpack.c.l.b16 %v6371
    %v6388 = vunpack.c.l.b16 %v6372
    %v6389 = vunpack.c.l.b16 %v6373
    %v6390 = vunpack.c.l.b16 %v6374
    %v6391 = vpack.c.b16 %v6384, %v6383
    %v6392 = vpack.c.b16 %v6386, %v6385
    %v6393 = vpack.c.b16 %v6388, %v6387
    %v6394 = vpack.c.b16 %v6390, %v6389
    %6399 = vrot.lane.b32.xlu0 %v3726, 124
    %v6400 = vpop.permute.xlu0 %6399
    %6401 = vrot.lane.b32.xlu0 %v3727, 124
    %v6402 = vpop.permute.xlu0 %6401
    %6403 = vrot.lane.b32.xlu0 %v3728, 124
    %v6404 = vpop.permute.xlu0 %6403
    %6405 = vrot.lane.b32.xlu0 %v3729, 124
    %v6406 = vpop.permute.xlu0 %6405
    %v6407 = vsel %vm305, %v6400, %v6402
    %v6408 = vsel %vm305, %v6404, %v6406
    %v6414 = vsel %vm5755, %v6391, 0
    %v6417 = vsel %vm5755, %v6392, 0
    %v6420 = vsel %vm5755, %v6393, 0
    %v6423 = vsel %vm5755, %v6394, 0
    %6425 = vmatprep.subr.bf16.mxu0 %v6402
    %6426 = vmatpush1.bf16.msra.mxu0 %v6407
    %6427 = vmatprep.subr.bf16.mxu0 %v6406
    %6428 = vmatpush1.bf16.msra.mxu0 %v6408
    %6429 = vmatprep.subr.bf16.mxu0 0
    %6430 = vmatpush1.bf16.msra.mxu0 0
    %6431 = vmatprep.subr.bf16.mxu0 0
    %6432 = vmatpush1.bf16.msra.mxu0 0
    %6433 = vmatprep.subr.bf16.mxu0 0
    %6434 = vmatpush1.bf16.msra.mxu0 0
    %6435 = vmatprep.subr.bf16.mxu0 0
    %6436 = vmatpush1.bf16.msra.mxu0 0
    %6437 = vmatprep.subr.bf16.mxu0 0
    %6438 = vmatpush1.bf16.msra.mxu0 0
    %6439 = vmatprep.subr.bf16.mxu0 0
    %6440 = vmatpush1.bf16.msra.mxu0 0
    %6441 = vmatprep.subr.bf16.mxu0 0
    %6442 = vmatpush1.bf16.msra.mxu0 0
    %6443 = vmatprep.subr.bf16.mxu0 0
    %6444 = vmatpush1.bf16.msra.mxu0 0
    %6445 = vmatprep.subr.bf16.mxu0 0
    %6446 = vmatpush1.bf16.msra.mxu0 0
    %6447 = vmatprep.subr.bf16.mxu0 0
    %6448 = vmatpush1.bf16.msra.mxu0 0
    %6449 = vmatprep.subr.bf16.mxu0 0
    %6450 = vmatpush1.bf16.msra.mxu0 0
    %6451 = vmatprep.subr.bf16.mxu0 0
    %6452 = vmatpush1.bf16.msra.mxu0 0
    %6453 = vmatprep.subr.bf16.mxu0 0
    %6454 = vmatpush1.bf16.msra.mxu0 0
    %6455 = vmatprep.subr.bf16.mxu0 0
    %6456 = vmatpush1.bf16.msra.mxu0 0
    %6457 = vmatprep.mubr.bf16.mxu0 0
    %6458 = vmatmul.mubr.bf16.gmra.mrb[0].mxu0 %v6414
    %v6459 = vpop.f32.mrb[0].mxu0
    %v6460 = vadd.f32 0.0, %v6459
    %v6461 = vpop.f32.mrb[0].mxu0
    %v6462 = vadd.f32 0.0, %v6461
    %v6463 = vpop.f32.mrb[0].mxu0
    %v6464 = vadd.f32 0.0, %v6463
    %v6465 = vpop.f32.mrb[0].mxu0
    %v6466 = vadd.f32 0.0, %v6465
    %6467 = vmatprep.mubr.bf16.mxu0 0
    %6468 = vmatmul.mubr.bf16.gmra.mrb[0].mxu0 %v6417
    %v6469 = vpop.f32.mrb[0].mxu0
    %v6470 = vadd.f32 0.0, %v6469
    %v6471 = vpop.f32.mrb[0].mxu0
    %v6472 = vadd.f32 0.0, %v6471
    %v6473 = vpop.f32.mrb[0].mxu0
    %v6474 = vadd.f32 0.0, %v6473
    %v6475 = vpop.f32.mrb[0].mxu0
    %v6476 = vadd.f32 0.0, %v6475
    %6477 = vmatprep.mubr.bf16.mxu0 0
    %6478 = vmatmul.mubr.bf16.gmra.mrb[0].mxu0 %v6420
    %v6479 = vpop.f32.mrb[0].mxu0
    %v6480 = vadd.f32 0.0, %v6479
    %v6481 = vpop.f32.mrb[0].mxu0
    %v6482 = vadd.f32 0.0, %v6481
    %v6483 = vpop.f32.mrb[0].mxu0
    %v6484 = vadd.f32 0.0, %v6483
    %v6485 = vpop.f32.mrb[0].mxu0
    %v6486 = vadd.f32 0.0, %v6485
    %6487 = vmatprep.mubr.bf16.mxu0 0
    %6488 = vmatmul.mubr.bf16.gmra.mrb[0].mxu0 %v6423
    %v6489 = vpop.f32.mrb[0].mxu0
    %v6490 = vadd.f32 0.0, %v6489
    %v6491 = vpop.f32.mrb[0].mxu0
    %v6492 = vadd.f32 0.0, %v6491
    %v6493 = vpop.f32.mrb[0].mxu0
    %v6494 = vadd.f32 0.0, %v6493
    %v6495 = vpop.f32.mrb[0].mxu0
    %v6496 = vadd.f32 0.0, %v6495
    %6497 = vdwg.mxu0
    %v6498 = vadd.f32 %v6350, %v6460
    %v6499 = vadd.f32 %v6351, %v6462
    %v6500 = vadd.f32 %v6352, %v6464
    %v6501 = vadd.f32 %v6353, %v6466
    %v6502 = vadd.f32 %v6354, %v6470
    %v6503 = vadd.f32 %v6355, %v6472
    %v6504 = vadd.f32 %v6356, %v6474
    %v6505 = vadd.f32 %v6357, %v6476
    %v6506 = vadd.f32 %v6358, %v6480
    %v6507 = vadd.f32 %v6359, %v6482
    %v6508 = vadd.f32 %v6360, %v6484
    %v6509 = vadd.f32 %v6361, %v6486
    %v6510 = vadd.f32 %v6362, %v6490
    %v6511 = vadd.f32 %v6363, %v6492
    %v6512 = vadd.f32 %v6364, %v6494
    %v6513 = vadd.f32 %v6365, %v6496
    %s6514 = scalar_lea.vmem %s6, 192
    %v6515 = vld [vmem:[%s6514] sm:$0xf]
    %v6516 = vld [vmem:[%s6514 + $0x4] sm:$0xf]
    %v6517 = vld [vmem:[%s6514 + $0x8] sm:$0xf]
    %v6518 = vld [vmem:[%s6514 + $0xc] sm:$0xf]
    %v6519 = vld [vmem:[%s6514 + $0x10] sm:$0xf]
    %v6520 = vld [vmem:[%s6514 + $0x14] sm:$0xf]
    %v6521 = vld [vmem:[%s6514 + $0x18] sm:$0xf]
    %v6522 = vld [vmem:[%s6514 + $0x1c] sm:$0xf]
    %v6531 = vunpack.c.l.b16 %v6515
    %v6532 = vunpack.c.l.b16 %v6516
    %v6533 = vunpack.c.l.b16 %v6517
    %v6534 = vunpack.c.l.b16 %v6518
    %v6535 = vunpack.c.l.b16 %v6519
    %v6536 = vunpack.c.l.b16 %v6520
    %v6537 = vunpack.c.l.b16 %v6521
    %v6538 = vunpack.c.l.b16 %v6522
    %v6539 = vpack.c.b16 %v6532, %v6531
    %v6540 = vpack.c.b16 %v6534, %v6533
    %v6541 = vpack.c.b16 %v6536, %v6535
    %v6542 = vpack.c.b16 %v6538, %v6537
    %6543 = vrot.lane.b32.xlu0 %v3726, 100
    %v6544 = vpop.permute.xlu0 %6543
    %6545 = vrot.lane.b32.xlu0 %v3727, 100
    %v6546 = vpop.permute.xlu0 %6545
    %6547 = vrot.lane.b32.xlu0 %v3728, 100
    %v6548 = vpop.permute.xlu0 %6547
    %6549 = vrot.lane.b32.xlu0 %v3729, 100
    %v6550 = vpop.permute.xlu0 %6549
    %v6551 = vsel %vm5983, %v6544, %v6546
    %v6552 = vsel %vm5983, %v6548, %v6550
    %v6558 = vsel %vm5755, %v6539, 0
    %v6561 = vsel %vm5755, %v6540, 0
    %v6564 = vsel %vm5755, %v6541, 0
    %v6567 = vsel %vm5755, %v6542, 0
    %6569 = vmatprep.subr.bf16.mxu0 %v6546
    %6570 = vmatpush1.bf16.msra.mxu0 %v6551
    %6571 = vmatprep.subr.bf16.mxu0 %v6550
    %6572 = vmatpush1.bf16.msra.mxu0 %v6552
    %6573 = vmatprep.subr.bf16.mxu0 0
    %6574 = vmatpush1.bf16.msra.mxu0 0
    %6575 = vmatprep.subr.bf16.mxu0 0
    %6576 = vmatpush1.bf16.msra.mxu0 0
    %6577 = vmatprep.subr.bf16.mxu0 0
    %6578 = vmatpush1.bf16.msra.mxu0 0
    %6579 = vmatprep.subr.bf16.mxu0 0
    %6580 = vmatpush1.bf16.msra.mxu0 0
    %6581 = vmatprep.subr.bf16.mxu0 0
    %6582 = vmatpush1.bf16.msra.mxu0 0
    %6583 = vmatprep.subr.bf16.mxu0 0
    %6584 = vmatpush1.bf16.msra.mxu0 0
    %6585 = vmatprep.subr.bf16.mxu0 0
    %6586 = vmatpush1.bf16.msra.mxu0 0
    %6587 = vmatprep.subr.bf16.mxu0 0
    %6588 = vmatpush1.bf16.msra.mxu0 0
    %6589 = vmatprep.subr.bf16.mxu0 0
    %6590 = vmatpush1.bf16.msra.mxu0 0
    %6591 = vmatprep.subr.bf16.mxu0 0
    %6592 = vmatpush1.bf16.msra.mxu0 0
    %6593 = vmatprep.subr.bf16.mxu0 0
    %6594 = vmatpush1.bf16.msra.mxu0 0
    %6595 = vmatprep.subr.bf16.mxu0 0
    %6596 = vmatpush1.bf16.msra.mxu0 0
    %6597 = vmatprep.subr.bf16.mxu0 0
    %6598 = vmatpush1.bf16.msra.mxu0 0
    %6599 = vmatprep.subr.bf16.mxu0 0
    %6600 = vmatpush1.bf16.msra.mxu0 0
    %6601 = vmatprep.mubr.bf16.mxu0 0
    %6602 = vmatmul.mubr.bf16.gmra.mrb[0].mxu0 %v6558
    %v6603 = vpop.f32.mrb[0].mxu0
    %v6604 = vadd.f32 0.0, %v6603
    %v6605 = vpop.f32.mrb[0].mxu0
    %v6606 = vadd.f32 0.0, %v6605
    %v6607 = vpop.f32.mrb[0].mxu0
    %v6608 = vadd.f32 0.0, %v6607
    %v6609 = vpop.f32.mrb[0].mxu0
    %v6610 = vadd.f32 0.0, %v6609
    %6611 = vmatprep.mubr.bf16.mxu0 0
    %6612 = vmatmul.mubr.bf16.gmra.mrb[0].mxu0 %v6561
    %v6613 = vpop.f32.mrb[0].mxu0
    %v6614 = vadd.f32 0.0, %v6613
    %v6615 = vpop.f32.mrb[0].mxu0
    %v6616 = vadd.f32 0.0, %v6615
    %v6617 = vpop.f32.mrb[0].mxu0
    %v6618 = vadd.f32 0.0, %v6617
    %v6619 = vpop.f32.mrb[0].mxu0
    %v6620 = vadd.f32 0.0, %v6619
    %6621 = vmatprep.mubr.bf16.mxu0 0
    %6622 = vmatmul.mubr.bf16.gmra.mrb[0].mxu0 %v6564
    %v6623 = vpop.f32.mrb[0].mxu0
    %v6624 = vadd.f32 0.0, %v6623
    %v6625 = vpop.f32.mrb[0].mxu0
    %v6626 = vadd.f32 0.0, %v6625
    %v6627 = vpop.f32.mrb[0].mxu0
    %v6628 = vadd.f32 0.0, %v6627
    %v6629 = vpop.f32.mrb[0].mxu0
    %v6630 = vadd.f32 0.0, %v6629
    %6631 = vmatprep.mubr.bf16.mxu0 0
    %6632 = vmatmul.mubr.bf16.gmra.mrb[0].mxu0 %v6567
    %v6633 = vpop.f32.mrb[0].mxu0
    %v6634 = vadd.f32 0.0, %v6633
    %v6635 = vpop.f32.mrb[0].mxu0
    %v6636 = vadd.f32 0.0, %v6635
    %v6637 = vpop.f32.mrb[0].mxu0
    %v6638 = vadd.f32 0.0, %v6637
    %v6639 = vpop.f32.mrb[0].mxu0
    %v6640 = vadd.f32 0.0, %v6639
    %6641 = vdwg.mxu0
    %v6642 = vadd.f32 %v6498, %v6604
    %v6643 = vadd.f32 %v6499, %v6606
    %v6644 = vadd.f32 %v6500, %v6608
    %v6645 = vadd.f32 %v6501, %v6610
    %v6646 = vadd.f32 %v6502, %v6614
    %v6647 = vadd.f32 %v6503, %v6616
    %v6648 = vadd.f32 %v6504, %v6618
    %v6649 = vadd.f32 %v6505, %v6620
    %v6650 = vadd.f32 %v6506, %v6624
    %v6651 = vadd.f32 %v6507, %v6626
    %v6652 = vadd.f32 %v6508, %v6628
    %v6653 = vadd.f32 %v6509, %v6630
    %v6654 = vadd.f32 %v6510, %v6634
    %v6655 = vadd.f32 %v6511, %v6636
    %v6656 = vadd.f32 %v6512, %v6638
    %v6657 = vadd.f32 %v6513, %v6640
    %s6658 = scalar_lea.vmem %s6, 224
    %v6659 = vld [vmem:[%s6658] sm:$0xf]
    %v6660 = vld [vmem:[%s6658 + $0x4] sm:$0xf]
    %v6661 = vld [vmem:[%s6658 + $0x8] sm:$0xf]
    %v6662 = vld [vmem:[%s6658 + $0xc] sm:$0xf]
    %v6663 = vld [vmem:[%s6658 + $0x10] sm:$0xf]
    %v6664 = vld [vmem:[%s6658 + $0x14] sm:$0xf]
    %v6665 = vld [vmem:[%s6658 + $0x18] sm:$0xf]
    %v6666 = vld [vmem:[%s6658 + $0x1c] sm:$0xf]
    %v6675 = vunpack.c.l.b16 %v6659
    %v6676 = vunpack.c.l.b16 %v6660
    %v6677 = vunpack.c.l.b16 %v6661
    %v6678 = vunpack.c.l.b16 %v6662
    %v6679 = vunpack.c.l.b16 %v6663
    %v6680 = vunpack.c.l.b16 %v6664
    %v6681 = vunpack.c.l.b16 %v6665
    %v6682 = vunpack.c.l.b16 %v6666
    %v6683 = vpack.c.b16 %v6676, %v6675
    %v6684 = vpack.c.b16 %v6678, %v6677
    %v6685 = vpack.c.b16 %v6680, %v6679
    %v6686 = vpack.c.b16 %v6682, %v6681
    %6687 = vrot.lane.b32.xlu0 %v3726, 96
    %v6688 = vpop.permute.xlu0 %6687
    %6689 = vrot.lane.b32.xlu0 %v3727, 96
    %v6690 = vpop.permute.xlu0 %6689
    %6691 = vrot.lane.b32.xlu0 %v3728, 96
    %v6692 = vpop.permute.xlu0 %6691
    %6693 = vrot.lane.b32.xlu0 %v3729, 96
    %v6694 = vpop.permute.xlu0 %6693
    %v6695 = vsel %vm6128, %v6688, %v6690
    %v6696 = vsel %vm6128, %v6692, %v6694
    %v6702 = vsel %vm5755, %v6683, 0
    %v6705 = vsel %vm5755, %v6684, 0
    %v6708 = vsel %vm5755, %v6685, 0
    %v6711 = vsel %vm5755, %v6686, 0
    %6713 = vmatprep.subr.bf16.mxu0 %v6690
    %6714 = vmatpush1.bf16.msra.mxu0 %v6695
    %6715 = vmatprep.subr.bf16.mxu0 %v6694
    %6716 = vmatpush1.bf16.msra.mxu0 %v6696
    %6717 = vmatprep.subr.bf16.mxu0 0
    %6718 = vmatpush1.bf16.msra.mxu0 0
    %6719 = vmatprep.subr.bf16.mxu0 0
    %6720 = vmatpush1.bf16.msra.mxu0 0
    %6721 = vmatprep.subr.bf16.mxu0 0
    %6722 = vmatpush1.bf16.msra.mxu0 0
    %6723 = vmatprep.subr.bf16.mxu0 0
    %6724 = vmatpush1.bf16.msra.mxu0 0
    %6725 = vmatprep.subr.bf16.mxu0 0
    %6726 = vmatpush1.bf16.msra.mxu0 0
    %6727 = vmatprep.subr.bf16.mxu0 0
    %6728 = vmatpush1.bf16.msra.mxu0 0
    %6729 = vmatprep.subr.bf16.mxu0 0
    %6730 = vmatpush1.bf16.msra.mxu0 0
    %6731 = vmatprep.subr.bf16.mxu0 0
    %6732 = vmatpush1.bf16.msra.mxu0 0
    %6733 = vmatprep.subr.bf16.mxu0 0
    %6734 = vmatpush1.bf16.msra.mxu0 0
    %6735 = vmatprep.subr.bf16.mxu0 0
    %6736 = vmatpush1.bf16.msra.mxu0 0
    %6737 = vmatprep.subr.bf16.mxu0 0
    %6738 = vmatpush1.bf16.msra.mxu0 0
    %6739 = vmatprep.subr.bf16.mxu0 0
    %6740 = vmatpush1.bf16.msra.mxu0 0
    %6741 = vmatprep.subr.bf16.mxu0 0
    %6742 = vmatpush1.bf16.msra.mxu0 0
    %6743 = vmatprep.subr.bf16.mxu0 0
    %6744 = vmatpush1.bf16.msra.mxu0 0
    %6745 = vmatprep.mubr.bf16.mxu0 0
    %6746 = vmatmul.mubr.bf16.gmra.mrb[0].mxu0 %v6702
    %v6747 = vpop.f32.mrb[0].mxu0
    %v6748 = vadd.f32 0.0, %v6747
    %v6749 = vpop.f32.mrb[0].mxu0
    %v6750 = vadd.f32 0.0, %v6749
    %v6751 = vpop.f32.mrb[0].mxu0
    %v6752 = vadd.f32 0.0, %v6751
    %v6753 = vpop.f32.mrb[0].mxu0
    %v6754 = vadd.f32 0.0, %v6753
    %6755 = vmatprep.mubr.bf16.mxu0 0
    %6756 = vmatmul.mubr.bf16.gmra.mrb[0].mxu0 %v6705
    %v6757 = vpop.f32.mrb[0].mxu0
    %v6758 = vadd.f32 0.0, %v6757
    %v6759 = vpop.f32.mrb[0].mxu0
    %v6760 = vadd.f32 0.0, %v6759
    %v6761 = vpop.f32.mrb[0].mxu0
    %v6762 = vadd.f32 0.0, %v6761
    %v6763 = vpop.f32.mrb[0].mxu0
    %v6764 = vadd.f32 0.0, %v6763
    %6765 = vmatprep.mubr.bf16.mxu0 0
    %6766 = vmatmul.mubr.bf16.gmra.mrb[0].mxu0 %v6708
    %v6767 = vpop.f32.mrb[0].mxu0
    %v6768 = vadd.f32 0.0, %v6767
    %v6769 = vpop.f32.mrb[0].mxu0
    %v6770 = vadd.f32 0.0, %v6769
    %v6771 = vpop.f32.mrb[0].mxu0
    %v6772 = vadd.f32 0.0, %v6771
    %v6773 = vpop.f32.mrb[0].mxu0
    %v6774 = vadd.f32 0.0, %v6773
    %6775 = vmatprep.mubr.bf16.mxu0 0
    %6776 = vmatmul.mubr.bf16.gmra.mrb[0].mxu0 %v6711
    %v6777 = vpop.f32.mrb[0].mxu0
    %v6778 = vadd.f32 0.0, %v6777
    %v6779 = vpop.f32.mrb[0].mxu0
    %v6780 = vadd.f32 0.0, %v6779
    %v6781 = vpop.f32.mrb[0].mxu0
    %v6782 = vadd.f32 0.0, %v6781
    %v6783 = vpop.f32.mrb[0].mxu0
    %v6784 = vadd.f32 0.0, %v6783
    %6785 = vdwg.mxu0
    %v6786 = vadd.f32 %v6642, %v6748
    %v6787 = vadd.f32 %v6643, %v6750
    %v6788 = vadd.f32 %v6644, %v6752
    %v6789 = vadd.f32 %v6645, %v6754
    %v6790 = vadd.f32 %v6646, %v6758
    %v6791 = vadd.f32 %v6647, %v6760
    %v6792 = vadd.f32 %v6648, %v6762
    %v6793 = vadd.f32 %v6649, %v6764
    %v6794 = vadd.f32 %v6650, %v6768
    %v6795 = vadd.f32 %v6651, %v6770
    %v6796 = vadd.f32 %v6652, %v6772
    %v6797 = vadd.f32 %v6653, %v6774
    %v6798 = vadd.f32 %v6654, %v6778
    %v6799 = vadd.f32 %v6655, %v6780
    %v6800 = vadd.f32 %v6656, %v6782
    %v6801 = vadd.f32 %v6657, %v6784
    %s6802 = scalar_lea.vmem %s6, 256
    %v6803 = vld [vmem:[%s6802] sm:$0xf]
    %v6804 = vld [vmem:[%s6802 + $0x4] sm:$0xf]
    %v6805 = vld [vmem:[%s6802 + $0x8] sm:$0xf]
    %v6806 = vld [vmem:[%s6802 + $0xc] sm:$0xf]
    %v6807 = vld [vmem:[%s6802 + $0x10] sm:$0xf]
    %v6808 = vld [vmem:[%s6802 + $0x14] sm:$0xf]
    %v6809 = vld [vmem:[%s6802 + $0x18] sm:$0xf]
    %v6810 = vld [vmem:[%s6802 + $0x1c] sm:$0xf]
    %v6819 = vunpack.c.l.b16 %v6803
    %v6820 = vunpack.c.l.b16 %v6804
    %v6821 = vunpack.c.l.b16 %v6805
    %v6822 = vunpack.c.l.b16 %v6806
    %v6823 = vunpack.c.l.b16 %v6807
    %v6824 = vunpack.c.l.b16 %v6808
    %v6825 = vunpack.c.l.b16 %v6809
    %v6826 = vunpack.c.l.b16 %v6810
    %v6827 = vpack.c.b16 %v6820, %v6819
    %v6828 = vpack.c.b16 %v6822, %v6821
    %v6829 = vpack.c.b16 %v6824, %v6823
    %v6830 = vpack.c.b16 %v6826, %v6825
    %v6832 = vsel %vm5755, %v6827, 0
    %v6835 = vsel %vm5755, %v6828, 0
    %v6838 = vsel %vm5755, %v6829, 0
    %v6841 = vsel %vm5755, %v6830, 0
    %6843 = vmatprep.subr.bf16.mxu0 %v4712
    %6844 = vmatpush1.bf16.msra.mxu0 %v4711
    %6845 = vmatprep.subr.bf16.mxu0 %v4714
    %6846 = vmatpush1.bf16.msra.mxu0 %v4713
    %6847 = vmatprep.subr.bf16.mxu0 0
    %6848 = vmatpush1.bf16.msra.mxu0 0
    %6849 = vmatprep.subr.bf16.mxu0 0
    %6850 = vmatpush1.bf16.msra.mxu0 0
    %6851 = vmatprep.subr.bf16.mxu0 0
    %6852 = vmatpush1.bf16.msra.mxu0 0
    %6853 = vmatprep.subr.bf16.mxu0 0
    %6854 = vmatpush1.bf16.msra.mxu0 0
    %6855 = vmatprep.subr.bf16.mxu0 0
    %6856 = vmatpush1.bf16.msra.mxu0 0
    %6857 = vmatprep.subr.bf16.mxu0 0
    %6858 = vmatpush1.bf16.msra.mxu0 0
    %6859 = vmatprep.subr.bf16.mxu0 0
    %6860 = vmatpush1.bf16.msra.mxu0 0
    %6861 = vmatprep.subr.bf16.mxu0 0
    %6862 = vmatpush1.bf16.msra.mxu0 0
    %6863 = vmatprep.subr.bf16.mxu0 0
    %6864 = vmatpush1.bf16.msra.mxu0 0
    %6865 = vmatprep.subr.bf16.mxu0 0
    %6866 = vmatpush1.bf16.msra.mxu0 0
    %6867 = vmatprep.subr.bf16.mxu0 0
    %6868 = vmatpush1.bf16.msra.mxu0 0
    %6869 = vmatprep.subr.bf16.mxu0 0
    %6870 = vmatpush1.bf16.msra.mxu0 0
    %6871 = vmatprep.subr.bf16.mxu0 0
    %6872 = vmatpush1.bf16.msra.mxu0 0
    %6873 = vmatprep.subr.bf16.mxu0 0
    %6874 = vmatpush1.bf16.msra.mxu0 0
    %6875 = vmatprep.mubr.bf16.mxu0 0
    %6876 = vmatmul.mubr.bf16.gmra.mrb[0].mxu0 %v6832
    %v6877 = vpop.f32.mrb[0].mxu0
    %v6878 = vadd.f32 0.0, %v6877
    %v6879 = vpop.f32.mrb[0].mxu0
    %v6880 = vadd.f32 0.0, %v6879
    %v6881 = vpop.f32.mrb[0].mxu0
    %v6882 = vadd.f32 0.0, %v6881
    %v6883 = vpop.f32.mrb[0].mxu0
    %v6884 = vadd.f32 0.0, %v6883
    %6885 = vmatprep.mubr.bf16.mxu0 0
    %6886 = vmatmul.mubr.bf16.gmra.mrb[0].mxu0 %v6835
    %v6887 = vpop.f32.mrb[0].mxu0
    %v6888 = vadd.f32 0.0, %v6887
    %v6889 = vpop.f32.mrb[0].mxu0
    %v6890 = vadd.f32 0.0, %v6889
    %v6891 = vpop.f32.mrb[0].mxu0
    %v6892 = vadd.f32 0.0, %v6891
    %v6893 = vpop.f32.mrb[0].mxu0
    %v6894 = vadd.f32 0.0, %v6893
    %6895 = vmatprep.mubr.bf16.mxu0 0
    %6896 = vmatmul.mubr.bf16.gmra.mrb[0].mxu0 %v6838
    %v6897 = vpop.f32.mrb[0].mxu0
    %v6898 = vadd.f32 0.0, %v6897
    %v6899 = vpop.f32.mrb[0].mxu0
    %v6900 = vadd.f32 0.0, %v6899
    %v6901 = vpop.f32.mrb[0].mxu0
    %v6902 = vadd.f32 0.0, %v6901
    %v6903 = vpop.f32.mrb[0].mxu0
    %v6904 = vadd.f32 0.0, %v6903
    %6905 = vmatprep.mubr.bf16.mxu0 0
    %6906 = vmatmul.mubr.bf16.gmra.mrb[0].mxu0 %v6841
    %v6907 = vpop.f32.mrb[0].mxu0
    %v6908 = vadd.f32 0.0, %v6907
    %v6909 = vpop.f32.mrb[0].mxu0
    %v6910 = vadd.f32 0.0, %v6909
    %v6911 = vpop.f32.mrb[0].mxu0
    %v6912 = vadd.f32 0.0, %v6911
    %v6913 = vpop.f32.mrb[0].mxu0
    %v6914 = vadd.f32 0.0, %v6913
    %6915 = vdwg.mxu0
    %v6916 = vadd.f32 %v6786, %v6878
    %v6917 = vadd.f32 %v6787, %v6880
    %v6918 = vadd.f32 %v6788, %v6882
    %v6919 = vadd.f32 %v6789, %v6884
    %v6920 = vadd.f32 %v6790, %v6888
    %v6921 = vadd.f32 %v6791, %v6890
    %v6922 = vadd.f32 %v6792, %v6892
    %v6923 = vadd.f32 %v6793, %v6894
    %v6924 = vadd.f32 %v6794, %v6898
    %v6925 = vadd.f32 %v6795, %v6900
    %v6926 = vadd.f32 %v6796, %v6902
    %v6927 = vadd.f32 %v6797, %v6904
    %v6928 = vadd.f32 %v6798, %v6908
    %v6929 = vadd.f32 %v6799, %v6910
    %v6930 = vadd.f32 %v6800, %v6912
    %v6931 = vadd.f32 %v6801, %v6914
    %s6932 = scalar_lea.vmem %s6, 288
    %v6933 = vld [vmem:[%s6932] sm:$0xf]
    %v6934 = vld [vmem:[%s6932 + $0x4] sm:$0xf]
    %v6935 = vld [vmem:[%s6932 + $0x8] sm:$0xf]
    %v6936 = vld [vmem:[%s6932 + $0xc] sm:$0xf]
    %v6937 = vld [vmem:[%s6932 + $0x10] sm:$0xf]
    %v6938 = vld [vmem:[%s6932 + $0x14] sm:$0xf]
    %v6939 = vld [vmem:[%s6932 + $0x18] sm:$0xf]
    %v6940 = vld [vmem:[%s6932 + $0x1c] sm:$0xf]
    %v6949 = vunpack.c.l.b16 %v6933
    %v6950 = vunpack.c.l.b16 %v6934
    %v6951 = vunpack.c.l.b16 %v6935
    %v6952 = vunpack.c.l.b16 %v6936
    %v6953 = vunpack.c.l.b16 %v6937
    %v6954 = vunpack.c.l.b16 %v6938
    %v6955 = vunpack.c.l.b16 %v6939
    %v6956 = vunpack.c.l.b16 %v6940
    %v6957 = vpack.c.b16 %v6950, %v6949
    %v6958 = vpack.c.b16 %v6952, %v6951
    %v6959 = vpack.c.b16 %v6954, %v6953
    %v6960 = vpack.c.b16 %v6956, %v6955
    %6965 = vrot.lane.b32.xlu0 %v4711, 124
    %v6966 = vpop.permute.xlu0 %6965
    %6967 = vrot.lane.b32.xlu0 %v4712, 124
    %v6968 = vpop.permute.xlu0 %6967
    %6969 = vrot.lane.b32.xlu0 %v4713, 124
    %v6970 = vpop.permute.xlu0 %6969
    %6971 = vrot.lane.b32.xlu0 %v4714, 124
    %v6972 = vpop.permute.xlu0 %6971
    %v6973 = vsel %vm305, %v6966, %v6968
    %v6974 = vsel %vm305, %v6970, %v6972
    %v6980 = vsel %vm5755, %v6957, 0
    %v6983 = vsel %vm5755, %v6958, 0
    %v6986 = vsel %vm5755, %v6959, 0
    %v6989 = vsel %vm5755, %v6960, 0
    %6991 = vmatprep.subr.bf16.mxu0 %v6968
    %6992 = vmatpush1.bf16.msra.mxu0 %v6973
    %6993 = vmatprep.subr.bf16.mxu0 %v6972
    %6994 = vmatpush1.bf16.msra.mxu0 %v6974
    %6995 = vmatprep.subr.bf16.mxu0 0
    %6996 = vmatpush1.bf16.msra.mxu0 0
    %6997 = vmatprep.subr.bf16.mxu0 0
    %6998 = vmatpush1.bf16.msra.mxu0 0
    %6999 = vmatprep.subr.bf16.mxu0 0
    %7000 = vmatpush1.bf16.msra.mxu0 0
    %7001 = vmatprep.subr.bf16.mxu0 0
    %7002 = vmatpush1.bf16.msra.mxu0 0
    %7003 = vmatprep.subr.bf16.mxu0 0
    %7004 = vmatpush1.bf16.msra.mxu0 0
    %7005 = vmatprep.subr.bf16.mxu0 0
    %7006 = vmatpush1.bf16.msra.mxu0 0
    %7007 = vmatprep.subr.bf16.mxu0 0
    %7008 = vmatpush1.bf16.msra.mxu0 0
    %7009 = vmatprep.subr.bf16.mxu0 0
    %7010 = vmatpush1.bf16.msra.mxu0 0
    %7011 = vmatprep.subr.bf16.mxu0 0
    %7012 = vmatpush1.bf16.msra.mxu0 0
    %7013 = vmatprep.subr.bf16.mxu0 0
    %7014 = vmatpush1.bf16.msra.mxu0 0
    %7015 = vmatprep.subr.bf16.mxu0 0
    %7016 = vmatpush1.bf16.msra.mxu0 0
    %7017 = vmatprep.subr.bf16.mxu0 0
    %7018 = vmatpush1.bf16.msra.mxu0 0
    %7019 = vmatprep.subr.bf16.mxu0 0
    %7020 = vmatpush1.bf16.msra.mxu0 0
    %7021 = vmatprep.subr.bf16.mxu0 0
    %7022 = vmatpush1.bf16.msra.mxu0 0
    %7023 = vmatprep.mubr.bf16.mxu0 0
    %7024 = vmatmul.mubr.bf16.gmra.mrb[0].mxu0 %v6980
    %v7025 = vpop.f32.mrb[0].mxu0
    %v7026 = vadd.f32 0.0, %v7025
    %v7027 = vpop.f32.mrb[0].mxu0
    %v7028 = vadd.f32 0.0, %v7027
    %v7029 = vpop.f32.mrb[0].mxu0
    %v7030 = vadd.f32 0.0, %v7029
    %v7031 = vpop.f32.mrb[0].mxu0
    %v7032 = vadd.f32 0.0, %v7031
    %7033 = vmatprep.mubr.bf16.mxu0 0
    %7034 = vmatmul.mubr.bf16.gmra.mrb[0].mxu0 %v6983
    %v7035 = vpop.f32.mrb[0].mxu0
    %v7036 = vadd.f32 0.0, %v7035
    %v7037 = vpop.f32.mrb[0].mxu0
    %v7038 = vadd.f32 0.0, %v7037
    %v7039 = vpop.f32.mrb[0].mxu0
    %v7040 = vadd.f32 0.0, %v7039
    %v7041 = vpop.f32.mrb[0].mxu0
    %v7042 = vadd.f32 0.0, %v7041
    %7043 = vmatprep.mubr.bf16.mxu0 0
    %7044 = vmatmul.mubr.bf16.gmra.mrb[0].mxu0 %v6986
    %v7045 = vpop.f32.mrb[0].mxu0
    %v7046 = vadd.f32 0.0, %v7045
    %v7047 = vpop.f32.mrb[0].mxu0
    %v7048 = vadd.f32 0.0, %v7047
    %v7049 = vpop.f32.mrb[0].mxu0
    %v7050 = vadd.f32 0.0, %v7049
    %v7051 = vpop.f32.mrb[0].mxu0
    %v7052 = vadd.f32 0.0, %v7051
    %7053 = vmatprep.mubr.bf16.mxu0 0
    %7054 = vmatmul.mubr.bf16.gmra.mrb[0].mxu0 %v6989
    %v7055 = vpop.f32.mrb[0].mxu0
    %v7056 = vadd.f32 0.0, %v7055
    %v7057 = vpop.f32.mrb[0].mxu0
    %v7058 = vadd.f32 0.0, %v7057
    %v7059 = vpop.f32.mrb[0].mxu0
    %v7060 = vadd.f32 0.0, %v7059
    %v7061 = vpop.f32.mrb[0].mxu0
    %v7062 = vadd.f32 0.0, %v7061
    %7063 = vdwg.mxu0
    %v7064 = vadd.f32 %v6916, %v7026
    %v7065 = vadd.f32 %v6917, %v7028
    %v7066 = vadd.f32 %v6918, %v7030
    %v7067 = vadd.f32 %v6919, %v7032
    %v7068 = vadd.f32 %v6920, %v7036
    %v7069 = vadd.f32 %v6921, %v7038
    %v7070 = vadd.f32 %v6922, %v7040
    %v7071 = vadd.f32 %v6923, %v7042
    %v7072 = vadd.f32 %v6924, %v7046
    %v7073 = vadd.f32 %v6925, %v7048
    %v7074 = vadd.f32 %v6926, %v7050
    %v7075 = vadd.f32 %v6927, %v7052
    %v7076 = vadd.f32 %v6928, %v7056
    %v7077 = vadd.f32 %v6929, %v7058
    %v7078 = vadd.f32 %v6930, %v7060
    %v7079 = vadd.f32 %v6931, %v7062
    %s7080 = scalar_lea.vmem %s6, 320
    %v7081 = vld [vmem:[%s7080] sm:$0xf]
    %v7082 = vld [vmem:[%s7080 + $0x4] sm:$0xf]
    %v7083 = vld [vmem:[%s7080 + $0x8] sm:$0xf]
    %v7084 = vld [vmem:[%s7080 + $0xc] sm:$0xf]
    %v7085 = vld [vmem:[%s7080 + $0x10] sm:$0xf]
    %v7086 = vld [vmem:[%s7080 + $0x14] sm:$0xf]
    %v7087 = vld [vmem:[%s7080 + $0x18] sm:$0xf]
    %v7088 = vld [vmem:[%s7080 + $0x1c] sm:$0xf]
    %v7097 = vunpack.c.l.b16 %v7081
    %v7098 = vunpack.c.l.b16 %v7082
    %v7099 = vunpack.c.l.b16 %v7083
    %v7100 = vunpack.c.l.b16 %v7084
    %v7101 = vunpack.c.l.b16 %v7085
    %v7102 = vunpack.c.l.b16 %v7086
    %v7103 = vunpack.c.l.b16 %v7087
    %v7104 = vunpack.c.l.b16 %v7088
    %v7105 = vpack.c.b16 %v7098, %v7097
    %v7106 = vpack.c.b16 %v7100, %v7099
    %v7107 = vpack.c.b16 %v7102, %v7101
    %v7108 = vpack.c.b16 %v7104, %v7103
    %7109 = vrot.lane.b32.xlu0 %v4711, 100
    %v7110 = vpop.permute.xlu0 %7109
    %7111 = vrot.lane.b32.xlu0 %v4712, 100
    %v7112 = vpop.permute.xlu0 %7111
    %7113 = vrot.lane.b32.xlu0 %v4713, 100
    %v7114 = vpop.permute.xlu0 %7113
    %7115 = vrot.lane.b32.xlu0 %v4714, 100
    %v7116 = vpop.permute.xlu0 %7115
    %v7117 = vsel %vm5983, %v7110, %v7112
    %v7118 = vsel %vm5983, %v7114, %v7116
    %v7124 = vsel %vm5755, %v7105, 0
    %v7127 = vsel %vm5755, %v7106, 0
    %v7130 = vsel %vm5755, %v7107, 0
    %v7133 = vsel %vm5755, %v7108, 0
    %7135 = vmatprep.subr.bf16.mxu0 %v7112
    %7136 = vmatpush1.bf16.msra.mxu0 %v7117
    %7137 = vmatprep.subr.bf16.mxu0 %v7116
    %7138 = vmatpush1.bf16.msra.mxu0 %v7118
    %7139 = vmatprep.subr.bf16.mxu0 0
    %7140 = vmatpush1.bf16.msra.mxu0 0
    %7141 = vmatprep.subr.bf16.mxu0 0
    %7142 = vmatpush1.bf16.msra.mxu0 0
    %7143 = vmatprep.subr.bf16.mxu0 0
    %7144 = vmatpush1.bf16.msra.mxu0 0
    %7145 = vmatprep.subr.bf16.mxu0 0
    %7146 = vmatpush1.bf16.msra.mxu0 0
    %7147 = vmatprep.subr.bf16.mxu0 0
    %7148 = vmatpush1.bf16.msra.mxu0 0
    %7149 = vmatprep.subr.bf16.mxu0 0
    %7150 = vmatpush1.bf16.msra.mxu0 0
    %7151 = vmatprep.subr.bf16.mxu0 0
    %7152 = vmatpush1.bf16.msra.mxu0 0
    %7153 = vmatprep.subr.bf16.mxu0 0
    %7154 = vmatpush1.bf16.msra.mxu0 0
    %7155 = vmatprep.subr.bf16.mxu0 0
    %7156 = vmatpush1.bf16.msra.mxu0 0
    %7157 = vmatprep.subr.bf16.mxu0 0
    %7158 = vmatpush1.bf16.msra.mxu0 0
    %7159 = vmatprep.subr.bf16.mxu0 0
    %7160 = vmatpush1.bf16.msra.mxu0 0
    %7161 = vmatprep.subr.bf16.mxu0 0
    %7162 = vmatpush1.bf16.msra.mxu0 0
    %7163 = vmatprep.subr.bf16.mxu0 0
    %7164 = vmatpush1.bf16.msra.mxu0 0
    %7165 = vmatprep.subr.bf16.mxu0 0
    %7166 = vmatpush1.bf16.msra.mxu0 0
    %7167 = vmatprep.mubr.bf16.mxu0 0
    %7168 = vmatmul.mubr.bf16.gmra.mrb[0].mxu0 %v7124
    %v7169 = vpop.f32.mrb[0].mxu0
    %v7170 = vadd.f32 0.0, %v7169
    %v7171 = vpop.f32.mrb[0].mxu0
    %v7172 = vadd.f32 0.0, %v7171
    %v7173 = vpop.f32.mrb[0].mxu0
    %v7174 = vadd.f32 0.0, %v7173
    %v7175 = vpop.f32.mrb[0].mxu0
    %v7176 = vadd.f32 0.0, %v7175
    %7177 = vmatprep.mubr.bf16.mxu0 0
    %7178 = vmatmul.mubr.bf16.gmra.mrb[0].mxu0 %v7127
    %v7179 = vpop.f32.mrb[0].mxu0
    %v7180 = vadd.f32 0.0, %v7179
    %v7181 = vpop.f32.mrb[0].mxu0
    %v7182 = vadd.f32 0.0, %v7181
    %v7183 = vpop.f32.mrb[0].mxu0
    %v7184 = vadd.f32 0.0, %v7183
    %v7185 = vpop.f32.mrb[0].mxu0
    %v7186 = vadd.f32 0.0, %v7185
    %7187 = vmatprep.mubr.bf16.mxu0 0
    %7188 = vmatmul.mubr.bf16.gmra.mrb[0].mxu0 %v7130
    %v7189 = vpop.f32.mrb[0].mxu0
    %v7190 = vadd.f32 0.0, %v7189
    %v7191 = vpop.f32.mrb[0].mxu0
    %v7192 = vadd.f32 0.0, %v7191
    %v7193 = vpop.f32.mrb[0].mxu0
    %v7194 = vadd.f32 0.0, %v7193
    %v7195 = vpop.f32.mrb[0].mxu0
    %v7196 = vadd.f32 0.0, %v7195
    %7197 = vmatprep.mubr.bf16.mxu0 0
    %7198 = vmatmul.mubr.bf16.gmra.mrb[0].mxu0 %v7133
    %v7199 = vpop.f32.mrb[0].mxu0
    %v7200 = vadd.f32 0.0, %v7199
    %v7201 = vpop.f32.mrb[0].mxu0
    %v7202 = vadd.f32 0.0, %v7201
    %v7203 = vpop.f32.mrb[0].mxu0
    %v7204 = vadd.f32 0.0, %v7203
    %v7205 = vpop.f32.mrb[0].mxu0
    %v7206 = vadd.f32 0.0, %v7205
    %7207 = vdwg.mxu0
    %v7208 = vadd.f32 %v7064, %v7170
    %v7209 = vadd.f32 %v7065, %v7172
    %v7210 = vadd.f32 %v7066, %v7174
    %v7211 = vadd.f32 %v7067, %v7176
    %v7212 = vadd.f32 %v7068, %v7180
    %v7213 = vadd.f32 %v7069, %v7182
    %v7214 = vadd.f32 %v7070, %v7184
    %v7215 = vadd.f32 %v7071, %v7186
    %v7216 = vadd.f32 %v7072, %v7190
    %v7217 = vadd.f32 %v7073, %v7192
    %v7218 = vadd.f32 %v7074, %v7194
    %v7219 = vadd.f32 %v7075, %v7196
    %v7220 = vadd.f32 %v7076, %v7200
    %v7221 = vadd.f32 %v7077, %v7202
    %v7222 = vadd.f32 %v7078, %v7204
    %v7223 = vadd.f32 %v7079, %v7206
    %s7224 = scalar_lea.vmem %s6, 352
    %v7225 = vld [vmem:[%s7224] sm:$0xf]
    %v7226 = vld [vmem:[%s7224 + $0x4] sm:$0xf]
    %v7227 = vld [vmem:[%s7224 + $0x8] sm:$0xf]
    %v7228 = vld [vmem:[%s7224 + $0xc] sm:$0xf]
    %v7229 = vld [vmem:[%s7224 + $0x10] sm:$0xf]
    %v7230 = vld [vmem:[%s7224 + $0x14] sm:$0xf]
    %v7231 = vld [vmem:[%s7224 + $0x18] sm:$0xf]
    %v7232 = vld [vmem:[%s7224 + $0x1c] sm:$0xf]
    %v7241 = vunpack.c.l.b16 %v7225
    %v7242 = vunpack.c.l.b16 %v7226
    %v7243 = vunpack.c.l.b16 %v7227
    %v7244 = vunpack.c.l.b16 %v7228
    %v7245 = vunpack.c.l.b16 %v7229
    %v7246 = vunpack.c.l.b16 %v7230
    %v7247 = vunpack.c.l.b16 %v7231
    %v7248 = vunpack.c.l.b16 %v7232
    %v7249 = vpack.c.b16 %v7242, %v7241
    %v7250 = vpack.c.b16 %v7244, %v7243
    %v7251 = vpack.c.b16 %v7246, %v7245
    %v7252 = vpack.c.b16 %v7248, %v7247
    %7253 = vrot.lane.b32.xlu0 %v4711, 96
    %v7254 = vpop.permute.xlu0 %7253
    %7255 = vrot.lane.b32.xlu0 %v4712, 96
    %v7256 = vpop.permute.xlu0 %7255
    %7257 = vrot.lane.b32.xlu0 %v4713, 96
    %v7258 = vpop.permute.xlu0 %7257
    %7259 = vrot.lane.b32.xlu0 %v4714, 96
    %v7260 = vpop.permute.xlu0 %7259
    %v7261 = vsel %vm6128, %v7254, %v7256
    %v7262 = vsel %vm6128, %v7258, %v7260
    %v7268 = vsel %vm5755, %v7249, 0
    %v7271 = vsel %vm5755, %v7250, 0
    %v7274 = vsel %vm5755, %v7251, 0
    %v7277 = vsel %vm5755, %v7252, 0
    %7279 = vmatprep.subr.bf16.mxu0 %v7256
    %7280 = vmatpush1.bf16.msra.mxu0 %v7261
    %7281 = vmatprep.subr.bf16.mxu0 %v7260
    %7282 = vmatpush1.bf16.msra.mxu0 %v7262
    %7283 = vmatprep.subr.bf16.mxu0 0
    %7284 = vmatpush1.bf16.msra.mxu0 0
    %7285 = vmatprep.subr.bf16.mxu0 0
    %7286 = vmatpush1.bf16.msra.mxu0 0
    %7287 = vmatprep.subr.bf16.mxu0 0
    %7288 = vmatpush1.bf16.msra.mxu0 0
    %7289 = vmatprep.subr.bf16.mxu0 0
    %7290 = vmatpush1.bf16.msra.mxu0 0
    %7291 = vmatprep.subr.bf16.mxu0 0
    %7292 = vmatpush1.bf16.msra.mxu0 0
    %7293 = vmatprep.subr.bf16.mxu0 0
    %7294 = vmatpush1.bf16.msra.mxu0 0
    %7295 = vmatprep.subr.bf16.mxu0 0
    %7296 = vmatpush1.bf16.msra.mxu0 0
    %7297 = vmatprep.subr.bf16.mxu0 0
    %7298 = vmatpush1.bf16.msra.mxu0 0
    %7299 = vmatprep.subr.bf16.mxu0 0
    %7300 = vmatpush1.bf16.msra.mxu0 0
    %7301 = vmatprep.subr.bf16.mxu0 0
    %7302 = vmatpush1.bf16.msra.mxu0 0
    %7303 = vmatprep.subr.bf16.mxu0 0
    %7304 = vmatpush1.bf16.msra.mxu0 0
    %7305 = vmatprep.subr.bf16.mxu0 0
    %7306 = vmatpush1.bf16.msra.mxu0 0
    %7307 = vmatprep.subr.bf16.mxu0 0
    %7308 = vmatpush1.bf16.msra.mxu0 0
    %7309 = vmatprep.subr.bf16.mxu0 0
    %7310 = vmatpush1.bf16.msra.mxu0 0
    %7311 = vmatprep.mubr.bf16.mxu0 0
    %7312 = vmatmul.mubr.bf16.gmra.mrb[0].mxu0 %v7268
    %v7313 = vpop.f32.mrb[0].mxu0
    %v7314 = vadd.f32 0.0, %v7313
    %v7315 = vpop.f32.mrb[0].mxu0
    %v7316 = vadd.f32 0.0, %v7315
    %v7317 = vpop.f32.mrb[0].mxu0
    %v7318 = vadd.f32 0.0, %v7317
    %v7319 = vpop.f32.mrb[0].mxu0
    %v7320 = vadd.f32 0.0, %v7319
    %7321 = vmatprep.mubr.bf16.mxu0 0
    %7322 = vmatmul.mubr.bf16.gmra.mrb[0].mxu0 %v7271
    %v7323 = vpop.f32.mrb[0].mxu0
    %v7324 = vadd.f32 0.0, %v7323
    %v7325 = vpop.f32.mrb[0].mxu0
    %v7326 = vadd.f32 0.0, %v7325
    %v7327 = vpop.f32.mrb[0].mxu0
    %v7328 = vadd.f32 0.0, %v7327
    %v7329 = vpop.f32.mrb[0].mxu0
    %v7330 = vadd.f32 0.0, %v7329
    %7331 = vmatprep.mubr.bf16.mxu0 0
    %7332 = vmatmul.mubr.bf16.gmra.mrb[0].mxu0 %v7274
    %v7333 = vpop.f32.mrb[0].mxu0
    %v7334 = vadd.f32 0.0, %v7333
    %v7335 = vpop.f32.mrb[0].mxu0
    %v7336 = vadd.f32 0.0, %v7335
    %v7337 = vpop.f32.mrb[0].mxu0
    %v7338 = vadd.f32 0.0, %v7337
    %v7339 = vpop.f32.mrb[0].mxu0
    %v7340 = vadd.f32 0.0, %v7339
    %7341 = vmatprep.mubr.bf16.mxu0 0
    %7342 = vmatmul.mubr.bf16.gmra.mrb[0].mxu0 %v7277
    %v7343 = vpop.f32.mrb[0].mxu0
    %v7344 = vadd.f32 0.0, %v7343
    %v7345 = vpop.f32.mrb[0].mxu0
    %v7346 = vadd.f32 0.0, %v7345
    %v7347 = vpop.f32.mrb[0].mxu0
    %v7348 = vadd.f32 0.0, %v7347
    %v7349 = vpop.f32.mrb[0].mxu0
    %v7350 = vadd.f32 0.0, %v7349
    %7351 = vdwg.mxu0
    %v7352 = vadd.f32 %v7208, %v7314
    %v7353 = vadd.f32 %v7209, %v7316
    %v7354 = vadd.f32 %v7210, %v7318
    %v7355 = vadd.f32 %v7211, %v7320
    %v7356 = vadd.f32 %v7212, %v7324
    %v7357 = vadd.f32 %v7213, %v7326
    %v7358 = vadd.f32 %v7214, %v7328
    %v7359 = vadd.f32 %v7215, %v7330
    %v7360 = vadd.f32 %v7216, %v7334
    %v7361 = vadd.f32 %v7217, %v7336
    %v7362 = vadd.f32 %v7218, %v7338
    %v7363 = vadd.f32 %v7219, %v7340
    %v7364 = vadd.f32 %v7220, %v7344
    %v7365 = vadd.f32 %v7221, %v7346
    %v7366 = vadd.f32 %v7222, %v7348
    %v7367 = vadd.f32 %v7223, %v7350
    %s7368 = scalar_lea.vmem %s6, 384
    %v7369 = vld [vmem:[%s7368] sm:$0xf]
    %v7370 = vld [vmem:[%s7368 + $0x4] sm:$0xf]
    %v7371 = vld [vmem:[%s7368 + $0x8] sm:$0xf]
    %v7372 = vld [vmem:[%s7368 + $0xc] sm:$0xf]
    %v7373 = vld [vmem:[%s7368 + $0x10] sm:$0xf]
    %v7374 = vld [vmem:[%s7368 + $0x14] sm:$0xf]
    %v7375 = vld [vmem:[%s7368 + $0x18] sm:$0xf]
    %v7376 = vld [vmem:[%s7368 + $0x1c] sm:$0xf]
    %v7385 = vunpack.c.l.b16 %v7369
    %v7386 = vunpack.c.l.b16 %v7370
    %v7387 = vunpack.c.l.b16 %v7371
    %v7388 = vunpack.c.l.b16 %v7372
    %v7389 = vunpack.c.l.b16 %v7373
    %v7390 = vunpack.c.l.b16 %v7374
    %v7391 = vunpack.c.l.b16 %v7375
    %v7392 = vunpack.c.l.b16 %v7376
    %v7393 = vpack.c.b16 %v7386, %v7385
    %v7394 = vpack.c.b16 %v7388, %v7387
    %v7395 = vpack.c.b16 %v7390, %v7389
    %v7396 = vpack.c.b16 %v7392, %v7391
    %v7398 = vsel %vm5755, %v7393, 0
    %v7401 = vsel %vm5755, %v7394, 0
    %v7404 = vsel %vm5755, %v7395, 0
    %v7407 = vsel %vm5755, %v7396, 0
    %7409 = vmatprep.subr.bf16.mxu0 %v5697
    %7410 = vmatpush1.bf16.msra.mxu0 %v5696
    %7411 = vmatprep.subr.bf16.mxu0 %v5699
    %7412 = vmatpush1.bf16.msra.mxu0 %v5698
    %7413 = vmatprep.subr.bf16.mxu0 0
    %7414 = vmatpush1.bf16.msra.mxu0 0
    %7415 = vmatprep.subr.bf16.mxu0 0
    %7416 = vmatpush1.bf16.msra.mxu0 0
    %7417 = vmatprep.subr.bf16.mxu0 0
    %7418 = vmatpush1.bf16.msra.mxu0 0
    %7419 = vmatprep.subr.bf16.mxu0 0
    %7420 = vmatpush1.bf16.msra.mxu0 0
    %7421 = vmatprep.subr.bf16.mxu0 0
    %7422 = vmatpush1.bf16.msra.mxu0 0
    %7423 = vmatprep.subr.bf16.mxu0 0
    %7424 = vmatpush1.bf16.msra.mxu0 0
    %7425 = vmatprep.subr.bf16.mxu0 0
    %7426 = vmatpush1.bf16.msra.mxu0 0
    %7427 = vmatprep.subr.bf16.mxu0 0
    %7428 = vmatpush1.bf16.msra.mxu0 0
    %7429 = vmatprep.subr.bf16.mxu0 0
    %7430 = vmatpush1.bf16.msra.mxu0 0
    %7431 = vmatprep.subr.bf16.mxu0 0
    %7432 = vmatpush1.bf16.msra.mxu0 0
    %7433 = vmatprep.subr.bf16.mxu0 0
    %7434 = vmatpush1.bf16.msra.mxu0 0
    %7435 = vmatprep.subr.bf16.mxu0 0
    %7436 = vmatpush1.bf16.msra.mxu0 0
    %7437 = vmatprep.subr.bf16.mxu0 0
    %7438 = vmatpush1.bf16.msra.mxu0 0
    %7439 = vmatprep.subr.bf16.mxu0 0
    %7440 = vmatpush1.bf16.msra.mxu0 0
    %7441 = vmatprep.mubr.bf16.mxu0 0
    %7442 = vmatmul.mubr.bf16.gmra.mrb[0].mxu0 %v7398
    %v7443 = vpop.f32.mrb[0].mxu0
    %v7444 = vadd.f32 0.0, %v7443
    %v7445 = vpop.f32.mrb[0].mxu0
    %v7446 = vadd.f32 0.0, %v7445
    %v7447 = vpop.f32.mrb[0].mxu0
    %v7448 = vadd.f32 0.0, %v7447
    %v7449 = vpop.f32.mrb[0].mxu0
    %v7450 = vadd.f32 0.0, %v7449
    %7451 = vmatprep.mubr.bf16.mxu0 0
    %7452 = vmatmul.mubr.bf16.gmra.mrb[0].mxu0 %v7401
    %v7453 = vpop.f32.mrb[0].mxu0
    %v7454 = vadd.f32 0.0, %v7453
    %v7455 = vpop.f32.mrb[0].mxu0
    %v7456 = vadd.f32 0.0, %v7455
    %v7457 = vpop.f32.mrb[0].mxu0
    %v7458 = vadd.f32 0.0, %v7457
    %v7459 = vpop.f32.mrb[0].mxu0
    %v7460 = vadd.f32 0.0, %v7459
    %7461 = vmatprep.mubr.bf16.mxu0 0
    %7462 = vmatmul.mubr.bf16.gmra.mrb[0].mxu0 %v7404
    %v7463 = vpop.f32.mrb[0].mxu0
    %v7464 = vadd.f32 0.0, %v7463
    %v7465 = vpop.f32.mrb[0].mxu0
    %v7466 = vadd.f32 0.0, %v7465
    %v7467 = vpop.f32.mrb[0].mxu0
    %v7468 = vadd.f32 0.0, %v7467
    %v7469 = vpop.f32.mrb[0].mxu0
    %v7470 = vadd.f32 0.0, %v7469
    %7471 = vmatprep.mubr.bf16.mxu0 0
    %7472 = vmatmul.mubr.bf16.gmra.mrb[0].mxu0 %v7407
    %v7473 = vpop.f32.mrb[0].mxu0
    %v7474 = vadd.f32 0.0, %v7473
    %v7475 = vpop.f32.mrb[0].mxu0
    %v7476 = vadd.f32 0.0, %v7475
    %v7477 = vpop.f32.mrb[0].mxu0
    %v7478 = vadd.f32 0.0, %v7477
    %v7479 = vpop.f32.mrb[0].mxu0
    %v7480 = vadd.f32 0.0, %v7479
    %7481 = vdwg.mxu0
    %v7482 = vadd.f32 %v7352, %v7444
    %v7483 = vadd.f32 %v7353, %v7446
    %v7484 = vadd.f32 %v7354, %v7448
    %v7485 = vadd.f32 %v7355, %v7450
    %v7486 = vadd.f32 %v7356, %v7454
    %v7487 = vadd.f32 %v7357, %v7456
    %v7488 = vadd.f32 %v7358, %v7458
    %v7489 = vadd.f32 %v7359, %v7460
    %v7490 = vadd.f32 %v7360, %v7464
    %v7491 = vadd.f32 %v7361, %v7466
    %v7492 = vadd.f32 %v7362, %v7468
    %v7493 = vadd.f32 %v7363, %v7470
    %v7494 = vadd.f32 %v7364, %v7474
    %v7495 = vadd.f32 %v7365, %v7476
    %v7496 = vadd.f32 %v7366, %v7478
    %v7497 = vadd.f32 %v7367, %v7480
    %s7498 = scalar_lea.vmem %s6, 416
    %v7499 = vld [vmem:[%s7498] sm:$0xf]
    %v7500 = vld [vmem:[%s7498 + $0x4] sm:$0xf]
    %v7501 = vld [vmem:[%s7498 + $0x8] sm:$0xf]
    %v7502 = vld [vmem:[%s7498 + $0xc] sm:$0xf]
    %v7503 = vld [vmem:[%s7498 + $0x10] sm:$0xf]
    %v7504 = vld [vmem:[%s7498 + $0x14] sm:$0xf]
    %v7505 = vld [vmem:[%s7498 + $0x18] sm:$0xf]
    %v7506 = vld [vmem:[%s7498 + $0x1c] sm:$0xf]
    %v7515 = vunpack.c.l.b16 %v7499
    %v7516 = vunpack.c.l.b16 %v7500
    %v7517 = vunpack.c.l.b16 %v7501
    %v7518 = vunpack.c.l.b16 %v7502
    %v7519 = vunpack.c.l.b16 %v7503
    %v7520 = vunpack.c.l.b16 %v7504
    %v7521 = vunpack.c.l.b16 %v7505
    %v7522 = vunpack.c.l.b16 %v7506
    %v7523 = vpack.c.b16 %v7516, %v7515
    %v7524 = vpack.c.b16 %v7518, %v7517
    %v7525 = vpack.c.b16 %v7520, %v7519
    %v7526 = vpack.c.b16 %v7522, %v7521
    %7531 = vrot.lane.b32.xlu0 %v5696, 124
    %v7532 = vpop.permute.xlu0 %7531
    %7533 = vrot.lane.b32.xlu0 %v5697, 124
    %v7534 = vpop.permute.xlu0 %7533
    %7535 = vrot.lane.b32.xlu0 %v5698, 124
    %v7536 = vpop.permute.xlu0 %7535
    %7537 = vrot.lane.b32.xlu0 %v5699, 124
    %v7538 = vpop.permute.xlu0 %7537
    %v7539 = vsel %vm305, %v7532, %v7534
    %v7540 = vsel %vm305, %v7536, %v7538
    %v7546 = vsel %vm5755, %v7523, 0
    %v7549 = vsel %vm5755, %v7524, 0
    %v7552 = vsel %vm5755, %v7525, 0
    %v7555 = vsel %vm5755, %v7526, 0
    %7557 = vmatprep.subr.bf16.mxu0 %v7534
    %7558 = vmatpush1.bf16.msra.mxu0 %v7539
    %7559 = vmatprep.subr.bf16.mxu0 %v7538
    %7560 = vmatpush1.bf16.msra.mxu0 %v7540
    %7561 = vmatprep.subr.bf16.mxu0 0
    %7562 = vmatpush1.bf16.msra.mxu0 0
    %7563 = vmatprep.subr.bf16.mxu0 0
    %7564 = vmatpush1.bf16.msra.mxu0 0
    %7565 = vmatprep.subr.bf16.mxu0 0
    %7566 = vmatpush1.bf16.msra.mxu0 0
    %7567 = vmatprep.subr.bf16.mxu0 0
    %7568 = vmatpush1.bf16.msra.mxu0 0
    %7569 = vmatprep.subr.bf16.mxu0 0
    %7570 = vmatpush1.bf16.msra.mxu0 0
    %7571 = vmatprep.subr.bf16.mxu0 0
    %7572 = vmatpush1.bf16.msra.mxu0 0
    %7573 = vmatprep.subr.bf16.mxu0 0
    %7574 = vmatpush1.bf16.msra.mxu0 0
    %7575 = vmatprep.subr.bf16.mxu0 0
    %7576 = vmatpush1.bf16.msra.mxu0 0
    %7577 = vmatprep.subr.bf16.mxu0 0
    %7578 = vmatpush1.bf16.msra.mxu0 0
    %7579 = vmatprep.subr.bf16.mxu0 0
    %7580 = vmatpush1.bf16.msra.mxu0 0
    %7581 = vmatprep.subr.bf16.mxu0 0
    %7582 = vmatpush1.bf16.msra.mxu0 0
    %7583 = vmatprep.subr.bf16.mxu0 0
    %7584 = vmatpush1.bf16.msra.mxu0 0
    %7585 = vmatprep.subr.bf16.mxu0 0
    %7586 = vmatpush1.bf16.msra.mxu0 0
    %7587 = vmatprep.subr.bf16.mxu0 0
    %7588 = vmatpush1.bf16.msra.mxu0 0
    %7589 = vmatprep.mubr.bf16.mxu0 0
    %7590 = vmatmul.mubr.bf16.gmra.mrb[0].mxu0 %v7546
    %v7591 = vpop.f32.mrb[0].mxu0
    %v7592 = vadd.f32 0.0, %v7591
    %v7593 = vpop.f32.mrb[0].mxu0
    %v7594 = vadd.f32 0.0, %v7593
    %v7595 = vpop.f32.mrb[0].mxu0
    %v7596 = vadd.f32 0.0, %v7595
    %v7597 = vpop.f32.mrb[0].mxu0
    %v7598 = vadd.f32 0.0, %v7597
    %7599 = vmatprep.mubr.bf16.mxu0 0
    %7600 = vmatmul.mubr.bf16.gmra.mrb[0].mxu0 %v7549
    %v7601 = vpop.f32.mrb[0].mxu0
    %v7602 = vadd.f32 0.0, %v7601
    %v7603 = vpop.f32.mrb[0].mxu0
    %v7604 = vadd.f32 0.0, %v7603
    %v7605 = vpop.f32.mrb[0].mxu0
    %v7606 = vadd.f32 0.0, %v7605
    %v7607 = vpop.f32.mrb[0].mxu0
    %v7608 = vadd.f32 0.0, %v7607
    %7609 = vmatprep.mubr.bf16.mxu0 0
    %7610 = vmatmul.mubr.bf16.gmra.mrb[0].mxu0 %v7552
    %v7611 = vpop.f32.mrb[0].mxu0
    %v7612 = vadd.f32 0.0, %v7611
    %v7613 = vpop.f32.mrb[0].mxu0
    %v7614 = vadd.f32 0.0, %v7613
    %v7615 = vpop.f32.mrb[0].mxu0
    %v7616 = vadd.f32 0.0, %v7615
    %v7617 = vpop.f32.mrb[0].mxu0
    %v7618 = vadd.f32 0.0, %v7617
    %7619 = vmatprep.mubr.bf16.mxu0 0
    %7620 = vmatmul.mubr.bf16.gmra.mrb[0].mxu0 %v7555
    %v7621 = vpop.f32.mrb[0].mxu0
    %v7622 = vadd.f32 0.0, %v7621
    %v7623 = vpop.f32.mrb[0].mxu0
    %v7624 = vadd.f32 0.0, %v7623
    %v7625 = vpop.f32.mrb[0].mxu0
    %v7626 = vadd.f32 0.0, %v7625
    %v7627 = vpop.f32.mrb[0].mxu0
    %v7628 = vadd.f32 0.0, %v7627
    %7629 = vdwg.mxu0
    %v7630 = vadd.f32 %v7482, %v7592
    %v7631 = vadd.f32 %v7483, %v7594
    %v7632 = vadd.f32 %v7484, %v7596
    %v7633 = vadd.f32 %v7485, %v7598
    %v7634 = vadd.f32 %v7486, %v7602
    %v7635 = vadd.f32 %v7487, %v7604
    %v7636 = vadd.f32 %v7488, %v7606
    %v7637 = vadd.f32 %v7489, %v7608
    %v7638 = vadd.f32 %v7490, %v7612
    %v7639 = vadd.f32 %v7491, %v7614
    %v7640 = vadd.f32 %v7492, %v7616
    %v7641 = vadd.f32 %v7493, %v7618
    %v7642 = vadd.f32 %v7494, %v7622
    %v7643 = vadd.f32 %v7495, %v7624
    %v7644 = vadd.f32 %v7496, %v7626
    %v7645 = vadd.f32 %v7497, %v7628
    %s7646 = scalar_lea.vmem %s6, 448
    %v7647 = vld [vmem:[%s7646] sm:$0xf]
    %v7648 = vld [vmem:[%s7646 + $0x4] sm:$0xf]
    %v7649 = vld [vmem:[%s7646 + $0x8] sm:$0xf]
    %v7650 = vld [vmem:[%s7646 + $0xc] sm:$0xf]
    %v7651 = vld [vmem:[%s7646 + $0x10] sm:$0xf]
    %v7652 = vld [vmem:[%s7646 + $0x14] sm:$0xf]
    %v7653 = vld [vmem:[%s7646 + $0x18] sm:$0xf]
    %v7654 = vld [vmem:[%s7646 + $0x1c] sm:$0xf]
    %v7663 = vunpack.c.l.b16 %v7647
    %v7664 = vunpack.c.l.b16 %v7648
    %v7665 = vunpack.c.l.b16 %v7649
    %v7666 = vunpack.c.l.b16 %v7650
    %v7667 = vunpack.c.l.b16 %v7651
    %v7668 = vunpack.c.l.b16 %v7652
    %v7669 = vunpack.c.l.b16 %v7653
    %v7670 = vunpack.c.l.b16 %v7654
    %v7671 = vpack.c.b16 %v7664, %v7663
    %v7672 = vpack.c.b16 %v7666, %v7665
    %v7673 = vpack.c.b16 %v7668, %v7667
    %v7674 = vpack.c.b16 %v7670, %v7669
    %7675 = vrot.lane.b32.xlu0 %v5696, 100
    %v7676 = vpop.permute.xlu0 %7675
    %7677 = vrot.lane.b32.xlu0 %v5697, 100
    %v7678 = vpop.permute.xlu0 %7677
    %7679 = vrot.lane.b32.xlu0 %v5698, 100
    %v7680 = vpop.permute.xlu0 %7679
    %7681 = vrot.lane.b32.xlu0 %v5699, 100
    %v7682 = vpop.permute.xlu0 %7681
    %v7683 = vsel %vm5983, %v7676, %v7678
    %v7684 = vsel %vm5983, %v7680, %v7682
    %v7690 = vsel %vm5755, %v7671, 0
    %v7693 = vsel %vm5755, %v7672, 0
    %v7696 = vsel %vm5755, %v7673, 0
    %v7699 = vsel %vm5755, %v7674, 0
    %7701 = vmatprep.subr.bf16.mxu0 %v7678
    %7702 = vmatpush1.bf16.msra.mxu0 %v7683
    %7703 = vmatprep.subr.bf16.mxu0 %v7682
    %7704 = vmatpush1.bf16.msra.mxu0 %v7684
    %7705 = vmatprep.subr.bf16.mxu0 0
    %7706 = vmatpush1.bf16.msra.mxu0 0
    %7707 = vmatprep.subr.bf16.mxu0 0
    %7708 = vmatpush1.bf16.msra.mxu0 0
    %7709 = vmatprep.subr.bf16.mxu0 0
    %7710 = vmatpush1.bf16.msra.mxu0 0
    %7711 = vmatprep.subr.bf16.mxu0 0
    %7712 = vmatpush1.bf16.msra.mxu0 0
    %7713 = vmatprep.subr.bf16.mxu0 0
    %7714 = vmatpush1.bf16.msra.mxu0 0
    %7715 = vmatprep.subr.bf16.mxu0 0
    %7716 = vmatpush1.bf16.msra.mxu0 0
    %7717 = vmatprep.subr.bf16.mxu0 0
    %7718 = vmatpush1.bf16.msra.mxu0 0
    %7719 = vmatprep.subr.bf16.mxu0 0
    %7720 = vmatpush1.bf16.msra.mxu0 0
    %7721 = vmatprep.subr.bf16.mxu0 0
    %7722 = vmatpush1.bf16.msra.mxu0 0
    %7723 = vmatprep.subr.bf16.mxu0 0
    %7724 = vmatpush1.bf16.msra.mxu0 0
    %7725 = vmatprep.subr.bf16.mxu0 0
    %7726 = vmatpush1.bf16.msra.mxu0 0
    %7727 = vmatprep.subr.bf16.mxu0 0
    %7728 = vmatpush1.bf16.msra.mxu0 0
    %7729 = vmatprep.subr.bf16.mxu0 0
    %7730 = vmatpush1.bf16.msra.mxu0 0
    %7731 = vmatprep.subr.bf16.mxu0 0
    %7732 = vmatpush1.bf16.msra.mxu0 0
    %7733 = vmatprep.mubr.bf16.mxu0 0
    %7734 = vmatmul.mubr.bf16.gmra.mrb[0].mxu0 %v7690
    %v7735 = vpop.f32.mrb[0].mxu0
    %v7736 = vadd.f32 0.0, %v7735
    %v7737 = vpop.f32.mrb[0].mxu0
    %v7738 = vadd.f32 0.0, %v7737
    %v7739 = vpop.f32.mrb[0].mxu0
    %v7740 = vadd.f32 0.0, %v7739
    %v7741 = vpop.f32.mrb[0].mxu0
    %v7742 = vadd.f32 0.0, %v7741
    %7743 = vmatprep.mubr.bf16.mxu0 0
    %7744 = vmatmul.mubr.bf16.gmra.mrb[0].mxu0 %v7693
    %v7745 = vpop.f32.mrb[0].mxu0
    %v7746 = vadd.f32 0.0, %v7745
    %v7747 = vpop.f32.mrb[0].mxu0
    %v7748 = vadd.f32 0.0, %v7747
    %v7749 = vpop.f32.mrb[0].mxu0
    %v7750 = vadd.f32 0.0, %v7749
    %v7751 = vpop.f32.mrb[0].mxu0
    %v7752 = vadd.f32 0.0, %v7751
    %7753 = vmatprep.mubr.bf16.mxu0 0
    %7754 = vmatmul.mubr.bf16.gmra.mrb[0].mxu0 %v7696
    %v7755 = vpop.f32.mrb[0].mxu0
    %v7756 = vadd.f32 0.0, %v7755
    %v7757 = vpop.f32.mrb[0].mxu0
    %v7758 = vadd.f32 0.0, %v7757
    %v7759 = vpop.f32.mrb[0].mxu0
    %v7760 = vadd.f32 0.0, %v7759
    %v7761 = vpop.f32.mrb[0].mxu0
    %v7762 = vadd.f32 0.0, %v7761
    %7763 = vmatprep.mubr.bf16.mxu0 0
    %7764 = vmatmul.mubr.bf16.gmra.mrb[0].mxu0 %v7699
    %v7765 = vpop.f32.mrb[0].mxu0
    %v7766 = vadd.f32 0.0, %v7765
    %v7767 = vpop.f32.mrb[0].mxu0
    %v7768 = vadd.f32 0.0, %v7767
    %v7769 = vpop.f32.mrb[0].mxu0
    %v7770 = vadd.f32 0.0, %v7769
    %v7771 = vpop.f32.mrb[0].mxu0
    %v7772 = vadd.f32 0.0, %v7771
    %7773 = vdwg.mxu0
    %v7774 = vadd.f32 %v7630, %v7736
    %v7775 = vadd.f32 %v7631, %v7738
    %v7776 = vadd.f32 %v7632, %v7740
    %v7777 = vadd.f32 %v7633, %v7742
    %v7778 = vadd.f32 %v7634, %v7746
    %v7779 = vadd.f32 %v7635, %v7748
    %v7780 = vadd.f32 %v7636, %v7750
    %v7781 = vadd.f32 %v7637, %v7752
    %v7782 = vadd.f32 %v7638, %v7756
    %v7783 = vadd.f32 %v7639, %v7758
    %v7784 = vadd.f32 %v7640, %v7760
    %v7785 = vadd.f32 %v7641, %v7762
    %v7786 = vadd.f32 %v7642, %v7766
    %v7787 = vadd.f32 %v7643, %v7768
    %v7788 = vadd.f32 %v7644, %v7770
    %v7789 = vadd.f32 %v7645, %v7772
    %s7790 = scalar_lea.vmem %s6, 480
    %v7791 = vld [vmem:[%s7790] sm:$0xf]
    %v7792 = vld [vmem:[%s7790 + $0x4] sm:$0xf]
    %v7793 = vld [vmem:[%s7790 + $0x8] sm:$0xf]
    %v7794 = vld [vmem:[%s7790 + $0xc] sm:$0xf]
    %v7795 = vld [vmem:[%s7790 + $0x10] sm:$0xf]
    %v7796 = vld [vmem:[%s7790 + $0x14] sm:$0xf]
    %v7797 = vld [vmem:[%s7790 + $0x18] sm:$0xf]
    %v7798 = vld [vmem:[%s7790 + $0x1c] sm:$0xf]
    %v7807 = vunpack.c.l.b16 %v7791
    %v7808 = vunpack.c.l.b16 %v7792
    %v7809 = vunpack.c.l.b16 %v7793
    %v7810 = vunpack.c.l.b16 %v7794
    %v7811 = vunpack.c.l.b16 %v7795
    %v7812 = vunpack.c.l.b16 %v7796
    %v7813 = vunpack.c.l.b16 %v7797
    %v7814 = vunpack.c.l.b16 %v7798
    %v7815 = vpack.c.b16 %v7808, %v7807
    %v7816 = vpack.c.b16 %v7810, %v7809
    %v7817 = vpack.c.b16 %v7812, %v7811
    %v7818 = vpack.c.b16 %v7814, %v7813
    %7819 = vrot.lane.b32.xlu0 %v5696, 96
    %v7820 = vpop.permute.xlu0 %7819
    %7821 = vrot.lane.b32.xlu0 %v5697, 96
    %v7822 = vpop.permute.xlu0 %7821
    %7823 = vrot.lane.b32.xlu0 %v5698, 96
    %v7824 = vpop.permute.xlu0 %7823
    %7825 = vrot.lane.b32.xlu0 %v5699, 96
    %v7826 = vpop.permute.xlu0 %7825
    %v7827 = vsel %vm6128, %v7820, %v7822
    %v7828 = vsel %vm6128, %v7824, %v7826
    %v7834 = vsel %vm5755, %v7815, 0
    %v7837 = vsel %vm5755, %v7816, 0
    %v7840 = vsel %vm5755, %v7817, 0
    %v7843 = vsel %vm5755, %v7818, 0
    %7845 = vmatprep.subr.bf16.mxu0 %v7822
    %7846 = vmatpush1.bf16.msra.mxu0 %v7827
    %7847 = vmatprep.subr.bf16.mxu0 %v7826
    %7848 = vmatpush1.bf16.msra.mxu0 %v7828
    %7849 = vmatprep.subr.bf16.mxu0 0
    %7850 = vmatpush1.bf16.msra.mxu0 0
    %7851 = vmatprep.subr.bf16.mxu0 0
    %7852 = vmatpush1.bf16.msra.mxu0 0
    %7853 = vmatprep.subr.bf16.mxu0 0
    %7854 = vmatpush1.bf16.msra.mxu0 0
    %7855 = vmatprep.subr.bf16.mxu0 0
    %7856 = vmatpush1.bf16.msra.mxu0 0
    %7857 = vmatprep.subr.bf16.mxu0 0
    %7858 = vmatpush1.bf16.msra.mxu0 0
    %7859 = vmatprep.subr.bf16.mxu0 0
    %7860 = vmatpush1.bf16.msra.mxu0 0
    %7861 = vmatprep.subr.bf16.mxu0 0
    %7862 = vmatpush1.bf16.msra.mxu0 0
    %7863 = vmatprep.subr.bf16.mxu0 0
    %7864 = vmatpush1.bf16.msra.mxu0 0
    %7865 = vmatprep.subr.bf16.mxu0 0
    %7866 = vmatpush1.bf16.msra.mxu0 0
    %7867 = vmatprep.subr.bf16.mxu0 0
    %7868 = vmatpush1.bf16.msra.mxu0 0
    %7869 = vmatprep.subr.bf16.mxu0 0
    %7870 = vmatpush1.bf16.msra.mxu0 0
    %7871 = vmatprep.subr.bf16.mxu0 0
    %7872 = vmatpush1.bf16.msra.mxu0 0
    %7873 = vmatprep.subr.bf16.mxu0 0
    %7874 = vmatpush1.bf16.msra.mxu0 0
    %7875 = vmatprep.subr.bf16.mxu0 0
    %7876 = vmatpush1.bf16.msra.mxu0 0
    %7877 = vmatprep.mubr.bf16.mxu0 0
    %7878 = vmatmul.mubr.bf16.gmra.mrb[0].mxu0 %v7834
    %v7879 = vpop.f32.mrb[0].mxu0
    %v7880 = vadd.f32 0.0, %v7879
    %v7881 = vpop.f32.mrb[0].mxu0
    %v7882 = vadd.f32 0.0, %v7881
    %v7883 = vpop.f32.mrb[0].mxu0
    %v7884 = vadd.f32 0.0, %v7883
    %v7885 = vpop.f32.mrb[0].mxu0
    %v7886 = vadd.f32 0.0, %v7885
    %7887 = vmatprep.mubr.bf16.mxu0 0
    %7888 = vmatmul.mubr.bf16.gmra.mrb[0].mxu0 %v7837
    %v7889 = vpop.f32.mrb[0].mxu0
    %v7890 = vadd.f32 0.0, %v7889
    %v7891 = vpop.f32.mrb[0].mxu0
    %v7892 = vadd.f32 0.0, %v7891
    %v7893 = vpop.f32.mrb[0].mxu0
    %v7894 = vadd.f32 0.0, %v7893
    %v7895 = vpop.f32.mrb[0].mxu0
    %v7896 = vadd.f32 0.0, %v7895
    %7897 = vmatprep.mubr.bf16.mxu0 0
    %7898 = vmatmul.mubr.bf16.gmra.mrb[0].mxu0 %v7840
    %v7899 = vpop.f32.mrb[0].mxu0
    %v7900 = vadd.f32 0.0, %v7899
    %v7901 = vpop.f32.mrb[0].mxu0
    %v7902 = vadd.f32 0.0, %v7901
    %v7903 = vpop.f32.mrb[0].mxu0
    %v7904 = vadd.f32 0.0, %v7903
    %v7905 = vpop.f32.mrb[0].mxu0
    %v7906 = vadd.f32 0.0, %v7905
    %7907 = vmatprep.mubr.bf16.mxu0 0
    %7908 = vmatmul.mubr.bf16.gmra.mrb[0].mxu0 %v7843
    %v7909 = vpop.f32.mrb[0].mxu0
    %v7910 = vadd.f32 0.0, %v7909
    %v7911 = vpop.f32.mrb[0].mxu0
    %v7912 = vadd.f32 0.0, %v7911
    %v7913 = vpop.f32.mrb[0].mxu0
    %v7914 = vadd.f32 0.0, %v7913
    %v7915 = vpop.f32.mrb[0].mxu0
    %v7916 = vadd.f32 0.0, %v7915
    %7917 = vdwg.mxu0
    %v7918 = vadd.f32 %v7774, %v7880
    %v7919 = vadd.f32 %v7775, %v7882
    %v7920 = vadd.f32 %v7776, %v7884
    %v7921 = vadd.f32 %v7777, %v7886
    %v7922 = vadd.f32 %v7778, %v7890
    %v7923 = vadd.f32 %v7779, %v7892
    %v7924 = vadd.f32 %v7780, %v7894
    %v7925 = vadd.f32 %v7781, %v7896
    %v7926 = vadd.f32 %v7782, %v7900
    %v7927 = vadd.f32 %v7783, %v7902
    %v7928 = vadd.f32 %v7784, %v7904
    %v7929 = vadd.f32 %v7785, %v7906
    %v7930 = vadd.f32 %v7786, %v7910
    %v7931 = vadd.f32 %v7787, %v7912
    %v7932 = vadd.f32 %v7788, %v7914
    %v7933 = vadd.f32 %v7789, %v7916
    %v7934 = vld [vmem:[%s7] sm:$0xff]
    %v7935 = vld [vmem:[%s7 + $0x8] sm:$0xff]
    %v7936 = vld [vmem:[%s7 + $0x10] sm:$0xff]
    %v7937 = vld [vmem:[%s7 + $0x18] sm:$0xff]
    %v7938 = vld [vmem:[%s7 + $0x20] sm:$0xff]
    %v7939 = vld [vmem:[%s7 + $0x28] sm:$0xff]
    %v7940 = vld [vmem:[%s7 + $0x30] sm:$0xff]
    %v7941 = vld [vmem:[%s7 + $0x38] sm:$0xff]
    %7943 = vset.pattern.permute.xlu0 0
    %7944 = vperm.xlu0 %7943, %v7934
    %v7945 = vpop.permute.xlu0 %7944
    %7948 = vset.pattern.permute.xlu0 0
    %7949 = vperm.xlu0 %7948, %v7935
    %v7950 = vpop.permute.xlu0 %7949
    %7953 = vset.pattern.permute.xlu0 0
    %7954 = vperm.xlu0 %7953, %v7936
    %v7955 = vpop.permute.xlu0 %7954
    %7958 = vset.pattern.permute.xlu0 0
    %7959 = vperm.xlu0 %7958, %v7937
    %v7960 = vpop.permute.xlu0 %7959
    %7963 = vset.pattern.permute.xlu0 0
    %7964 = vperm.xlu0 %7963, %v7938
    %v7965 = vpop.permute.xlu0 %7964
    %7968 = vset.pattern.permute.xlu0 0
    %7969 = vperm.xlu0 %7968, %v7939
    %v7970 = vpop.permute.xlu0 %7969
    %7973 = vset.pattern.permute.xlu0 0
    %7974 = vperm.xlu0 %7973, %v7940
    %v7975 = vpop.permute.xlu0 %7974
    %7978 = vset.pattern.permute.xlu0 0
    %7979 = vperm.xlu0 %7978, %v7941
    %v7980 = vpop.permute.xlu0 %7979
    %v7982 = vadd.f32 %v7918, %v7945
    %v7983 = vadd.f32 %v7919, %v7945
    %v7984 = vadd.f32 %v7920, %v7950
    %v7985 = vadd.f32 %v7921, %v7950
    %v7986 = vadd.f32 %v7922, %v7955
    %v7987 = vadd.f32 %v7923, %v7955
    %v7988 = vadd.f32 %v7924, %v7960
    %v7989 = vadd.f32 %v7925, %v7960
    %v7990 = vadd.f32 %v7926, %v7965
    %v7991 = vadd.f32 %v7927, %v7965
    %v7992 = vadd.f32 %v7928, %v7970
    %v7993 = vadd.f32 %v7929, %v7970
    %v7994 = vadd.f32 %v7930, %v7975
    %v7995 = vadd.f32 %v7931, %v7975
    %v7996 = vadd.f32 %v7932, %v7980
    %v7997 = vadd.f32 %v7933, %v7980
    %v7998 = vmax.f32 %v7982, 0.0
    %v7999 = vmax.f32 %v7983, 0.0
    %v8000 = vmax.f32 %v7984, 0.0
    %v8001 = vmax.f32 %v7985, 0.0
    %v8002 = vmax.f32 %v7986, 0.0
    %v8003 = vmax.f32 %v7987, 0.0
    %v8004 = vmax.f32 %v7988, 0.0
    %v8005 = vmax.f32 %v7989, 0.0
    %v8006 = vmax.f32 %v7990, 0.0
    %v8007 = vmax.f32 %v7991, 0.0
    %v8008 = vmax.f32 %v7992, 0.0
    %v8009 = vmax.f32 %v7993, 0.0
    %v8010 = vmax.f32 %v7994, 0.0
    %v8011 = vmax.f32 %v7995, 0.0
    %v8012 = vmax.f32 %v7996, 0.0
    %v8013 = vmax.f32 %v7997, 0.0
    %v8014 = vpack.c.bf16 %v8000, %v7998
    %v8015 = vpack.c.bf16 %v8001, %v7999
    %v8016 = vpack.c.bf16 %v8004, %v8002
    %v8017 = vpack.c.bf16 %v8005, %v8003
    %v8018 = vpack.c.bf16 %v8008, %v8006
    %v8019 = vpack.c.bf16 %v8009, %v8007
    %v8020 = vpack.c.bf16 %v8012, %v8010
    %v8021 = vpack.c.bf16 %v8013, %v8011
    %v8022 = vld [vmem:[%s8] sm:$0xf]
    %v8023 = vld [vmem:[%s8 + $0x4] sm:$0xf]
    %v8024 = vld [vmem:[%s8 + $0x8] sm:$0xf]
    %v8025 = vld [vmem:[%s8 + $0xc] sm:$0xf]
    %s8026 = scalar_lea.vmem %s8, 16
    %v8027 = vld [vmem:[%s8026] sm:$0xf]
    %v8028 = vld [vmem:[%s8026 + $0x4] sm:$0xf]
    %v8029 = vld [vmem:[%s8026 + $0x8] sm:$0xf]
    %v8030 = vld [vmem:[%s8026 + $0xc] sm:$0xf]
    %v8035 = vunpack.c.l.b16 %v8027
    %v8036 = vunpack.c.l.b16 %v8028
    %v8037 = vunpack.c.l.b16 %v8029
    %v8038 = vunpack.c.l.b16 %v8030
    %v8039 = vpack.c.b16 %v8036, %v8035
    %v8040 = vpack.c.b16 %v8038, %v8037
    %8045 = vrot.lane.b32.xlu0 %v8014, 124
    %v8046 = vpop.permute.xlu0 %8045
    %8047 = vrot.lane.b32.xlu0 %v8016, 124
    %v8048 = vpop.permute.xlu0 %8047
    %8049 = vrot.lane.b32.xlu0 %v8018, 124
    %v8050 = vpop.permute.xlu0 %8049
    %8051 = vrot.lane.b32.xlu0 %v8020, 124
    %v8052 = vpop.permute.xlu0 %8051
    %vm8057 = vcmask 523264
    %v8059 = vsel %vm8057, %v8039, 0
    %v8062 = vsel %vm8057, %v8040, 0
    %8064 = vmatprep.subr.bf16.mxu0 0
    %8065 = vmatpush1.bf16.msra.mxu0 %v8046
    %8066 = vmatprep.subr.bf16.mxu0 0
    %8067 = vmatpush1.bf16.msra.mxu0 %v8048
    %8068 = vmatprep.subr.bf16.mxu0 0
    %8069 = vmatpush1.bf16.msra.mxu0 %v8050
    %8070 = vmatprep.subr.bf16.mxu0 0
    %8071 = vmatpush1.bf16.msra.mxu0 %v8052
    %8072 = vmatprep.subr.bf16.mxu0 0
    %8073 = vmatpush1.bf16.msra.mxu0 0
    %8074 = vmatprep.subr.bf16.mxu0 0
    %8075 = vmatpush1.bf16.msra.mxu0 0
    %8076 = vmatprep.subr.bf16.mxu0 0
    %8077 = vmatpush1.bf16.msra.mxu0 0
    %8078 = vmatprep.subr.bf16.mxu0 0
    %8079 = vmatpush1.bf16.msra.mxu0 0
    %8080 = vmatprep.subr.bf16.mxu0 0
    %8081 = vmatpush1.bf16.msra.mxu0 0
    %8082 = vmatprep.subr.bf16.mxu0 0
    %8083 = vmatpush1.bf16.msra.mxu0 0
    %8084 = vmatprep.subr.bf16.mxu0 0
    %8085 = vmatpush1.bf16.msra.mxu0 0
    %8086 = vmatprep.subr.bf16.mxu0 0
    %8087 = vmatpush1.bf16.msra.mxu0 0
    %8088 = vmatprep.subr.bf16.mxu0 0
    %8089 = vmatpush1.bf16.msra.mxu0 0
    %8090 = vmatprep.subr.bf16.mxu0 0
    %8091 = vmatpush1.bf16.msra.mxu0 0
    %8092 = vmatprep.subr.bf16.mxu0 0
    %8093 = vmatpush1.bf16.msra.mxu0 0
    %8094 = vmatprep.subr.bf16.mxu0 0
    %8095 = vmatpush1.bf16.msra.mxu0 0
    %8096 = vmatprep.mubr.bf16.mxu0 0
    %8097 = vmatmul.mubr.bf16.gmra.mrb[0].mxu0 %v8059
    %v8098 = vpop.f32.mrb[0].mxu0
    %v8099 = vadd.f32 0.0, %v8098
    %v8100 = vpop.f32.mrb[0].mxu0
    %v8101 = vpop.f32.mrb[0].mxu0
    %v8102 = vadd.f32 0.0, %v8101
    %v8103 = vpop.f32.mrb[0].mxu0
    %8104 = vmatprep.mubr.bf16.mxu0 0
    %8105 = vmatmul.mubr.bf16.gmra.mrb[0].mxu0 %v8062
    %v8106 = vpop.f32.mrb[0].mxu0
    %v8107 = vadd.f32 0.0, %v8106
    %v8108 = vpop.f32.mrb[0].mxu0
    %v8109 = vpop.f32.mrb[0].mxu0
    %v8110 = vadd.f32 0.0, %v8109
    %v8111 = vpop.f32.mrb[0].mxu0
    %8112 = vdwg.mxu0
    %v8117 = vunpack.c.l.b16 %v8022
    %v8118 = vunpack.c.l.b16 %v8023
    %v8119 = vunpack.c.l.b16 %v8024
    %v8120 = vunpack.c.l.b16 %v8025
    %v8121 = vpack.c.b16 %v8118, %v8117
    %v8122 = vpack.c.b16 %v8120, %v8119
    %v8124 = vsel %vm8057, %v8121, 0
    %v8127 = vsel %vm8057, %v8122, 0
    %8129 = vmatprep.subr.bf16.mxu0 0
    %8130 = vmatpush1.bf16.msra.mxu0 %v8014
    %8131 = vmatprep.subr.bf16.mxu0 0
    %8132 = vmatpush1.bf16.msra.mxu0 %v8016
    %8133 = vmatprep.subr.bf16.mxu0 0
    %8134 = vmatpush1.bf16.msra.mxu0 %v8018
    %8135 = vmatprep.subr.bf16.mxu0 0
    %8136 = vmatpush1.bf16.msra.mxu0 %v8020
    %8137 = vmatprep.subr.bf16.mxu0 0
    %8138 = vmatpush1.bf16.msra.mxu0 0
    %8139 = vmatprep.subr.bf16.mxu0 0
    %8140 = vmatpush1.bf16.msra.mxu0 0
    %8141 = vmatprep.subr.bf16.mxu0 0
    %8142 = vmatpush1.bf16.msra.mxu0 0
    %8143 = vmatprep.subr.bf16.mxu0 0
    %8144 = vmatpush1.bf16.msra.mxu0 0
    %8145 = vmatprep.subr.bf16.mxu0 0
    %8146 = vmatpush1.bf16.msra.mxu0 0
    %8147 = vmatprep.subr.bf16.mxu0 0
    %8148 = vmatpush1.bf16.msra.mxu0 0
    %8149 = vmatprep.subr.bf16.mxu0 0
    %8150 = vmatpush1.bf16.msra.mxu0 0
    %8151 = vmatprep.subr.bf16.mxu0 0
    %8152 = vmatpush1.bf16.msra.mxu0 0
    %8153 = vmatprep.subr.bf16.mxu0 0
    %8154 = vmatpush1.bf16.msra.mxu0 0
    %8155 = vmatprep.subr.bf16.mxu0 0
    %8156 = vmatpush1.bf16.msra.mxu0 0
    %8157 = vmatprep.subr.bf16.mxu0 0
    %8158 = vmatpush1.bf16.msra.mxu0 0
    %8159 = vmatprep.subr.bf16.mxu0 0
    %8160 = vmatpush1.bf16.msra.mxu0 0
    %8161 = vmatprep.mubr.bf16.mxu0 0
    %8162 = vmatmul.mubr.bf16.gmra.mrb[0].mxu0 %v8124
    %v8163 = vpop.f32.mrb[0].mxu0
    %v8164 = vadd.f32 %v8099, %v8163
    %v8165 = vpop.f32.mrb[0].mxu0
    %v8166 = vpop.f32.mrb[0].mxu0
    %v8167 = vadd.f32 %v8102, %v8166
    %v8168 = vpop.f32.mrb[0].mxu0
    %8169 = vmatprep.mubr.bf16.mxu0 0
    %8170 = vmatmul.mubr.bf16.gmra.mrb[0].mxu0 %v8127
    %v8171 = vpop.f32.mrb[0].mxu0
    %v8172 = vadd.f32 %v8107, %v8171
    %v8173 = vpop.f32.mrb[0].mxu0
    %v8174 = vpop.f32.mrb[0].mxu0
    %v8175 = vadd.f32 %v8110, %v8174
    %v8176 = vpop.f32.mrb[0].mxu0
    %8177 = vdwg.mxu0
    %s8178 = scalar_lea.vmem %s8, 32
    %v8179 = vld [vmem:[%s8178] sm:$0xf]
    %v8180 = vld [vmem:[%s8178 + $0x4] sm:$0xf]
    %v8181 = vld [vmem:[%s8178 + $0x8] sm:$0xf]
    %v8182 = vld [vmem:[%s8178 + $0xc] sm:$0xf]
    %v8187 = vunpack.c.l.b16 %v8179
    %v8188 = vunpack.c.l.b16 %v8180
    %v8189 = vunpack.c.l.b16 %v8181
    %v8190 = vunpack.c.l.b16 %v8182
    %v8191 = vpack.c.b16 %v8188, %v8187
    %v8192 = vpack.c.b16 %v8190, %v8189
    %8193 = vrot.lane.b32.xlu0 %v8014, 120
    %v8194 = vpop.permute.xlu0 %8193
    %8195 = vrot.lane.b32.xlu0 %v8016, 120
    %v8196 = vpop.permute.xlu0 %8195
    %8197 = vrot.lane.b32.xlu0 %v8018, 120
    %v8198 = vpop.permute.xlu0 %8197
    %8199 = vrot.lane.b32.xlu0 %v8020, 120
    %v8200 = vpop.permute.xlu0 %8199
    %v8206 = vsel %vm8057, %v8191, 0
    %v8209 = vsel %vm8057, %v8192, 0
    %8211 = vmatprep.subr.bf16.mxu0 0
    %8212 = vmatpush1.bf16.msra.mxu0 %v8194
    %8213 = vmatprep.subr.bf16.mxu0 0
    %8214 = vmatpush1.bf16.msra.mxu0 %v8196
    %8215 = vmatprep.subr.bf16.mxu0 0
    %8216 = vmatpush1.bf16.msra.mxu0 %v8198
    %8217 = vmatprep.subr.bf16.mxu0 0
    %8218 = vmatpush1.bf16.msra.mxu0 %v8200
    %8219 = vmatprep.subr.bf16.mxu0 0
    %8220 = vmatpush1.bf16.msra.mxu0 0
    %8221 = vmatprep.subr.bf16.mxu0 0
    %8222 = vmatpush1.bf16.msra.mxu0 0
    %8223 = vmatprep.subr.bf16.mxu0 0
    %8224 = vmatpush1.bf16.msra.mxu0 0
    %8225 = vmatprep.subr.bf16.mxu0 0
    %8226 = vmatpush1.bf16.msra.mxu0 0
    %8227 = vmatprep.subr.bf16.mxu0 0
    %8228 = vmatpush1.bf16.msra.mxu0 0
    %8229 = vmatprep.subr.bf16.mxu0 0
    %8230 = vmatpush1.bf16.msra.mxu0 0
    %8231 = vmatprep.subr.bf16.mxu0 0
    %8232 = vmatpush1.bf16.msra.mxu0 0
    %8233 = vmatprep.subr.bf16.mxu0 0
    %8234 = vmatpush1.bf16.msra.mxu0 0
    %8235 = vmatprep.subr.bf16.mxu0 0
    %8236 = vmatpush1.bf16.msra.mxu0 0
    %8237 = vmatprep.subr.bf16.mxu0 0
    %8238 = vmatpush1.bf16.msra.mxu0 0
    %8239 = vmatprep.subr.bf16.mxu0 0
    %8240 = vmatpush1.bf16.msra.mxu0 0
    %8241 = vmatprep.subr.bf16.mxu0 0
    %8242 = vmatpush1.bf16.msra.mxu0 0
    %8243 = vmatprep.mubr.bf16.mxu0 0
    %8244 = vmatmul.mubr.bf16.gmra.mrb[0].mxu0 %v8206
    %v8245 = vpop.f32.mrb[0].mxu0
    %v8246 = vadd.f32 0.0, %v8245
    %v8247 = vpop.f32.mrb[0].mxu0
    %v8248 = vpop.f32.mrb[0].mxu0
    %v8249 = vadd.f32 0.0, %v8248
    %v8250 = vpop.f32.mrb[0].mxu0
    %8251 = vmatprep.mubr.bf16.mxu0 0
    %8252 = vmatmul.mubr.bf16.gmra.mrb[0].mxu0 %v8209
    %v8253 = vpop.f32.mrb[0].mxu0
    %v8254 = vadd.f32 0.0, %v8253
    %v8255 = vpop.f32.mrb[0].mxu0
    %v8256 = vpop.f32.mrb[0].mxu0
    %v8257 = vadd.f32 0.0, %v8256
    %v8258 = vpop.f32.mrb[0].mxu0
    %8259 = vdwg.mxu0
    %v8260 = vadd.f32 %v8164, %v8246
    %v8261 = vadd.f32 %v8167, %v8249
    %v8262 = vadd.f32 %v8172, %v8254
    %v8263 = vadd.f32 %v8175, %v8257
    %s8264 = scalar_lea.vmem %s8, 48
    %v8265 = vld [vmem:[%s8264] sm:$0xf]
    %v8266 = vld [vmem:[%s8264 + $0x4] sm:$0xf]
    %v8267 = vld [vmem:[%s8264 + $0x8] sm:$0xf]
    %v8268 = vld [vmem:[%s8264 + $0xc] sm:$0xf]
    %v8273 = vunpack.c.l.b16 %v8265
    %v8274 = vunpack.c.l.b16 %v8266
    %v8275 = vunpack.c.l.b16 %v8267
    %v8276 = vunpack.c.l.b16 %v8268
    %v8277 = vpack.c.b16 %v8274, %v8273
    %v8278 = vpack.c.b16 %v8276, %v8275
    %8283 = vrot.lane.b32.xlu0 %v8014, 100
    %v8284 = vpop.permute.xlu0 %8283
    %8285 = vrot.lane.b32.xlu0 %v8015, 100
    %v8286 = vpop.permute.xlu0 %8285
    %8287 = vrot.lane.b32.xlu0 %v8016, 100
    %v8288 = vpop.permute.xlu0 %8287
    %8289 = vrot.lane.b32.xlu0 %v8017, 100
    %v8290 = vpop.permute.xlu0 %8289
    %8291 = vrot.lane.b32.xlu0 %v8018, 100
    %v8292 = vpop.permute.xlu0 %8291
    %8293 = vrot.lane.b32.xlu0 %v8019, 100
    %v8294 = vpop.permute.xlu0 %8293
    %8295 = vrot.lane.b32.xlu0 %v8020, 100
    %v8296 = vpop.permute.xlu0 %8295
    %8297 = vrot.lane.b32.xlu0 %v8021, 100
    %v8298 = vpop.permute.xlu0 %8297
    %v8299 = vsel %vm5983, %v8284, %v8286
    %v8300 = vsel %vm5983, %v8288, %v8290
    %v8301 = vsel %vm5983, %v8292, %v8294
    %v8302 = vsel %vm5983, %v8296, %v8298
    %v8308 = vsel %vm8057, %v8277, 0
    %v8311 = vsel %vm8057, %v8278, 0
    %8313 = vmatprep.subr.bf16.mxu0 0
    %8314 = vmatpush1.bf16.msra.mxu0 %v8299
    %8315 = vmatprep.subr.bf16.mxu0 0
    %8316 = vmatpush1.bf16.msra.mxu0 %v8300
    %8317 = vmatprep.subr.bf16.mxu0 0
    %8318 = vmatpush1.bf16.msra.mxu0 %v8301
    %8319 = vmatprep.subr.bf16.mxu0 0
    %8320 = vmatpush1.bf16.msra.mxu0 %v8302
    %8321 = vmatprep.subr.bf16.mxu0 0
    %8322 = vmatpush1.bf16.msra.mxu0 0
    %8323 = vmatprep.subr.bf16.mxu0 0
    %8324 = vmatpush1.bf16.msra.mxu0 0
    %8325 = vmatprep.subr.bf16.mxu0 0
    %8326 = vmatpush1.bf16.msra.mxu0 0
    %8327 = vmatprep.subr.bf16.mxu0 0
    %8328 = vmatpush1.bf16.msra.mxu0 0
    %8329 = vmatprep.subr.bf16.mxu0 0
    %8330 = vmatpush1.bf16.msra.mxu0 0
    %8331 = vmatprep.subr.bf16.mxu0 0
    %8332 = vmatpush1.bf16.msra.mxu0 0
    %8333 = vmatprep.subr.bf16.mxu0 0
    %8334 = vmatpush1.bf16.msra.mxu0 0
    %8335 = vmatprep.subr.bf16.mxu0 0
    %8336 = vmatpush1.bf16.msra.mxu0 0
    %8337 = vmatprep.subr.bf16.mxu0 0
    %8338 = vmatpush1.bf16.msra.mxu0 0
    %8339 = vmatprep.subr.bf16.mxu0 0
    %8340 = vmatpush1.bf16.msra.mxu0 0
    %8341 = vmatprep.subr.bf16.mxu0 0
    %8342 = vmatpush1.bf16.msra.mxu0 0
    %8343 = vmatprep.subr.bf16.mxu0 0
    %8344 = vmatpush1.bf16.msra.mxu0 0
    %8345 = vmatprep.mubr.bf16.mxu0 0
    %8346 = vmatmul.mubr.bf16.gmra.mrb[0].mxu0 %v8308
    %v8347 = vpop.f32.mrb[0].mxu0
    %v8348 = vadd.f32 0.0, %v8347
    %v8349 = vpop.f32.mrb[0].mxu0
    %v8350 = vpop.f32.mrb[0].mxu0
    %v8351 = vadd.f32 0.0, %v8350
    %v8352 = vpop.f32.mrb[0].mxu0
    %8353 = vmatprep.mubr.bf16.mxu0 0
    %8354 = vmatmul.mubr.bf16.gmra.mrb[0].mxu0 %v8311
    %v8355 = vpop.f32.mrb[0].mxu0
    %v8356 = vadd.f32 0.0, %v8355
    %v8357 = vpop.f32.mrb[0].mxu0
    %v8358 = vpop.f32.mrb[0].mxu0
    %v8359 = vadd.f32 0.0, %v8358
    %v8360 = vpop.f32.mrb[0].mxu0
    %8361 = vdwg.mxu0
    %v8362 = vadd.f32 %v8260, %v8348
    %v8363 = vadd.f32 %v8261, %v8351
    %v8364 = vadd.f32 %v8262, %v8356
    %v8365 = vadd.f32 %v8263, %v8359
    %s8366 = scalar_lea.vmem %s8, 64
    %v8367 = vld [vmem:[%s8366] sm:$0xf]
    %v8368 = vld [vmem:[%s8366 + $0x4] sm:$0xf]
    %v8369 = vld [vmem:[%s8366 + $0x8] sm:$0xf]
    %v8370 = vld [vmem:[%s8366 + $0xc] sm:$0xf]
    %v8375 = vunpack.c.l.b16 %v8367
    %v8376 = vunpack.c.l.b16 %v8368
    %v8377 = vunpack.c.l.b16 %v8369
    %v8378 = vunpack.c.l.b16 %v8370
    %v8379 = vpack.c.b16 %v8376, %v8375
    %v8380 = vpack.c.b16 %v8378, %v8377
    %8381 = vrot.lane.b32.xlu0 %v8014, 96
    %v8382 = vpop.permute.xlu0 %8381
    %8383 = vrot.lane.b32.xlu0 %v8015, 96
    %v8384 = vpop.permute.xlu0 %8383
    %8385 = vrot.lane.b32.xlu0 %v8016, 96
    %v8386 = vpop.permute.xlu0 %8385
    %8387 = vrot.lane.b32.xlu0 %v8017, 96
    %v8388 = vpop.permute.xlu0 %8387
    %8389 = vrot.lane.b32.xlu0 %v8018, 96
    %v8390 = vpop.permute.xlu0 %8389
    %8391 = vrot.lane.b32.xlu0 %v8019, 96
    %v8392 = vpop.permute.xlu0 %8391
    %8393 = vrot.lane.b32.xlu0 %v8020, 96
    %v8394 = vpop.permute.xlu0 %8393
    %8395 = vrot.lane.b32.xlu0 %v8021, 96
    %v8396 = vpop.permute.xlu0 %8395
    %v8397 = vsel %vm6128, %v8382, %v8384
    %v8398 = vsel %vm6128, %v8386, %v8388
    %v8399 = vsel %vm6128, %v8390, %v8392
    %v8400 = vsel %vm6128, %v8394, %v8396
    %v8406 = vsel %vm8057, %v8379, 0
    %v8409 = vsel %vm8057, %v8380, 0
    %8411 = vmatprep.subr.bf16.mxu0 0
    %8412 = vmatpush1.bf16.msra.mxu0 %v8397
    %8413 = vmatprep.subr.bf16.mxu0 0
    %8414 = vmatpush1.bf16.msra.mxu0 %v8398
    %8415 = vmatprep.subr.bf16.mxu0 0
    %8416 = vmatpush1.bf16.msra.mxu0 %v8399
    %8417 = vmatprep.subr.bf16.mxu0 0
    %8418 = vmatpush1.bf16.msra.mxu0 %v8400
    %8419 = vmatprep.subr.bf16.mxu0 0
    %8420 = vmatpush1.bf16.msra.mxu0 0
    %8421 = vmatprep.subr.bf16.mxu0 0
    %8422 = vmatpush1.bf16.msra.mxu0 0
    %8423 = vmatprep.subr.bf16.mxu0 0
    %8424 = vmatpush1.bf16.msra.mxu0 0
    %8425 = vmatprep.subr.bf16.mxu0 0
    %8426 = vmatpush1.bf16.msra.mxu0 0
    %8427 = vmatprep.subr.bf16.mxu0 0
    %8428 = vmatpush1.bf16.msra.mxu0 0
    %8429 = vmatprep.subr.bf16.mxu0 0
    %8430 = vmatpush1.bf16.msra.mxu0 0
    %8431 = vmatprep.subr.bf16.mxu0 0
    %8432 = vmatpush1.bf16.msra.mxu0 0
    %8433 = vmatprep.subr.bf16.mxu0 0
    %8434 = vmatpush1.bf16.msra.mxu0 0
    %8435 = vmatprep.subr.bf16.mxu0 0
    %8436 = vmatpush1.bf16.msra.mxu0 0
    %8437 = vmatprep.subr.bf16.mxu0 0
    %8438 = vmatpush1.bf16.msra.mxu0 0
    %8439 = vmatprep.subr.bf16.mxu0 0
    %8440 = vmatpush1.bf16.msra.mxu0 0
    %8441 = vmatprep.subr.bf16.mxu0 0
    %8442 = vmatpush1.bf16.msra.mxu0 0
    %8443 = vmatprep.mubr.bf16.mxu0 0
    %8444 = vmatmul.mubr.bf16.gmra.mrb[0].mxu0 %v8406
    %v8445 = vpop.f32.mrb[0].mxu0
    %v8446 = vadd.f32 0.0, %v8445
    %v8447 = vpop.f32.mrb[0].mxu0
    %v8448 = vpop.f32.mrb[0].mxu0
    %v8449 = vadd.f32 0.0, %v8448
    %v8450 = vpop.f32.mrb[0].mxu0
    %8451 = vmatprep.mubr.bf16.mxu0 0
    %8452 = vmatmul.mubr.bf16.gmra.mrb[0].mxu0 %v8409
    %v8453 = vpop.f32.mrb[0].mxu0
    %v8454 = vadd.f32 0.0, %v8453
    %v8455 = vpop.f32.mrb[0].mxu0
    %v8456 = vpop.f32.mrb[0].mxu0
    %v8457 = vadd.f32 0.0, %v8456
    %v8458 = vpop.f32.mrb[0].mxu0
    %8459 = vdwg.mxu0
    %v8460 = vadd.f32 %v8362, %v8446
    %v8461 = vadd.f32 %v8363, %v8449
    %v8462 = vadd.f32 %v8364, %v8454
    %v8463 = vadd.f32 %v8365, %v8457
    %s8464 = scalar_lea.vmem %s8, 80
    %v8465 = vld [vmem:[%s8464] sm:$0xf]
    %v8466 = vld [vmem:[%s8464 + $0x4] sm:$0xf]
    %v8467 = vld [vmem:[%s8464 + $0x8] sm:$0xf]
    %v8468 = vld [vmem:[%s8464 + $0xc] sm:$0xf]
    %v8473 = vunpack.c.l.b16 %v8465
    %v8474 = vunpack.c.l.b16 %v8466
    %v8475 = vunpack.c.l.b16 %v8467
    %v8476 = vunpack.c.l.b16 %v8468
    %v8477 = vpack.c.b16 %v8474, %v8473
    %v8478 = vpack.c.b16 %v8476, %v8475
    %8479 = vrot.lane.b32.xlu0 %v8014, 92
    %v8480 = vpop.permute.xlu0 %8479
    %8481 = vrot.lane.b32.xlu0 %v8015, 92
    %v8482 = vpop.permute.xlu0 %8481
    %8483 = vrot.lane.b32.xlu0 %v8016, 92
    %v8484 = vpop.permute.xlu0 %8483
    %8485 = vrot.lane.b32.xlu0 %v8017, 92
    %v8486 = vpop.permute.xlu0 %8485
    %8487 = vrot.lane.b32.xlu0 %v8018, 92
    %v8488 = vpop.permute.xlu0 %8487
    %8489 = vrot.lane.b32.xlu0 %v8019, 92
    %v8490 = vpop.permute.xlu0 %8489
    %8491 = vrot.lane.b32.xlu0 %v8020, 92
    %v8492 = vpop.permute.xlu0 %8491
    %8493 = vrot.lane.b32.xlu0 %v8021, 92
    %v8494 = vpop.permute.xlu0 %8493
    %vm8495 = vcmask 752640
    %v8496 = vsel %vm8495, %v8480, %v8482
    %v8497 = vsel %vm8495, %v8484, %v8486
    %v8498 = vsel %vm8495, %v8488, %v8490
    %v8499 = vsel %vm8495, %v8492, %v8494
    %v8505 = vsel %vm8057, %v8477, 0
    %v8508 = vsel %vm8057, %v8478, 0
    %8510 = vmatprep.subr.bf16.mxu0 0
    %8511 = vmatpush1.bf16.msra.mxu0 %v8496
    %8512 = vmatprep.subr.bf16.mxu0 0
    %8513 = vmatpush1.bf16.msra.mxu0 %v8497
    %8514 = vmatprep.subr.bf16.mxu0 0
    %8515 = vmatpush1.bf16.msra.mxu0 %v8498
    %8516 = vmatprep.subr.bf16.mxu0 0
    %8517 = vmatpush1.bf16.msra.mxu0 %v8499
    %8518 = vmatprep.subr.bf16.mxu0 0
    %8519 = vmatpush1.bf16.msra.mxu0 0
    %8520 = vmatprep.subr.bf16.mxu0 0
    %8521 = vmatpush1.bf16.msra.mxu0 0
    %8522 = vmatprep.subr.bf16.mxu0 0
    %8523 = vmatpush1.bf16.msra.mxu0 0
    %8524 = vmatprep.subr.bf16.mxu0 0
    %8525 = vmatpush1.bf16.msra.mxu0 0
    %8526 = vmatprep.subr.bf16.mxu0 0
    %8527 = vmatpush1.bf16.msra.mxu0 0
    %8528 = vmatprep.subr.bf16.mxu0 0
    %8529 = vmatpush1.bf16.msra.mxu0 0
    %8530 = vmatprep.subr.bf16.mxu0 0
    %8531 = vmatpush1.bf16.msra.mxu0 0
    %8532 = vmatprep.subr.bf16.mxu0 0
    %8533 = vmatpush1.bf16.msra.mxu0 0
    %8534 = vmatprep.subr.bf16.mxu0 0
    %8535 = vmatpush1.bf16.msra.mxu0 0
    %8536 = vmatprep.subr.bf16.mxu0 0
    %8537 = vmatpush1.bf16.msra.mxu0 0
    %8538 = vmatprep.subr.bf16.mxu0 0
    %8539 = vmatpush1.bf16.msra.mxu0 0
    %8540 = vmatprep.subr.bf16.mxu0 0
    %8541 = vmatpush1.bf16.msra.mxu0 0
    %8542 = vmatprep.mubr.bf16.mxu0 0
    %8543 = vmatmul.mubr.bf16.gmra.mrb[0].mxu0 %v8505
    %v8544 = vpop.f32.mrb[0].mxu0
    %v8545 = vadd.f32 0.0, %v8544
    %v8546 = vpop.f32.mrb[0].mxu0
    %v8547 = vpop.f32.mrb[0].mxu0
    %v8548 = vadd.f32 0.0, %v8547
    %v8549 = vpop.f32.mrb[0].mxu0
    %8550 = vmatprep.mubr.bf16.mxu0 0
    %8551 = vmatmul.mubr.bf16.gmra.mrb[0].mxu0 %v8508
    %v8552 = vpop.f32.mrb[0].mxu0
    %v8553 = vadd.f32 0.0, %v8552
    %v8554 = vpop.f32.mrb[0].mxu0
    %v8555 = vpop.f32.mrb[0].mxu0
    %v8556 = vadd.f32 0.0, %v8555
    %v8557 = vpop.f32.mrb[0].mxu0
    %8558 = vdwg.mxu0
    %v8559 = vadd.f32 %v8460, %v8545
    %v8560 = vadd.f32 %v8461, %v8548
    %v8561 = vadd.f32 %v8462, %v8553
    %v8562 = vadd.f32 %v8463, %v8556
    %s8563 = scalar_lea.vmem %s8, 96
    %v8564 = vld [vmem:[%s8563] sm:$0xf]
    %v8565 = vld [vmem:[%s8563 + $0x4] sm:$0xf]
    %v8566 = vld [vmem:[%s8563 + $0x8] sm:$0xf]
    %v8567 = vld [vmem:[%s8563 + $0xc] sm:$0xf]
    %v8572 = vunpack.c.l.b16 %v8564
    %v8573 = vunpack.c.l.b16 %v8565
    %v8574 = vunpack.c.l.b16 %v8566
    %v8575 = vunpack.c.l.b16 %v8567
    %v8576 = vpack.c.b16 %v8573, %v8572
    %v8577 = vpack.c.b16 %v8575, %v8574
    %8578 = vrot.lane.b32.xlu0 %v8014, 72
    %v8579 = vpop.permute.xlu0 %8578
    %8580 = vrot.lane.b32.xlu0 %v8015, 72
    %v8581 = vpop.permute.xlu0 %8580
    %8582 = vrot.lane.b32.xlu0 %v8016, 72
    %v8583 = vpop.permute.xlu0 %8582
    %8584 = vrot.lane.b32.xlu0 %v8017, 72
    %v8585 = vpop.permute.xlu0 %8584
    %8586 = vrot.lane.b32.xlu0 %v8018, 72
    %v8587 = vpop.permute.xlu0 %8586
    %8588 = vrot.lane.b32.xlu0 %v8019, 72
    %v8589 = vpop.permute.xlu0 %8588
    %8590 = vrot.lane.b32.xlu0 %v8020, 72
    %v8591 = vpop.permute.xlu0 %8590
    %8592 = vrot.lane.b32.xlu0 %v8021, 72
    %v8593 = vpop.permute.xlu0 %8592
    %vm8594 = vcmask 588800
    %v8595 = vsel %vm8594, %v8579, %v8581
    %v8596 = vsel %vm8594, %v8583, %v8585
    %v8597 = vsel %vm8594, %v8587, %v8589
    %v8598 = vsel %vm8594, %v8591, %v8593
    %v8604 = vsel %vm8057, %v8576, 0
    %v8607 = vsel %vm8057, %v8577, 0
    %8609 = vmatprep.subr.bf16.mxu0 0
    %8610 = vmatpush1.bf16.msra.mxu0 %v8595
    %8611 = vmatprep.subr.bf16.mxu0 0
    %8612 = vmatpush1.bf16.msra.mxu0 %v8596
    %8613 = vmatprep.subr.bf16.mxu0 0
    %8614 = vmatpush1.bf16.msra.mxu0 %v8597
    %8615 = vmatprep.subr.bf16.mxu0 0
    %8616 = vmatpush1.bf16.msra.mxu0 %v8598
    %8617 = vmatprep.subr.bf16.mxu0 0
    %8618 = vmatpush1.bf16.msra.mxu0 0
    %8619 = vmatprep.subr.bf16.mxu0 0
    %8620 = vmatpush1.bf16.msra.mxu0 0
    %8621 = vmatprep.subr.bf16.mxu0 0
    %8622 = vmatpush1.bf16.msra.mxu0 0
    %8623 = vmatprep.subr.bf16.mxu0 0
    %8624 = vmatpush1.bf16.msra.mxu0 0
    %8625 = vmatprep.subr.bf16.mxu0 0
    %8626 = vmatpush1.bf16.msra.mxu0 0
    %8627 = vmatprep.subr.bf16.mxu0 0
    %8628 = vmatpush1.bf16.msra.mxu0 0
    %8629 = vmatprep.subr.bf16.mxu0 0
    %8630 = vmatpush1.bf16.msra.mxu0 0
    %8631 = vmatprep.subr.bf16.mxu0 0
    %8632 = vmatpush1.bf16.msra.mxu0 0
    %8633 = vmatprep.subr.bf16.mxu0 0
    %8634 = vmatpush1.bf16.msra.mxu0 0
    %8635 = vmatprep.subr.bf16.mxu0 0
    %8636 = vmatpush1.bf16.msra.mxu0 0
    %8637 = vmatprep.subr.bf16.mxu0 0
    %8638 = vmatpush1.bf16.msra.mxu0 0
    %8639 = vmatprep.subr.bf16.mxu0 0
    %8640 = vmatpush1.bf16.msra.mxu0 0
    %8641 = vmatprep.mubr.bf16.mxu0 0
    %8642 = vmatmul.mubr.bf16.gmra.mrb[0].mxu0 %v8604
    %v8643 = vpop.f32.mrb[0].mxu0
    %v8644 = vadd.f32 0.0, %v8643
    %v8645 = vpop.f32.mrb[0].mxu0
    %v8646 = vpop.f32.mrb[0].mxu0
    %v8647 = vadd.f32 0.0, %v8646
    %v8648 = vpop.f32.mrb[0].mxu0
    %8649 = vmatprep.mubr.bf16.mxu0 0
    %8650 = vmatmul.mubr.bf16.gmra.mrb[0].mxu0 %v8607
    %v8651 = vpop.f32.mrb[0].mxu0
    %v8652 = vadd.f32 0.0, %v8651
    %v8653 = vpop.f32.mrb[0].mxu0
    %v8654 = vpop.f32.mrb[0].mxu0
    %v8655 = vadd.f32 0.0, %v8654
    %v8656 = vpop.f32.mrb[0].mxu0
    %8657 = vdwg.mxu0
    %v8658 = vadd.f32 %v8559, %v8644
    %v8659 = vadd.f32 %v8560, %v8647
    %v8660 = vadd.f32 %v8561, %v8652
    %v8661 = vadd.f32 %v8562, %v8655
    %s8662 = scalar_lea.vmem %s8, 112
    %v8663 = vld [vmem:[%s8662] sm:$0xf]
    %v8664 = vld [vmem:[%s8662 + $0x4] sm:$0xf]
    %v8665 = vld [vmem:[%s8662 + $0x8] sm:$0xf]
    %v8666 = vld [vmem:[%s8662 + $0xc] sm:$0xf]
    %v8671 = vunpack.c.l.b16 %v8663
    %v8672 = vunpack.c.l.b16 %v8664
    %v8673 = vunpack.c.l.b16 %v8665
    %v8674 = vunpack.c.l.b16 %v8666
    %v8675 = vpack.c.b16 %v8672, %v8671
    %v8676 = vpack.c.b16 %v8674, %v8673
    %8677 = vrot.lane.b32.xlu0 %v8014, 68
    %v8678 = vpop.permute.xlu0 %8677
    %8679 = vrot.lane.b32.xlu0 %v8015, 68
    %v8680 = vpop.permute.xlu0 %8679
    %8681 = vrot.lane.b32.xlu0 %v8016, 68
    %v8682 = vpop.permute.xlu0 %8681
    %8683 = vrot.lane.b32.xlu0 %v8017, 68
    %v8684 = vpop.permute.xlu0 %8683
    %8685 = vrot.lane.b32.xlu0 %v8018, 68
    %v8686 = vpop.permute.xlu0 %8685
    %8687 = vrot.lane.b32.xlu0 %v8019, 68
    %v8688 = vpop.permute.xlu0 %8687
    %8689 = vrot.lane.b32.xlu0 %v8020, 68
    %v8690 = vpop.permute.xlu0 %8689
    %8691 = vrot.lane.b32.xlu0 %v8021, 68
    %v8692 = vpop.permute.xlu0 %8691
    %vm8693 = vcmask 556032
    %v8694 = vsel %vm8693, %v8678, %v8680
    %v8695 = vsel %vm8693, %v8682, %v8684
    %v8696 = vsel %vm8693, %v8686, %v8688
    %v8697 = vsel %vm8693, %v8690, %v8692
    %v8703 = vsel %vm8057, %v8675, 0
    %v8706 = vsel %vm8057, %v8676, 0
    %8708 = vmatprep.subr.bf16.mxu0 0
    %8709 = vmatpush1.bf16.msra.mxu0 %v8694
    %8710 = vmatprep.subr.bf16.mxu0 0
    %8711 = vmatpush1.bf16.msra.mxu0 %v8695
    %8712 = vmatprep.subr.bf16.mxu0 0
    %8713 = vmatpush1.bf16.msra.mxu0 %v8696
    %8714 = vmatprep.subr.bf16.mxu0 0
    %8715 = vmatpush1.bf16.msra.mxu0 %v8697
    %8716 = vmatprep.subr.bf16.mxu0 0
    %8717 = vmatpush1.bf16.msra.mxu0 0
    %8718 = vmatprep.subr.bf16.mxu0 0
    %8719 = vmatpush1.bf16.msra.mxu0 0
    %8720 = vmatprep.subr.bf16.mxu0 0
    %8721 = vmatpush1.bf16.msra.mxu0 0
    %8722 = vmatprep.subr.bf16.mxu0 0
    %8723 = vmatpush1.bf16.msra.mxu0 0
    %8724 = vmatprep.subr.bf16.mxu0 0
    %8725 = vmatpush1.bf16.msra.mxu0 0
    %8726 = vmatprep.subr.bf16.mxu0 0
    %8727 = vmatpush1.bf16.msra.mxu0 0
    %8728 = vmatprep.subr.bf16.mxu0 0
    %8729 = vmatpush1.bf16.msra.mxu0 0
    %8730 = vmatprep.subr.bf16.mxu0 0
    %8731 = vmatpush1.bf16.msra.mxu0 0
    %8732 = vmatprep.subr.bf16.mxu0 0
    %8733 = vmatpush1.bf16.msra.mxu0 0
    %8734 = vmatprep.subr.bf16.mxu0 0
    %8735 = vmatpush1.bf16.msra.mxu0 0
    %8736 = vmatprep.subr.bf16.mxu0 0
    %8737 = vmatpush1.bf16.msra.mxu0 0
    %8738 = vmatprep.subr.bf16.mxu0 0
    %8739 = vmatpush1.bf16.msra.mxu0 0
    %8740 = vmatprep.mubr.bf16.mxu0 0
    %8741 = vmatmul.mubr.bf16.gmra.mrb[0].mxu0 %v8703
    %v8742 = vpop.f32.mrb[0].mxu0
    %v8743 = vadd.f32 0.0, %v8742
    %v8744 = vpop.f32.mrb[0].mxu0
    %v8745 = vpop.f32.mrb[0].mxu0
    %v8746 = vadd.f32 0.0, %v8745
    %v8747 = vpop.f32.mrb[0].mxu0
    %8748 = vmatprep.mubr.bf16.mxu0 0
    %8749 = vmatmul.mubr.bf16.gmra.mrb[0].mxu0 %v8706
    %v8750 = vpop.f32.mrb[0].mxu0
    %v8751 = vadd.f32 0.0, %v8750
    %v8752 = vpop.f32.mrb[0].mxu0
    %v8753 = vpop.f32.mrb[0].mxu0
    %v8754 = vadd.f32 0.0, %v8753
    %v8755 = vpop.f32.mrb[0].mxu0
    %8756 = vdwg.mxu0
    %v8757 = vadd.f32 %v8658, %v8743
    %v8758 = vadd.f32 %v8659, %v8746
    %v8759 = vadd.f32 %v8660, %v8751
    %v8760 = vadd.f32 %v8661, %v8754
    %s8761 = scalar_lea.vmem %s8, 128
    %v8762 = vld [vmem:[%s8761] sm:$0xf]
    %v8763 = vld [vmem:[%s8761 + $0x4] sm:$0xf]
    %v8764 = vld [vmem:[%s8761 + $0x8] sm:$0xf]
    %v8765 = vld [vmem:[%s8761 + $0xc] sm:$0xf]
    %v8770 = vunpack.c.l.b16 %v8762
    %v8771 = vunpack.c.l.b16 %v8763
    %v8772 = vunpack.c.l.b16 %v8764
    %v8773 = vunpack.c.l.b16 %v8765
    %v8774 = vpack.c.b16 %v8771, %v8770
    %v8775 = vpack.c.b16 %v8773, %v8772
    %8776 = vrot.lane.b32.xlu0 %v8014, 64
    %v8777 = vpop.permute.xlu0 %8776
    %8778 = vrot.lane.b32.xlu0 %v8015, 64
    %v8779 = vpop.permute.xlu0 %8778
    %8780 = vrot.lane.b32.xlu0 %v8016, 64
    %v8781 = vpop.permute.xlu0 %8780
    %8782 = vrot.lane.b32.xlu0 %v8017, 64
    %v8783 = vpop.permute.xlu0 %8782
    %8784 = vrot.lane.b32.xlu0 %v8018, 64
    %v8785 = vpop.permute.xlu0 %8784
    %8786 = vrot.lane.b32.xlu0 %v8019, 64
    %v8787 = vpop.permute.xlu0 %8786
    %8788 = vrot.lane.b32.xlu0 %v8020, 64
    %v8789 = vpop.permute.xlu0 %8788
    %8790 = vrot.lane.b32.xlu0 %v8021, 64
    %v8791 = vpop.permute.xlu0 %8790
    %v8792 = vsel %vm990, %v8777, %v8779
    %v8793 = vsel %vm990, %v8781, %v8783
    %v8794 = vsel %vm990, %v8785, %v8787
    %v8795 = vsel %vm990, %v8789, %v8791
    %v8801 = vsel %vm8057, %v8774, 0
    %v8804 = vsel %vm8057, %v8775, 0
    %8806 = vmatprep.subr.bf16.mxu0 0
    %8807 = vmatpush1.bf16.msra.mxu0 %v8792
    %8808 = vmatprep.subr.bf16.mxu0 0
    %8809 = vmatpush1.bf16.msra.mxu0 %v8793
    %8810 = vmatprep.subr.bf16.mxu0 0
    %8811 = vmatpush1.bf16.msra.mxu0 %v8794
    %8812 = vmatprep.subr.bf16.mxu0 0
    %8813 = vmatpush1.bf16.msra.mxu0 %v8795
    %8814 = vmatprep.subr.bf16.mxu0 0
    %8815 = vmatpush1.bf16.msra.mxu0 0
    %8816 = vmatprep.subr.bf16.mxu0 0
    %8817 = vmatpush1.bf16.msra.mxu0 0
    %8818 = vmatprep.subr.bf16.mxu0 0
    %8819 = vmatpush1.bf16.msra.mxu0 0
    %8820 = vmatprep.subr.bf16.mxu0 0
    %8821 = vmatpush1.bf16.msra.mxu0 0
    %8822 = vmatprep.subr.bf16.mxu0 0
    %8823 = vmatpush1.bf16.msra.mxu0 0
    %8824 = vmatprep.subr.bf16.mxu0 0
    %8825 = vmatpush1.bf16.msra.mxu0 0
    %8826 = vmatprep.subr.bf16.mxu0 0
    %8827 = vmatpush1.bf16.msra.mxu0 0
    %8828 = vmatprep.subr.bf16.mxu0 0
    %8829 = vmatpush1.bf16.msra.mxu0 0
    %8830 = vmatprep.subr.bf16.mxu0 0
    %8831 = vmatpush1.bf16.msra.mxu0 0
    %8832 = vmatprep.subr.bf16.mxu0 0
    %8833 = vmatpush1.bf16.msra.mxu0 0
    %8834 = vmatprep.subr.bf16.mxu0 0
    %8835 = vmatpush1.bf16.msra.mxu0 0
    %8836 = vmatprep.subr.bf16.mxu0 0
    %8837 = vmatpush1.bf16.msra.mxu0 0
    %8838 = vmatprep.mubr.bf16.mxu0 0
    %8839 = vmatmul.mubr.bf16.gmra.mrb[0].mxu0 %v8801
    %v8840 = vpop.f32.mrb[0].mxu0
    %v8841 = vadd.f32 0.0, %v8840
    %v8842 = vpop.f32.mrb[0].mxu0
    %v8843 = vpop.f32.mrb[0].mxu0
    %v8844 = vadd.f32 0.0, %v8843
    %v8845 = vpop.f32.mrb[0].mxu0
    %8846 = vmatprep.mubr.bf16.mxu0 0
    %8847 = vmatmul.mubr.bf16.gmra.mrb[0].mxu0 %v8804
    %v8848 = vpop.f32.mrb[0].mxu0
    %v8849 = vadd.f32 0.0, %v8848
    %v8850 = vpop.f32.mrb[0].mxu0
    %v8851 = vpop.f32.mrb[0].mxu0
    %v8852 = vadd.f32 0.0, %v8851
    %v8853 = vpop.f32.mrb[0].mxu0
    %8854 = vdwg.mxu0
    %v8855 = vadd.f32 %v8757, %v8841
    %v8856 = vadd.f32 %v8758, %v8844
    %v8857 = vadd.f32 %v8759, %v8849
    %v8858 = vadd.f32 %v8760, %v8852
    %v8859 = vld [vmem:[%s9] sm:$0xff]
    %v8860 = vld [vmem:[%s9 + $0x8] sm:$0xff]
    %v8861 = vld [vmem:[%s9 + $0x10] sm:$0xff]
    %v8862 = vld [vmem:[%s9 + $0x18] sm:$0xff]
    %8864 = vset.pattern.permute.xlu0 0
    %8865 = vperm.xlu0 %8864, %v8859
    %v8866 = vpop.permute.xlu0 %8865
    %8869 = vset.pattern.permute.xlu0 0
    %8870 = vperm.xlu0 %8869, %v8860
    %v8871 = vpop.permute.xlu0 %8870
    %8874 = vset.pattern.permute.xlu0 0
    %8875 = vperm.xlu0 %8874, %v8861
    %v8876 = vpop.permute.xlu0 %8875
    %8879 = vset.pattern.permute.xlu0 0
    %8880 = vperm.xlu0 %8879, %v8862
    %v8881 = vpop.permute.xlu0 %8880
    %v8883 = vadd.f32 %v8855, %v8866
    %v8884 = vadd.f32 %v8856, %v8871
    %v8885 = vadd.f32 %v8857, %v8876
    %v8886 = vadd.f32 %v8858, %v8881
    %v8887 = vpack.c.bf16 %v8884, %v8883
    %v8888 = vpack.c.bf16 %v8886, %v8885
    %v8889 = vld [vmem:[%s10] sm:$0xf]
    %v8890 = vld [vmem:[%s10 + $0x4] sm:$0xf]
    %v8891 = vld [vmem:[%s10 + $0x8] sm:$0xf]
    %v8892 = vld [vmem:[%s10 + $0xc] sm:$0xf]
    %s8893 = scalar_lea.vmem %s10, 16
    %v8894 = vld [vmem:[%s8893] sm:$0xf]
    %v8895 = vld [vmem:[%s8893 + $0x4] sm:$0xf]
    %v8896 = vld [vmem:[%s8893 + $0x8] sm:$0xf]
    %v8897 = vld [vmem:[%s8893 + $0xc] sm:$0xf]
    %v8902 = vunpack.c.l.b16 %v8894
    %v8903 = vunpack.c.l.b16 %v8895
    %v8904 = vunpack.c.l.b16 %v8896
    %v8905 = vunpack.c.l.b16 %v8897
    %v8906 = vpack.c.b16 %v8903, %v8902
    %v8907 = vpack.c.b16 %v8905, %v8904
    %8910 = vrot.lane.b32.xlu0 %v8887, 124
    %v8911 = vpop.permute.xlu0 %8910
    %8912 = vrot.lane.b32.xlu0 %v8888, 124
    %v8913 = vpop.permute.xlu0 %8912
    %v8917 = vsel %vm5755, %v8906, 0
    %v8920 = vsel %vm5755, %v8907, 0
    %8922 = vmatprep.subr.bf16.mxu0 0
    %8923 = vmatpush1.bf16.msra.mxu0 %v8911
    %8924 = vmatprep.subr.bf16.mxu0 0
    %8925 = vmatpush1.bf16.msra.mxu0 %v8913
    %8926 = vmatprep.subr.bf16.mxu0 0
    %8927 = vmatpush1.bf16.msra.mxu0 0
    %8928 = vmatprep.subr.bf16.mxu0 0
    %8929 = vmatpush1.bf16.msra.mxu0 0
    %8930 = vmatprep.subr.bf16.mxu0 0
    %8931 = vmatpush1.bf16.msra.mxu0 0
    %8932 = vmatprep.subr.bf16.mxu0 0
    %8933 = vmatpush1.bf16.msra.mxu0 0
    %8934 = vmatprep.subr.bf16.mxu0 0
    %8935 = vmatpush1.bf16.msra.mxu0 0
    %8936 = vmatprep.subr.bf16.mxu0 0
    %8937 = vmatpush1.bf16.msra.mxu0 0
    %8938 = vmatprep.subr.bf16.mxu0 0
    %8939 = vmatpush1.bf16.msra.mxu0 0
    %8940 = vmatprep.subr.bf16.mxu0 0
    %8941 = vmatpush1.bf16.msra.mxu0 0
    %8942 = vmatprep.subr.bf16.mxu0 0
    %8943 = vmatpush1.bf16.msra.mxu0 0
    %8944 = vmatprep.subr.bf16.mxu0 0
    %8945 = vmatpush1.bf16.msra.mxu0 0
    %8946 = vmatprep.subr.bf16.mxu0 0
    %8947 = vmatpush1.bf16.msra.mxu0 0
    %8948 = vmatprep.subr.bf16.mxu0 0
    %8949 = vmatpush1.bf16.msra.mxu0 0
    %8950 = vmatprep.subr.bf16.mxu0 0
    %8951 = vmatpush1.bf16.msra.mxu0 0
    %8952 = vmatprep.subr.bf16.mxu0 0
    %8953 = vmatpush1.bf16.msra.mxu0 0
    %8954 = vmatprep.mubr.bf16.mxu0 0
    %8955 = vmatmul.mubr.bf16.gmra.mrb[0].mxu0 %v8917
    %v8956 = vpop.f32.mrb[0].mxu0
    %v8957 = vadd.f32 0.0, %v8956
    %v8958 = vpop.f32.mrb[0].mxu0
    %v8959 = vpop.f32.mrb[0].mxu0
    %v8960 = vadd.f32 0.0, %v8959
    %v8961 = vpop.f32.mrb[0].mxu0
    %8962 = vmatprep.mubr.bf16.mxu0 0
    %8963 = vmatmul.mubr.bf16.gmra.mrb[0].mxu0 %v8920
    %v8964 = vpop.f32.mrb[0].mxu0
    %v8965 = vadd.f32 0.0, %v8964
    %v8966 = vpop.f32.mrb[0].mxu0
    %v8967 = vpop.f32.mrb[0].mxu0
    %v8968 = vadd.f32 0.0, %v8967
    %v8969 = vpop.f32.mrb[0].mxu0
    %8970 = vdwg.mxu0
    %v8975 = vunpack.c.l.b16 %v8889
    %v8976 = vunpack.c.l.b16 %v8890
    %v8977 = vunpack.c.l.b16 %v8891
    %v8978 = vunpack.c.l.b16 %v8892
    %v8979 = vpack.c.b16 %v8976, %v8975
    %v8980 = vpack.c.b16 %v8978, %v8977
    %v8982 = vsel %vm5755, %v8979, 0
    %v8985 = vsel %vm5755, %v8980, 0
    %8987 = vmatprep.subr.bf16.mxu0 0
    %8988 = vmatpush1.bf16.msra.mxu0 %v8887
    %8989 = vmatprep.subr.bf16.mxu0 0
    %8990 = vmatpush1.bf16.msra.mxu0 %v8888
    %8991 = vmatprep.subr.bf16.mxu0 0
    %8992 = vmatpush1.bf16.msra.mxu0 0
    %8993 = vmatprep.subr.bf16.mxu0 0
    %8994 = vmatpush1.bf16.msra.mxu0 0
    %8995 = vmatprep.subr.bf16.mxu0 0
    %8996 = vmatpush1.bf16.msra.mxu0 0
    %8997 = vmatprep.subr.bf16.mxu0 0
    %8998 = vmatpush1.bf16.msra.mxu0 0
    %8999 = vmatprep.subr.bf16.mxu0 0
    %9000 = vmatpush1.bf16.msra.mxu0 0
    %9001 = vmatprep.subr.bf16.mxu0 0
    %9002 = vmatpush1.bf16.msra.mxu0 0
    %9003 = vmatprep.subr.bf16.mxu0 0
    %9004 = vmatpush1.bf16.msra.mxu0 0
    %9005 = vmatprep.subr.bf16.mxu0 0
    %9006 = vmatpush1.bf16.msra.mxu0 0
    %9007 = vmatprep.subr.bf16.mxu0 0
    %9008 = vmatpush1.bf16.msra.mxu0 0
    %9009 = vmatprep.subr.bf16.mxu0 0
    %9010 = vmatpush1.bf16.msra.mxu0 0
    %9011 = vmatprep.subr.bf16.mxu0 0
    %9012 = vmatpush1.bf16.msra.mxu0 0
    %9013 = vmatprep.subr.bf16.mxu0 0
    %9014 = vmatpush1.bf16.msra.mxu0 0
    %9015 = vmatprep.subr.bf16.mxu0 0
    %9016 = vmatpush1.bf16.msra.mxu0 0
    %9017 = vmatprep.subr.bf16.mxu0 0
    %9018 = vmatpush1.bf16.msra.mxu0 0
    %9019 = vmatprep.mubr.bf16.mxu0 0
    %9020 = vmatmul.mubr.bf16.gmra.mrb[0].mxu0 %v8982
    %v9021 = vpop.f32.mrb[0].mxu0
    %v9022 = vadd.f32 %v8957, %v9021
    %v9023 = vpop.f32.mrb[0].mxu0
    %v9024 = vpop.f32.mrb[0].mxu0
    %v9025 = vadd.f32 %v8960, %v9024
    %v9026 = vpop.f32.mrb[0].mxu0
    %9027 = vmatprep.mubr.bf16.mxu0 0
    %9028 = vmatmul.mubr.bf16.gmra.mrb[0].mxu0 %v8985
    %v9029 = vpop.f32.mrb[0].mxu0
    %v9030 = vadd.f32 %v8965, %v9029
    %v9031 = vpop.f32.mrb[0].mxu0
    %v9032 = vpop.f32.mrb[0].mxu0
    %v9033 = vadd.f32 %v8968, %v9032
    %v9034 = vpop.f32.mrb[0].mxu0
    %9035 = vdwg.mxu0
    %s9036 = scalar_lea.vmem %s10, 32
    %v9037 = vld [vmem:[%s9036] sm:$0xf]
    %v9038 = vld [vmem:[%s9036 + $0x4] sm:$0xf]
    %v9039 = vld [vmem:[%s9036 + $0x8] sm:$0xf]
    %v9040 = vld [vmem:[%s9036 + $0xc] sm:$0xf]
    %v9045 = vunpack.c.l.b16 %v9037
    %v9046 = vunpack.c.l.b16 %v9038
    %v9047 = vunpack.c.l.b16 %v9039
    %v9048 = vunpack.c.l.b16 %v9040
    %v9049 = vpack.c.b16 %v9046, %v9045
    %v9050 = vpack.c.b16 %v9048, %v9047
    %9051 = vrot.lane.b32.xlu0 %v8887, 120
    %v9052 = vpop.permute.xlu0 %9051
    %9053 = vrot.lane.b32.xlu0 %v8888, 120
    %v9054 = vpop.permute.xlu0 %9053
    %v9058 = vsel %vm5755, %v9049, 0
    %v9061 = vsel %vm5755, %v9050, 0
    %9063 = vmatprep.subr.bf16.mxu0 0
    %9064 = vmatpush1.bf16.msra.mxu0 %v9052
    %9065 = vmatprep.subr.bf16.mxu0 0
    %9066 = vmatpush1.bf16.msra.mxu0 %v9054
    %9067 = vmatprep.subr.bf16.mxu0 0
    %9068 = vmatpush1.bf16.msra.mxu0 0
    %9069 = vmatprep.subr.bf16.mxu0 0
    %9070 = vmatpush1.bf16.msra.mxu0 0
    %9071 = vmatprep.subr.bf16.mxu0 0
    %9072 = vmatpush1.bf16.msra.mxu0 0
    %9073 = vmatprep.subr.bf16.mxu0 0
    %9074 = vmatpush1.bf16.msra.mxu0 0
    %9075 = vmatprep.subr.bf16.mxu0 0
    %9076 = vmatpush1.bf16.msra.mxu0 0
    %9077 = vmatprep.subr.bf16.mxu0 0
    %9078 = vmatpush1.bf16.msra.mxu0 0
    %9079 = vmatprep.subr.bf16.mxu0 0
    %9080 = vmatpush1.bf16.msra.mxu0 0
    %9081 = vmatprep.subr.bf16.mxu0 0
    %9082 = vmatpush1.bf16.msra.mxu0 0
    %9083 = vmatprep.subr.bf16.mxu0 0
    %9084 = vmatpush1.bf16.msra.mxu0 0
    %9085 = vmatprep.subr.bf16.mxu0 0
    %9086 = vmatpush1.bf16.msra.mxu0 0
    %9087 = vmatprep.subr.bf16.mxu0 0
    %9088 = vmatpush1.bf16.msra.mxu0 0
    %9089 = vmatprep.subr.bf16.mxu0 0
    %9090 = vmatpush1.bf16.msra.mxu0 0
    %9091 = vmatprep.subr.bf16.mxu0 0
    %9092 = vmatpush1.bf16.msra.mxu0 0
    %9093 = vmatprep.subr.bf16.mxu0 0
    %9094 = vmatpush1.bf16.msra.mxu0 0
    %9095 = vmatprep.mubr.bf16.mxu0 0
    %9096 = vmatmul.mubr.bf16.gmra.mrb[0].mxu0 %v9058
    %v9097 = vpop.f32.mrb[0].mxu0
    %v9098 = vadd.f32 0.0, %v9097
    %v9099 = vpop.f32.mrb[0].mxu0
    %v9100 = vpop.f32.mrb[0].mxu0
    %v9101 = vadd.f32 0.0, %v9100
    %v9102 = vpop.f32.mrb[0].mxu0
    %9103 = vmatprep.mubr.bf16.mxu0 0
    %9104 = vmatmul.mubr.bf16.gmra.mrb[0].mxu0 %v9061
    %v9105 = vpop.f32.mrb[0].mxu0
    %v9106 = vadd.f32 0.0, %v9105
    %v9107 = vpop.f32.mrb[0].mxu0
    %v9108 = vpop.f32.mrb[0].mxu0
    %v9109 = vadd.f32 0.0, %v9108
    %v9110 = vpop.f32.mrb[0].mxu0
    %9111 = vdwg.mxu0
    %v9112 = vadd.f32 %v9022, %v9098
    %v9113 = vadd.f32 %v9025, %v9101
    %v9114 = vadd.f32 %v9030, %v9106
    %v9115 = vadd.f32 %v9033, %v9109
    %s9116 = scalar_lea.vmem %s10, 48
    %v9117 = vld [vmem:[%s9116] sm:$0xf]
    %v9118 = vld [vmem:[%s9116 + $0x4] sm:$0xf]
    %v9119 = vld [vmem:[%s9116 + $0x8] sm:$0xf]
    %v9120 = vld [vmem:[%s9116 + $0xc] sm:$0xf]
    %v9125 = vunpack.c.l.b16 %v9117
    %v9126 = vunpack.c.l.b16 %v9118
    %v9127 = vunpack.c.l.b16 %v9119
    %v9128 = vunpack.c.l.b16 %v9120
    %v9129 = vpack.c.b16 %v9126, %v9125
    %v9130 = vpack.c.b16 %v9128, %v9127
    %9131 = vrot.lane.b32.xlu0 %v8887, 116
    %v9132 = vpop.permute.xlu0 %9131
    %9133 = vrot.lane.b32.xlu0 %v8888, 116
    %v9134 = vpop.permute.xlu0 %9133
    %v9138 = vsel %vm5755, %v9129, 0
    %v9141 = vsel %vm5755, %v9130, 0
    %9143 = vmatprep.subr.bf16.mxu0 0
    %9144 = vmatpush1.bf16.msra.mxu0 %v9132
    %9145 = vmatprep.subr.bf16.mxu0 0
    %9146 = vmatpush1.bf16.msra.mxu0 %v9134
    %9147 = vmatprep.subr.bf16.mxu0 0
    %9148 = vmatpush1.bf16.msra.mxu0 0
    %9149 = vmatprep.subr.bf16.mxu0 0
    %9150 = vmatpush1.bf16.msra.mxu0 0
    %9151 = vmatprep.subr.bf16.mxu0 0
    %9152 = vmatpush1.bf16.msra.mxu0 0
    %9153 = vmatprep.subr.bf16.mxu0 0
    %9154 = vmatpush1.bf16.msra.mxu0 0
    %9155 = vmatprep.subr.bf16.mxu0 0
    %9156 = vmatpush1.bf16.msra.mxu0 0
    %9157 = vmatprep.subr.bf16.mxu0 0
    %9158 = vmatpush1.bf16.msra.mxu0 0
    %9159 = vmatprep.subr.bf16.mxu0 0
    %9160 = vmatpush1.bf16.msra.mxu0 0
    %9161 = vmatprep.subr.bf16.mxu0 0
    %9162 = vmatpush1.bf16.msra.mxu0 0
    %9163 = vmatprep.subr.bf16.mxu0 0
    %9164 = vmatpush1.bf16.msra.mxu0 0
    %9165 = vmatprep.subr.bf16.mxu0 0
    %9166 = vmatpush1.bf16.msra.mxu0 0
    %9167 = vmatprep.subr.bf16.mxu0 0
    %9168 = vmatpush1.bf16.msra.mxu0 0
    %9169 = vmatprep.subr.bf16.mxu0 0
    %9170 = vmatpush1.bf16.msra.mxu0 0
    %9171 = vmatprep.subr.bf16.mxu0 0
    %9172 = vmatpush1.bf16.msra.mxu0 0
    %9173 = vmatprep.subr.bf16.mxu0 0
    %9174 = vmatpush1.bf16.msra.mxu0 0
    %9175 = vmatprep.mubr.bf16.mxu0 0
    %9176 = vmatmul.mubr.bf16.gmra.mrb[0].mxu0 %v9138
    %v9177 = vpop.f32.mrb[0].mxu0
    %v9178 = vadd.f32 0.0, %v9177
    %v9179 = vpop.f32.mrb[0].mxu0
    %v9180 = vpop.f32.mrb[0].mxu0
    %v9181 = vadd.f32 0.0, %v9180
    %v9182 = vpop.f32.mrb[0].mxu0
    %9183 = vmatprep.mubr.bf16.mxu0 0
    %9184 = vmatmul.mubr.bf16.gmra.mrb[0].mxu0 %v9141
    %v9185 = vpop.f32.mrb[0].mxu0
    %v9186 = vadd.f32 0.0, %v9185
    %v9187 = vpop.f32.mrb[0].mxu0
    %v9188 = vpop.f32.mrb[0].mxu0
    %v9189 = vadd.f32 0.0, %v9188
    %v9190 = vpop.f32.mrb[0].mxu0
    %9191 = vdwg.mxu0
    %v9192 = vadd.f32 %v9112, %v9178
    %v9193 = vadd.f32 %v9113, %v9181
    %v9194 = vadd.f32 %v9114, %v9186
    %v9195 = vadd.f32 %v9115, %v9189
    %s9196 = scalar_lea.vmem %s10, 64
    %v9197 = vld [vmem:[%s9196] sm:$0xf]
    %v9198 = vld [vmem:[%s9196 + $0x4] sm:$0xf]
    %v9199 = vld [vmem:[%s9196 + $0x8] sm:$0xf]
    %v9200 = vld [vmem:[%s9196 + $0xc] sm:$0xf]
    %v9205 = vunpack.c.l.b16 %v9197
    %v9206 = vunpack.c.l.b16 %v9198
    %v9207 = vunpack.c.l.b16 %v9199
    %v9208 = vunpack.c.l.b16 %v9200
    %v9209 = vpack.c.b16 %v9206, %v9205
    %v9210 = vpack.c.b16 %v9208, %v9207
    %9211 = vrot.lane.b32.xlu0 %v8887, 100
    %v9212 = vpop.permute.xlu0 %9211
    %9213 = vrot.lane.b32.xlu0 %v8888, 100
    %v9214 = vpop.permute.xlu0 %9213
    %v9218 = vsel %vm5755, %v9209, 0
    %v9221 = vsel %vm5755, %v9210, 0
    %9223 = vmatprep.subr.bf16.mxu0 0
    %9224 = vmatpush1.bf16.msra.mxu0 %v9212
    %9225 = vmatprep.subr.bf16.mxu0 0
    %9226 = vmatpush1.bf16.msra.mxu0 %v9214
    %9227 = vmatprep.subr.bf16.mxu0 0
    %9228 = vmatpush1.bf16.msra.mxu0 0
    %9229 = vmatprep.subr.bf16.mxu0 0
    %9230 = vmatpush1.bf16.msra.mxu0 0
    %9231 = vmatprep.subr.bf16.mxu0 0
    %9232 = vmatpush1.bf16.msra.mxu0 0
    %9233 = vmatprep.subr.bf16.mxu0 0
    %9234 = vmatpush1.bf16.msra.mxu0 0
    %9235 = vmatprep.subr.bf16.mxu0 0
    %9236 = vmatpush1.bf16.msra.mxu0 0
    %9237 = vmatprep.subr.bf16.mxu0 0
    %9238 = vmatpush1.bf16.msra.mxu0 0
    %9239 = vmatprep.subr.bf16.mxu0 0
    %9240 = vmatpush1.bf16.msra.mxu0 0
    %9241 = vmatprep.subr.bf16.mxu0 0
    %9242 = vmatpush1.bf16.msra.mxu0 0
    %9243 = vmatprep.subr.bf16.mxu0 0
    %9244 = vmatpush1.bf16.msra.mxu0 0
    %9245 = vmatprep.subr.bf16.mxu0 0
    %9246 = vmatpush1.bf16.msra.mxu0 0
    %9247 = vmatprep.subr.bf16.mxu0 0
    %9248 = vmatpush1.bf16.msra.mxu0 0
    %9249 = vmatprep.subr.bf16.mxu0 0
    %9250 = vmatpush1.bf16.msra.mxu0 0
    %9251 = vmatprep.subr.bf16.mxu0 0
    %9252 = vmatpush1.bf16.msra.mxu0 0
    %9253 = vmatprep.subr.bf16.mxu0 0
    %9254 = vmatpush1.bf16.msra.mxu0 0
    %9255 = vmatprep.mubr.bf16.mxu0 0
    %9256 = vmatmul.mubr.bf16.gmra.mrb[0].mxu0 %v9218
    %v9257 = vpop.f32.mrb[0].mxu0
    %v9258 = vadd.f32 0.0, %v9257
    %v9259 = vpop.f32.mrb[0].mxu0
    %v9260 = vpop.f32.mrb[0].mxu0
    %v9261 = vadd.f32 0.0, %v9260
    %v9262 = vpop.f32.mrb[0].mxu0
    %9263 = vmatprep.mubr.bf16.mxu0 0
    %9264 = vmatmul.mubr.bf16.gmra.mrb[0].mxu0 %v9221
    %v9265 = vpop.f32.mrb[0].mxu0
    %v9266 = vadd.f32 0.0, %v9265
    %v9267 = vpop.f32.mrb[0].mxu0
    %v9268 = vpop.f32.mrb[0].mxu0
    %v9269 = vadd.f32 0.0, %v9268
    %v9270 = vpop.f32.mrb[0].mxu0
    %9271 = vdwg.mxu0
    %v9272 = vadd.f32 %v9192, %v9258
    %v9273 = vadd.f32 %v9193, %v9261
    %v9274 = vadd.f32 %v9194, %v9266
    %v9275 = vadd.f32 %v9195, %v9269
    %s9276 = scalar_lea.vmem %s10, 80
    %v9277 = vld [vmem:[%s9276] sm:$0xf]
    %v9278 = vld [vmem:[%s9276 + $0x4] sm:$0xf]
    %v9279 = vld [vmem:[%s9276 + $0x8] sm:$0xf]
    %v9280 = vld [vmem:[%s9276 + $0xc] sm:$0xf]
    %v9285 = vunpack.c.l.b16 %v9277
    %v9286 = vunpack.c.l.b16 %v9278
    %v9287 = vunpack.c.l.b16 %v9279
    %v9288 = vunpack.c.l.b16 %v9280
    %v9289 = vpack.c.b16 %v9286, %v9285
    %v9290 = vpack.c.b16 %v9288, %v9287
    %9291 = vrot.lane.b32.xlu0 %v8887, 96
    %v9292 = vpop.permute.xlu0 %9291
    %9293 = vrot.lane.b32.xlu0 %v8888, 96
    %v9294 = vpop.permute.xlu0 %9293
    %v9298 = vsel %vm5755, %v9289, 0
    %v9301 = vsel %vm5755, %v9290, 0
    %9303 = vmatprep.subr.bf16.mxu0 0
    %9304 = vmatpush1.bf16.msra.mxu0 %v9292
    %9305 = vmatprep.subr.bf16.mxu0 0
    %9306 = vmatpush1.bf16.msra.mxu0 %v9294
    %9307 = vmatprep.subr.bf16.mxu0 0
    %9308 = vmatpush1.bf16.msra.mxu0 0
    %9309 = vmatprep.subr.bf16.mxu0 0
    %9310 = vmatpush1.bf16.msra.mxu0 0
    %9311 = vmatprep.subr.bf16.mxu0 0
    %9312 = vmatpush1.bf16.msra.mxu0 0
    %9313 = vmatprep.subr.bf16.mxu0 0
    %9314 = vmatpush1.bf16.msra.mxu0 0
    %9315 = vmatprep.subr.bf16.mxu0 0
    %9316 = vmatpush1.bf16.msra.mxu0 0
    %9317 = vmatprep.subr.bf16.mxu0 0
    %9318 = vmatpush1.bf16.msra.mxu0 0
    %9319 = vmatprep.subr.bf16.mxu0 0
    %9320 = vmatpush1.bf16.msra.mxu0 0
    %9321 = vmatprep.subr.bf16.mxu0 0
    %9322 = vmatpush1.bf16.msra.mxu0 0
    %9323 = vmatprep.subr.bf16.mxu0 0
    %9324 = vmatpush1.bf16.msra.mxu0 0
    %9325 = vmatprep.subr.bf16.mxu0 0
    %9326 = vmatpush1.bf16.msra.mxu0 0
    %9327 = vmatprep.subr.bf16.mxu0 0
    %9328 = vmatpush1.bf16.msra.mxu0 0
    %9329 = vmatprep.subr.bf16.mxu0 0
    %9330 = vmatpush1.bf16.msra.mxu0 0
    %9331 = vmatprep.subr.bf16.mxu0 0
    %9332 = vmatpush1.bf16.msra.mxu0 0
    %9333 = vmatprep.subr.bf16.mxu0 0
    %9334 = vmatpush1.bf16.msra.mxu0 0
    %9335 = vmatprep.mubr.bf16.mxu0 0
    %9336 = vmatmul.mubr.bf16.gmra.mrb[0].mxu0 %v9298
    %v9337 = vpop.f32.mrb[0].mxu0
    %v9338 = vadd.f32 0.0, %v9337
    %v9339 = vpop.f32.mrb[0].mxu0
    %v9340 = vpop.f32.mrb[0].mxu0
    %v9341 = vadd.f32 0.0, %v9340
    %v9342 = vpop.f32.mrb[0].mxu0
    %9343 = vmatprep.mubr.bf16.mxu0 0
    %9344 = vmatmul.mubr.bf16.gmra.mrb[0].mxu0 %v9301
    %v9345 = vpop.f32.mrb[0].mxu0
    %v9346 = vadd.f32 0.0, %v9345
    %v9347 = vpop.f32.mrb[0].mxu0
    %v9348 = vpop.f32.mrb[0].mxu0
    %v9349 = vadd.f32 0.0, %v9348
    %v9350 = vpop.f32.mrb[0].mxu0
    %9351 = vdwg.mxu0
    %v9352 = vadd.f32 %v9272, %v9338
    %v9353 = vadd.f32 %v9273, %v9341
    %v9354 = vadd.f32 %v9274, %v9346
    %v9355 = vadd.f32 %v9275, %v9349
    %s9356 = scalar_lea.vmem %s10, 96
    %v9357 = vld [vmem:[%s9356] sm:$0xf]
    %v9358 = vld [vmem:[%s9356 + $0x4] sm:$0xf]
    %v9359 = vld [vmem:[%s9356 + $0x8] sm:$0xf]
    %v9360 = vld [vmem:[%s9356 + $0xc] sm:$0xf]
    %v9365 = vunpack.c.l.b16 %v9357
    %v9366 = vunpack.c.l.b16 %v9358
    %v9367 = vunpack.c.l.b16 %v9359
    %v9368 = vunpack.c.l.b16 %v9360
    %v9369 = vpack.c.b16 %v9366, %v9365
    %v9370 = vpack.c.b16 %v9368, %v9367
    %9371 = vrot.lane.b32.xlu0 %v8887, 92
    %v9372 = vpop.permute.xlu0 %9371
    %9373 = vrot.lane.b32.xlu0 %v8888, 92
    %v9374 = vpop.permute.xlu0 %9373
    %v9378 = vsel %vm5755, %v9369, 0
    %v9381 = vsel %vm5755, %v9370, 0
    %9383 = vmatprep.subr.bf16.mxu0 0
    %9384 = vmatpush1.bf16.msra.mxu0 %v9372
    %9385 = vmatprep.subr.bf16.mxu0 0
    %9386 = vmatpush1.bf16.msra.mxu0 %v9374
    %9387 = vmatprep.subr.bf16.mxu0 0
    %9388 = vmatpush1.bf16.msra.mxu0 0
    %9389 = vmatprep.subr.bf16.mxu0 0
    %9390 = vmatpush1.bf16.msra.mxu0 0
    %9391 = vmatprep.subr.bf16.mxu0 0
    %9392 = vmatpush1.bf16.msra.mxu0 0
    %9393 = vmatprep.subr.bf16.mxu0 0
    %9394 = vmatpush1.bf16.msra.mxu0 0
    %9395 = vmatprep.subr.bf16.mxu0 0
    %9396 = vmatpush1.bf16.msra.mxu0 0
    %9397 = vmatprep.subr.bf16.mxu0 0
    %9398 = vmatpush1.bf16.msra.mxu0 0
    %9399 = vmatprep.subr.bf16.mxu0 0
    %9400 = vmatpush1.bf16.msra.mxu0 0
    %9401 = vmatprep.subr.bf16.mxu0 0
    %9402 = vmatpush1.bf16.msra.mxu0 0
    %9403 = vmatprep.subr.bf16.mxu0 0
    %9404 = vmatpush1.bf16.msra.mxu0 0
    %9405 = vmatprep.subr.bf16.mxu0 0
    %9406 = vmatpush1.bf16.msra.mxu0 0
    %9407 = vmatprep.subr.bf16.mxu0 0
    %9408 = vmatpush1.bf16.msra.mxu0 0
    %9409 = vmatprep.subr.bf16.mxu0 0
    %9410 = vmatpush1.bf16.msra.mxu0 0
    %9411 = vmatprep.subr.bf16.mxu0 0
    %9412 = vmatpush1.bf16.msra.mxu0 0
    %9413 = vmatprep.subr.bf16.mxu0 0
    %9414 = vmatpush1.bf16.msra.mxu0 0
    %9415 = vmatprep.mubr.bf16.mxu0 0
    %9416 = vmatmul.mubr.bf16.gmra.mrb[0].mxu0 %v9378
    %v9417 = vpop.f32.mrb[0].mxu0
    %v9418 = vadd.f32 0.0, %v9417
    %v9419 = vpop.f32.mrb[0].mxu0
    %v9420 = vpop.f32.mrb[0].mxu0
    %v9421 = vadd.f32 0.0, %v9420
    %v9422 = vpop.f32.mrb[0].mxu0
    %9423 = vmatprep.mubr.bf16.mxu0 0
    %9424 = vmatmul.mubr.bf16.gmra.mrb[0].mxu0 %v9381
    %v9425 = vpop.f32.mrb[0].mxu0
    %v9426 = vadd.f32 0.0, %v9425
    %v9427 = vpop.f32.mrb[0].mxu0
    %v9428 = vpop.f32.mrb[0].mxu0
    %v9429 = vadd.f32 0.0, %v9428
    %v9430 = vpop.f32.mrb[0].mxu0
    %9431 = vdwg.mxu0
    %v9432 = vadd.f32 %v9352, %v9418
    %v9433 = vadd.f32 %v9353, %v9421
    %v9434 = vadd.f32 %v9354, %v9426
    %v9435 = vadd.f32 %v9355, %v9429
    %s9436 = scalar_lea.vmem %s10, 112
    %v9437 = vld [vmem:[%s9436] sm:$0xf]
    %v9438 = vld [vmem:[%s9436 + $0x4] sm:$0xf]
    %v9439 = vld [vmem:[%s9436 + $0x8] sm:$0xf]
    %v9440 = vld [vmem:[%s9436 + $0xc] sm:$0xf]
    %v9445 = vunpack.c.l.b16 %v9437
    %v9446 = vunpack.c.l.b16 %v9438
    %v9447 = vunpack.c.l.b16 %v9439
    %v9448 = vunpack.c.l.b16 %v9440
    %v9449 = vpack.c.b16 %v9446, %v9445
    %v9450 = vpack.c.b16 %v9448, %v9447
    %9451 = vrot.lane.b32.xlu0 %v8887, 88
    %v9452 = vpop.permute.xlu0 %9451
    %9453 = vrot.lane.b32.xlu0 %v8888, 88
    %v9454 = vpop.permute.xlu0 %9453
    %v9458 = vsel %vm5755, %v9449, 0
    %v9461 = vsel %vm5755, %v9450, 0
    %9463 = vmatprep.subr.bf16.mxu0 0
    %9464 = vmatpush1.bf16.msra.mxu0 %v9452
    %9465 = vmatprep.subr.bf16.mxu0 0
    %9466 = vmatpush1.bf16.msra.mxu0 %v9454
    %9467 = vmatprep.subr.bf16.mxu0 0
    %9468 = vmatpush1.bf16.msra.mxu0 0
    %9469 = vmatprep.subr.bf16.mxu0 0
    %9470 = vmatpush1.bf16.msra.mxu0 0
    %9471 = vmatprep.subr.bf16.mxu0 0
    %9472 = vmatpush1.bf16.msra.mxu0 0
    %9473 = vmatprep.subr.bf16.mxu0 0
    %9474 = vmatpush1.bf16.msra.mxu0 0
    %9475 = vmatprep.subr.bf16.mxu0 0
    %9476 = vmatpush1.bf16.msra.mxu0 0
    %9477 = vmatprep.subr.bf16.mxu0 0
    %9478 = vmatpush1.bf16.msra.mxu0 0
    %9479 = vmatprep.subr.bf16.mxu0 0
    %9480 = vmatpush1.bf16.msra.mxu0 0
    %9481 = vmatprep.subr.bf16.mxu0 0
    %9482 = vmatpush1.bf16.msra.mxu0 0
    %9483 = vmatprep.subr.bf16.mxu0 0
    %9484 = vmatpush1.bf16.msra.mxu0 0
    %9485 = vmatprep.subr.bf16.mxu0 0
    %9486 = vmatpush1.bf16.msra.mxu0 0
    %9487 = vmatprep.subr.bf16.mxu0 0
    %9488 = vmatpush1.bf16.msra.mxu0 0
    %9489 = vmatprep.subr.bf16.mxu0 0
    %9490 = vmatpush1.bf16.msra.mxu0 0
    %9491 = vmatprep.subr.bf16.mxu0 0
    %9492 = vmatpush1.bf16.msra.mxu0 0
    %9493 = vmatprep.subr.bf16.mxu0 0
    %9494 = vmatpush1.bf16.msra.mxu0 0
    %9495 = vmatprep.mubr.bf16.mxu0 0
    %9496 = vmatmul.mubr.bf16.gmra.mrb[0].mxu0 %v9458
    %v9497 = vpop.f32.mrb[0].mxu0
    %v9498 = vadd.f32 0.0, %v9497
    %v9499 = vpop.f32.mrb[0].mxu0
    %v9500 = vpop.f32.mrb[0].mxu0
    %v9501 = vadd.f32 0.0, %v9500
    %v9502 = vpop.f32.mrb[0].mxu0
    %9503 = vmatprep.mubr.bf16.mxu0 0
    %9504 = vmatmul.mubr.bf16.gmra.mrb[0].mxu0 %v9461
    %v9505 = vpop.f32.mrb[0].mxu0
    %v9506 = vadd.f32 0.0, %v9505
    %v9507 = vpop.f32.mrb[0].mxu0
    %v9508 = vpop.f32.mrb[0].mxu0
    %v9509 = vadd.f32 0.0, %v9508
    %v9510 = vpop.f32.mrb[0].mxu0
    %9511 = vdwg.mxu0
    %v9512 = vadd.f32 %v9432, %v9498
    %v9513 = vadd.f32 %v9433, %v9501
    %v9514 = vadd.f32 %v9434, %v9506
    %v9515 = vadd.f32 %v9435, %v9509
    %s9516 = scalar_lea.vmem %s10, 128
    %v9517 = vld [vmem:[%s9516] sm:$0xf]
    %v9518 = vld [vmem:[%s9516 + $0x4] sm:$0xf]
    %v9519 = vld [vmem:[%s9516 + $0x8] sm:$0xf]
    %v9520 = vld [vmem:[%s9516 + $0xc] sm:$0xf]
    %v9525 = vunpack.c.l.b16 %v9517
    %v9526 = vunpack.c.l.b16 %v9518
    %v9527 = vunpack.c.l.b16 %v9519
    %v9528 = vunpack.c.l.b16 %v9520
    %v9529 = vpack.c.b16 %v9526, %v9525
    %v9530 = vpack.c.b16 %v9528, %v9527
    %9531 = vrot.lane.b32.xlu0 %v8887, 72
    %v9532 = vpop.permute.xlu0 %9531
    %9533 = vrot.lane.b32.xlu0 %v8888, 72
    %v9534 = vpop.permute.xlu0 %9533
    %v9538 = vsel %vm5755, %v9529, 0
    %v9541 = vsel %vm5755, %v9530, 0
    %9543 = vmatprep.subr.bf16.mxu0 0
    %9544 = vmatpush1.bf16.msra.mxu0 %v9532
    %9545 = vmatprep.subr.bf16.mxu0 0
    %9546 = vmatpush1.bf16.msra.mxu0 %v9534
    %9547 = vmatprep.subr.bf16.mxu0 0
    %9548 = vmatpush1.bf16.msra.mxu0 0
    %9549 = vmatprep.subr.bf16.mxu0 0
    %9550 = vmatpush1.bf16.msra.mxu0 0
    %9551 = vmatprep.subr.bf16.mxu0 0
    %9552 = vmatpush1.bf16.msra.mxu0 0
    %9553 = vmatprep.subr.bf16.mxu0 0
    %9554 = vmatpush1.bf16.msra.mxu0 0
    %9555 = vmatprep.subr.bf16.mxu0 0
    %9556 = vmatpush1.bf16.msra.mxu0 0
    %9557 = vmatprep.subr.bf16.mxu0 0
    %9558 = vmatpush1.bf16.msra.mxu0 0
    %9559 = vmatprep.subr.bf16.mxu0 0
    %9560 = vmatpush1.bf16.msra.mxu0 0
    %9561 = vmatprep.subr.bf16.mxu0 0
    %9562 = vmatpush1.bf16.msra.mxu0 0
    %9563 = vmatprep.subr.bf16.mxu0 0
    %9564 = vmatpush1.bf16.msra.mxu0 0
    %9565 = vmatprep.subr.bf16.mxu0 0
    %9566 = vmatpush1.bf16.msra.mxu0 0
    %9567 = vmatprep.subr.bf16.mxu0 0
    %9568 = vmatpush1.bf16.msra.mxu0 0
    %9569 = vmatprep.subr.bf16.mxu0 0
    %9570 = vmatpush1.bf16.msra.mxu0 0
    %9571 = vmatprep.subr.bf16.mxu0 0
    %9572 = vmatpush1.bf16.msra.mxu0 0
    %9573 = vmatprep.subr.bf16.mxu0 0
    %9574 = vmatpush1.bf16.msra.mxu0 0
    %9575 = vmatprep.mubr.bf16.mxu0 0
    %9576 = vmatmul.mubr.bf16.gmra.mrb[0].mxu0 %v9538
    %v9577 = vpop.f32.mrb[0].mxu0
    %v9578 = vadd.f32 0.0, %v9577
    %v9579 = vpop.f32.mrb[0].mxu0
    %v9580 = vpop.f32.mrb[0].mxu0
    %v9581 = vadd.f32 0.0, %v9580
    %v9582 = vpop.f32.mrb[0].mxu0
    %9583 = vmatprep.mubr.bf16.mxu0 0
    %9584 = vmatmul.mubr.bf16.gmra.mrb[0].mxu0 %v9541
    %v9585 = vpop.f32.mrb[0].mxu0
    %v9586 = vadd.f32 0.0, %v9585
    %v9587 = vpop.f32.mrb[0].mxu0
    %v9588 = vpop.f32.mrb[0].mxu0
    %v9589 = vadd.f32 0.0, %v9588
    %v9590 = vpop.f32.mrb[0].mxu0
    %9591 = vdwg.mxu0
    %v9592 = vadd.f32 %v9512, %v9578
    %v9593 = vadd.f32 %v9513, %v9581
    %v9594 = vadd.f32 %v9514, %v9586
    %v9595 = vadd.f32 %v9515, %v9589
    %s9596 = scalar_lea.vmem %s10, 144
    %v9597 = vld [vmem:[%s9596] sm:$0xf]
    %v9598 = vld [vmem:[%s9596 + $0x4] sm:$0xf]
    %v9599 = vld [vmem:[%s9596 + $0x8] sm:$0xf]
    %v9600 = vld [vmem:[%s9596 + $0xc] sm:$0xf]
    %v9605 = vunpack.c.l.b16 %v9597
    %v9606 = vunpack.c.l.b16 %v9598
    %v9607 = vunpack.c.l.b16 %v9599
    %v9608 = vunpack.c.l.b16 %v9600
    %v9609 = vpack.c.b16 %v9606, %v9605
    %v9610 = vpack.c.b16 %v9608, %v9607
    %9611 = vrot.lane.b32.xlu0 %v8887, 68
    %v9612 = vpop.permute.xlu0 %9611
    %9613 = vrot.lane.b32.xlu0 %v8888, 68
    %v9614 = vpop.permute.xlu0 %9613
    %v9618 = vsel %vm5755, %v9609, 0
    %v9621 = vsel %vm5755, %v9610, 0
    %9623 = vmatprep.subr.bf16.mxu0 0
    %9624 = vmatpush1.bf16.msra.mxu0 %v9612
    %9625 = vmatprep.subr.bf16.mxu0 0
    %9626 = vmatpush1.bf16.msra.mxu0 %v9614
    %9627 = vmatprep.subr.bf16.mxu0 0
    %9628 = vmatpush1.bf16.msra.mxu0 0
    %9629 = vmatprep.subr.bf16.mxu0 0
    %9630 = vmatpush1.bf16.msra.mxu0 0
    %9631 = vmatprep.subr.bf16.mxu0 0
    %9632 = vmatpush1.bf16.msra.mxu0 0
    %9633 = vmatprep.subr.bf16.mxu0 0
    %9634 = vmatpush1.bf16.msra.mxu0 0
    %9635 = vmatprep.subr.bf16.mxu0 0
    %9636 = vmatpush1.bf16.msra.mxu0 0
    %9637 = vmatprep.subr.bf16.mxu0 0
    %9638 = vmatpush1.bf16.msra.mxu0 0
    %9639 = vmatprep.subr.bf16.mxu0 0
    %9640 = vmatpush1.bf16.msra.mxu0 0
    %9641 = vmatprep.subr.bf16.mxu0 0
    %9642 = vmatpush1.bf16.msra.mxu0 0
    %9643 = vmatprep.subr.bf16.mxu0 0
    %9644 = vmatpush1.bf16.msra.mxu0 0
    %9645 = vmatprep.subr.bf16.mxu0 0
    %9646 = vmatpush1.bf16.msra.mxu0 0
    %9647 = vmatprep.subr.bf16.mxu0 0
    %9648 = vmatpush1.bf16.msra.mxu0 0
    %9649 = vmatprep.subr.bf16.mxu0 0
    %9650 = vmatpush1.bf16.msra.mxu0 0
    %9651 = vmatprep.subr.bf16.mxu0 0
    %9652 = vmatpush1.bf16.msra.mxu0 0
    %9653 = vmatprep.subr.bf16.mxu0 0
    %9654 = vmatpush1.bf16.msra.mxu0 0
    %9655 = vmatprep.mubr.bf16.mxu0 0
    %9656 = vmatmul.mubr.bf16.gmra.mrb[0].mxu0 %v9618
    %v9657 = vpop.f32.mrb[0].mxu0
    %v9658 = vadd.f32 0.0, %v9657
    %v9659 = vpop.f32.mrb[0].mxu0
    %v9660 = vpop.f32.mrb[0].mxu0
    %v9661 = vadd.f32 0.0, %v9660
    %v9662 = vpop.f32.mrb[0].mxu0
    %9663 = vmatprep.mubr.bf16.mxu0 0
    %9664 = vmatmul.mubr.bf16.gmra.mrb[0].mxu0 %v9621
    %v9665 = vpop.f32.mrb[0].mxu0
    %v9666 = vadd.f32 0.0, %v9665
    %v9667 = vpop.f32.mrb[0].mxu0
    %v9668 = vpop.f32.mrb[0].mxu0
    %v9669 = vadd.f32 0.0, %v9668
    %v9670 = vpop.f32.mrb[0].mxu0
    %9671 = vdwg.mxu0
    %v9672 = vadd.f32 %v9592, %v9658
    %v9673 = vadd.f32 %v9593, %v9661
    %v9674 = vadd.f32 %v9594, %v9666
    %v9675 = vadd.f32 %v9595, %v9669
    %s9676 = scalar_lea.vmem %s10, 160
    %v9677 = vld [vmem:[%s9676] sm:$0xf]
    %v9678 = vld [vmem:[%s9676 + $0x4] sm:$0xf]
    %v9679 = vld [vmem:[%s9676 + $0x8] sm:$0xf]
    %v9680 = vld [vmem:[%s9676 + $0xc] sm:$0xf]
    %v9685 = vunpack.c.l.b16 %v9677
    %v9686 = vunpack.c.l.b16 %v9678
    %v9687 = vunpack.c.l.b16 %v9679
    %v9688 = vunpack.c.l.b16 %v9680
    %v9689 = vpack.c.b16 %v9686, %v9685
    %v9690 = vpack.c.b16 %v9688, %v9687
    %9691 = vrot.lane.b32.xlu0 %v8887, 64
    %v9692 = vpop.permute.xlu0 %9691
    %9693 = vrot.lane.b32.xlu0 %v8888, 64
    %v9694 = vpop.permute.xlu0 %9693
    %v9698 = vsel %vm5755, %v9689, 0
    %v9701 = vsel %vm5755, %v9690, 0
    %9703 = vmatprep.subr.bf16.mxu0 0
    %9704 = vmatpush1.bf16.msra.mxu0 %v9692
    %9705 = vmatprep.subr.bf16.mxu0 0
    %9706 = vmatpush1.bf16.msra.mxu0 %v9694
    %9707 = vmatprep.subr.bf16.mxu0 0
    %9708 = vmatpush1.bf16.msra.mxu0 0
    %9709 = vmatprep.subr.bf16.mxu0 0
    %9710 = vmatpush1.bf16.msra.mxu0 0
    %9711 = vmatprep.subr.bf16.mxu0 0
    %9712 = vmatpush1.bf16.msra.mxu0 0
    %9713 = vmatprep.subr.bf16.mxu0 0
    %9714 = vmatpush1.bf16.msra.mxu0 0
    %9715 = vmatprep.subr.bf16.mxu0 0
    %9716 = vmatpush1.bf16.msra.mxu0 0
    %9717 = vmatprep.subr.bf16.mxu0 0
    %9718 = vmatpush1.bf16.msra.mxu0 0
    %9719 = vmatprep.subr.bf16.mxu0 0
    %9720 = vmatpush1.bf16.msra.mxu0 0
    %9721 = vmatprep.subr.bf16.mxu0 0
    %9722 = vmatpush1.bf16.msra.mxu0 0
    %9723 = vmatprep.subr.bf16.mxu0 0
    %9724 = vmatpush1.bf16.msra.mxu0 0
    %9725 = vmatprep.subr.bf16.mxu0 0
    %9726 = vmatpush1.bf16.msra.mxu0 0
    %9727 = vmatprep.subr.bf16.mxu0 0
    %9728 = vmatpush1.bf16.msra.mxu0 0
    %9729 = vmatprep.subr.bf16.mxu0 0
    %9730 = vmatpush1.bf16.msra.mxu0 0
    %9731 = vmatprep.subr.bf16.mxu0 0
    %9732 = vmatpush1.bf16.msra.mxu0 0
    %9733 = vmatprep.subr.bf16.mxu0 0
    %9734 = vmatpush1.bf16.msra.mxu0 0
    %9735 = vmatprep.mubr.bf16.mxu0 0
    %9736 = vmatmul.mubr.bf16.gmra.mrb[0].mxu0 %v9698
    %v9737 = vpop.f32.mrb[0].mxu0
    %v9738 = vadd.f32 0.0, %v9737
    %v9739 = vpop.f32.mrb[0].mxu0
    %v9740 = vpop.f32.mrb[0].mxu0
    %v9741 = vadd.f32 0.0, %v9740
    %v9742 = vpop.f32.mrb[0].mxu0
    %9743 = vmatprep.mubr.bf16.mxu0 0
    %9744 = vmatmul.mubr.bf16.gmra.mrb[0].mxu0 %v9701
    %v9745 = vpop.f32.mrb[0].mxu0
    %v9746 = vadd.f32 0.0, %v9745
    %v9747 = vpop.f32.mrb[0].mxu0
    %v9748 = vpop.f32.mrb[0].mxu0
    %v9749 = vadd.f32 0.0, %v9748
    %v9750 = vpop.f32.mrb[0].mxu0
    %9751 = vdwg.mxu0
    %v9752 = vadd.f32 %v9672, %v9738
    %v9753 = vadd.f32 %v9673, %v9741
    %v9754 = vadd.f32 %v9674, %v9746
    %v9755 = vadd.f32 %v9675, %v9749
    %s9756 = scalar_lea.vmem %s10, 176
    %v9757 = vld [vmem:[%s9756] sm:$0xf]
    %v9758 = vld [vmem:[%s9756 + $0x4] sm:$0xf]
    %v9759 = vld [vmem:[%s9756 + $0x8] sm:$0xf]
    %v9760 = vld [vmem:[%s9756 + $0xc] sm:$0xf]
    %v9765 = vunpack.c.l.b16 %v9757
    %v9766 = vunpack.c.l.b16 %v9758
    %v9767 = vunpack.c.l.b16 %v9759
    %v9768 = vunpack.c.l.b16 %v9760
    %v9769 = vpack.c.b16 %v9766, %v9765
    %v9770 = vpack.c.b16 %v9768, %v9767
    %9771 = vrot.lane.b32.xlu0 %v8887, 60
    %v9772 = vpop.permute.xlu0 %9771
    %9773 = vrot.lane.b32.xlu0 %v8888, 60
    %v9774 = vpop.permute.xlu0 %9773
    %v9778 = vsel %vm5755, %v9769, 0
    %v9781 = vsel %vm5755, %v9770, 0
    %9783 = vmatprep.subr.bf16.mxu0 0
    %9784 = vmatpush1.bf16.msra.mxu0 %v9772
    %9785 = vmatprep.subr.bf16.mxu0 0
    %9786 = vmatpush1.bf16.msra.mxu0 %v9774
    %9787 = vmatprep.subr.bf16.mxu0 0
    %9788 = vmatpush1.bf16.msra.mxu0 0
    %9789 = vmatprep.subr.bf16.mxu0 0
    %9790 = vmatpush1.bf16.msra.mxu0 0
    %9791 = vmatprep.subr.bf16.mxu0 0
    %9792 = vmatpush1.bf16.msra.mxu0 0
    %9793 = vmatprep.subr.bf16.mxu0 0
    %9794 = vmatpush1.bf16.msra.mxu0 0
    %9795 = vmatprep.subr.bf16.mxu0 0
    %9796 = vmatpush1.bf16.msra.mxu0 0
    %9797 = vmatprep.subr.bf16.mxu0 0
    %9798 = vmatpush1.bf16.msra.mxu0 0
    %9799 = vmatprep.subr.bf16.mxu0 0
    %9800 = vmatpush1.bf16.msra.mxu0 0
    %9801 = vmatprep.subr.bf16.mxu0 0
    %9802 = vmatpush1.bf16.msra.mxu0 0
    %9803 = vmatprep.subr.bf16.mxu0 0
    %9804 = vmatpush1.bf16.msra.mxu0 0
    %9805 = vmatprep.subr.bf16.mxu0 0
    %9806 = vmatpush1.bf16.msra.mxu0 0
    %9807 = vmatprep.subr.bf16.mxu0 0
    %9808 = vmatpush1.bf16.msra.mxu0 0
    %9809 = vmatprep.subr.bf16.mxu0 0
    %9810 = vmatpush1.bf16.msra.mxu0 0
    %9811 = vmatprep.subr.bf16.mxu0 0
    %9812 = vmatpush1.bf16.msra.mxu0 0
    %9813 = vmatprep.subr.bf16.mxu0 0
    %9814 = vmatpush1.bf16.msra.mxu0 0
    %9815 = vmatprep.mubr.bf16.mxu0 0
    %9816 = vmatmul.mubr.bf16.gmra.mrb[0].mxu0 %v9778
    %v9817 = vpop.f32.mrb[0].mxu0
    %v9818 = vadd.f32 0.0, %v9817
    %v9819 = vpop.f32.mrb[0].mxu0
    %v9820 = vpop.f32.mrb[0].mxu0
    %v9821 = vadd.f32 0.0, %v9820
    %v9822 = vpop.f32.mrb[0].mxu0
    %9823 = vmatprep.mubr.bf16.mxu0 0
    %9824 = vmatmul.mubr.bf16.gmra.mrb[0].mxu0 %v9781
    %v9825 = vpop.f32.mrb[0].mxu0
    %v9826 = vadd.f32 0.0, %v9825
    %v9827 = vpop.f32.mrb[0].mxu0
    %v9828 = vpop.f32.mrb[0].mxu0
    %v9829 = vadd.f32 0.0, %v9828
    %v9830 = vpop.f32.mrb[0].mxu0
    %9831 = vdwg.mxu0
    %v9832 = vadd.f32 %v9752, %v9818
    %v9833 = vadd.f32 %v9753, %v9821
    %v9834 = vadd.f32 %v9754, %v9826
    %v9835 = vadd.f32 %v9755, %v9829
    %s9836 = scalar_lea.vmem %s10, 192
    %v9837 = vld [vmem:[%s9836] sm:$0xf]
    %v9838 = vld [vmem:[%s9836 + $0x4] sm:$0xf]
    %v9839 = vld [vmem:[%s9836 + $0x8] sm:$0xf]
    %v9840 = vld [vmem:[%s9836 + $0xc] sm:$0xf]
    %v9845 = vunpack.c.l.b16 %v9837
    %v9846 = vunpack.c.l.b16 %v9838
    %v9847 = vunpack.c.l.b16 %v9839
    %v9848 = vunpack.c.l.b16 %v9840
    %v9849 = vpack.c.b16 %v9846, %v9845
    %v9850 = vpack.c.b16 %v9848, %v9847
    %9851 = vrot.lane.b32.xlu0 %v8887, 44
    %v9852 = vpop.permute.xlu0 %9851
    %9853 = vrot.lane.b32.xlu0 %v8888, 44
    %v9854 = vpop.permute.xlu0 %9853
    %v9858 = vsel %vm5755, %v9849, 0
    %v9861 = vsel %vm5755, %v9850, 0
    %9863 = vmatprep.subr.bf16.mxu0 0
    %9864 = vmatpush1.bf16.msra.mxu0 %v9852
    %9865 = vmatprep.subr.bf16.mxu0 0
    %9866 = vmatpush1.bf16.msra.mxu0 %v9854
    %9867 = vmatprep.subr.bf16.mxu0 0
    %9868 = vmatpush1.bf16.msra.mxu0 0
    %9869 = vmatprep.subr.bf16.mxu0 0
    %9870 = vmatpush1.bf16.msra.mxu0 0
    %9871 = vmatprep.subr.bf16.mxu0 0
    %9872 = vmatpush1.bf16.msra.mxu0 0
    %9873 = vmatprep.subr.bf16.mxu0 0
    %9874 = vmatpush1.bf16.msra.mxu0 0
    %9875 = vmatprep.subr.bf16.mxu0 0
    %9876 = vmatpush1.bf16.msra.mxu0 0
    %9877 = vmatprep.subr.bf16.mxu0 0
    %9878 = vmatpush1.bf16.msra.mxu0 0
    %9879 = vmatprep.subr.bf16.mxu0 0
    %9880 = vmatpush1.bf16.msra.mxu0 0
    %9881 = vmatprep.subr.bf16.mxu0 0
    %9882 = vmatpush1.bf16.msra.mxu0 0
    %9883 = vmatprep.subr.bf16.mxu0 0
    %9884 = vmatpush1.bf16.msra.mxu0 0
    %9885 = vmatprep.subr.bf16.mxu0 0
    %9886 = vmatpush1.bf16.msra.mxu0 0
    %9887 = vmatprep.subr.bf16.mxu0 0
    %9888 = vmatpush1.bf16.msra.mxu0 0
    %9889 = vmatprep.subr.bf16.mxu0 0
    %9890 = vmatpush1.bf16.msra.mxu0 0
    %9891 = vmatprep.subr.bf16.mxu0 0
    %9892 = vmatpush1.bf16.msra.mxu0 0
    %9893 = vmatprep.subr.bf16.mxu0 0
    %9894 = vmatpush1.bf16.msra.mxu0 0
    %9895 = vmatprep.mubr.bf16.mxu0 0
    %9896 = vmatmul.mubr.bf16.gmra.mrb[0].mxu0 %v9858
    %v9897 = vpop.f32.mrb[0].mxu0
    %v9898 = vadd.f32 0.0, %v9897
    %v9899 = vpop.f32.mrb[0].mxu0
    %v9900 = vpop.f32.mrb[0].mxu0
    %v9901 = vadd.f32 0.0, %v9900
    %v9902 = vpop.f32.mrb[0].mxu0
    %9903 = vmatprep.mubr.bf16.mxu0 0
    %9904 = vmatmul.mubr.bf16.gmra.mrb[0].mxu0 %v9861
    %v9905 = vpop.f32.mrb[0].mxu0
    %v9906 = vadd.f32 0.0, %v9905
    %v9907 = vpop.f32.mrb[0].mxu0
    %v9908 = vpop.f32.mrb[0].mxu0
    %v9909 = vadd.f32 0.0, %v9908
    %v9910 = vpop.f32.mrb[0].mxu0
    %9911 = vdwg.mxu0
    %v9912 = vadd.f32 %v9832, %v9898
    %v9913 = vadd.f32 %v9833, %v9901
    %v9914 = vadd.f32 %v9834, %v9906
    %v9915 = vadd.f32 %v9835, %v9909
    %s9916 = scalar_lea.vmem %s10, 208
    %v9917 = vld [vmem:[%s9916] sm:$0xf]
    %v9918 = vld [vmem:[%s9916 + $0x4] sm:$0xf]
    %v9919 = vld [vmem:[%s9916 + $0x8] sm:$0xf]
    %v9920 = vld [vmem:[%s9916 + $0xc] sm:$0xf]
    %v9925 = vunpack.c.l.b16 %v9917
    %v9926 = vunpack.c.l.b16 %v9918
    %v9927 = vunpack.c.l.b16 %v9919
    %v9928 = vunpack.c.l.b16 %v9920
    %v9929 = vpack.c.b16 %v9926, %v9925
    %v9930 = vpack.c.b16 %v9928, %v9927
    %9931 = vrot.lane.b32.xlu0 %v8887, 40
    %v9932 = vpop.permute.xlu0 %9931
    %9933 = vrot.lane.b32.xlu0 %v8888, 40
    %v9934 = vpop.permute.xlu0 %9933
    %v9938 = vsel %vm5755, %v9929, 0
    %v9941 = vsel %vm5755, %v9930, 0
    %9943 = vmatprep.subr.bf16.mxu0 0
    %9944 = vmatpush1.bf16.msra.mxu0 %v9932
    %9945 = vmatprep.subr.bf16.mxu0 0
    %9946 = vmatpush1.bf16.msra.mxu0 %v9934
    %9947 = vmatprep.subr.bf16.mxu0 0
    %9948 = vmatpush1.bf16.msra.mxu0 0
    %9949 = vmatprep.subr.bf16.mxu0 0
    %9950 = vmatpush1.bf16.msra.mxu0 0
    %9951 = vmatprep.subr.bf16.mxu0 0
    %9952 = vmatpush1.bf16.msra.mxu0 0
    %9953 = vmatprep.subr.bf16.mxu0 0
    %9954 = vmatpush1.bf16.msra.mxu0 0
    %9955 = vmatprep.subr.bf16.mxu0 0
    %9956 = vmatpush1.bf16.msra.mxu0 0
    %9957 = vmatprep.subr.bf16.mxu0 0
    %9958 = vmatpush1.bf16.msra.mxu0 0
    %9959 = vmatprep.subr.bf16.mxu0 0
    %9960 = vmatpush1.bf16.msra.mxu0 0
    %9961 = vmatprep.subr.bf16.mxu0 0
    %9962 = vmatpush1.bf16.msra.mxu0 0
    %9963 = vmatprep.subr.bf16.mxu0 0
    %9964 = vmatpush1.bf16.msra.mxu0 0
    %9965 = vmatprep.subr.bf16.mxu0 0
    %9966 = vmatpush1.bf16.msra.mxu0 0
    %9967 = vmatprep.subr.bf16.mxu0 0
    %9968 = vmatpush1.bf16.msra.mxu0 0
    %9969 = vmatprep.subr.bf16.mxu0 0
    %9970 = vmatpush1.bf16.msra.mxu0 0
    %9971 = vmatprep.subr.bf16.mxu0 0
    %9972 = vmatpush1.bf16.msra.mxu0 0
    %9973 = vmatprep.subr.bf16.mxu0 0
    %9974 = vmatpush1.bf16.msra.mxu0 0
    %9975 = vmatprep.mubr.bf16.mxu0 0
    %9976 = vmatmul.mubr.bf16.gmra.mrb[0].mxu0 %v9938
    %v9977 = vpop.f32.mrb[0].mxu0
    %v9978 = vadd.f32 0.0, %v9977
    %v9979 = vpop.f32.mrb[0].mxu0
    %v9980 = vpop.f32.mrb[0].mxu0
    %v9981 = vadd.f32 0.0, %v9980
    %v9982 = vpop.f32.mrb[0].mxu0
    %9983 = vmatprep.mubr.bf16.mxu0 0
    %9984 = vmatmul.mubr.bf16.gmra.mrb[0].mxu0 %v9941
    %v9985 = vpop.f32.mrb[0].mxu0
    %v9986 = vadd.f32 0.0, %v9985
    %v9987 = vpop.f32.mrb[0].mxu0
    %v9988 = vpop.f32.mrb[0].mxu0
    %v9989 = vadd.f32 0.0, %v9988
    %v9990 = vpop.f32.mrb[0].mxu0
    %9991 = vdwg.mxu0
    %v9992 = vadd.f32 %v9912, %v9978
    %v9993 = vadd.f32 %v9913, %v9981
    %v9994 = vadd.f32 %v9914, %v9986
    %v9995 = vadd.f32 %v9915, %v9989
    %s9996 = scalar_lea.vmem %s10, 224
    %v9997 = vld [vmem:[%s9996] sm:$0xf]
    %v9998 = vld [vmem:[%s9996 + $0x4] sm:$0xf]
    %v9999 = vld [vmem:[%s9996 + $0x8] sm:$0xf]
    %v10000 = vld [vmem:[%s9996 + $0xc] sm:$0xf]
    %v10005 = vunpack.c.l.b16 %v9997
    %v10006 = vunpack.c.l.b16 %v9998
    %v10007 = vunpack.c.l.b16 %v9999
    %v10008 = vunpack.c.l.b16 %v10000
    %v10009 = vpack.c.b16 %v10006, %v10005
    %v10010 = vpack.c.b16 %v10008, %v10007
    %10011 = vrot.lane.b32.xlu0 %v8887, 36
    %v10012 = vpop.permute.xlu0 %10011
    %10013 = vrot.lane.b32.xlu0 %v8888, 36
    %v10014 = vpop.permute.xlu0 %10013
    %v10018 = vsel %vm5755, %v10009, 0
    %v10021 = vsel %vm5755, %v10010, 0
    %10023 = vmatprep.subr.bf16.mxu0 0
    %10024 = vmatpush1.bf16.msra.mxu0 %v10012
    %10025 = vmatprep.subr.bf16.mxu0 0
    %10026 = vmatpush1.bf16.msra.mxu0 %v10014
    %10027 = vmatprep.subr.bf16.mxu0 0
    %10028 = vmatpush1.bf16.msra.mxu0 0
    %10029 = vmatprep.subr.bf16.mxu0 0
    %10030 = vmatpush1.bf16.msra.mxu0 0
    %10031 = vmatprep.subr.bf16.mxu0 0
    %10032 = vmatpush1.bf16.msra.mxu0 0
    %10033 = vmatprep.subr.bf16.mxu0 0
    %10034 = vmatpush1.bf16.msra.mxu0 0
    %10035 = vmatprep.subr.bf16.mxu0 0
    %10036 = vmatpush1.bf16.msra.mxu0 0
    %10037 = vmatprep.subr.bf16.mxu0 0
    %10038 = vmatpush1.bf16.msra.mxu0 0
    %10039 = vmatprep.subr.bf16.mxu0 0
    %10040 = vmatpush1.bf16.msra.mxu0 0
    %10041 = vmatprep.subr.bf16.mxu0 0
    %10042 = vmatpush1.bf16.msra.mxu0 0
    %10043 = vmatprep.subr.bf16.mxu0 0
    %10044 = vmatpush1.bf16.msra.mxu0 0
    %10045 = vmatprep.subr.bf16.mxu0 0
    %10046 = vmatpush1.bf16.msra.mxu0 0
    %10047 = vmatprep.subr.bf16.mxu0 0
    %10048 = vmatpush1.bf16.msra.mxu0 0
    %10049 = vmatprep.subr.bf16.mxu0 0
    %10050 = vmatpush1.bf16.msra.mxu0 0
    %10051 = vmatprep.subr.bf16.mxu0 0
    %10052 = vmatpush1.bf16.msra.mxu0 0
    %10053 = vmatprep.subr.bf16.mxu0 0
    %10054 = vmatpush1.bf16.msra.mxu0 0
    %10055 = vmatprep.mubr.bf16.mxu0 0
    %10056 = vmatmul.mubr.bf16.gmra.mrb[0].mxu0 %v10018
    %v10057 = vpop.f32.mrb[0].mxu0
    %v10058 = vadd.f32 0.0, %v10057
    %v10059 = vpop.f32.mrb[0].mxu0
    %v10060 = vpop.f32.mrb[0].mxu0
    %v10061 = vadd.f32 0.0, %v10060
    %v10062 = vpop.f32.mrb[0].mxu0
    %10063 = vmatprep.mubr.bf16.mxu0 0
    %10064 = vmatmul.mubr.bf16.gmra.mrb[0].mxu0 %v10021
    %v10065 = vpop.f32.mrb[0].mxu0
    %v10066 = vadd.f32 0.0, %v10065
    %v10067 = vpop.f32.mrb[0].mxu0
    %v10068 = vpop.f32.mrb[0].mxu0
    %v10069 = vadd.f32 0.0, %v10068
    %v10070 = vpop.f32.mrb[0].mxu0
    %10071 = vdwg.mxu0
    %v10072 = vadd.f32 %v9992, %v10058
    %v10073 = vadd.f32 %v9993, %v10061
    %v10074 = vadd.f32 %v9994, %v10066
    %v10075 = vadd.f32 %v9995, %v10069
    %s10076 = scalar_lea.vmem %s10, 240
    %v10077 = vld [vmem:[%s10076] sm:$0xf]
    %v10078 = vld [vmem:[%s10076 + $0x4] sm:$0xf]
    %v10079 = vld [vmem:[%s10076 + $0x8] sm:$0xf]
    %v10080 = vld [vmem:[%s10076 + $0xc] sm:$0xf]
    %v10085 = vunpack.c.l.b16 %v10077
    %v10086 = vunpack.c.l.b16 %v10078
    %v10087 = vunpack.c.l.b16 %v10079
    %v10088 = vunpack.c.l.b16 %v10080
    %v10089 = vpack.c.b16 %v10086, %v10085
    %v10090 = vpack.c.b16 %v10088, %v10087
    %10091 = vrot.lane.b32.xlu0 %v8887, 32
    %v10092 = vpop.permute.xlu0 %10091
    %10093 = vrot.lane.b32.xlu0 %v8888, 32
    %v10094 = vpop.permute.xlu0 %10093
    %v10098 = vsel %vm5755, %v10089, 0
    %v10101 = vsel %vm5755, %v10090, 0
    %10103 = vmatprep.subr.bf16.mxu0 0
    %10104 = vmatpush1.bf16.msra.mxu0 %v10092
    %10105 = vmatprep.subr.bf16.mxu0 0
    %10106 = vmatpush1.bf16.msra.mxu0 %v10094
    %10107 = vmatprep.subr.bf16.mxu0 0
    %10108 = vmatpush1.bf16.msra.mxu0 0
    %10109 = vmatprep.subr.bf16.mxu0 0
    %10110 = vmatpush1.bf16.msra.mxu0 0
    %10111 = vmatprep.subr.bf16.mxu0 0
    %10112 = vmatpush1.bf16.msra.mxu0 0
    %10113 = vmatprep.subr.bf16.mxu0 0
    %10114 = vmatpush1.bf16.msra.mxu0 0
    %10115 = vmatprep.subr.bf16.mxu0 0
    %10116 = vmatpush1.bf16.msra.mxu0 0
    %10117 = vmatprep.subr.bf16.mxu0 0
    %10118 = vmatpush1.bf16.msra.mxu0 0
    %10119 = vmatprep.subr.bf16.mxu0 0
    %10120 = vmatpush1.bf16.msra.mxu0 0
    %10121 = vmatprep.subr.bf16.mxu0 0
    %10122 = vmatpush1.bf16.msra.mxu0 0
    %10123 = vmatprep.subr.bf16.mxu0 0
    %10124 = vmatpush1.bf16.msra.mxu0 0
    %10125 = vmatprep.subr.bf16.mxu0 0
    %10126 = vmatpush1.bf16.msra.mxu0 0
    %10127 = vmatprep.subr.bf16.mxu0 0
    %10128 = vmatpush1.bf16.msra.mxu0 0
    %10129 = vmatprep.subr.bf16.mxu0 0
    %10130 = vmatpush1.bf16.msra.mxu0 0
    %10131 = vmatprep.subr.bf16.mxu0 0
    %10132 = vmatpush1.bf16.msra.mxu0 0
    %10133 = vmatprep.subr.bf16.mxu0 0
    %10134 = vmatpush1.bf16.msra.mxu0 0
    %10135 = vmatprep.mubr.bf16.mxu0 0
    %10136 = vmatmul.mubr.bf16.gmra.mrb[0].mxu0 %v10098
    %v10137 = vpop.f32.mrb[0].mxu0
    %v10138 = vadd.f32 0.0, %v10137
    %v10139 = vpop.f32.mrb[0].mxu0
    %v10140 = vpop.f32.mrb[0].mxu0
    %v10141 = vadd.f32 0.0, %v10140
    %v10142 = vpop.f32.mrb[0].mxu0
    %10143 = vmatprep.mubr.bf16.mxu0 0
    %10144 = vmatmul.mubr.bf16.gmra.mrb[0].mxu0 %v10101
    %v10145 = vpop.f32.mrb[0].mxu0
    %v10146 = vadd.f32 0.0, %v10145
    %v10147 = vpop.f32.mrb[0].mxu0
    %v10148 = vpop.f32.mrb[0].mxu0
    %v10149 = vadd.f32 0.0, %v10148
    %v10150 = vpop.f32.mrb[0].mxu0
    %10151 = vdwg.mxu0
    %v10152 = vadd.f32 %v10072, %v10138
    %v10153 = vadd.f32 %v10073, %v10141
    %v10154 = vadd.f32 %v10074, %v10146
    %v10155 = vadd.f32 %v10075, %v10149
    %v10156 = vld [vmem:[%s11] sm:$0xff]
    %v10157 = vld [vmem:[%s11 + $0x8] sm:$0xff]
    %v10158 = vld [vmem:[%s11 + $0x10] sm:$0xff]
    %v10159 = vld [vmem:[%s11 + $0x18] sm:$0xff]
    %10161 = vset.pattern.permute.xlu0 0
    %10162 = vperm.xlu0 %10161, %v10156
    %v10163 = vpop.permute.xlu0 %10162
    %10166 = vset.pattern.permute.xlu0 0
    %10167 = vperm.xlu0 %10166, %v10157
    %v10168 = vpop.permute.xlu0 %10167
    %10171 = vset.pattern.permute.xlu0 0
    %10172 = vperm.xlu0 %10171, %v10158
    %v10173 = vpop.permute.xlu0 %10172
    %10176 = vset.pattern.permute.xlu0 0
    %10177 = vperm.xlu0 %10176, %v10159
    %v10178 = vpop.permute.xlu0 %10177
    %v10180 = vadd.f32 %v10152, %v10163
    %v10181 = vadd.f32 %v10153, %v10168
    %v10182 = vadd.f32 %v10154, %v10173
    %v10183 = vadd.f32 %v10155, %v10178
    %v10184 = vmax.f32 %v10180, 0.0
    %v10185 = vmax.f32 %v10181, 0.0
    %v10186 = vmax.f32 %v10182, 0.0
    %v10187 = vmax.f32 %v10183, 0.0
    %v10188 = vpack.c.bf16 %v10185, %v10184
    %v10189 = vpack.c.bf16 %v10187, %v10186
    %v10190 = vld [vmem:[%s12] sm:$0xf]
    %v10191 = vld [vmem:[%s12 + $0x4] sm:$0xf]
    %v10192 = vld [vmem:[%s12 + $0x8] sm:$0xf]
    %v10193 = vld [vmem:[%s12 + $0xc] sm:$0xf]
    %v10194 = vld [vmem:[%s12 + $0x10] sm:$0xf]
    %v10195 = vld [vmem:[%s12 + $0x14] sm:$0xf]
    %v10196 = vld [vmem:[%s12 + $0x18] sm:$0xf]
    %v10197 = vld [vmem:[%s12 + $0x1c] sm:$0xf]
    %v10198 = vld [vmem:[%s12 + $0x20] sm:$0xf]
    %v10199 = vld [vmem:[%s12 + $0x24] sm:$0xf]
    %v10200 = vld [vmem:[%s12 + $0x28] sm:$0xf]
    %v10201 = vld [vmem:[%s12 + $0x2c] sm:$0xf]
    %v10202 = vld [vmem:[%s13] sm:$0xf]
    %v10203 = vld [vmem:[%s13 + $0x4] sm:$0xf]
    %v10204 = vld [vmem:[%s13 + $0x8] sm:$0xf]
    %v10205 = vld [vmem:[%s13 + $0xc] sm:$0xf]
    %v10206 = vld [vmem:[%s13 + $0x10] sm:$0xf]
    %v10207 = vld [vmem:[%s13 + $0x14] sm:$0xf]
    %v10208 = vld [vmem:[%s13 + $0x18] sm:$0xf]
    %v10209 = vld [vmem:[%s13 + $0x1c] sm:$0xf]
    %v10210 = vld [vmem:[%s13 + $0x20] sm:$0xf]
    %v10211 = vld [vmem:[%s13 + $0x24] sm:$0xf]
    %v10212 = vld [vmem:[%s13 + $0x28] sm:$0xf]
    %v10213 = vld [vmem:[%s13 + $0x2c] sm:$0xf]
    %v10214 = vld [vmem:[%s1] sm:$0x1]
    %v10227 = vunpack.c.l.b16 %v10202
    %v10228 = vunpack.c.l.b16 %v10203
    %v10229 = vunpack.c.l.b16 %v10204
    %v10230 = vunpack.c.l.b16 %v10205
    %v10231 = vunpack.c.l.b16 %v10206
    %v10232 = vunpack.c.l.b16 %v10207
    %v10233 = vunpack.c.l.b16 %v10208
    %v10234 = vunpack.c.l.b16 %v10209
    %v10235 = vunpack.c.l.b16 %v10210
    %v10236 = vunpack.c.l.b16 %v10211
    %v10237 = vunpack.c.l.b16 %v10212
    %v10238 = vunpack.c.l.b16 %v10213
    %v10239 = vpack.c.b16 %v10228, %v10227
    %v10240 = vpack.c.b16 %v10230, %v10229
    %v10241 = vpack.c.b16 %v10232, %v10231
    %v10242 = vpack.c.b16 %v10234, %v10233
    %v10243 = vpack.c.b16 %v10236, %v10235
    %v10244 = vpack.c.b16 %v10238, %v10237
    %vm10245 = vcmask 15360
    %v10247 = vsel %vm10245, %v10239, 0
    %v10250 = vsel %vm10245, %v10240, 0
    %v10253 = vsel %vm10245, %v10241, 0
    %v10256 = vsel %vm10245, %v10242, 0
    %v10259 = vsel %vm10245, %v10243, 0
    %v10262 = vsel %vm10245, %v10244, 0
    %vm10264 = vcmask 1040384
    %v10266 = vsel %vm10264, %v10214, 0
    %10268 = vmatprep.subr.bf16.mxu0 0
    %10269 = vmatpush1.bf16.msra.mxu0 %v10266
    %10270 = vmatprep.subr.bf16.mxu0 0
    %10271 = vmatpush1.bf16.msra.mxu0 0
    %10272 = vmatprep.subr.bf16.mxu0 0
    %10273 = vmatpush1.bf16.msra.mxu0 0
    %10274 = vmatprep.subr.bf16.mxu0 0
    %10275 = vmatpush1.bf16.msra.mxu0 0
    %10276 = vmatprep.subr.bf16.mxu0 0
    %10277 = vmatpush1.bf16.msra.mxu0 0
    %10278 = vmatprep.subr.bf16.mxu0 0
    %10279 = vmatpush1.bf16.msra.mxu0 0
    %10280 = vmatprep.subr.bf16.mxu0 0
    %10281 = vmatpush1.bf16.msra.mxu0 0
    %10282 = vmatprep.subr.bf16.mxu0 0
    %10283 = vmatpush1.bf16.msra.mxu0 0
    %10284 = vmatprep.subr.bf16.mxu0 0
    %10285 = vmatpush1.bf16.msra.mxu0 0
    %10286 = vmatprep.subr.bf16.mxu0 0
    %10287 = vmatpush1.bf16.msra.mxu0 0
    %10288 = vmatprep.subr.bf16.mxu0 0
    %10289 = vmatpush1.bf16.msra.mxu0 0
    %10290 = vmatprep.subr.bf16.mxu0 0
    %10291 = vmatpush1.bf16.msra.mxu0 0
    %10292 = vmatprep.subr.bf16.mxu0 0
    %10293 = vmatpush1.bf16.msra.mxu0 0
    %10294 = vmatprep.subr.bf16.mxu0 0
    %10295 = vmatpush1.bf16.msra.mxu0 0
    %10296 = vmatprep.subr.bf16.mxu0 0
    %10297 = vmatpush1.bf16.msra.mxu0 0
    %10298 = vmatprep.subr.bf16.mxu0 0
    %10299 = vmatpush1.bf16.msra.mxu0 0
    %10300 = vmatprep.mubr.bf16.mxu0 0
    %10301 = vmatmul.mubr.bf16.gmra.mrb[0].mxu0 %v10247
    %v10302 = vpop.f32.mrb[0].mxu0
    %v10303 = vadd.f32 0.0, %v10302
    %v10304 = vpop.f32.mrb[0].mxu0
    %v10305 = vpop.f32.mrb[0].mxu0
    %v10306 = vadd.f32 0.0, %v10305
    %v10307 = vpop.f32.mrb[0].mxu0
    %10308 = vmatprep.mubr.bf16.mxu0 0
    %10309 = vmatmul.mubr.bf16.gmra.mrb[0].mxu0 %v10250
    %v10310 = vpop.f32.mrb[0].mxu0
    %v10311 = vadd.f32 0.0, %v10310
    %v10312 = vpop.f32.mrb[0].mxu0
    %v10313 = vpop.f32.mrb[0].mxu0
    %v10314 = vadd.f32 0.0, %v10313
    %v10315 = vpop.f32.mrb[0].mxu0
    %10316 = vmatprep.mubr.bf16.mxu0 0
    %10317 = vmatmul.mubr.bf16.gmra.mrb[0].mxu0 %v10253
    %v10318 = vpop.f32.mrb[0].mxu0
    %v10319 = vadd.f32 0.0, %v10318
    %v10320 = vpop.f32.mrb[0].mxu0
    %v10321 = vpop.f32.mrb[0].mxu0
    %v10322 = vadd.f32 0.0, %v10321
    %v10323 = vpop.f32.mrb[0].mxu0
    %10324 = vmatprep.mubr.bf16.mxu0 0
    %10325 = vmatmul.mubr.bf16.gmra.mrb[0].mxu0 %v10256
    %v10326 = vpop.f32.mrb[0].mxu0
    %v10327 = vadd.f32 0.0, %v10326
    %v10328 = vpop.f32.mrb[0].mxu0
    %v10329 = vpop.f32.mrb[0].mxu0
    %v10330 = vadd.f32 0.0, %v10329
    %v10331 = vpop.f32.mrb[0].mxu0
    %10332 = vmatprep.mubr.bf16.mxu0 0
    %10333 = vmatmul.mubr.bf16.gmra.mrb[0].mxu0 %v10259
    %v10334 = vpop.f32.mrb[0].mxu0
    %v10335 = vadd.f32 0.0, %v10334
    %v10336 = vpop.f32.mrb[0].mxu0
    %v10337 = vpop.f32.mrb[0].mxu0
    %v10338 = vadd.f32 0.0, %v10337
    %v10339 = vpop.f32.mrb[0].mxu0
    %10340 = vmatprep.mubr.bf16.mxu0 0
    %10341 = vmatmul.mubr.bf16.gmra.mrb[0].mxu0 %v10262
    %v10342 = vpop.f32.mrb[0].mxu0
    %v10343 = vadd.f32 0.0, %v10342
    %v10344 = vpop.f32.mrb[0].mxu0
    %v10345 = vpop.f32.mrb[0].mxu0
    %v10346 = vadd.f32 0.0, %v10345
    %v10347 = vpop.f32.mrb[0].mxu0
    %10348 = vdwg.mxu0
    %v10361 = vunpack.c.l.b16 %v10190
    %v10362 = vunpack.c.l.b16 %v10191
    %v10363 = vunpack.c.l.b16 %v10192
    %v10364 = vunpack.c.l.b16 %v10193
    %v10365 = vunpack.c.l.b16 %v10194
    %v10366 = vunpack.c.l.b16 %v10195
    %v10367 = vunpack.c.l.b16 %v10196
    %v10368 = vunpack.c.l.b16 %v10197
    %v10369 = vunpack.c.l.b16 %v10198
    %v10370 = vunpack.c.l.b16 %v10199
    %v10371 = vunpack.c.l.b16 %v10200
    %v10372 = vunpack.c.l.b16 %v10201
    %v10373 = vpack.c.b16 %v10362, %v10361
    %v10374 = vpack.c.b16 %v10364, %v10363
    %v10375 = vpack.c.b16 %v10366, %v10365
    %v10376 = vpack.c.b16 %v10368, %v10367
    %v10377 = vpack.c.b16 %v10370, %v10369
    %v10378 = vpack.c.b16 %v10372, %v10371
    %v10380 = vsel %vm5755, %v10373, 0
    %v10383 = vsel %vm5755, %v10374, 0
    %v10386 = vsel %vm5755, %v10375, 0
    %v10389 = vsel %vm5755, %v10376, 0
    %v10392 = vsel %vm5755, %v10377, 0
    %v10395 = vsel %vm5755, %v10378, 0
    %10397 = vmatprep.subr.bf16.mxu0 0
    %10398 = vmatpush1.bf16.msra.mxu0 %v10188
    %10399 = vmatprep.subr.bf16.mxu0 0
    %10400 = vmatpush1.bf16.msra.mxu0 %v10189
    %10401 = vmatprep.subr.bf16.mxu0 0
    %10402 = vmatpush1.bf16.msra.mxu0 0
    %10403 = vmatprep.subr.bf16.mxu0 0
    %10404 = vmatpush1.bf16.msra.mxu0 0
    %10405 = vmatprep.subr.bf16.mxu0 0
    %10406 = vmatpush1.bf16.msra.mxu0 0
    %10407 = vmatprep.subr.bf16.mxu0 0
    %10408 = vmatpush1.bf16.msra.mxu0 0
    %10409 = vmatprep.subr.bf16.mxu0 0
    %10410 = vmatpush1.bf16.msra.mxu0 0
    %10411 = vmatprep.subr.bf16.mxu0 0
    %10412 = vmatpush1.bf16.msra.mxu0 0
    %10413 = vmatprep.subr.bf16.mxu0 0
    %10414 = vmatpush1.bf16.msra.mxu0 0
    %10415 = vmatprep.subr.bf16.mxu0 0
    %10416 = vmatpush1.bf16.msra.mxu0 0
    %10417 = vmatprep.subr.bf16.mxu0 0
    %10418 = vmatpush1.bf16.msra.mxu0 0
    %10419 = vmatprep.subr.bf16.mxu0 0
    %10420 = vmatpush1.bf16.msra.mxu0 0
    %10421 = vmatprep.subr.bf16.mxu0 0
    %10422 = vmatpush1.bf16.msra.mxu0 0
    %10423 = vmatprep.subr.bf16.mxu0 0
    %10424 = vmatpush1.bf16.msra.mxu0 0
    %10425 = vmatprep.subr.bf16.mxu0 0
    %10426 = vmatpush1.bf16.msra.mxu0 0
    %10427 = vmatprep.subr.bf16.mxu0 0
    %10428 = vmatpush1.bf16.msra.mxu0 0
    %10429 = vmatprep.mubr.bf16.mxu0 0
    %10430 = vmatmul.mubr.bf16.gmra.mrb[0].mxu0 %v10380
    %v10431 = vpop.f32.mrb[0].mxu0
    %v10432 = vadd.f32 %v10303, %v10431
    %v10433 = vpop.f32.mrb[0].mxu0
    %v10434 = vpop.f32.mrb[0].mxu0
    %v10435 = vadd.f32 %v10306, %v10434
    %v10436 = vpop.f32.mrb[0].mxu0
    %10437 = vmatprep.mubr.bf16.mxu0 0
    %10438 = vmatmul.mubr.bf16.gmra.mrb[0].mxu0 %v10383
    %v10439 = vpop.f32.mrb[0].mxu0
    %v10440 = vadd.f32 %v10311, %v10439
    %v10441 = vpop.f32.mrb[0].mxu0
    %v10442 = vpop.f32.mrb[0].mxu0
    %v10443 = vadd.f32 %v10314, %v10442
    %v10444 = vpop.f32.mrb[0].mxu0
    %10445 = vmatprep.mubr.bf16.mxu0 0
    %10446 = vmatmul.mubr.bf16.gmra.mrb[0].mxu0 %v10386
    %v10447 = vpop.f32.mrb[0].mxu0
    %v10448 = vadd.f32 %v10319, %v10447
    %v10449 = vpop.f32.mrb[0].mxu0
    %v10450 = vpop.f32.mrb[0].mxu0
    %v10451 = vadd.f32 %v10322, %v10450
    %v10452 = vpop.f32.mrb[0].mxu0
    %10453 = vmatprep.mubr.bf16.mxu0 0
    %10454 = vmatmul.mubr.bf16.gmra.mrb[0].mxu0 %v10389
    %v10455 = vpop.f32.mrb[0].mxu0
    %v10456 = vadd.f32 %v10327, %v10455
    %v10457 = vpop.f32.mrb[0].mxu0
    %v10458 = vpop.f32.mrb[0].mxu0
    %v10459 = vadd.f32 %v10330, %v10458
    %v10460 = vpop.f32.mrb[0].mxu0
    %10461 = vmatprep.mubr.bf16.mxu0 0
    %10462 = vmatmul.mubr.bf16.gmra.mrb[0].mxu0 %v10392
    %v10463 = vpop.f32.mrb[0].mxu0
    %v10464 = vadd.f32 %v10335, %v10463
    %v10465 = vpop.f32.mrb[0].mxu0
    %v10466 = vpop.f32.mrb[0].mxu0
    %v10467 = vadd.f32 %v10338, %v10466
    %v10468 = vpop.f32.mrb[0].mxu0
    %10469 = vmatprep.mubr.bf16.mxu0 0
    %10470 = vmatmul.mubr.bf16.gmra.mrb[0].mxu0 %v10395
    %v10471 = vpop.f32.mrb[0].mxu0
    %v10472 = vadd.f32 %v10343, %v10471
    %v10473 = vpop.f32.mrb[0].mxu0
    %v10474 = vpop.f32.mrb[0].mxu0
    %v10475 = vadd.f32 %v10346, %v10474
    %v10476 = vpop.f32.mrb[0].mxu0
    %10477 = vdwg.mxu0
    %v10478 = vld [vmem:[%s14] sm:$0xff]
    %v10479 = vld [vmem:[%s14 + $0x8] sm:$0xff]
    %v10480 = vld [vmem:[%s14 + $0x10] sm:$0xff]
    %v10481 = vld [vmem:[%s14 + $0x18] sm:$0xff]
    %v10482 = vld [vmem:[%s14 + $0x20] sm:$0xff]
    %v10483 = vld [vmem:[%s14 + $0x28] sm:$0xff]
    %v10484 = vld [vmem:[%s14 + $0x30] sm:$0xff]
    %v10485 = vld [vmem:[%s14 + $0x38] sm:$0xff]
    %v10486 = vld [vmem:[%s14 + $0x40] sm:$0xff]
    %v10487 = vld [vmem:[%s14 + $0x48] sm:$0xff]
    %v10488 = vld [vmem:[%s14 + $0x50] sm:$0xff]
    %v10489 = vld [vmem:[%s14 + $0x58] sm:$0xff]
    %10491 = vset.pattern.permute.xlu0 0
    %10492 = vperm.xlu0 %10491, %v10478
    %v10493 = vpop.permute.xlu0 %10492
    %10496 = vset.pattern.permute.xlu0 0
    %10497 = vperm.xlu0 %10496, %v10479
    %v10498 = vpop.permute.xlu0 %10497
    %10501 = vset.pattern.permute.xlu0 0
    %10502 = vperm.xlu0 %10501, %v10480
    %v10503 = vpop.permute.xlu0 %10502
    %10506 = vset.pattern.permute.xlu0 0
    %10507 = vperm.xlu0 %10506, %v10481
    %v10508 = vpop.permute.xlu0 %10507
    %10511 = vset.pattern.permute.xlu0 0
    %10512 = vperm.xlu0 %10511, %v10482
    %v10513 = vpop.permute.xlu0 %10512
    %10516 = vset.pattern.permute.xlu0 0
    %10517 = vperm.xlu0 %10516, %v10483
    %v10518 = vpop.permute.xlu0 %10517
    %10521 = vset.pattern.permute.xlu0 0
    %10522 = vperm.xlu0 %10521, %v10484
    %v10523 = vpop.permute.xlu0 %10522
    %10526 = vset.pattern.permute.xlu0 0
    %10527 = vperm.xlu0 %10526, %v10485
    %v10528 = vpop.permute.xlu0 %10527
    %10531 = vset.pattern.permute.xlu0 0
    %10532 = vperm.xlu0 %10531, %v10486
    %v10533 = vpop.permute.xlu0 %10532
    %10536 = vset.pattern.permute.xlu0 0
    %10537 = vperm.xlu0 %10536, %v10487
    %v10538 = vpop.permute.xlu0 %10537
    %10541 = vset.pattern.permute.xlu0 0
    %10542 = vperm.xlu0 %10541, %v10488
    %v10543 = vpop.permute.xlu0 %10542
    %10546 = vset.pattern.permute.xlu0 0
    %10547 = vperm.xlu0 %10546, %v10489
    %v10548 = vpop.permute.xlu0 %10547
    %v10550 = vadd.f32 %v10432, %v10493
    %v10551 = vadd.f32 %v10435, %v10498
    %v10552 = vadd.f32 %v10440, %v10503
    %v10553 = vadd.f32 %v10443, %v10508
    %v10554 = vadd.f32 %v10448, %v10513
    %v10555 = vadd.f32 %v10451, %v10518
    %v10556 = vadd.f32 %v10456, %v10523
    %v10557 = vadd.f32 %v10459, %v10528
    %v10558 = vadd.f32 %v10464, %v10533
    %v10559 = vadd.f32 %v10467, %v10538
    %v10560 = vadd.f32 %v10472, %v10543
    %v10561 = vadd.f32 %v10475, %v10548
    %v10562 = vld [vmem:[%s16] sm:$0xff]
    %v10563 = vld [vmem:[%s16 + $0x8] sm:$0xff]
    %v10564 = vld [vmem:[%s16 + $0x10] sm:$0xff]
    %v10565 = vld [vmem:[%s16 + $0x18] sm:$0xff]
    %v10566 = vld [vmem:[%s16 + $0x20] sm:$0xff]
    %v10567 = vld [vmem:[%s16 + $0x28] sm:$0xff]
    %v10568 = vld [vmem:[%s16 + $0x30] sm:$0xff]
    %v10569 = vld [vmem:[%s16 + $0x38] sm:$0xff]
    %v10570 = vld [vmem:[%s16 + $0x40] sm:$0xff]
    %v10571 = vld [vmem:[%s16 + $0x48] sm:$0xff]
    %v10572 = vld [vmem:[%s16 + $0x50] sm:$0xff]
    %v10573 = vld [vmem:[%s16 + $0x58] sm:$0xff]
    %v10574 = vld [vmem:[%s2] sm:$0xff]
    %v10575 = vld [vmem:[%s2 + $0x8] sm:$0xff]
    %v10576 = vld [vmem:[%s2 + $0x10] sm:$0xff]
    %v10577 = vld [vmem:[%s2 + $0x18] sm:$0xff]
    %v10578 = vld [vmem:[%s15] sm:$0xf]
    %v10579 = vld [vmem:[%s15 + $0x4] sm:$0xf]
    %v10580 = vld [vmem:[%s15 + $0x8] sm:$0xf]
    %v10581 = vld [vmem:[%s15 + $0xc] sm:$0xf]
    %v10582 = vld [vmem:[%s15 + $0x10] sm:$0xf]
    %v10583 = vld [vmem:[%s15 + $0x14] sm:$0xf]
    %v10584 = vld [vmem:[%s15 + $0x18] sm:$0xf]
    %v10585 = vld [vmem:[%s15 + $0x1c] sm:$0xf]
    %v10586 = vld [vmem:[%s15 + $0x20] sm:$0xf]
    %v10587 = vld [vmem:[%s15 + $0x24] sm:$0xf]
    %v10588 = vld [vmem:[%s15 + $0x28] sm:$0xf]
    %v10589 = vld [vmem:[%s15 + $0x2c] sm:$0xf]
    %v10590 = vpack.c.bf16 %v10575, %v10574
    %v10591 = vpack.c.bf16 %v10577, %v10576
    %v10604 = vunpack.c.l.b16 %v10578
    %v10605 = vunpack.c.l.b16 %v10579
    %v10606 = vunpack.c.l.b16 %v10580
    %v10607 = vunpack.c.l.b16 %v10581
    %v10608 = vunpack.c.l.b16 %v10582
    %v10609 = vunpack.c.l.b16 %v10583
    %v10610 = vunpack.c.l.b16 %v10584
    %v10611 = vunpack.c.l.b16 %v10585
    %v10612 = vunpack.c.l.b16 %v10586
    %v10613 = vunpack.c.l.b16 %v10587
    %v10614 = vunpack.c.l.b16 %v10588
    %v10615 = vunpack.c.l.b16 %v10589
    %v10616 = vpack.c.b16 %v10605, %v10604
    %v10617 = vpack.c.b16 %v10607, %v10606
    %v10618 = vpack.c.b16 %v10609, %v10608
    %v10619 = vpack.c.b16 %v10611, %v10610
    %v10620 = vpack.c.b16 %v10613, %v10612
    %v10621 = vpack.c.b16 %v10615, %v10614
    %v10623 = vsel %vm5755, %v10616, 0
    %v10626 = vsel %vm5755, %v10617, 0
    %v10629 = vsel %vm5755, %v10618, 0
    %v10632 = vsel %vm5755, %v10619, 0
    %v10635 = vsel %vm5755, %v10620, 0
    %v10638 = vsel %vm5755, %v10621, 0
    %10640 = vmatprep.subr.bf16.mxu0 0
    %10641 = vmatpush1.bf16.msra.mxu0 %v10590
    %10642 = vmatprep.subr.bf16.mxu0 0
    %10643 = vmatpush1.bf16.msra.mxu0 %v10591
    %10644 = vmatprep.subr.bf16.mxu0 0
    %10645 = vmatpush1.bf16.msra.mxu0 0
    %10646 = vmatprep.subr.bf16.mxu0 0
    %10647 = vmatpush1.bf16.msra.mxu0 0
    %10648 = vmatprep.subr.bf16.mxu0 0
    %10649 = vmatpush1.bf16.msra.mxu0 0
    %10650 = vmatprep.subr.bf16.mxu0 0
    %10651 = vmatpush1.bf16.msra.mxu0 0
    %10652 = vmatprep.subr.bf16.mxu0 0
    %10653 = vmatpush1.bf16.msra.mxu0 0
    %10654 = vmatprep.subr.bf16.mxu0 0
    %10655 = vmatpush1.bf16.msra.mxu0 0
    %10656 = vmatprep.subr.bf16.mxu0 0
    %10657 = vmatpush1.bf16.msra.mxu0 0
    %10658 = vmatprep.subr.bf16.mxu0 0
    %10659 = vmatpush1.bf16.msra.mxu0 0
    %10660 = vmatprep.subr.bf16.mxu0 0
    %10661 = vmatpush1.bf16.msra.mxu0 0
    %10662 = vmatprep.subr.bf16.mxu0 0
    %10663 = vmatpush1.bf16.msra.mxu0 0
    %10664 = vmatprep.subr.bf16.mxu0 0
    %10665 = vmatpush1.bf16.msra.mxu0 0
    %10666 = vmatprep.subr.bf16.mxu0 0
    %10667 = vmatpush1.bf16.msra.mxu0 0
    %10668 = vmatprep.subr.bf16.mxu0 0
    %10669 = vmatpush1.bf16.msra.mxu0 0
    %10670 = vmatprep.subr.bf16.mxu0 0
    %10671 = vmatpush1.bf16.msra.mxu0 0
    %10672 = vmatprep.mubr.bf16.mxu0 0
    %10673 = vmatmul.mubr.bf16.gmra.mrb[0].mxu0 %v10623
    %v10674 = vpop.f32.mrb[0].mxu0
    %v10675 = vadd.f32 %v10562, %v10674
    %v10676 = vpop.f32.mrb[0].mxu0
    %v10677 = vpop.f32.mrb[0].mxu0
    %v10678 = vadd.f32 %v10563, %v10677
    %v10679 = vpop.f32.mrb[0].mxu0
    %10680 = vmatprep.mubr.bf16.mxu0 0
    %10681 = vmatmul.mubr.bf16.gmra.mrb[0].mxu0 %v10626
    %v10682 = vpop.f32.mrb[0].mxu0
    %v10683 = vadd.f32 %v10564, %v10682
    %v10684 = vpop.f32.mrb[0].mxu0
    %v10685 = vpop.f32.mrb[0].mxu0
    %v10686 = vadd.f32 %v10565, %v10685
    %v10687 = vpop.f32.mrb[0].mxu0
    %10688 = vmatprep.mubr.bf16.mxu0 0
    %10689 = vmatmul.mubr.bf16.gmra.mrb[0].mxu0 %v10629
    %v10690 = vpop.f32.mrb[0].mxu0
    %v10691 = vadd.f32 %v10566, %v10690
    %v10692 = vpop.f32.mrb[0].mxu0
    %v10693 = vpop.f32.mrb[0].mxu0
    %v10694 = vadd.f32 %v10567, %v10693
    %v10695 = vpop.f32.mrb[0].mxu0
    %10696 = vmatprep.mubr.bf16.mxu0 0
    %10697 = vmatmul.mubr.bf16.gmra.mrb[0].mxu0 %v10632
    %v10698 = vpop.f32.mrb[0].mxu0
    %v10699 = vadd.f32 %v10568, %v10698
    %v10700 = vpop.f32.mrb[0].mxu0
    %v10701 = vpop.f32.mrb[0].mxu0
    %v10702 = vadd.f32 %v10569, %v10701
    %v10703 = vpop.f32.mrb[0].mxu0
    %10704 = vmatprep.mubr.bf16.mxu0 0
    %10705 = vmatmul.mubr.bf16.gmra.mrb[0].mxu0 %v10635
    %v10706 = vpop.f32.mrb[0].mxu0
    %v10707 = vadd.f32 %v10570, %v10706
    %v10708 = vpop.f32.mrb[0].mxu0
    %v10709 = vpop.f32.mrb[0].mxu0
    %v10710 = vadd.f32 %v10571, %v10709
    %v10711 = vpop.f32.mrb[0].mxu0
    %10712 = vmatprep.mubr.bf16.mxu0 0
    %10713 = vmatmul.mubr.bf16.gmra.mrb[0].mxu0 %v10638
    %v10714 = vpop.f32.mrb[0].mxu0
    %v10715 = vadd.f32 %v10572, %v10714
    %v10716 = vpop.f32.mrb[0].mxu0
    %v10717 = vpop.f32.mrb[0].mxu0
    %v10718 = vadd.f32 %v10573, %v10717
    %v10719 = vpop.f32.mrb[0].mxu0
    %10720 = vdwg.mxu0
    %v10721 = vadd.f32 %v10550, %v10675
    %v10722 = vadd.f32 %v10551, %v10678
    %v10723 = vadd.f32 %v10552, %v10683
    %v10724 = vadd.f32 %v10553, %v10686
    %v10725 = vxor.u32 %v10721, 2147483648
    %v10726 = vxor.u32 %v10722, 2147483648
    %v10727 = vxor.u32 %v10723, 2147483648
    %v10728 = vxor.u32 %v10724, 2147483648
    %v10729 = vmul.f32 %v10725, 1.442695
    %v10730 = vpow.pop %v10729
    %v10731 = vmul.f32 %v10726, 1.442695
    %v10732 = vpow.pop %v10731
    %v10733 = vmul.f32 %v10727, 1.442695
    %v10734 = vpow.pop %v10733
    %v10735 = vmul.f32 %v10728, 1.442695
    %v10736 = vpow.pop %v10735
    %v10737 = vadd.f32 %v10730, 1.0
    %v10738 = vadd.f32 %v10732, 1.0
    %v10739 = vadd.f32 %v10734, 1.0
    %v10740 = vadd.f32 %v10736, 1.0
    %v10741 = vrcp.pop %v10737
    %v10742 = vmul.f32 1.0, %v10741
    %v10743 = vrcp.pop %v10738
    %v10744 = vmul.f32 1.0, %v10743
    %v10745 = vrcp.pop %v10739
    %v10746 = vmul.f32 1.0, %v10745
    %v10747 = vrcp.pop %v10740
    %v10748 = vmul.f32 1.0, %v10747
    %v10749 = vadd.f32 %v10554, %v10691
    %v10750 = vadd.f32 %v10555, %v10694
    %v10751 = vadd.f32 %v10556, %v10699
    %v10752 = vadd.f32 %v10557, %v10702
    %v10753 = vxor.u32 %v10749, 2147483648
    %v10754 = vxor.u32 %v10750, 2147483648
    %v10755 = vxor.u32 %v10751, 2147483648
    %v10756 = vxor.u32 %v10752, 2147483648
    %v10757 = vmul.f32 %v10753, 1.442695
    %v10758 = vpow.pop %v10757
    %v10759 = vmul.f32 %v10754, 1.442695
    %v10760 = vpow.pop %v10759
    %v10761 = vmul.f32 %v10755, 1.442695
    %v10762 = vpow.pop %v10761
    %v10763 = vmul.f32 %v10756, 1.442695
    %v10764 = vpow.pop %v10763
    %v10765 = vadd.f32 %v10758, 1.0
    %v10766 = vadd.f32 %v10760, 1.0
    %v10767 = vadd.f32 %v10762, 1.0
    %v10768 = vadd.f32 %v10764, 1.0
    %v10769 = vrcp.pop %v10765
    %v10770 = vmul.f32 1.0, %v10769
    %v10771 = vrcp.pop %v10766
    %v10772 = vmul.f32 1.0, %v10771
    %v10773 = vrcp.pop %v10767
    %v10774 = vmul.f32 1.0, %v10773
    %v10775 = vrcp.pop %v10768
    %v10776 = vmul.f32 1.0, %v10775
    %v10777 = vmul.f32 %v10742, %v10707
    %v10778 = vmul.f32 %v10744, %v10710
    %v10779 = vmul.f32 %v10746, %v10715
    %v10780 = vmul.f32 %v10748, %v10718
    %v10781 = vadd.f32 %v10558, %v10777
    %v10782 = vadd.f32 %v10559, %v10778
    %v10783 = vadd.f32 %v10560, %v10779
    %v10784 = vadd.f32 %v10561, %v10780
    %v10785 = vtanh.pop %v10781
    %v10786 = vtanh.pop %v10782
    %v10787 = vtanh.pop %v10783
    %v10788 = vtanh.pop %v10784
    %v10789 = vsub.f32 1.0, %v10770
    %v10790 = vsub.f32 1.0, %v10772
    %v10791 = vsub.f32 1.0, %v10774
    %v10792 = vsub.f32 1.0, %v10776
    %v10793 = vmul.f32 %v10789, %v10785
    %v10794 = vmul.f32 %v10790, %v10786
    %v10795 = vmul.f32 %v10791, %v10787
    %v10796 = vmul.f32 %v10792, %v10788
    %v10797 = vmul.f32 %v10770, %v10574
    %v10798 = vmul.f32 %v10772, %v10575
    %v10799 = vmul.f32 %v10774, %v10576
    %v10800 = vmul.f32 %v10776, %v10577
    %v10801 = vadd.f32 %v10793, %v10797
    %v10802 = vadd.f32 %v10794, %v10798
    %v10803 = vadd.f32 %v10795, %v10799
    %v10804 = vadd.f32 %v10796, %v10800
    %vm10805 = vcmask 7168
    %10806 = vst.msk [vmem:[#allocation2] sm:$0xff] %vm10805, %v10801
    %10807 = vst.msk [vmem:[#allocation2 + $0x8] sm:$0xff] %vm10805, %v10802
    %10808 = vst.msk [vmem:[#allocation2 + $0x10] sm:$0xff] %vm10805, %v10803
    %10809 = vst.msk [vmem:[#allocation2 + $0x18] sm:$0xff] %vm10805, %v10804
    %v10810 = vld [vmem:[%s15] sm:$0xf]
    %v10811 = vld [vmem:[%s15 + $0x4] sm:$0xf]
    %v10812 = vld [vmem:[%s15 + $0x8] sm:$0xf]
    %v10813 = vld [vmem:[%s15 + $0xc] sm:$0xf]
    %v10814 = vld [vmem:[%s15 + $0x10] sm:$0xf]
    %v10815 = vld [vmem:[%s15 + $0x14] sm:$0xf]
    %v10816 = vld [vmem:[%s15 + $0x18] sm:$0xf]
    %v10817 = vld [vmem:[%s15 + $0x1c] sm:$0xf]
    %v10818 = vld [vmem:[%s15 + $0x20] sm:$0xf]
    %v10819 = vld [vmem:[%s15 + $0x24] sm:$0xf]
    %v10820 = vld [vmem:[%s15 + $0x28] sm:$0xf]
    %v10821 = vld [vmem:[%s15 + $0x2c] sm:$0xf]
    %v10822 = vpack.c.bf16 %v10802, %v10801
    %v10823 = vpack.c.bf16 %v10804, %v10803
    %v10836 = vunpack.c.l.b16 %v10810
    %v10837 = vunpack.c.l.b16 %v10811
    %v10838 = vunpack.c.l.b16 %v10812
    %v10839 = vunpack.c.l.b16 %v10813
    %v10840 = vunpack.c.l.b16 %v10814
    %v10841 = vunpack.c.l.b16 %v10815
    %v10842 = vunpack.c.l.b16 %v10816
    %v10843 = vunpack.c.l.b16 %v10817
    %v10844 = vunpack.c.l.b16 %v10818
    %v10845 = vunpack.c.l.b16 %v10819
    %v10846 = vunpack.c.l.b16 %v10820
    %v10847 = vunpack.c.l.b16 %v10821
    %v10848 = vpack.c.b16 %v10837, %v10836
    %v10849 = vpack.c.b16 %v10839, %v10838
    %v10850 = vpack.c.b16 %v10841, %v10840
    %v10851 = vpack.c.b16 %v10843, %v10842
    %v10852 = vpack.c.b16 %v10845, %v10844
    %v10853 = vpack.c.b16 %v10847, %v10846
    %v10855 = vsel %vm5755, %v10848, 0
    %v10858 = vsel %vm5755, %v10849, 0
    %v10861 = vsel %vm5755, %v10850, 0
    %v10864 = vsel %vm5755, %v10851, 0
    %v10867 = vsel %vm5755, %v10852, 0
    %v10870 = vsel %vm5755, %v10853, 0
    %10872 = vmatprep.subr.bf16.mxu0 0
    %10873 = vmatpush1.bf16.msra.mxu0 %v10822
    %10874 = vmatprep.subr.bf16.mxu0 0
    %10875 = vmatpush1.bf16.msra.mxu0 %v10823
    %10876 = vmatprep.subr.bf16.mxu0 0
    %10877 = vmatpush1.bf16.msra.mxu0 0
    %10878 = vmatprep.subr.bf16.mxu0 0
    %10879 = vmatpush1.bf16.msra.mxu0 0
    %10880 = vmatprep.subr.bf16.mxu0 0
    %10881 = vmatpush1.bf16.msra.mxu0 0
    %10882 = vmatprep.subr.bf16.mxu0 0
    %10883 = vmatpush1.bf16.msra.mxu0 0
    %10884 = vmatprep.subr.bf16.mxu0 0
    %10885 = vmatpush1.bf16.msra.mxu0 0
    %10886 = vmatprep.subr.bf16.mxu0 0
    %10887 = vmatpush1.bf16.msra.mxu0 0
    %10888 = vmatprep.subr.bf16.mxu0 0
    %10889 = vmatpush1.bf16.msra.mxu0 0
    %10890 = vmatprep.subr.bf16.mxu0 0
    %10891 = vmatpush1.bf16.msra.mxu0 0
    %10892 = vmatprep.subr.bf16.mxu0 0
    %10893 = vmatpush1.bf16.msra.mxu0 0
    %10894 = vmatprep.subr.bf16.mxu0 0
    %10895 = vmatpush1.bf16.msra.mxu0 0
    %10896 = vmatprep.subr.bf16.mxu0 0
    %10897 = vmatpush1.bf16.msra.mxu0 0
    %10898 = vmatprep.subr.bf16.mxu0 0
    %10899 = vmatpush1.bf16.msra.mxu0 0
    %10900 = vmatprep.subr.bf16.mxu0 0
    %10901 = vmatpush1.bf16.msra.mxu0 0
    %10902 = vmatprep.subr.bf16.mxu0 0
    %10903 = vmatpush1.bf16.msra.mxu0 0
    %10904 = vmatprep.mubr.bf16.mxu0 0
    %10905 = vmatmul.mubr.bf16.gmra.mrb[0].mxu0 %v10855
    %v10906 = vpop.f32.mrb[0].mxu0
    %v10907 = vadd.f32 %v10562, %v10906
    %v10908 = vpop.f32.mrb[0].mxu0
    %v10909 = vpop.f32.mrb[0].mxu0
    %v10910 = vadd.f32 %v10563, %v10909
    %v10911 = vpop.f32.mrb[0].mxu0
    %10912 = vmatprep.mubr.bf16.mxu0 0
    %10913 = vmatmul.mubr.bf16.gmra.mrb[0].mxu0 %v10858
    %v10914 = vpop.f32.mrb[0].mxu0
    %v10915 = vadd.f32 %v10564, %v10914
    %v10916 = vpop.f32.mrb[0].mxu0
    %v10917 = vpop.f32.mrb[0].mxu0
    %v10918 = vadd.f32 %v10565, %v10917
    %v10919 = vpop.f32.mrb[0].mxu0
    %10920 = vmatprep.mubr.bf16.mxu0 0
    %10921 = vmatmul.mubr.bf16.gmra.mrb[0].mxu0 %v10861
    %v10922 = vpop.f32.mrb[0].mxu0
    %v10923 = vadd.f32 %v10566, %v10922
    %v10924 = vpop.f32.mrb[0].mxu0
    %v10925 = vpop.f32.mrb[0].mxu0
    %v10926 = vadd.f32 %v10567, %v10925
    %v10927 = vpop.f32.mrb[0].mxu0
    %10928 = vmatprep.mubr.bf16.mxu0 0
    %10929 = vmatmul.mubr.bf16.gmra.mrb[0].mxu0 %v10864
    %v10930 = vpop.f32.mrb[0].mxu0
    %v10931 = vadd.f32 %v10568, %v10930
    %v10932 = vpop.f32.mrb[0].mxu0
    %v10933 = vpop.f32.mrb[0].mxu0
    %v10934 = vadd.f32 %v10569, %v10933
    %v10935 = vpop.f32.mrb[0].mxu0
    %10936 = vmatprep.mubr.bf16.mxu0 0
    %10937 = vmatmul.mubr.bf16.gmra.mrb[0].mxu0 %v10867
    %v10938 = vpop.f32.mrb[0].mxu0
    %v10939 = vadd.f32 %v10570, %v10938
    %v10940 = vpop.f32.mrb[0].mxu0
    %v10941 = vpop.f32.mrb[0].mxu0
    %v10942 = vadd.f32 %v10571, %v10941
    %v10943 = vpop.f32.mrb[0].mxu0
    %10944 = vmatprep.mubr.bf16.mxu0 0
    %10945 = vmatmul.mubr.bf16.gmra.mrb[0].mxu0 %v10870
    %v10946 = vpop.f32.mrb[0].mxu0
    %v10947 = vadd.f32 %v10572, %v10946
    %v10948 = vpop.f32.mrb[0].mxu0
    %v10949 = vpop.f32.mrb[0].mxu0
    %v10950 = vadd.f32 %v10573, %v10949
    %v10951 = vpop.f32.mrb[0].mxu0
    %10952 = vdwg.mxu0
    %10957 = vrot.lane.b32.xlu0 %v10907, 1
    %v10958 = vpop.permute.xlu0 %10957
    %10959 = vrot.lane.b32.xlu0 %v10910, 1
    %v10960 = vpop.permute.xlu0 %10959
    %10961 = vrot.lane.b32.xlu0 %v10915, 1
    %v10962 = vpop.permute.xlu0 %10961
    %10963 = vrot.lane.b32.xlu0 %v10918, 1
    %v10964 = vpop.permute.xlu0 %10963
    %v10969 = vadd.f32 %v10550, %v10958
    %v10970 = vadd.f32 %v10551, %v10960
    %v10971 = vadd.f32 %v10552, %v10962
    %v10972 = vadd.f32 %v10553, %v10964
    %v10973 = vxor.u32 %v10969, 2147483648
    %v10974 = vxor.u32 %v10970, 2147483648
    %v10975 = vxor.u32 %v10971, 2147483648
    %v10976 = vxor.u32 %v10972, 2147483648
    %v10977 = vmul.f32 %v10973, 1.442695
    %v10978 = vpow.pop %v10977
    %v10979 = vmul.f32 %v10974, 1.442695
    %v10980 = vpow.pop %v10979
    %v10981 = vmul.f32 %v10975, 1.442695
    %v10982 = vpow.pop %v10981
    %v10983 = vmul.f32 %v10976, 1.442695
    %v10984 = vpow.pop %v10983
    %v10985 = vadd.f32 %v10978, 1.0
    %v10986 = vadd.f32 %v10980, 1.0
    %v10987 = vadd.f32 %v10982, 1.0
    %v10988 = vadd.f32 %v10984, 1.0
    %v10989 = vrcp.pop %v10985
    %v10990 = vmul.f32 1.0, %v10989
    %v10991 = vrcp.pop %v10986
    %v10992 = vmul.f32 1.0, %v10991
    %v10993 = vrcp.pop %v10987
    %v10994 = vmul.f32 1.0, %v10993
    %v10995 = vrcp.pop %v10988
    %v10996 = vmul.f32 1.0, %v10995
    %11001 = vrot.lane.b32.xlu0 %v10923, 1
    %v11002 = vpop.permute.xlu0 %11001
    %11003 = vrot.lane.b32.xlu0 %v10926, 1
    %v11004 = vpop.permute.xlu0 %11003
    %11005 = vrot.lane.b32.xlu0 %v10931, 1
    %v11006 = vpop.permute.xlu0 %11005
    %11007 = vrot.lane.b32.xlu0 %v10934, 1
    %v11008 = vpop.permute.xlu0 %11007
    %v11013 = vadd.f32 %v10554, %v11002
    %v11014 = vadd.f32 %v10555, %v11004
    %v11015 = vadd.f32 %v10556, %v11006
    %v11016 = vadd.f32 %v10557, %v11008
    %v11017 = vxor.u32 %v11013, 2147483648
    %v11018 = vxor.u32 %v11014, 2147483648
    %v11019 = vxor.u32 %v11015, 2147483648
    %v11020 = vxor.u32 %v11016, 2147483648
    %v11021 = vmul.f32 %v11017, 1.442695
    %v11022 = vpow.pop %v11021
    %v11023 = vmul.f32 %v11018, 1.442695
    %v11024 = vpow.pop %v11023
    %v11025 = vmul.f32 %v11019, 1.442695
    %v11026 = vpow.pop %v11025
    %v11027 = vmul.f32 %v11020, 1.442695
    %v11028 = vpow.pop %v11027
    %v11029 = vadd.f32 %v11022, 1.0
    %v11030 = vadd.f32 %v11024, 1.0
    %v11031 = vadd.f32 %v11026, 1.0
    %v11032 = vadd.f32 %v11028, 1.0
    %v11033 = vrcp.pop %v11029
    %v11034 = vmul.f32 1.0, %v11033
    %v11035 = vrcp.pop %v11030
    %v11036 = vmul.f32 1.0, %v11035
    %v11037 = vrcp.pop %v11031
    %v11038 = vmul.f32 1.0, %v11037
    %v11039 = vrcp.pop %v11032
    %v11040 = vmul.f32 1.0, %v11039
    %11045 = vrot.lane.b32.xlu0 %v10939, 1
    %v11046 = vpop.permute.xlu0 %11045
    %11047 = vrot.lane.b32.xlu0 %v10942, 1
    %v11048 = vpop.permute.xlu0 %11047
    %11049 = vrot.lane.b32.xlu0 %v10947, 1
    %v11050 = vpop.permute.xlu0 %11049
    %11051 = vrot.lane.b32.xlu0 %v10950, 1
    %v11052 = vpop.permute.xlu0 %11051
    %v11057 = vmul.f32 %v10990, %v11046
    %v11058 = vmul.f32 %v10992, %v11048
    %v11059 = vmul.f32 %v10994, %v11050
    %v11060 = vmul.f32 %v10996, %v11052
    %v11061 = vadd.f32 %v10558, %v11057
    %v11062 = vadd.f32 %v10559, %v11058
    %v11063 = vadd.f32 %v10560, %v11059
    %v11064 = vadd.f32 %v10561, %v11060
    %v11065 = vtanh.pop %v11061
    %v11066 = vtanh.pop %v11062
    %v11067 = vtanh.pop %v11063
    %v11068 = vtanh.pop %v11064
    %v11069 = vsub.f32 1.0, %v11034
    %v11070 = vsub.f32 1.0, %v11036
    %v11071 = vsub.f32 1.0, %v11038
    %v11072 = vsub.f32 1.0, %v11040
    %v11073 = vmul.f32 %v11069, %v11065
    %v11074 = vmul.f32 %v11070, %v11066
    %v11075 = vmul.f32 %v11071, %v11067
    %v11076 = vmul.f32 %v11072, %v11068
    %11081 = vrot.lane.b32.xlu0 %v10801, 1
    %v11082 = vpop.permute.xlu0 %11081
    %11083 = vrot.lane.b32.xlu0 %v10802, 1
    %v11084 = vpop.permute.xlu0 %11083
    %11085 = vrot.lane.b32.xlu0 %v10803, 1
    %v11086 = vpop.permute.xlu0 %11085
    %11087 = vrot.lane.b32.xlu0 %v10804, 1
    %v11088 = vpop.permute.xlu0 %11087
    %v11093 = vmul.f32 %v11034, %v11082
    %v11094 = vmul.f32 %v11036, %v11084
    %v11095 = vmul.f32 %v11038, %v11086
    %v11096 = vmul.f32 %v11040, %v11088
    %v11097 = vadd.f32 %v11073, %v11093
    %v11098 = vadd.f32 %v11074, %v11094
    %v11099 = vadd.f32 %v11075, %v11095
    %v11100 = vadd.f32 %v11076, %v11096
    %vm11101 = vcmask 15368
    %11102 = vst.msk [vmem:[#allocation2] sm:$0xff] %vm11101, %v11097
    %11103 = vst.msk [vmem:[#allocation2 + $0x8] sm:$0xff] %vm11101, %v11098
    %11104 = vst.msk [vmem:[#allocation2 + $0x10] sm:$0xff] %vm11101, %v11099
    %11105 = vst.msk [vmem:[#allocation2 + $0x18] sm:$0xff] %vm11101, %v11100
    %11110 = vrot.lane.b32.xlu0 %v11097, 127
    %v11111 = vpop.permute.xlu0 %11110
    %11112 = vrot.lane.b32.xlu0 %v11098, 127
    %v11113 = vpop.permute.xlu0 %11112
    %11114 = vrot.lane.b32.xlu0 %v11099, 127
    %v11115 = vpop.permute.xlu0 %11114
    %11116 = vrot.lane.b32.xlu0 %v11100, 127
    %v11117 = vpop.permute.xlu0 %11116
    %11122 = vst.msk [vmem:[%s21] sm:$0xff] %vm10805, %v11111
    %11123 = vst.msk [vmem:[%s21 + $0x8] sm:$0xff] %vm10805, %v11113
    %11124 = vst.msk [vmem:[%s21 + $0x10] sm:$0xff] %vm10805, %v11115
    %11125 = vst.msk [vmem:[%s21 + $0x18] sm:$0xff] %vm10805, %v11117
    %v11126 = vld [vmem:[%s2] sm:$0xff]
    %v11127 = vld [vmem:[%s2 + $0x8] sm:$0xff]
    %v11128 = vld [vmem:[%s2 + $0x10] sm:$0xff]
    %v11129 = vld [vmem:[%s2 + $0x18] sm:$0xff]
    %v11130 = vld [vmem:[%s15] sm:$0xf]
    %v11131 = vld [vmem:[%s15 + $0x4] sm:$0xf]
    %v11132 = vld [vmem:[%s15 + $0x8] sm:$0xf]
    %v11133 = vld [vmem:[%s15 + $0xc] sm:$0xf]
    %v11134 = vld [vmem:[%s15 + $0x10] sm:$0xf]
    %v11135 = vld [vmem:[%s15 + $0x14] sm:$0xf]
    %v11136 = vld [vmem:[%s15 + $0x18] sm:$0xf]
    %v11137 = vld [vmem:[%s15 + $0x1c] sm:$0xf]
    %v11138 = vld [vmem:[%s15 + $0x20] sm:$0xf]
    %v11139 = vld [vmem:[%s15 + $0x24] sm:$0xf]
    %v11140 = vld [vmem:[%s15 + $0x28] sm:$0xf]
    %v11141 = vld [vmem:[%s15 + $0x2c] sm:$0xf]
    %v11142 = vpack.c.bf16 %v11127, %v11126
    %v11143 = vpack.c.bf16 %v11129, %v11128
    %v11156 = vunpack.c.l.b16 %v11130
    %v11157 = vunpack.c.l.b16 %v11131
    %v11158 = vunpack.c.l.b16 %v11132
    %v11159 = vunpack.c.l.b16 %v11133
    %v11160 = vunpack.c.l.b16 %v11134
    %v11161 = vunpack.c.l.b16 %v11135
    %v11162 = vunpack.c.l.b16 %v11136
    %v11163 = vunpack.c.l.b16 %v11137
    %v11164 = vunpack.c.l.b16 %v11138
    %v11165 = vunpack.c.l.b16 %v11139
    %v11166 = vunpack.c.l.b16 %v11140
    %v11167 = vunpack.c.l.b16 %v11141
    %v11168 = vpack.c.b16 %v11157, %v11156
    %v11169 = vpack.c.b16 %v11159, %v11158
    %v11170 = vpack.c.b16 %v11161, %v11160
    %v11171 = vpack.c.b16 %v11163, %v11162
    %v11172 = vpack.c.b16 %v11165, %v11164
    %v11173 = vpack.c.b16 %v11167, %v11166
    %11176 = vrot.lane.b32.xlu0 %v11142, 127
    %v11177 = vpop.permute.xlu0 %11176
    %11178 = vrot.lane.b32.xlu0 %v11143, 127
    %v11179 = vpop.permute.xlu0 %11178
    %v11183 = vsel %vm5755, %v11168, 0
    %v11186 = vsel %vm5755, %v11169, 0
    %v11189 = vsel %vm5755, %v11170, 0
    %v11192 = vsel %vm5755, %v11171, 0
    %v11195 = vsel %vm5755, %v11172, 0
    %v11198 = vsel %vm5755, %v11173, 0
    %11200 = vmatprep.subr.bf16.mxu0 0
    %11201 = vmatpush1.bf16.msra.mxu0 %v11177
    %11202 = vmatprep.subr.bf16.mxu0 0
    %11203 = vmatpush1.bf16.msra.mxu0 %v11179
    %11204 = vmatprep.subr.bf16.mxu0 0
    %11205 = vmatpush1.bf16.msra.mxu0 0
    %11206 = vmatprep.subr.bf16.mxu0 0
    %11207 = vmatpush1.bf16.msra.mxu0 0
    %11208 = vmatprep.subr.bf16.mxu0 0
    %11209 = vmatpush1.bf16.msra.mxu0 0
    %11210 = vmatprep.subr.bf16.mxu0 0
    %11211 = vmatpush1.bf16.msra.mxu0 0
    %11212 = vmatprep.subr.bf16.mxu0 0
    %11213 = vmatpush1.bf16.msra.mxu0 0
    %11214 = vmatprep.subr.bf16.mxu0 0
    %11215 = vmatpush1.bf16.msra.mxu0 0
    %11216 = vmatprep.subr.bf16.mxu0 0
    %11217 = vmatpush1.bf16.msra.mxu0 0
    %11218 = vmatprep.subr.bf16.mxu0 0
    %11219 = vmatpush1.bf16.msra.mxu0 0
    %11220 = vmatprep.subr.bf16.mxu0 0
    %11221 = vmatpush1.bf16.msra.mxu0 0
    %11222 = vmatprep.subr.bf16.mxu0 0
    %11223 = vmatpush1.bf16.msra.mxu0 0
    %11224 = vmatprep.subr.bf16.mxu0 0
    %11225 = vmatpush1.bf16.msra.mxu0 0
    %11226 = vmatprep.subr.bf16.mxu0 0
    %11227 = vmatpush1.bf16.msra.mxu0 0
    %11228 = vmatprep.subr.bf16.mxu0 0
    %11229 = vmatpush1.bf16.msra.mxu0 0
    %11230 = vmatprep.subr.bf16.mxu0 0
    %11231 = vmatpush1.bf16.msra.mxu0 0
    %11232 = vmatprep.mubr.bf16.mxu0 0
    %11233 = vmatmul.mubr.bf16.gmra.mrb[0].mxu0 %v11183
    %v11234 = vpop.f32.mrb[0].mxu0
    %v11235 = vadd.f32 %v10562, %v11234
    %v11236 = vpop.f32.mrb[0].mxu0
    %v11237 = vpop.f32.mrb[0].mxu0
    %v11238 = vadd.f32 %v10563, %v11237
    %v11239 = vpop.f32.mrb[0].mxu0
    %11240 = vmatprep.mubr.bf16.mxu0 0
    %11241 = vmatmul.mubr.bf16.gmra.mrb[0].mxu0 %v11186
    %v11242 = vpop.f32.mrb[0].mxu0
    %v11243 = vadd.f32 %v10564, %v11242
    %v11244 = vpop.f32.mrb[0].mxu0
    %v11245 = vpop.f32.mrb[0].mxu0
    %v11246 = vadd.f32 %v10565, %v11245
    %v11247 = vpop.f32.mrb[0].mxu0
    %11248 = vmatprep.mubr.bf16.mxu0 0
    %11249 = vmatmul.mubr.bf16.gmra.mrb[0].mxu0 %v11189
    %v11250 = vpop.f32.mrb[0].mxu0
    %v11251 = vadd.f32 %v10566, %v11250
    %v11252 = vpop.f32.mrb[0].mxu0
    %v11253 = vpop.f32.mrb[0].mxu0
    %v11254 = vadd.f32 %v10567, %v11253
    %v11255 = vpop.f32.mrb[0].mxu0
    %11256 = vmatprep.mubr.bf16.mxu0 0
    %11257 = vmatmul.mubr.bf16.gmra.mrb[0].mxu0 %v11192
    %v11258 = vpop.f32.mrb[0].mxu0
    %v11259 = vadd.f32 %v10568, %v11258
    %v11260 = vpop.f32.mrb[0].mxu0
    %v11261 = vpop.f32.mrb[0].mxu0
    %v11262 = vadd.f32 %v10569, %v11261
    %v11263 = vpop.f32.mrb[0].mxu0
    %11264 = vmatprep.mubr.bf16.mxu0 0
    %11265 = vmatmul.mubr.bf16.gmra.mrb[0].mxu0 %v11195
    %v11266 = vpop.f32.mrb[0].mxu0
    %v11267 = vadd.f32 %v10570, %v11266
    %v11268 = vpop.f32.mrb[0].mxu0
    %v11269 = vpop.f32.mrb[0].mxu0
    %v11270 = vadd.f32 %v10571, %v11269
    %v11271 = vpop.f32.mrb[0].mxu0
    %11272 = vmatprep.mubr.bf16.mxu0 0
    %11273 = vmatmul.mubr.bf16.gmra.mrb[0].mxu0 %v11198
    %v11274 = vpop.f32.mrb[0].mxu0
    %v11275 = vadd.f32 %v10572, %v11274
    %v11276 = vpop.f32.mrb[0].mxu0
    %v11277 = vpop.f32.mrb[0].mxu0
    %v11278 = vadd.f32 %v10573, %v11277
    %v11279 = vpop.f32.mrb[0].mxu0
    %11280 = vdwg.mxu0
    %11285 = vrot.lane.b32.xlu0 %v11235, 2
    %v11286 = vpop.permute.xlu0 %11285
    %11287 = vrot.lane.b32.xlu0 %v11238, 2
    %v11288 = vpop.permute.xlu0 %11287
    %11289 = vrot.lane.b32.xlu0 %v11243, 2
    %v11290 = vpop.permute.xlu0 %11289
    %11291 = vrot.lane.b32.xlu0 %v11246, 2
    %v11292 = vpop.permute.xlu0 %11291
    %v11297 = vadd.f32 %v10550, %v11286
    %v11298 = vadd.f32 %v10551, %v11288
    %v11299 = vadd.f32 %v10552, %v11290
    %v11300 = vadd.f32 %v10553, %v11292
    %v11301 = vxor.u32 %v11297, 2147483648
    %v11302 = vxor.u32 %v11298, 2147483648
    %v11303 = vxor.u32 %v11299, 2147483648
    %v11304 = vxor.u32 %v11300, 2147483648
    %v11305 = vmul.f32 %v11301, 1.442695
    %v11306 = vpow.pop %v11305
    %v11307 = vmul.f32 %v11302, 1.442695
    %v11308 = vpow.pop %v11307
    %v11309 = vmul.f32 %v11303, 1.442695
    %v11310 = vpow.pop %v11309
    %v11311 = vmul.f32 %v11304, 1.442695
    %v11312 = vpow.pop %v11311
    %v11313 = vadd.f32 %v11306, 1.0
    %v11314 = vadd.f32 %v11308, 1.0
    %v11315 = vadd.f32 %v11310, 1.0
    %v11316 = vadd.f32 %v11312, 1.0
    %v11317 = vrcp.pop %v11313
    %v11318 = vmul.f32 1.0, %v11317
    %v11319 = vrcp.pop %v11314
    %v11320 = vmul.f32 1.0, %v11319
    %v11321 = vrcp.pop %v11315
    %v11322 = vmul.f32 1.0, %v11321
    %v11323 = vrcp.pop %v11316
    %v11324 = vmul.f32 1.0, %v11323
    %11329 = vrot.lane.b32.xlu0 %v11251, 2
    %v11330 = vpop.permute.xlu0 %11329
    %11331 = vrot.lane.b32.xlu0 %v11254, 2
    %v11332 = vpop.permute.xlu0 %11331
    %11333 = vrot.lane.b32.xlu0 %v11259, 2
    %v11334 = vpop.permute.xlu0 %11333
    %11335 = vrot.lane.b32.xlu0 %v11262, 2
    %v11336 = vpop.permute.xlu0 %11335
    %v11341 = vadd.f32 %v10554, %v11330
    %v11342 = vadd.f32 %v10555, %v11332
    %v11343 = vadd.f32 %v10556, %v11334
    %v11344 = vadd.f32 %v10557, %v11336
    %v11345 = vxor.u32 %v11341, 2147483648
    %v11346 = vxor.u32 %v11342, 2147483648
    %v11347 = vxor.u32 %v11343, 2147483648
    %v11348 = vxor.u32 %v11344, 2147483648
    %v11349 = vmul.f32 %v11345, 1.442695
    %v11350 = vpow.pop %v11349
    %v11351 = vmul.f32 %v11346, 1.442695
    %v11352 = vpow.pop %v11351
    %v11353 = vmul.f32 %v11347, 1.442695
    %v11354 = vpow.pop %v11353
    %v11355 = vmul.f32 %v11348, 1.442695
    %v11356 = vpow.pop %v11355
    %v11357 = vadd.f32 %v11350, 1.0
    %v11358 = vadd.f32 %v11352, 1.0
    %v11359 = vadd.f32 %v11354, 1.0
    %v11360 = vadd.f32 %v11356, 1.0
    %v11361 = vrcp.pop %v11357
    %v11362 = vmul.f32 1.0, %v11361
    %v11363 = vrcp.pop %v11358
    %v11364 = vmul.f32 1.0, %v11363
    %v11365 = vrcp.pop %v11359
    %v11366 = vmul.f32 1.0, %v11365
    %v11367 = vrcp.pop %v11360
    %v11368 = vmul.f32 1.0, %v11367
    %11373 = vrot.lane.b32.xlu0 %v11267, 2
    %v11374 = vpop.permute.xlu0 %11373
    %11375 = vrot.lane.b32.xlu0 %v11270, 2
    %v11376 = vpop.permute.xlu0 %11375
    %11377 = vrot.lane.b32.xlu0 %v11275, 2
    %v11378 = vpop.permute.xlu0 %11377
    %11379 = vrot.lane.b32.xlu0 %v11278, 2
    %v11380 = vpop.permute.xlu0 %11379
    %v11385 = vmul.f32 %v11318, %v11374
    %v11386 = vmul.f32 %v11320, %v11376
    %v11387 = vmul.f32 %v11322, %v11378
    %v11388 = vmul.f32 %v11324, %v11380
    %v11389 = vadd.f32 %v10558, %v11385
    %v11390 = vadd.f32 %v10559, %v11386
    %v11391 = vadd.f32 %v10560, %v11387
    %v11392 = vadd.f32 %v10561, %v11388
    %v11393 = vtanh.pop %v11389
    %v11394 = vtanh.pop %v11390
    %v11395 = vtanh.pop %v11391
    %v11396 = vtanh.pop %v11392
    %v11397 = vsub.f32 1.0, %v11362
    %v11398 = vsub.f32 1.0, %v11364
    %v11399 = vsub.f32 1.0, %v11366
    %v11400 = vsub.f32 1.0, %v11368
    %v11401 = vmul.f32 %v11397, %v11393
    %v11402 = vmul.f32 %v11398, %v11394
    %v11403 = vmul.f32 %v11399, %v11395
    %v11404 = vmul.f32 %v11400, %v11396
    %11409 = vrot.lane.b32.xlu0 %v11126, 1
    %v11410 = vpop.permute.xlu0 %11409
    %11411 = vrot.lane.b32.xlu0 %v11127, 1
    %v11412 = vpop.permute.xlu0 %11411
    %11413 = vrot.lane.b32.xlu0 %v11128, 1
    %v11414 = vpop.permute.xlu0 %11413
    %11415 = vrot.lane.b32.xlu0 %v11129, 1
    %v11416 = vpop.permute.xlu0 %11415
    %v11421 = vmul.f32 %v11362, %v11410
    %v11422 = vmul.f32 %v11364, %v11412
    %v11423 = vmul.f32 %v11366, %v11414
    %v11424 = vmul.f32 %v11368, %v11416
    %v11425 = vadd.f32 %v11401, %v11421
    %v11426 = vadd.f32 %v11402, %v11422
    %v11427 = vadd.f32 %v11403, %v11423
    %v11428 = vadd.f32 %v11404, %v11424
    %vm11429 = vcmask 23568
    %11430 = vst.msk [vmem:[#allocation2] sm:$0xff] %vm11429, %v11425
    %11431 = vst.msk [vmem:[#allocation2 + $0x8] sm:$0xff] %vm11429, %v11426
    %11432 = vst.msk [vmem:[#allocation2 + $0x10] sm:$0xff] %vm11429, %v11427
    %11433 = vst.msk [vmem:[#allocation2 + $0x18] sm:$0xff] %vm11429, %v11428
    %v11434 = vld [vmem:[%s15] sm:$0xf]
    %v11435 = vld [vmem:[%s15 + $0x4] sm:$0xf]
    %v11436 = vld [vmem:[%s15 + $0x8] sm:$0xf]
    %v11437 = vld [vmem:[%s15 + $0xc] sm:$0xf]
    %v11438 = vld [vmem:[%s15 + $0x10] sm:$0xf]
    %v11439 = vld [vmem:[%s15 + $0x14] sm:$0xf]
    %v11440 = vld [vmem:[%s15 + $0x18] sm:$0xf]
    %v11441 = vld [vmem:[%s15 + $0x1c] sm:$0xf]
    %v11442 = vld [vmem:[%s15 + $0x20] sm:$0xf]
    %v11443 = vld [vmem:[%s15 + $0x24] sm:$0xf]
    %v11444 = vld [vmem:[%s15 + $0x28] sm:$0xf]
    %v11445 = vld [vmem:[%s15 + $0x2c] sm:$0xf]
    %v11446 = vpack.c.bf16 %v11426, %v11425
    %v11447 = vpack.c.bf16 %v11428, %v11427
    %v11460 = vunpack.c.l.b16 %v11434
    %v11461 = vunpack.c.l.b16 %v11435
    %v11462 = vunpack.c.l.b16 %v11436
    %v11463 = vunpack.c.l.b16 %v11437
    %v11464 = vunpack.c.l.b16 %v11438
    %v11465 = vunpack.c.l.b16 %v11439
    %v11466 = vunpack.c.l.b16 %v11440
    %v11467 = vunpack.c.l.b16 %v11441
    %v11468 = vunpack.c.l.b16 %v11442
    %v11469 = vunpack.c.l.b16 %v11443
    %v11470 = vunpack.c.l.b16 %v11444
    %v11471 = vunpack.c.l.b16 %v11445
    %v11472 = vpack.c.b16 %v11461, %v11460
    %v11473 = vpack.c.b16 %v11463, %v11462
    %v11474 = vpack.c.b16 %v11465, %v11464
    %v11475 = vpack.c.b16 %v11467, %v11466
    %v11476 = vpack.c.b16 %v11469, %v11468
    %v11477 = vpack.c.b16 %v11471, %v11470
    %11480 = vrot.lane.b32.xlu0 %v11446, 126
    %v11481 = vpop.permute.xlu0 %11480
    %11482 = vrot.lane.b32.xlu0 %v11447, 126
    %v11483 = vpop.permute.xlu0 %11482
    %v11487 = vsel %vm5755, %v11472, 0
    %v11490 = vsel %vm5755, %v11473, 0
    %v11493 = vsel %vm5755, %v11474, 0
    %v11496 = vsel %vm5755, %v11475, 0
    %v11499 = vsel %vm5755, %v11476, 0
    %v11502 = vsel %vm5755, %v11477, 0
    %11504 = vmatprep.subr.bf16.mxu0 0
    %11505 = vmatpush1.bf16.msra.mxu0 %v11481
    %11506 = vmatprep.subr.bf16.mxu0 0
    %11507 = vmatpush1.bf16.msra.mxu0 %v11483
    %11508 = vmatprep.subr.bf16.mxu0 0
    %11509 = vmatpush1.bf16.msra.mxu0 0
    %11510 = vmatprep.subr.bf16.mxu0 0
    %11511 = vmatpush1.bf16.msra.mxu0 0
    %11512 = vmatprep.subr.bf16.mxu0 0
    %11513 = vmatpush1.bf16.msra.mxu0 0
    %11514 = vmatprep.subr.bf16.mxu0 0
    %11515 = vmatpush1.bf16.msra.mxu0 0
    %11516 = vmatprep.subr.bf16.mxu0 0
    %11517 = vmatpush1.bf16.msra.mxu0 0
    %11518 = vmatprep.subr.bf16.mxu0 0
    %11519 = vmatpush1.bf16.msra.mxu0 0
    %11520 = vmatprep.subr.bf16.mxu0 0
    %11521 = vmatpush1.bf16.msra.mxu0 0
    %11522 = vmatprep.subr.bf16.mxu0 0
    %11523 = vmatpush1.bf16.msra.mxu0 0
    %11524 = vmatprep.subr.bf16.mxu0 0
    %11525 = vmatpush1.bf16.msra.mxu0 0
    %11526 = vmatprep.subr.bf16.mxu0 0
    %11527 = vmatpush1.bf16.msra.mxu0 0
    %11528 = vmatprep.subr.bf16.mxu0 0
    %11529 = vmatpush1.bf16.msra.mxu0 0
    %11530 = vmatprep.subr.bf16.mxu0 0
    %11531 = vmatpush1.bf16.msra.mxu0 0
    %11532 = vmatprep.subr.bf16.mxu0 0
    %11533 = vmatpush1.bf16.msra.mxu0 0
    %11534 = vmatprep.subr.bf16.mxu0 0
    %11535 = vmatpush1.bf16.msra.mxu0 0
    %11536 = vmatprep.mubr.bf16.mxu0 0
    %11537 = vmatmul.mubr.bf16.gmra.mrb[0].mxu0 %v11487
    %v11538 = vpop.f32.mrb[0].mxu0
    %v11539 = vadd.f32 %v10562, %v11538
    %v11540 = vpop.f32.mrb[0].mxu0
    %v11541 = vpop.f32.mrb[0].mxu0
    %v11542 = vadd.f32 %v10563, %v11541
    %v11543 = vpop.f32.mrb[0].mxu0
    %11544 = vmatprep.mubr.bf16.mxu0 0
    %11545 = vmatmul.mubr.bf16.gmra.mrb[0].mxu0 %v11490
    %v11546 = vpop.f32.mrb[0].mxu0
    %v11547 = vadd.f32 %v10564, %v11546
    %v11548 = vpop.f32.mrb[0].mxu0
    %v11549 = vpop.f32.mrb[0].mxu0
    %v11550 = vadd.f32 %v10565, %v11549
    %v11551 = vpop.f32.mrb[0].mxu0
    %11552 = vmatprep.mubr.bf16.mxu0 0
    %11553 = vmatmul.mubr.bf16.gmra.mrb[0].mxu0 %v11493
    %v11554 = vpop.f32.mrb[0].mxu0
    %v11555 = vadd.f32 %v10566, %v11554
    %v11556 = vpop.f32.mrb[0].mxu0
    %v11557 = vpop.f32.mrb[0].mxu0
    %v11558 = vadd.f32 %v10567, %v11557
    %v11559 = vpop.f32.mrb[0].mxu0
    %11560 = vmatprep.mubr.bf16.mxu0 0
    %11561 = vmatmul.mubr.bf16.gmra.mrb[0].mxu0 %v11496
    %v11562 = vpop.f32.mrb[0].mxu0
    %v11563 = vadd.f32 %v10568, %v11562
    %v11564 = vpop.f32.mrb[0].mxu0
    %v11565 = vpop.f32.mrb[0].mxu0
    %v11566 = vadd.f32 %v10569, %v11565
    %v11567 = vpop.f32.mrb[0].mxu0
    %11568 = vmatprep.mubr.bf16.mxu0 0
    %11569 = vmatmul.mubr.bf16.gmra.mrb[0].mxu0 %v11499
    %v11570 = vpop.f32.mrb[0].mxu0
    %v11571 = vadd.f32 %v10570, %v11570
    %v11572 = vpop.f32.mrb[0].mxu0
    %v11573 = vpop.f32.mrb[0].mxu0
    %v11574 = vadd.f32 %v10571, %v11573
    %v11575 = vpop.f32.mrb[0].mxu0
    %11576 = vmatprep.mubr.bf16.mxu0 0
    %11577 = vmatmul.mubr.bf16.gmra.mrb[0].mxu0 %v11502
    %v11578 = vpop.f32.mrb[0].mxu0
    %v11579 = vadd.f32 %v10572, %v11578
    %v11580 = vpop.f32.mrb[0].mxu0
    %v11581 = vpop.f32.mrb[0].mxu0
    %v11582 = vadd.f32 %v10573, %v11581
    %v11583 = vpop.f32.mrb[0].mxu0
    %11584 = vdwg.mxu0
    %11589 = vrot.lane.b32.xlu0 %v11539, 3
    %v11590 = vpop.permute.xlu0 %11589
    %11591 = vrot.lane.b32.xlu0 %v11542, 3
    %v11592 = vpop.permute.xlu0 %11591
    %11593 = vrot.lane.b32.xlu0 %v11547, 3
    %v11594 = vpop.permute.xlu0 %11593
    %11595 = vrot.lane.b32.xlu0 %v11550, 3
    %v11596 = vpop.permute.xlu0 %11595
    %v11601 = vadd.f32 %v10550, %v11590
    %v11602 = vadd.f32 %v10551, %v11592
    %v11603 = vadd.f32 %v10552, %v11594
    %v11604 = vadd.f32 %v10553, %v11596
    %v11605 = vxor.u32 %v11601, 2147483648
    %v11606 = vxor.u32 %v11602, 2147483648
    %v11607 = vxor.u32 %v11603, 2147483648
    %v11608 = vxor.u32 %v11604, 2147483648
    %v11609 = vmul.f32 %v11605, 1.442695
    %v11610 = vpow.pop %v11609
    %v11611 = vmul.f32 %v11606, 1.442695
    %v11612 = vpow.pop %v11611
    %v11613 = vmul.f32 %v11607, 1.442695
    %v11614 = vpow.pop %v11613
    %v11615 = vmul.f32 %v11608, 1.442695
    %v11616 = vpow.pop %v11615
    %v11617 = vadd.f32 %v11610, 1.0
    %v11618 = vadd.f32 %v11612, 1.0
    %v11619 = vadd.f32 %v11614, 1.0
    %v11620 = vadd.f32 %v11616, 1.0
    %v11621 = vrcp.pop %v11617
    %v11622 = vmul.f32 1.0, %v11621
    %v11623 = vrcp.pop %v11618
    %v11624 = vmul.f32 1.0, %v11623
    %v11625 = vrcp.pop %v11619
    %v11626 = vmul.f32 1.0, %v11625
    %v11627 = vrcp.pop %v11620
    %v11628 = vmul.f32 1.0, %v11627
    %11633 = vrot.lane.b32.xlu0 %v11555, 3
    %v11634 = vpop.permute.xlu0 %11633
    %11635 = vrot.lane.b32.xlu0 %v11558, 3
    %v11636 = vpop.permute.xlu0 %11635
    %11637 = vrot.lane.b32.xlu0 %v11563, 3
    %v11638 = vpop.permute.xlu0 %11637
    %11639 = vrot.lane.b32.xlu0 %v11566, 3
    %v11640 = vpop.permute.xlu0 %11639
    %v11645 = vadd.f32 %v10554, %v11634
    %v11646 = vadd.f32 %v10555, %v11636
    %v11647 = vadd.f32 %v10556, %v11638
    %v11648 = vadd.f32 %v10557, %v11640
    %v11649 = vxor.u32 %v11645, 2147483648
    %v11650 = vxor.u32 %v11646, 2147483648
    %v11651 = vxor.u32 %v11647, 2147483648
    %v11652 = vxor.u32 %v11648, 2147483648
    %v11653 = vmul.f32 %v11649, 1.442695
    %v11654 = vpow.pop %v11653
    %v11655 = vmul.f32 %v11650, 1.442695
    %v11656 = vpow.pop %v11655
    %v11657 = vmul.f32 %v11651, 1.442695
    %v11658 = vpow.pop %v11657
    %v11659 = vmul.f32 %v11652, 1.442695
    %v11660 = vpow.pop %v11659
    %v11661 = vadd.f32 %v11654, 1.0
    %v11662 = vadd.f32 %v11656, 1.0
    %v11663 = vadd.f32 %v11658, 1.0
    %v11664 = vadd.f32 %v11660, 1.0
    %v11665 = vrcp.pop %v11661
    %v11666 = vmul.f32 1.0, %v11665
    %v11667 = vrcp.pop %v11662
    %v11668 = vmul.f32 1.0, %v11667
    %v11669 = vrcp.pop %v11663
    %v11670 = vmul.f32 1.0, %v11669
    %v11671 = vrcp.pop %v11664
    %v11672 = vmul.f32 1.0, %v11671
    %11677 = vrot.lane.b32.xlu0 %v11571, 3
    %v11678 = vpop.permute.xlu0 %11677
    %11679 = vrot.lane.b32.xlu0 %v11574, 3
    %v11680 = vpop.permute.xlu0 %11679
    %11681 = vrot.lane.b32.xlu0 %v11579, 3
    %v11682 = vpop.permute.xlu0 %11681
    %11683 = vrot.lane.b32.xlu0 %v11582, 3
    %v11684 = vpop.permute.xlu0 %11683
    %v11689 = vmul.f32 %v11622, %v11678
    %v11690 = vmul.f32 %v11624, %v11680
    %v11691 = vmul.f32 %v11626, %v11682
    %v11692 = vmul.f32 %v11628, %v11684
    %v11693 = vadd.f32 %v10558, %v11689
    %v11694 = vadd.f32 %v10559, %v11690
    %v11695 = vadd.f32 %v10560, %v11691
    %v11696 = vadd.f32 %v10561, %v11692
    %v11697 = vtanh.pop %v11693
    %v11698 = vtanh.pop %v11694
    %v11699 = vtanh.pop %v11695
    %v11700 = vtanh.pop %v11696
    %v11701 = vsub.f32 1.0, %v11666
    %v11702 = vsub.f32 1.0, %v11668
    %v11703 = vsub.f32 1.0, %v11670
    %v11704 = vsub.f32 1.0, %v11672
    %v11705 = vmul.f32 %v11701, %v11697
    %v11706 = vmul.f32 %v11702, %v11698
    %v11707 = vmul.f32 %v11703, %v11699
    %v11708 = vmul.f32 %v11704, %v11700
    %11713 = vrot.lane.b32.xlu0 %v11425, 1
    %v11714 = vpop.permute.xlu0 %11713
    %11715 = vrot.lane.b32.xlu0 %v11426, 1
    %v11716 = vpop.permute.xlu0 %11715
    %11717 = vrot.lane.b32.xlu0 %v11427, 1
    %v11718 = vpop.permute.xlu0 %11717
    %11719 = vrot.lane.b32.xlu0 %v11428, 1
    %v11720 = vpop.permute.xlu0 %11719
    %v11725 = vmul.f32 %v11666, %v11714
    %v11726 = vmul.f32 %v11668, %v11716
    %v11727 = vmul.f32 %v11670, %v11718
    %v11728 = vmul.f32 %v11672, %v11720
    %v11729 = vadd.f32 %v11705, %v11725
    %v11730 = vadd.f32 %v11706, %v11726
    %v11731 = vadd.f32 %v11707, %v11727
    %v11732 = vadd.f32 %v11708, %v11728
    %vm11733 = vcmask 31768
    %11734 = vst.msk [vmem:[#allocation2] sm:$0xff] %vm11733, %v11729
    %11735 = vst.msk [vmem:[#allocation2 + $0x8] sm:$0xff] %vm11733, %v11730
    %11736 = vst.msk [vmem:[#allocation2 + $0x10] sm:$0xff] %vm11733, %v11731
    %11737 = vst.msk [vmem:[#allocation2 + $0x18] sm:$0xff] %vm11733, %v11732
    %11742 = vrot.lane.b32.xlu0 %v11729, 126
    %v11743 = vpop.permute.xlu0 %11742
    %11744 = vrot.lane.b32.xlu0 %v11730, 126
    %v11745 = vpop.permute.xlu0 %11744
    %11746 = vrot.lane.b32.xlu0 %v11731, 126
    %v11747 = vpop.permute.xlu0 %11746
    %11748 = vrot.lane.b32.xlu0 %v11732, 126
    %v11749 = vpop.permute.xlu0 %11748
    %11754 = vst.msk [vmem:[%s21] sm:$0xff] %vm11101, %v11743
    %11755 = vst.msk [vmem:[%s21 + $0x8] sm:$0xff] %vm11101, %v11745
    %11756 = vst.msk [vmem:[%s21 + $0x10] sm:$0xff] %vm11101, %v11747
    %11757 = vst.msk [vmem:[%s21 + $0x18] sm:$0xff] %vm11101, %v11749
    %v11758 = vld [vmem:[%s17] sm:$0x3]
    %v11759 = vld [vmem:[#allocation2] sm:$0xff]
    %v11760 = vld [vmem:[#allocation2 + $0x8] sm:$0xff]
    %v11761 = vld [vmem:[#allocation2 + $0x10] sm:$0xff]
    %v11762 = vld [vmem:[#allocation2 + $0x18] sm:$0xff]
    %v11763 = vpack.c.bf16 %v11760, %v11759
    %v11764 = vpack.c.bf16 %v11762, %v11761
    %v11765 = vld [vmem:[%s18] sm:$0x7]
    %11767 = vset.pattern.permute.xlu0 0
    %11768 = vperm.xlu0 %11767, %v11765
    %v11769 = vpop.permute.xlu0 %11768
    %v11772 = vsel %vm5755, %v11758, 0
    %11774 = vmatprep.subr.bf16.mxu0 0
    %11775 = vmatpush1.bf16.msra.mxu0 %v11763
    %11776 = vmatprep.subr.bf16.mxu0 0
    %11777 = vmatpush1.bf16.msra.mxu0 %v11764
    %11778 = vmatprep.subr.bf16.mxu0 0
    %11779 = vmatpush1.bf16.msra.mxu0 0
    %11780 = vmatprep.subr.bf16.mxu0 0
    %11781 = vmatpush1.bf16.msra.mxu0 0
    %11782 = vmatprep.subr.bf16.mxu0 0
    %11783 = vmatpush1.bf16.msra.mxu0 0
    %11784 = vmatprep.subr.bf16.mxu0 0
    %11785 = vmatpush1.bf16.msra.mxu0 0
    %11786 = vmatprep.subr.bf16.mxu0 0
    %11787 = vmatpush1.bf16.msra.mxu0 0
    %11788 = vmatprep.subr.bf16.mxu0 0
    %11789 = vmatpush1.bf16.msra.mxu0 0
    %11790 = vmatprep.subr.bf16.mxu0 0
    %11791 = vmatpush1.bf16.msra.mxu0 0
    %11792 = vmatprep.subr.bf16.mxu0 0
    %11793 = vmatpush1.bf16.msra.mxu0 0
    %11794 = vmatprep.subr.bf16.mxu0 0
    %11795 = vmatpush1.bf16.msra.mxu0 0
    %11796 = vmatprep.subr.bf16.mxu0 0
    %11797 = vmatpush1.bf16.msra.mxu0 0
    %11798 = vmatprep.subr.bf16.mxu0 0
    %11799 = vmatpush1.bf16.msra.mxu0 0
    %11800 = vmatprep.subr.bf16.mxu0 0
    %11801 = vmatpush1.bf16.msra.mxu0 0
    %11802 = vmatprep.subr.bf16.mxu0 0
    %11803 = vmatpush1.bf16.msra.mxu0 0
    %11804 = vmatprep.subr.bf16.mxu0 0
    %11805 = vmatpush1.bf16.msra.mxu0 0
    %11806 = vmatprep.mubr.bf16.mxu0 0
    %11807 = vmatmul.mubr.bf16.gmra.mrb[0].mxu0 %v11772
    %v11808 = vpop.f32.mrb[0].mxu0
    %v11809 = vadd.f32 %v11769, %v11808
    %v11810 = vpop.f32.mrb[0].mxu0
    %v11811 = vpop.f32.mrb[0].mxu0
    %v11812 = vpop.f32.mrb[0].mxu0
    %11813 = vdwg.mxu0
    %vm11814 = vcmask 26624
    %11815 = vst.msk [vmem:[%s19] sm:$0x7] %vm11814, %v11809
    %v11817 = vrot.slane %v11809, 7
    %vm11819 = vcmp.gt.f32.partialorder %v11809, %v11817
    %v11820 = vsel %vm11819, %v11809, %v11817
    %v11821 = vsel %vm11819, 1, 0
    %v11823 = vrot.slane %v11820, 7
    %vm11825 = vcmp.gt.f32.partialorder %v11809, %v11823
    %v11826 = vrot.slane %v11821, 7
    %v11827 = vsel %vm11825, 2, %v11826
    %v11828 = vadd.s32 %v11827, 1
    %vm11829 = vcmask 26626
    %11830 = vst.msk [vmem:[#allocation3 - $0x2] sm:$0x4] %vm11829, %v11828
    // Predicated region
    $region78: #{model1_forward.1} parent=1 // pred_check
      _
    $region79: #{model1_forward.1} parent=1 // pred_check_branch
      %11832 = sbr.rel (0) target = $region81
    $region80: #{model1_forward.1} parent=1 // pred_region
      _
    $region81: #{model1_forward.1} parent=1 // pred_fallthru
      _
    // Predicated region
    $region82: #{model1_forward.1} parent=1 // pred_check
      _
    $region83: #{model1_forward.1} parent=1 // pred_check_branch
      %11834 = sbr.rel (0) target = $region85
    $region84: #{model1_forward.1} parent=1 // pred_region
      %s11836 = ssub.s32 16, 16
      %11837 = vsyncadd [#allocation4], %s11836
      %s11839 = sshll.u32 [#allocation3], 4
      %s11840 = int_to_ptr.vmem [resolvable:$true] %s11839
      %11842 = dma.vmem_to_hbm [thread:$0]  %s11840, 16, %s20, [#allocation4]
    $region85: #{model1_forward.1} parent=1 // pred_fallthru
      _
    // Predicated region
    $region86: #{model1_forward.1} parent=1 // pred_check
      _
    $region87: #{model1_forward.1} parent=1 // pred_check_branch
      %11844 = sbr.rel (0) target = $region89
    $region88: #{model1_forward.1} parent=1 // pred_region
      _
    $region89: #{model1_forward.1} parent=1 // pred_fallthru
      _
    // Predicated region
    $region90: #{model1_forward.1} parent=1 // pred_check
      _
    $region91: #{model1_forward.1} parent=1 // pred_check_branch
      %11846 = sbr.rel (0) target = $region93
    $region92: #{model1_forward.1} parent=1 // pred_region
      _
    $region93: #{model1_forward.1} parent=1 // pred_fallthru
      _
    // Predicated region
    $region94: #{model1_forward.1} parent=1 // pred_check
      _
    $region95: #{model1_forward.1} parent=1 // pred_check_branch
      %11848 = sbr.rel (0) target = $region97
    $region96: #{model1_forward.1} parent=1 // pred_region
      %11849 = dma.done [#allocation4], 16
    $region97: #{model1_forward.1} parent=1 // pred_fallthru
      _
    // Predicated region
    $region98: #{model1_forward.1} parent=1 // pred_check
      _
    $region99: #{model1_forward.1} parent=1 // pred_check_branch
      %11851 = sbr.rel (0) target = $region101
    $region100: #{model1_forward.1} parent=1 // pred_region
      _
    $region101: #{model1_forward.1} parent=1 // pred_fallthru
      _
    %11852 = vsyncpa [#allocation4], 1

</llo_original>
